<compile_context>
chip_gen: v7x
topology: tpu7x:2x2x1
jax: 0.10.0
libtpu: 0.0.40
codegen_flags: <defaults>
</compile_context>

<pallas_src>
import jax
import jax.numpy as jnp
import numpy as np
from jax.experimental import pallas as pl
from jax.experimental.pallas import tpu as pltpu

# ---- module constants (from the PyTorch source) -------------------------------
N_EMBED = 384
BLK_SIZE = 32
N_HEAD = 4
HEAD_SIZE = N_EMBED // N_HEAD          # 96
HS_PAD = 128                           # head_size padded to a full vreg lane width
HIDDEN = 4 * N_EMBED                   # 1536
LN_EPS = 1e-5


def _layernorm(z, gamma, beta):
    mu = jnp.mean(z, axis=-1, keepdims=True)
    var = jnp.mean((z - mu) ** 2, axis=-1, keepdims=True)
    return (z - mu) * jax.lax.rsqrt(var + LN_EPS) * gamma + beta


def block_kernel(
    x_ref,                                      # (B, T, C)
    wqkv_ref,                                   # (C, 3*H*HS_PAD)  fused, lane-padded QKV
    wproj_ref, bproj_ref,                       # (H, HS_PAD, C), (1, C)
    w1_ref, b1_ref,                             # (C, 4C), (1, 4C)
    w2_ref, b2_ref,                             # (4C, C), (1, C)
    g1_ref, beta1_ref, g2_ref, beta2_ref,       # (1, C) each
    o_ref,                                      # (B, T, C)
):
    B, T, C = x_ref.shape
    BT = B * T
    # flatten batch into the row (sublane) dim: tile-aligned, no relayout
    x = x_ref[...].reshape(BT, C)

    # one fused QKV matmul for ALL heads: (BT, C) @ (C, 3*H*128)
    qkv = jnp.dot(x, wqkv_ref[...], preferred_element_type=jnp.float32)

    # causal mask, built on-chip
    row = jax.lax.broadcasted_iota(jnp.int32, (T, T), 0)
    col = jax.lax.broadcasted_iota(jnp.int32, (T, T), 1)
    causal = (col <= row)[None]                 # (1, T, T)

    scale = jnp.float32(HEAD_SIZE ** 0.5)       # NB: multiply (as in reference code)

    y = jnp.zeros((BT, C), jnp.float32)
    for h in range(N_HEAD):                     # static unroll over heads
        q = qkv[:, (0 * N_HEAD + h) * HS_PAD:(0 * N_HEAD + h + 1) * HS_PAD].reshape(B, T, HS_PAD)
        k = qkv[:, (1 * N_HEAD + h) * HS_PAD:(1 * N_HEAD + h + 1) * HS_PAD].reshape(B, T, HS_PAD)
        v = qkv[:, (2 * N_HEAD + h) * HS_PAD:(2 * N_HEAD + h + 1) * HS_PAD].reshape(B, T, HS_PAD)

        # q . k^T — contract the head dim directly (no explicit transpose of k)
        logits = jax.lax.dot_general(
            q, k, (((2,), (2,)), ((0,), (0,))),
            preferred_element_type=jnp.float32) * scale            # (B, T, T)
        logits = jnp.where(causal, logits, -jnp.inf)
        logits = logits - jnp.max(logits, axis=-1, keepdims=True)
        e = jnp.exp(logits)
        p = e * pl.reciprocal(jnp.sum(e, axis=-1, keepdims=True), approx=False)
        # dropout(p) -> identity (eval mode)

        ao = jax.lax.dot_general(
            p, v, (((2,), (1,)), ((0,), (0,))),
            preferred_element_type=jnp.float32)                    # (B, T, HS_PAD)

        # accumulate per-head projection: equivalent to concat(heads) @ Wproj
        y = y + jnp.dot(ao.reshape(BT, HS_PAD), wproj_ref[h],
                        preferred_element_type=jnp.float32)

    y = y + bproj_ref[...]
    # dropout(y) -> identity (eval mode)

    x1 = _layernorm(x + y, g1_ref[...], beta1_ref[...])            # (BT, C)

    h1 = jnp.dot(x1, w1_ref[...], preferred_element_type=jnp.float32) + b1_ref[...]
    h1 = jnp.maximum(h1, 0.0)                                      # ReLU
    y2 = jnp.dot(h1, w2_ref[...], preferred_element_type=jnp.float32) + b2_ref[...]
    # dropout(y2) -> identity (eval mode)

    o_ref[...] = _layernorm(x1 + y2, g2_ref[...], beta2_ref[...]).reshape(B, T, C)


# ---------------------------- wrapper-side repacking ----------------------------
def _pack_params(p):
    """Fuse + lane-pad QKV weights (96 -> 128 per head) and split Wproj per head
    so the kernel can accumulate head projections instead of concatenating."""
    pad = HS_PAD - HEAD_SIZE
    wq = jnp.pad(p["wq"], ((0, 0), (0, 0), (0, pad)))      # (H, C, 128)
    wk = jnp.pad(p["wk"], ((0, 0), (0, 0), (0, pad)))
    wv = jnp.pad(p["wv"], ((0, 0), (0, 0), (0, pad)))
    wqkv = jnp.stack([wq, wk, wv], axis=0)                  # (3, H, C, 128)
    wqkv = wqkv.transpose(2, 0, 1, 3).reshape(N_EMBED, 3 * N_HEAD * HS_PAD)

    wproj = p["wproj"].reshape(N_HEAD, HEAD_SIZE, N_EMBED)  # split input rows per head
    wproj = jnp.pad(wproj, ((0, 0), (0, pad), (0, 0)))      # (H, 128, C)
    return wqkv, wproj


def block_forward(x, params):
    """x: (B, T, C) float32.  Whole batch processed in a single grid step."""
    B, T, C = x.shape
    wqkv, wproj = _pack_params(params)

    def full(shape):
        n = len(shape)
        return pl.BlockSpec(shape, lambda i, n=n: (0,) * n)

    in_specs = [
        full((B, T, C)),                         # x
        full(tuple(wqkv.shape)),                 # fused QKV weights
        full(tuple(wproj.shape)), full((1, C)),  # proj
        full((C, HIDDEN)), full((1, HIDDEN)),    # ffn layer 1
        full((HIDDEN, C)), full((1, C)),         # ffn layer 2
        full((1, C)), full((1, C)),              # ln1 gamma/beta
        full((1, C)), full((1, C)),              # ln2 gamma/beta
    ]
    out_spec = full((B, T, C))

    return pl.pallas_call(
        block_kernel,
        out_shape=jax.ShapeDtypeStruct((B, T, C), jnp.float32),
        grid_spec=pltpu.PrefetchScalarGridSpec(
            num_scalar_prefetch=0,
            grid=(1,),                           # one step: weights are DMA'd exactly once
            in_specs=in_specs,
            out_specs=out_spec,
        ),
        compiler_params=pltpu.CompilerParams(
            dimension_semantics=("arbitrary",),
            vmem_limit_bytes=48 * 1024 * 1024,
        ),
    )(
        x, wqkv,
        wproj, params["bproj"],
        params["w1"], params["b1"],
        params["w2"], params["b2"],
        params["g1"], params["beta1"],
        params["g2"], params["beta2"],
    )


# ------------------------- reference (pure JAX, for sanity) ---------------------
def block_reference(x, p):
    HI = jax.lax.Precision.HIGHEST
    outs = []
    T = x.shape[1]
    causal = np.tril(np.ones((T, T), dtype=bool))
    for h in range(N_HEAD):
        q = jnp.einsum("btc,cd->btd", x, p["wq"][h], precision=HI)
        k = jnp.einsum("btc,cd->btd", x, p["wk"][h], precision=HI)
        v = jnp.einsum("btc,cd->btd", x, p["wv"][h], precision=HI)
        w = jnp.einsum("bqd,bkd->bqk", q, k, precision=HI) * (HEAD_SIZE ** 0.5)
        w = jnp.where(causal[None], w, -jnp.inf)
        w = jax.nn.softmax(w, axis=-1)
        outs.append(jnp.einsum("bqk,bkd->bqd", w, v, precision=HI))
    attn = jnp.concatenate(outs, axis=-1)
    y = jnp.einsum("btc,cd->btd", attn, p["wproj"], precision=HI) + p["bproj"][0]

    def ln(z, g, b):
        mu = jnp.mean(z, -1, keepdims=True)
        var = jnp.mean((z - mu) ** 2, -1, keepdims=True)
        return (z - mu) / jnp.sqrt(var + LN_EPS) * g[0] + b[0]

    x1 = ln(x + y, p["g1"], p["beta1"])
    h1 = jnp.maximum(jnp.einsum("btc,ch->bth", x1, p["w1"], precision=HI) + p["b1"][0], 0.0)
    y2 = jnp.einsum("bth,hc->btc", h1, p["w2"], precision=HI) + p["b2"][0]
    return ln(x1 + y2, p["g2"], p["beta2"])


# ------------------------- deterministic parameter init -------------------------
def init_params(key):
    ks = jax.random.split(key, 10)

    def lin_w(k, fan_in, shape):
        bound = 1.0 / np.sqrt(fan_in)
        return jax.random.uniform(k, shape, jnp.float32, -bound, bound)

    return {
        "wq": lin_w(ks[0], N_EMBED, (N_HEAD, N_EMBED, HEAD_SIZE)),
        "wk": lin_w(ks[1], N_EMBED, (N_HEAD, N_EMBED, HEAD_SIZE)),
        "wv": lin_w(ks[2], N_EMBED, (N_HEAD, N_EMBED, HEAD_SIZE)),
        "wproj": lin_w(ks[3], N_EMBED, (N_EMBED, N_EMBED)),
        "bproj": lin_w(ks[4], N_EMBED, (1, N_EMBED)),
        "w1": lin_w(ks[5], N_EMBED, (N_EMBED, HIDDEN)),
        "b1": lin_w(ks[6], N_EMBED, (1, HIDDEN)),
        "w2": lin_w(ks[7], HIDDEN, (HIDDEN, N_EMBED)),
        "b2": lin_w(ks[8], HIDDEN, (1, N_EMBED)),
        "g1": jnp.ones((1, N_EMBED), jnp.float32),
        "beta1": jnp.zeros((1, N_EMBED), jnp.float32),
        "g2": jnp.ones((1, N_EMBED), jnp.float32),
        "beta2": jnp.zeros((1, N_EMBED), jnp.float32),
    }


if __name__ == "__main__":
    key = jax.random.PRNGKey(0)
    kx, kp = jax.random.split(key)

    B, T = 2, BLK_SIZE                      # (2, 32, 384)
    x = jax.random.normal(kx, (B, T, N_EMBED), jnp.float32)
    params = init_params(kp)

    out = block_forward(x, params)
    out = jax.block_until_ready(out)

    assert out.shape == (B, T, N_EMBED), out.shape
    assert bool(jnp.all(jnp.isfinite(out)))

    ref = jax.block_until_ready(block_reference(x, params))
    np.testing.assert_allclose(np.asarray(out), np.asarray(ref), rtol=5e-3, atol=5e-3)

    print("KERNEL_OK")
</pallas_src>

<mosaic_0001>
module attributes {stable_mosaic.version = 11 : i64} {
  func.func @block_kernel(%arg0: i32, %arg1: memref<2x32x384xf32, #tpu.memory_space<vmem>>, %arg2: memref<384x1536xf32, #tpu.memory_space<vmem>>, %arg3: memref<4x128x384xf32, #tpu.memory_space<vmem>>, %arg4: memref<1x384xf32, #tpu.memory_space<vmem>>, %arg5: memref<384x1536xf32, #tpu.memory_space<vmem>>, %arg6: memref<1x1536xf32, #tpu.memory_space<vmem>>, %arg7: memref<1536x384xf32, #tpu.memory_space<vmem>>, %arg8: memref<1x384xf32, #tpu.memory_space<vmem>>, %arg9: memref<1x384xf32, #tpu.memory_space<vmem>>, %arg10: memref<1x384xf32, #tpu.memory_space<vmem>>, %arg11: memref<1x384xf32, #tpu.memory_space<vmem>>, %arg12: memref<1x384xf32, #tpu.memory_space<vmem>>, %arg13: memref<2x32x384xf32, #tpu.memory_space<vmem>>) attributes {dimension_semantics = [#tpu.dimension_semantics<arbitrary>], iteration_bounds = array<i64: 1>, scalar_prefetch = 0 : i64, scratch_operands = 0 : i64, tpu.core_type = #tpu.core_type<tc>, window_params = [{pipeline_mode = #tpu.pipeline_mode<synchronous>, transform_indices = @transform_0, window_bounds = array<i64: 2, 32, 384>}, {pipeline_mode = #tpu.pipeline_mode<synchronous>, transform_indices = @transform_1, window_bounds = array<i64: 384, 1536>}, {pipeline_mode = #tpu.pipeline_mode<synchronous>, transform_indices = @transform_2, window_bounds = array<i64: 4, 128, 384>}, {pipeline_mode = #tpu.pipeline_mode<synchronous>, transform_indices = @transform_3, window_bounds = array<i64: 1, 384>}, {pipeline_mode = #tpu.pipeline_mode<synchronous>, transform_indices = @transform_4, window_bounds = array<i64: 384, 1536>}, {pipeline_mode = #tpu.pipeline_mode<synchronous>, transform_indices = @transform_5, window_bounds = array<i64: 1, 1536>}, {pipeline_mode = #tpu.pipeline_mode<synchronous>, transform_indices = @transform_6, window_bounds = array<i64: 1536, 384>}, {pipeline_mode = #tpu.pipeline_mode<synchronous>, transform_indices = @transform_7, window_bounds = array<i64: 1, 384>}, {pipeline_mode = #tpu.pipeline_mode<synchronous>, transform_indices = @transform_8, window_bounds = array<i64: 1, 384>}, {pipeline_mode = #tpu.pipeline_mode<synchronous>, transform_indices = @transform_9, window_bounds = array<i64: 1, 384>}, {pipeline_mode = #tpu.pipeline_mode<synchronous>, transform_indices = @transform_10, window_bounds = array<i64: 1, 384>}, {pipeline_mode = #tpu.pipeline_mode<synchronous>, transform_indices = @transform_11, window_bounds = array<i64: 1, 384>}, {pipeline_mode = #tpu.pipeline_mode<synchronous>, transform_indices = @transform_12, window_bounds = array<i64: 2, 32, 384>}]} {
    %c0 = arith.constant 0 : index
    %c0_0 = arith.constant 0 : index
    %c0_1 = arith.constant 0 : index
    %0 = vector.load %arg1[%c0, %c0_0, %c0_1] : memref<2x32x384xf32, #tpu.memory_space<vmem>>, vector<2x32x384xf32>
    %1 = vector.shape_cast %0 : vector<2x32x384xf32> to vector<64x384xf32>
    %c0_2 = arith.constant 0 : index
    %c0_3 = arith.constant 0 : index
    %2 = vector.load %arg2[%c0_2, %c0_3] : memref<384x1536xf32, #tpu.memory_space<vmem>>, vector<384x1536xf32>
    %cst = arith.constant dense<0.000000e+00> : vector<64x1536xf32>
    %3 = tpu.matmul %1, %2, %cst {dimension_numbers = #tpu.dot_dimension_numbers<[1], [0], [0], [1], [0, 0, 1, 1], [], []>} : vector<64x384xf32>, vector<384x1536xf32>, vector<64x1536xf32> -> vector<64x1536xf32>
    %4 = tpu.iota {dimensions = array<i32: 0>} : vector<32x32xi32>
    %5 = tpu.iota {dimensions = array<i32: 1>} : vector<32x32xi32>
    %6 = arith.cmpi sle, %5, %4 : vector<32x32xi32>
    %7 = vector.shape_cast %6 : vector<32x32xi1> to vector<1x32x32xi1>
    %cst_4 = arith.constant 0.000000e+00 : f32
    %8 = vector.broadcast %cst_4 : f32 to vector<64x384xf32>
    %9 = vector.extract_strided_slice %3 {offsets = [0, 0], sizes = [64, 128], strides = [1, 1]} : vector<64x1536xf32> to vector<64x128xf32>
    %10 = vector.shape_cast %9 : vector<64x128xf32> to vector<2x32x128xf32>
    %11 = vector.extract_strided_slice %3 {offsets = [0, 512], sizes = [64, 128], strides = [1, 1]} : vector<64x1536xf32> to vector<64x128xf32>
    %12 = vector.shape_cast %11 : vector<64x128xf32> to vector<2x32x128xf32>
    %13 = vector.extract_strided_slice %3 {offsets = [0, 1024], sizes = [64, 128], strides = [1, 1]} : vector<64x1536xf32> to vector<64x128xf32>
    %14 = vector.shape_cast %13 : vector<64x128xf32> to vector<2x32x128xf32>
    %cst_5 = arith.constant dense<0.000000e+00> : vector<2x32x32xf32>
    %15 = tpu.matmul %10, %12, %cst_5 {dimension_numbers = #tpu.dot_dimension_numbers<[2], [2], [1], [1], [0, 0, 0, 1, 1, 1], [0], [0]>} : vector<2x32x128xf32>, vector<2x32x128xf32>, vector<2x32x32xf32> -> vector<2x32x32xf32>
    %cst_6 = arith.constant 9.79795932 : f32
    %16 = vector.broadcast %cst_6 : f32 to vector<2x32x32xf32>
    %17 = arith.mulf %15, %16 : vector<2x32x32xf32>
    %cst_7 = arith.constant 0xFF800000 : f32
    %18 = vector.shape_cast %7 : vector<1x32x32xi1> to vector<1x32x32xi1>
    %19 = vector.broadcast %18 : vector<1x32x32xi1> to vector<2x32x32xi1>
    %20 = vector.broadcast %cst_7 : f32 to vector<2x32x32xf32>
    %21 = arith.select %19, %17, %20 : vector<2x32x32xi1>, vector<2x32x32xf32>
    %cst_8 = arith.constant dense<0xFF800000> : vector<2x32xf32>
    %22 = vector.multi_reduction <maximumf>, %21, %cst_8 [2] : vector<2x32x32xf32> to vector<2x32xf32>
    %23 = vector.shape_cast %22 : vector<2x32xf32> to vector<2x32x1xf32>
    %24 = vector.broadcast %23 : vector<2x32x1xf32> to vector<2x32x32xf32>
    %25 = arith.subf %21, %24 : vector<2x32x32xf32>
    %26 = math.exp %25 : vector<2x32x32xf32>
    %cst_9 = arith.constant dense<0.000000e+00> : vector<2x32xf32>
    %27 = vector.multi_reduction <add>, %26, %cst_9 [2] : vector<2x32x32xf32> to vector<2x32xf32>
    %28 = vector.shape_cast %27 : vector<2x32xf32> to vector<2x32x1xf32>
    %29 = tpu.reciprocal %28 : vector<2x32x1xf32> -> vector<2x32x1xf32>
    %30 = vector.broadcast %29 : vector<2x32x1xf32> to vector<2x32x32xf32>
    %31 = arith.mulf %26, %30 : vector<2x32x32xf32>
    %cst_10 = arith.constant dense<0.000000e+00> : vector<2x32x128xf32>
    %32 = tpu.matmul %31, %14, %cst_10 {dimension_numbers = #tpu.dot_dimension_numbers<[2], [1], [1], [2], [0, 0, 0, 1, 1, 2], [0], [0]>} : vector<2x32x32xf32>, vector<2x32x128xf32>, vector<2x32x128xf32> -> vector<2x32x128xf32>
    %33 = vector.shape_cast %32 : vector<2x32x128xf32> to vector<64x128xf32>
    %c0_11 = arith.constant 0 : index
    %c0_12 = arith.constant 0 : index
    %c0_13 = arith.constant 0 : index
    %34 = vector.load %arg3[%c0_11, %c0_12, %c0_13] : memref<4x128x384xf32, #tpu.memory_space<vmem>>, vector<1x128x384xf32>
    %35 = vector.shape_cast %34 : vector<1x128x384xf32> to vector<128x384xf32>
    %cst_14 = arith.constant dense<0.000000e+00> : vector<64x384xf32>
    %36 = tpu.matmul %33, %35, %cst_14 {dimension_numbers = #tpu.dot_dimension_numbers<[1], [0], [0], [1], [0, 0, 1, 1], [], []>} : vector<64x128xf32>, vector<128x384xf32>, vector<64x384xf32> -> vector<64x384xf32>
    %37 = arith.addf %8, %36 : vector<64x384xf32>
    %38 = vector.extract_strided_slice %3 {offsets = [0, 128], sizes = [64, 128], strides = [1, 1]} : vector<64x1536xf32> to vector<64x128xf32>
    %39 = vector.shape_cast %38 : vector<64x128xf32> to vector<2x32x128xf32>
    %40 = vector.extract_strided_slice %3 {offsets = [0, 640], sizes = [64, 128], strides = [1, 1]} : vector<64x1536xf32> to vector<64x128xf32>
    %41 = vector.shape_cast %40 : vector<64x128xf32> to vector<2x32x128xf32>
    %42 = vector.extract_strided_slice %3 {offsets = [0, 1152], sizes = [64, 128], strides = [1, 1]} : vector<64x1536xf32> to vector<64x128xf32>
    %43 = vector.shape_cast %42 : vector<64x128xf32> to vector<2x32x128xf32>
    %cst_15 = arith.constant dense<0.000000e+00> : vector<2x32x32xf32>
    %44 = tpu.matmul %39, %41, %cst_15 {dimension_numbers = #tpu.dot_dimension_numbers<[2], [2], [1], [1], [0, 0, 0, 1, 1, 1], [0], [0]>} : vector<2x32x128xf32>, vector<2x32x128xf32>, vector<2x32x32xf32> -> vector<2x32x32xf32>
    %cst_16 = arith.constant 9.79795932 : f32
    %45 = vector.broadcast %cst_16 : f32 to vector<2x32x32xf32>
    %46 = arith.mulf %44, %45 : vector<2x32x32xf32>
    %cst_17 = arith.constant 0xFF800000 : f32
    %47 = vector.shape_cast %7 : vector<1x32x32xi1> to vector<1x32x32xi1>
    %48 = vector.broadcast %47 : vector<1x32x32xi1> to vector<2x32x32xi1>
    %49 = vector.broadcast %cst_17 : f32 to vector<2x32x32xf32>
    %50 = arith.select %48, %46, %49 : vector<2x32x32xi1>, vector<2x32x32xf32>
    %cst_18 = arith.constant dense<0xFF800000> : vector<2x32xf32>
    %51 = vector.multi_reduction <maximumf>, %50, %cst_18 [2] : vector<2x32x32xf32> to vector<2x32xf32>
    %52 = vector.shape_cast %51 : vector<2x32xf32> to vector<2x32x1xf32>
    %53 = vector.broadcast %52 : vector<2x32x1xf32> to vector<2x32x32xf32>
    %54 = arith.subf %50, %53 : vector<2x32x32xf32>
    %55 = math.exp %54 : vector<2x32x32xf32>
    %cst_19 = arith.constant dense<0.000000e+00> : vector<2x32xf32>
    %56 = vector.multi_reduction <add>, %55, %cst_19 [2] : vector<2x32x32xf32> to vector<2x32xf32>
    %57 = vector.shape_cast %56 : vector<2x32xf32> to vector<2x32x1xf32>
    %58 = tpu.reciprocal %57 : vector<2x32x1xf32> -> vector<2x32x1xf32>
    %59 = vector.broadcast %58 : vector<2x32x1xf32> to vector<2x32x32xf32>
    %60 = arith.mulf %55, %59 : vector<2x32x32xf32>
    %cst_20 = arith.constant dense<0.000000e+00> : vector<2x32x128xf32>
    %61 = tpu.matmul %60, %43, %cst_20 {dimension_numbers = #tpu.dot_dimension_numbers<[2], [1], [1], [2], [0, 0, 0, 1, 1, 2], [0], [0]>} : vector<2x32x32xf32>, vector<2x32x128xf32>, vector<2x32x128xf32> -> vector<2x32x128xf32>
    %62 = vector.shape_cast %61 : vector<2x32x128xf32> to vector<64x128xf32>
    %c1 = arith.constant 1 : index
    %c0_21 = arith.constant 0 : index
    %c0_22 = arith.constant 0 : index
    %63 = vector.load %arg3[%c1, %c0_21, %c0_22] : memref<4x128x384xf32, #tpu.memory_space<vmem>>, vector<1x128x384xf32>
    %64 = vector.shape_cast %63 : vector<1x128x384xf32> to vector<128x384xf32>
    %cst_23 = arith.constant dense<0.000000e+00> : vector<64x384xf32>
    %65 = tpu.matmul %62, %64, %cst_23 {dimension_numbers = #tpu.dot_dimension_numbers<[1], [0], [0], [1], [0, 0, 1, 1], [], []>} : vector<64x128xf32>, vector<128x384xf32>, vector<64x384xf32> -> vector<64x384xf32>
    %66 = arith.addf %37, %65 : vector<64x384xf32>
    %67 = vector.extract_strided_slice %3 {offsets = [0, 256], sizes = [64, 128], strides = [1, 1]} : vector<64x1536xf32> to vector<64x128xf32>
    %68 = vector.shape_cast %67 : vector<64x128xf32> to vector<2x32x128xf32>
    %69 = vector.extract_strided_slice %3 {offsets = [0, 768], sizes = [64, 128], strides = [1, 1]} : vector<64x1536xf32> to vector<64x128xf32>
    %70 = vector.shape_cast %69 : vector<64x128xf32> to vector<2x32x128xf32>
    %71 = vector.extract_strided_slice %3 {offsets = [0, 1280], sizes = [64, 128], strides = [1, 1]} : vector<64x1536xf32> to vector<64x128xf32>
    %72 = vector.shape_cast %71 : vector<64x128xf32> to vector<2x32x128xf32>
    %cst_24 = arith.constant dense<0.000000e+00> : vector<2x32x32xf32>
    %73 = tpu.matmul %68, %70, %cst_24 {dimension_numbers = #tpu.dot_dimension_numbers<[2], [2], [1], [1], [0, 0, 0, 1, 1, 1], [0], [0]>} : vector<2x32x128xf32>, vector<2x32x128xf32>, vector<2x32x32xf32> -> vector<2x32x32xf32>
    %cst_25 = arith.constant 9.79795932 : f32
    %74 = vector.broadcast %cst_25 : f32 to vector<2x32x32xf32>
    %75 = arith.mulf %73, %74 : vector<2x32x32xf32>
    %cst_26 = arith.constant 0xFF800000 : f32
    %76 = vector.shape_cast %7 : vector<1x32x32xi1> to vector<1x32x32xi1>
    %77 = vector.broadcast %76 : vector<1x32x32xi1> to vector<2x32x32xi1>
    %78 = vector.broadcast %cst_26 : f32 to vector<2x32x32xf32>
    %79 = arith.select %77, %75, %78 : vector<2x32x32xi1>, vector<2x32x32xf32>
    %cst_27 = arith.constant dense<0xFF800000> : vector<2x32xf32>
    %80 = vector.multi_reduction <maximumf>, %79, %cst_27 [2] : vector<2x32x32xf32> to vector<2x32xf32>
    %81 = vector.shape_cast %80 : vector<2x32xf32> to vector<2x32x1xf32>
    %82 = vector.broadcast %81 : vector<2x32x1xf32> to vector<2x32x32xf32>
    %83 = arith.subf %79, %82 : vector<2x32x32xf32>
    %84 = math.exp %83 : vector<2x32x32xf32>
    %cst_28 = arith.constant dense<0.000000e+00> : vector<2x32xf32>
    %85 = vector.multi_reduction <add>, %84, %cst_28 [2] : vector<2x32x32xf32> to vector<2x32xf32>
    %86 = vector.shape_cast %85 : vector<2x32xf32> to vector<2x32x1xf32>
    %87 = tpu.reciprocal %86 : vector<2x32x1xf32> -> vector<2x32x1xf32>
    %88 = vector.broadcast %87 : vector<2x32x1xf32> to vector<2x32x32xf32>
    %89 = arith.mulf %84, %88 : vector<2x32x32xf32>
    %cst_29 = arith.constant dense<0.000000e+00> : vector<2x32x128xf32>
    %90 = tpu.matmul %89, %72, %cst_29 {dimension_numbers = #tpu.dot_dimension_numbers<[2], [1], [1], [2], [0, 0, 0, 1, 1, 2], [0], [0]>} : vector<2x32x32xf32>, vector<2x32x128xf32>, vector<2x32x128xf32> -> vector<2x32x128xf32>
    %91 = vector.shape_cast %90 : vector<2x32x128xf32> to vector<64x128xf32>
    %c2 = arith.constant 2 : index
    %c0_30 = arith.constant 0 : index
    %c0_31 = arith.constant 0 : index
    %92 = vector.load %arg3[%c2, %c0_30, %c0_31] : memref<4x128x384xf32, #tpu.memory_space<vmem>>, vector<1x128x384xf32>
    %93 = vector.shape_cast %92 : vector<1x128x384xf32> to vector<128x384xf32>
    %cst_32 = arith.constant dense<0.000000e+00> : vector<64x384xf32>
    %94 = tpu.matmul %91, %93, %cst_32 {dimension_numbers = #tpu.dot_dimension_numbers<[1], [0], [0], [1], [0, 0, 1, 1], [], []>} : vector<64x128xf32>, vector<128x384xf32>, vector<64x384xf32> -> vector<64x384xf32>
    %95 = arith.addf %66, %94 : vector<64x384xf32>
    %96 = vector.extract_strided_slice %3 {offsets = [0, 384], sizes = [64, 128], strides = [1, 1]} : vector<64x1536xf32> to vector<64x128xf32>
    %97 = vector.shape_cast %96 : vector<64x128xf32> to vector<2x32x128xf32>
    %98 = vector.extract_strided_slice %3 {offsets = [0, 896], sizes = [64, 128], strides = [1, 1]} : vector<64x1536xf32> to vector<64x128xf32>
    %99 = vector.shape_cast %98 : vector<64x128xf32> to vector<2x32x128xf32>
    %100 = vector.extract_strided_slice %3 {offsets = [0, 1408], sizes = [64, 128], strides = [1, 1]} : vector<64x1536xf32> to vector<64x128xf32>
    %101 = vector.shape_cast %100 : vector<64x128xf32> to vector<2x32x128xf32>
    %cst_33 = arith.constant dense<0.000000e+00> : vector<2x32x32xf32>
    %102 = tpu.matmul %97, %99, %cst_33 {dimension_numbers = #tpu.dot_dimension_numbers<[2], [2], [1], [1], [0, 0, 0, 1, 1, 1], [0], [0]>} : vector<2x32x128xf32>, vector<2x32x128xf32>, vector<2x32x32xf32> -> vector<2x32x32xf32>
    %cst_34 = arith.constant 9.79795932 : f32
    %103 = vector.broadcast %cst_34 : f32 to vector<2x32x32xf32>
    %104 = arith.mulf %102, %103 : vector<2x32x32xf32>
    %cst_35 = arith.constant 0xFF800000 : f32
    %105 = vector.shape_cast %7 : vector<1x32x32xi1> to vector<1x32x32xi1>
    %106 = vector.broadcast %105 : vector<1x32x32xi1> to vector<2x32x32xi1>
    %107 = vector.broadcast %cst_35 : f32 to vector<2x32x32xf32>
    %108 = arith.select %106, %104, %107 : vector<2x32x32xi1>, vector<2x32x32xf32>
    %cst_36 = arith.constant dense<0xFF800000> : vector<2x32xf32>
    %109 = vector.multi_reduction <maximumf>, %108, %cst_36 [2] : vector<2x32x32xf32> to vector<2x32xf32>
    %110 = vector.shape_cast %109 : vector<2x32xf32> to vector<2x32x1xf32>
    %111 = vector.broadcast %110 : vector<2x32x1xf32> to vector<2x32x32xf32>
    %112 = arith.subf %108, %111 : vector<2x32x32xf32>
    %113 = math.exp %112 : vector<2x32x32xf32>
    %cst_37 = arith.constant dense<0.000000e+00> : vector<2x32xf32>
    %114 = vector.multi_reduction <add>, %113, %cst_37 [2] : vector<2x32x32xf32> to vector<2x32xf32>
    %115 = vector.shape_cast %114 : vector<2x32xf32> to vector<2x32x1xf32>
    %116 = tpu.reciprocal %115 : vector<2x32x1xf32> -> vector<2x32x1xf32>
    %117 = vector.broadcast %116 : vector<2x32x1xf32> to vector<2x32x32xf32>
    %118 = arith.mulf %113, %117 : vector<2x32x32xf32>
    %cst_38 = arith.constant dense<0.000000e+00> : vector<2x32x128xf32>
    %119 = tpu.matmul %118, %101, %cst_38 {dimension_numbers = #tpu.dot_dimension_numbers<[2], [1], [1], [2], [0, 0, 0, 1, 1, 2], [0], [0]>} : vector<2x32x32xf32>, vector<2x32x128xf32>, vector<2x32x128xf32> -> vector<2x32x128xf32>
    %120 = vector.shape_cast %119 : vector<2x32x128xf32> to vector<64x128xf32>
    %c3 = arith.constant 3 : index
    %c0_39 = arith.constant 0 : index
    %c0_40 = arith.constant 0 : index
    %121 = vector.load %arg3[%c3, %c0_39, %c0_40] : memref<4x128x384xf32, #tpu.memory_space<vmem>>, vector<1x128x384xf32>
    %122 = vector.shape_cast %121 : vector<1x128x384xf32> to vector<128x384xf32>
    %cst_41 = arith.constant dense<0.000000e+00> : vector<64x384xf32>
    %123 = tpu.matmul %120, %122, %cst_41 {dimension_numbers = #tpu.dot_dimension_numbers<[1], [0], [0], [1], [0, 0, 1, 1], [], []>} : vector<64x128xf32>, vector<128x384xf32>, vector<64x384xf32> -> vector<64x384xf32>
    %124 = arith.addf %95, %123 : vector<64x384xf32>
    %c0_42 = arith.constant 0 : index
    %c0_43 = arith.constant 0 : index
    %125 = vector.load %arg4[%c0_42, %c0_43] : memref<1x384xf32, #tpu.memory_space<vmem>>, vector<1x384xf32>
    %126 = vector.broadcast %125 : vector<1x384xf32> to vector<64x384xf32>
    %127 = arith.addf %124, %126 : vector<64x384xf32>
    %128 = arith.addf %1, %127 : vector<64x384xf32>
    %c0_44 = arith.constant 0 : index
    %c0_45 = arith.constant 0 : index
    %129 = vector.load %arg9[%c0_44, %c0_45] : memref<1x384xf32, #tpu.memory_space<vmem>>, vector<1x384xf32>
    %c0_46 = arith.constant 0 : index
    %c0_47 = arith.constant 0 : index
    %130 = vector.load %arg10[%c0_46, %c0_47] : memref<1x384xf32, #tpu.memory_space<vmem>>, vector<1x384xf32>
    %cst_48 = arith.constant dense<0.000000e+00> : vector<64xf32>
    %131 = vector.multi_reduction <add>, %128, %cst_48 [1] : vector<64x384xf32> to vector<64xf32>
    %132 = vector.shape_cast %131 : vector<64xf32> to vector<64x1xf32>
    %cst_49 = arith.constant 3.840000e+02 : f32
    %133 = vector.broadcast %cst_49 : f32 to vector<64x1xf32>
    %134 = arith.divf %132, %133 : vector<64x1xf32>
    %135 = vector.broadcast %134 : vector<64x1xf32> to vector<64x384xf32>
    %136 = arith.subf %128, %135 : vector<64x384xf32>
    %137 = arith.mulf %136, %136 : vector<64x384xf32>
    %cst_50 = arith.constant dense<0.000000e+00> : vector<64xf32>
    %138 = vector.multi_reduction <add>, %137, %cst_50 [1] : vector<64x384xf32> to vector<64xf32>
    %139 = vector.shape_cast %138 : vector<64xf32> to vector<64x1xf32>
    %cst_51 = arith.constant 3.840000e+02 : f32
    %140 = vector.broadcast %cst_51 : f32 to vector<64x1xf32>
    %141 = arith.divf %139, %140 : vector<64x1xf32>
    %142 = vector.broadcast %134 : vector<64x1xf32> to vector<64x384xf32>
    %143 = arith.subf %128, %142 : vector<64x384xf32>
    %cst_52 = arith.constant 9.99999974E-6 : f32
    %144 = vector.broadcast %cst_52 : f32 to vector<64x1xf32>
    %145 = arith.addf %141, %144 : vector<64x1xf32>
    %146 = math.rsqrt %145 : vector<64x1xf32>
    %147 = vector.broadcast %146 : vector<64x1xf32> to vector<64x384xf32>
    %148 = arith.mulf %143, %147 : vector<64x384xf32>
    %149 = vector.broadcast %129 : vector<1x384xf32> to vector<64x384xf32>
    %150 = arith.mulf %148, %149 : vector<64x384xf32>
    %151 = vector.broadcast %130 : vector<1x384xf32> to vector<64x384xf32>
    %152 = arith.addf %150, %151 : vector<64x384xf32>
    %c0_53 = arith.constant 0 : index
    %c0_54 = arith.constant 0 : index
    %153 = vector.load %arg5[%c0_53, %c0_54] : memref<384x1536xf32, #tpu.memory_space<vmem>>, vector<384x1536xf32>
    %cst_55 = arith.constant dense<0.000000e+00> : vector<64x1536xf32>
    %154 = tpu.matmul %152, %153, %cst_55 {dimension_numbers = #tpu.dot_dimension_numbers<[1], [0], [0], [1], [0, 0, 1, 1], [], []>} : vector<64x384xf32>, vector<384x1536xf32>, vector<64x1536xf32> -> vector<64x1536xf32>
    %c0_56 = arith.constant 0 : index
    %c0_57 = arith.constant 0 : index
    %155 = vector.load %arg6[%c0_56, %c0_57] : memref<1x1536xf32, #tpu.memory_space<vmem>>, vector<1x1536xf32>
    %156 = vector.broadcast %155 : vector<1x1536xf32> to vector<64x1536xf32>
    %157 = arith.addf %154, %156 : vector<64x1536xf32>
    %cst_58 = arith.constant 0.000000e+00 : f32
    %158 = vector.broadcast %cst_58 : f32 to vector<64x1536xf32>
    %159 = arith.maximumf %157, %158 : vector<64x1536xf32>
    %c0_59 = arith.constant 0 : index
    %c0_60 = arith.constant 0 : index
    %160 = vector.load %arg7[%c0_59, %c0_60] : memref<1536x384xf32, #tpu.memory_space<vmem>>, vector<1536x384xf32>
    %cst_61 = arith.constant dense<0.000000e+00> : vector<64x384xf32>
    %161 = tpu.matmul %159, %160, %cst_61 {dimension_numbers = #tpu.dot_dimension_numbers<[1], [0], [0], [1], [0, 0, 1, 1], [], []>} : vector<64x1536xf32>, vector<1536x384xf32>, vector<64x384xf32> -> vector<64x384xf32>
    %c0_62 = arith.constant 0 : index
    %c0_63 = arith.constant 0 : index
    %162 = vector.load %arg8[%c0_62, %c0_63] : memref<1x384xf32, #tpu.memory_space<vmem>>, vector<1x384xf32>
    %163 = vector.broadcast %162 : vector<1x384xf32> to vector<64x384xf32>
    %164 = arith.addf %161, %163 : vector<64x384xf32>
    %165 = arith.addf %152, %164 : vector<64x384xf32>
    %c0_64 = arith.constant 0 : index
    %c0_65 = arith.constant 0 : index
    %166 = vector.load %arg11[%c0_64, %c0_65] : memref<1x384xf32, #tpu.memory_space<vmem>>, vector<1x384xf32>
    %c0_66 = arith.constant 0 : index
    %c0_67 = arith.constant 0 : index
    %167 = vector.load %arg12[%c0_66, %c0_67] : memref<1x384xf32, #tpu.memory_space<vmem>>, vector<1x384xf32>
    %cst_68 = arith.constant dense<0.000000e+00> : vector<64xf32>
    %168 = vector.multi_reduction <add>, %165, %cst_68 [1] : vector<64x384xf32> to vector<64xf32>
    %169 = vector.shape_cast %168 : vector<64xf32> to vector<64x1xf32>
    %cst_69 = arith.constant 3.840000e+02 : f32
    %170 = vector.broadcast %cst_69 : f32 to vector<64x1xf32>
    %171 = arith.divf %169, %170 : vector<64x1xf32>
    %172 = vector.broadcast %171 : vector<64x1xf32> to vector<64x384xf32>
    %173 = arith.subf %165, %172 : vector<64x384xf32>
    %174 = arith.mulf %173, %173 : vector<64x384xf32>
    %cst_70 = arith.constant dense<0.000000e+00> : vector<64xf32>
    %175 = vector.multi_reduction <add>, %174, %cst_70 [1] : vector<64x384xf32> to vector<64xf32>
    %176 = vector.shape_cast %175 : vector<64xf32> to vector<64x1xf32>
    %cst_71 = arith.constant 3.840000e+02 : f32
    %177 = vector.broadcast %cst_71 : f32 to vector<64x1xf32>
    %178 = arith.divf %176, %177 : vector<64x1xf32>
    %179 = vector.broadcast %171 : vector<64x1xf32> to vector<64x384xf32>
    %180 = arith.subf %165, %179 : vector<64x384xf32>
    %cst_72 = arith.constant 9.99999974E-6 : f32
    %181 = vector.broadcast %cst_72 : f32 to vector<64x1xf32>
    %182 = arith.addf %178, %181 : vector<64x1xf32>
    %183 = math.rsqrt %182 : vector<64x1xf32>
    %184 = vector.broadcast %183 : vector<64x1xf32> to vector<64x384xf32>
    %185 = arith.mulf %180, %184 : vector<64x384xf32>
    %186 = vector.broadcast %166 : vector<1x384xf32> to vector<64x384xf32>
    %187 = arith.mulf %185, %186 : vector<64x384xf32>
    %188 = vector.broadcast %167 : vector<1x384xf32> to vector<64x384xf32>
    %189 = arith.addf %187, %188 : vector<64x384xf32>
    %190 = vector.shape_cast %189 : vector<64x384xf32> to vector<2x32x384xf32>
    %c0_73 = arith.constant 0 : index
    %c0_74 = arith.constant 0 : index
    %c0_75 = arith.constant 0 : index
    %191 = vector.load %arg13[%c0_73, %c0_74, %c0_75] : memref<2x32x384xf32, #tpu.memory_space<vmem>>, vector<2x32x384xf32>
    tpu.vector_store %arg13[%c0_73, %c0_74, %c0_75], %190 {strides = array<i32>} : memref<2x32x384xf32, #tpu.memory_space<vmem>>, vector<2x32x384xf32>,
    return
  }
  func.func @transform_0(%arg0: i32) -> (i32, i32, i32) {
    %c0_i32 = arith.constant 0 : i32
    %c0_i32_0 = arith.constant 0 : i32
    %c0_i32_1 = arith.constant 0 : i32
    %c0_i32_2 = arith.constant 0 : i32
    return %c0_i32, %c0_i32_0, %c0_i32_1 : i32, i32, i32
  }
  func.func @transform_1(%arg0: i32) -> (i32, i32) {
    %c0_i32 = arith.constant 0 : i32
    %c0_i32_0 = arith.constant 0 : i32
    %c0_i32_1 = arith.constant 0 : i32
    return %c0_i32, %c0_i32_0 : i32, i32
  }
  func.func @transform_2(%arg0: i32) -> (i32, i32, i32) {
    %c0_i32 = arith.constant 0 : i32
    %c0_i32_0 = arith.constant 0 : i32
    %c0_i32_1 = arith.constant 0 : i32
    %c0_i32_2 = arith.constant 0 : i32
    return %c0_i32, %c0_i32_0, %c0_i32_1 : i32, i32, i32
  }
  func.func @transform_3(%arg0: i32) -> (i32, i32) {
    %c0_i32 = arith.constant 0 : i32
    %c0_i32_0 = arith.constant 0 : i32
    %c0_i32_1 = arith.constant 0 : i32
    return %c0_i32, %c0_i32_0 : i32, i32
  }
  func.func @transform_4(%arg0: i32) -> (i32, i32) {
    %c0_i32 = arith.constant 0 : i32
    %c0_i32_0 = arith.constant 0 : i32
    %c0_i32_1 = arith.constant 0 : i32
    return %c0_i32, %c0_i32_0 : i32, i32
  }
  func.func @transform_5(%arg0: i32) -> (i32, i32) {
    %c0_i32 = arith.constant 0 : i32
    %c0_i32_0 = arith.constant 0 : i32
    %c0_i32_1 = arith.constant 0 : i32
    return %c0_i32, %c0_i32_0 : i32, i32
  }
  func.func @transform_6(%arg0: i32) -> (i32, i32) {
    %c0_i32 = arith.constant 0 : i32
    %c0_i32_0 = arith.constant 0 : i32
    %c0_i32_1 = arith.constant 0 : i32
    return %c0_i32, %c0_i32_0 : i32, i32
  }
  func.func @transform_7(%arg0: i32) -> (i32, i32) {
    %c0_i32 = arith.constant 0 : i32
    %c0_i32_0 = arith.constant 0 : i32
    %c0_i32_1 = arith.constant 0 : i32
    return %c0_i32, %c0_i32_0 : i32, i32
  }
  func.func @transform_8(%arg0: i32) -> (i32, i32) {
    %c0_i32 = arith.constant 0 : i32
    %c0_i32_0 = arith.constant 0 : i32
    %c0_i32_1 = arith.constant 0 : i32
    return %c0_i32, %c0_i32_0 : i32, i32
  }
  func.func @transform_9(%arg0: i32) -> (i32, i32) {
    %c0_i32 = arith.constant 0 : i32
    %c0_i32_0 = arith.constant 0 : i32
    %c0_i32_1 = arith.constant 0 : i32
    return %c0_i32, %c0_i32_0 : i32, i32
  }
  func.func @transform_10(%arg0: i32) -> (i32, i32) {
    %c0_i32 = arith.constant 0 : i32
    %c0_i32_0 = arith.constant 0 : i32
    %c0_i32_1 = arith.constant 0 : i32
    return %c0_i32, %c0_i32_0 : i32, i32
  }
  func.func @transform_11(%arg0: i32) -> (i32, i32) {
    %c0_i32 = arith.constant 0 : i32
    %c0_i32_0 = arith.constant 0 : i32
    %c0_i32_1 = arith.constant 0 : i32
    return %c0_i32, %c0_i32_0 : i32, i32
  }
  func.func @transform_12(%arg0: i32) -> (i32, i32, i32) {
    %c0_i32 = arith.constant 0 : i32
    %c0_i32_0 = arith.constant 0 : i32
    %c0_i32_1 = arith.constant 0 : i32
    %c0_i32_2 = arith.constant 0 : i32
    return %c0_i32, %c0_i32_0, %c0_i32_1 : i32, i32, i32
  }
}

</mosaic_0001>

<llo_original>
// kernel: tpu_custom_call.1
$region0: #{tpu_custom_call.1}
  #allocation0 [shape = 'u32[]', space=smem, size = 0x4, offset = 0x4, fixed_abs, tag = 'smem constant byte address 0x4 - core index']
  #allocation1 [shape = 'u32[144,128]{1,0:T(1,128)}', space=vmem, size = 0x12000, scoped, tag = 'internal scratch']
  %s0 = inlined_call_operand.hbm [shape: f32[2,32,384], index: 0, kind: input, shape index: {}]
  %s1 = inlined_call_operand.hbm [shape: f32[384,1536], index: 1, kind: input, shape index: {}]
  %s2 = inlined_call_operand.hbm [shape: f32[4,128,384], index: 2, kind: input, shape index: {}]
  %s3 = inlined_call_operand.hbm [shape: f32[1,384], index: 3, kind: input, shape index: {}]
  %s4 = inlined_call_operand.hbm [shape: f32[384,1536], index: 4, kind: input, shape index: {}]
  %s5 = inlined_call_operand.hbm [shape: f32[1,1536], index: 5, kind: input, shape index: {}]
  %s6 = inlined_call_operand.hbm [shape: f32[1536,384], index: 6, kind: input, shape index: {}]
  %s7 = inlined_call_operand.hbm [shape: f32[1,384], index: 7, kind: input, shape index: {}]
  %s8 = inlined_call_operand.hbm [shape: f32[1,384], index: 8, kind: input, shape index: {}]
  %s9 = inlined_call_operand.hbm [shape: f32[1,384], index: 9, kind: input, shape index: {}]
  %s10 = inlined_call_operand.hbm [shape: f32[1,384], index: 10, kind: input, shape index: {}]
  %s11 = inlined_call_operand.hbm [shape: f32[1,384], index: 11, kind: input, shape index: {}]
  %s12 = inlined_call_operand.hbm [shape: f32[2,32,384], index: 12, kind: output, shape index: {}]
  %s13 = sld [smem:[#allocation0]]
  $region106: #{tpu_custom_call.1} parent=0
    _
  %s15 = ssub.s32 1, %s13
  %s16 = scalar_select 0, %s15, %s13
  $region1: #{tpu_custom_call.1} parent=0
    #allocation2 [shape = 'u8[98304]{0}', space=vmem, size = 0x18000, scoped, tag = 'input window, operand 0, single buffered']
    #allocation3 [shape = 's32[1]{0}', space=sflag, size = 0x4, scoped, tag = 'scoped memory for tpu_custom_call.1']
    #allocation4 [shape = 's32[1]{0}', space=sflag, size = 0x4, scoped, tag = 'scoped memory for tpu_custom_call.1']
    #allocation5 [shape = 'u8[2359296]{0}', space=vmem, size = 0x240000, scoped, tag = 'input window, operand 1, single buffered']
    #allocation6 [shape = 's32[1]{0}', space=sflag, size = 0x4, scoped, tag = 'scoped memory for tpu_custom_call.1']
    #allocation7 [shape = 'u8[786432]{0}', space=vmem, size = 0xc0000, scoped, tag = 'input window, operand 2, single buffered']
    #allocation8 [shape = 'u8[1536]{0}', space=vmem, size = 0x800, scoped, tag = 'input window, operand 3, single buffered']
    #allocation9 [shape = 's32[1]{0}', space=sflag, size = 0x4, scoped, tag = 'scoped memory for tpu_custom_call.1']
    #allocation10 [shape = 'u8[2359296]{0}', space=vmem, size = 0x240000, scoped, tag = 'input window, operand 4, single buffered']
    #allocation11 [shape = 'u8[6144]{0}', space=vmem, size = 0x1800, scoped, tag = 'input window, operand 5, single buffered']
    #allocation12 [shape = 's32[1]{0}', space=sflag, size = 0x4, scoped, tag = 'scoped memory for tpu_custom_call.1']
    #allocation13 [shape = 'u8[2359296]{0}', space=vmem, size = 0x240000, scoped, tag = 'input window, operand 6, single buffered']
    #allocation14 [shape = 'u8[1536]{0}', space=vmem, size = 0x800, scoped, tag = 'input window, operand 7, single buffered']
    #allocation15 [shape = 's32[1]{0}', space=sflag, size = 0x4, scoped, tag = 'scoped memory for tpu_custom_call.1']
    #allocation16 [shape = 'u8[1536]{0}', space=vmem, size = 0x800, scoped, tag = 'input window, operand 8, single buffered']
    #allocation17 [shape = 'u8[1536]{0}', space=vmem, size = 0x800, scoped, tag = 'input window, operand 9, single buffered']
    #allocation18 [shape = 's32[1]{0}', space=sflag, size = 0x4, scoped, tag = 'scoped memory for tpu_custom_call.1']
    #allocation19 [shape = 'u8[1536]{0}', space=vmem, size = 0x800, scoped, tag = 'input window, operand 10, single buffered']
    #allocation20 [shape = 'u8[1536]{0}', space=vmem, size = 0x800, scoped, tag = 'input window, operand 11, single buffered']
    #allocation21 [shape = 's32[1]{0}', space=sflag, size = 0x4, scoped, tag = 'scoped memory for tpu_custom_call.1']
    #allocation22 [shape = 'u8[98304]{0}', space=vmem, size = 0x18000, scoped, tag = 'output window, operand 0, single buffered']
    %17 = vsyncpa [#allocation3], 0
    %18 = vsyncpa [#allocation6], 0
    %19 = vsyncpa [#allocation9], 0
    %20 = vsyncpa [#allocation12], 0
    %21 = vsyncpa [#allocation15], 0
    %22 = vsyncpa [#allocation18], 0
    %23 = vsyncpa [#allocation21], 0
    %24 = vsyncpa [#allocation4], 0
    // Predicated region
    $region2: #{tpu_custom_call.1} parent=1 // pred_check
      _
    $region3: #{tpu_custom_call.1} parent=1 // pred_check_branch
      %26 = sbr.rel (0) target = $region5
    $region4: #{tpu_custom_call.1} parent=1 // pred_region
      %s28 = ssub.s32 3072, 3072
      %29 = vsyncadd [#allocation3], %s28
      %s30 = sshll.u32 [#allocation2], 4
      %s31 = int_to_ptr.vmem [resolvable:$true] %s30
      %36 = dma.hbm_to_vmem [thread:$0]  %s0, 3072, %s31, [#allocation3], 384, 384, 24
    $region5: #{tpu_custom_call.1} parent=1 // pred_fallthru
      _
    // Predicated region
    $region6: #{tpu_custom_call.1} parent=1 // pred_check
      _
    $region7: #{tpu_custom_call.1} parent=1 // pred_check_branch
      %38 = sbr.rel (0) target = $region9
    $region8: #{tpu_custom_call.1} parent=1 // pred_region
      %s40 = ssub.s32 73728, 73728
      %41 = vsyncadd [#allocation6], %s40
      %s42 = sshll.u32 [#allocation5], 4
      %s43 = int_to_ptr.vmem [resolvable:$true] %s42
      %48 = dma.hbm_to_vmem [thread:$0]  %s1, 73728, %s43, [#allocation6], 1536, 1536, 96
    $region9: #{tpu_custom_call.1} parent=1 // pred_fallthru
      _
    // Predicated region
    $region10: #{tpu_custom_call.1} parent=1 // pred_check
      _
    $region11: #{tpu_custom_call.1} parent=1 // pred_check_branch
      %50 = sbr.rel (0) target = $region13
    $region12: #{tpu_custom_call.1} parent=1 // pred_region
      %s52 = ssub.s32 24576, 24576
      %53 = vsyncadd [#allocation6], %s52
      %s54 = sshll.u32 [#allocation7], 4
      %s55 = int_to_ptr.vmem [resolvable:$true] %s54
      %60 = dma.hbm_to_vmem [thread:$0]  %s2, 24576, %s55, [#allocation6], 384, 384, 24
    $region13: #{tpu_custom_call.1} parent=1 // pred_fallthru
      _
    // Predicated region
    $region14: #{tpu_custom_call.1} parent=1 // pred_check
      _
    $region15: #{tpu_custom_call.1} parent=1 // pred_check_branch
      %62 = sbr.rel (0) target = $region17
    $region16: #{tpu_custom_call.1} parent=1 // pred_region
      %s64 = ssub.s32 48, 48
      %65 = vsyncadd [#allocation9], %s64
      %s67 = sshll.u32 [#allocation8], 4
      %s68 = int_to_ptr.vmem [resolvable:$true] %s67
      %70 = dma.hbm_to_vmem [thread:$0]  %s3, 48, %s68, [#allocation9]
    $region17: #{tpu_custom_call.1} parent=1 // pred_fallthru
      _
    // Predicated region
    $region18: #{tpu_custom_call.1} parent=1 // pred_check
      _
    $region19: #{tpu_custom_call.1} parent=1 // pred_check_branch
      %72 = sbr.rel (0) target = $region21
    $region20: #{tpu_custom_call.1} parent=1 // pred_region
      %s74 = ssub.s32 73728, 73728
      %75 = vsyncadd [#allocation9], %s74
      %s76 = sshll.u32 [#allocation10], 4
      %s77 = int_to_ptr.vmem [resolvable:$true] %s76
      %82 = dma.hbm_to_vmem [thread:$0]  %s4, 73728, %s77, [#allocation9], 1536, 1536, 96
    $region21: #{tpu_custom_call.1} parent=1 // pred_fallthru
      _
    // Predicated region
    $region22: #{tpu_custom_call.1} parent=1 // pred_check
      _
    $region23: #{tpu_custom_call.1} parent=1 // pred_check_branch
      %84 = sbr.rel (0) target = $region25
    $region24: #{tpu_custom_call.1} parent=1 // pred_region
      %s86 = ssub.s32 192, 192
      %87 = vsyncadd [#allocation12], %s86
      %s89 = sshll.u32 [#allocation11], 4
      %s90 = int_to_ptr.vmem [resolvable:$true] %s89
      %92 = dma.hbm_to_vmem [thread:$0]  %s5, 192, %s90, [#allocation12]
    $region25: #{tpu_custom_call.1} parent=1 // pred_fallthru
      _
    // Predicated region
    $region26: #{tpu_custom_call.1} parent=1 // pred_check
      _
    $region27: #{tpu_custom_call.1} parent=1 // pred_check_branch
      %94 = sbr.rel (0) target = $region29
    $region28: #{tpu_custom_call.1} parent=1 // pred_region
      %s96 = ssub.s32 73728, 73728
      %97 = vsyncadd [#allocation12], %s96
      %s98 = sshll.u32 [#allocation13], 4
      %s99 = int_to_ptr.vmem [resolvable:$true] %s98
      %104 = dma.hbm_to_vmem [thread:$0]  %s6, 73728, %s99, [#allocation12], 384, 384, 24
    $region29: #{tpu_custom_call.1} parent=1 // pred_fallthru
      _
    // Predicated region
    $region30: #{tpu_custom_call.1} parent=1 // pred_check
      _
    $region31: #{tpu_custom_call.1} parent=1 // pred_check_branch
      %106 = sbr.rel (0) target = $region33
    $region32: #{tpu_custom_call.1} parent=1 // pred_region
      %s108 = ssub.s32 48, 48
      %109 = vsyncadd [#allocation15], %s108
      %s111 = sshll.u32 [#allocation14], 4
      %s112 = int_to_ptr.vmem [resolvable:$true] %s111
      %114 = dma.hbm_to_vmem [thread:$0]  %s7, 48, %s112, [#allocation15]
    $region33: #{tpu_custom_call.1} parent=1 // pred_fallthru
      _
    // Predicated region
    $region34: #{tpu_custom_call.1} parent=1 // pred_check
      _
    $region35: #{tpu_custom_call.1} parent=1 // pred_check_branch
      %116 = sbr.rel (0) target = $region37
    $region36: #{tpu_custom_call.1} parent=1 // pred_region
      %s118 = ssub.s32 48, 48
      %119 = vsyncadd [#allocation15], %s118
      %s121 = sshll.u32 [#allocation16], 4
      %s122 = int_to_ptr.vmem [resolvable:$true] %s121
      %124 = dma.hbm_to_vmem [thread:$0]  %s8, 48, %s122, [#allocation15]
    $region37: #{tpu_custom_call.1} parent=1 // pred_fallthru
      _
    // Predicated region
    $region38: #{tpu_custom_call.1} parent=1 // pred_check
      _
    $region39: #{tpu_custom_call.1} parent=1 // pred_check_branch
      %126 = sbr.rel (0) target = $region41
    $region40: #{tpu_custom_call.1} parent=1 // pred_region
      %s128 = ssub.s32 48, 48
      %129 = vsyncadd [#allocation18], %s128
      %s131 = sshll.u32 [#allocation17], 4
      %s132 = int_to_ptr.vmem [resolvable:$true] %s131
      %134 = dma.hbm_to_vmem [thread:$0]  %s9, 48, %s132, [#allocation18]
    $region41: #{tpu_custom_call.1} parent=1 // pred_fallthru
      _
    // Predicated region
    $region42: #{tpu_custom_call.1} parent=1 // pred_check
      _
    $region43: #{tpu_custom_call.1} parent=1 // pred_check_branch
      %136 = sbr.rel (0) target = $region45
    $region44: #{tpu_custom_call.1} parent=1 // pred_region
      %s138 = ssub.s32 48, 48
      %139 = vsyncadd [#allocation18], %s138
      %s141 = sshll.u32 [#allocation19], 4
      %s142 = int_to_ptr.vmem [resolvable:$true] %s141
      %144 = dma.hbm_to_vmem [thread:$0]  %s10, 48, %s142, [#allocation18]
    $region45: #{tpu_custom_call.1} parent=1 // pred_fallthru
      _
    // Predicated region
    $region46: #{tpu_custom_call.1} parent=1 // pred_check
      _
    $region47: #{tpu_custom_call.1} parent=1 // pred_check_branch
      %146 = sbr.rel (0) target = $region49
    $region48: #{tpu_custom_call.1} parent=1 // pred_region
      %s148 = ssub.s32 48, 48
      %149 = vsyncadd [#allocation21], %s148
      %s151 = sshll.u32 [#allocation20], 4
      %s152 = int_to_ptr.vmem [resolvable:$true] %s151
      %154 = dma.hbm_to_vmem [thread:$0]  %s11, 48, %s152, [#allocation21]
    $region49: #{tpu_custom_call.1} parent=1 // pred_fallthru
      _
    // Predicated region
    $region50: #{tpu_custom_call.1} parent=1 // pred_check
      _
    $region51: #{tpu_custom_call.1} parent=1 // pred_check_branch
      %156 = sbr.rel (0) target = $region53
    $region52: #{tpu_custom_call.1} parent=1 // pred_region
      %157 = dma.done [#allocation3], 3072
    $region53: #{tpu_custom_call.1} parent=1 // pred_fallthru
      _
    // Predicated region
    $region54: #{tpu_custom_call.1} parent=1 // pred_check
      _
    $region55: #{tpu_custom_call.1} parent=1 // pred_check_branch
      %159 = sbr.rel (0) target = $region57
    $region56: #{tpu_custom_call.1} parent=1 // pred_region
      %160 = dma.done [#allocation6], 73728
    $region57: #{tpu_custom_call.1} parent=1 // pred_fallthru
      _
    // Predicated region
    $region58: #{tpu_custom_call.1} parent=1 // pred_check
      _
    $region59: #{tpu_custom_call.1} parent=1 // pred_check_branch
      %162 = sbr.rel (0) target = $region61
    $region60: #{tpu_custom_call.1} parent=1 // pred_region
      %163 = dma.done [#allocation6], 24576
    $region61: #{tpu_custom_call.1} parent=1 // pred_fallthru
      _
    // Predicated region
    $region62: #{tpu_custom_call.1} parent=1 // pred_check
      _
    $region63: #{tpu_custom_call.1} parent=1 // pred_check_branch
      %165 = sbr.rel (0) target = $region65
    $region64: #{tpu_custom_call.1} parent=1 // pred_region
      %166 = dma.done [#allocation9], 48
    $region65: #{tpu_custom_call.1} parent=1 // pred_fallthru
      _
    // Predicated region
    $region66: #{tpu_custom_call.1} parent=1 // pred_check
      _
    $region67: #{tpu_custom_call.1} parent=1 // pred_check_branch
      %168 = sbr.rel (0) target = $region69
    $region68: #{tpu_custom_call.1} parent=1 // pred_region
      %169 = dma.done [#allocation9], 73728
    $region69: #{tpu_custom_call.1} parent=1 // pred_fallthru
      _
    // Predicated region
    $region70: #{tpu_custom_call.1} parent=1 // pred_check
      _
    $region71: #{tpu_custom_call.1} parent=1 // pred_check_branch
      %171 = sbr.rel (0) target = $region73
    $region72: #{tpu_custom_call.1} parent=1 // pred_region
      %172 = dma.done [#allocation12], 192
    $region73: #{tpu_custom_call.1} parent=1 // pred_fallthru
      _
    // Predicated region
    $region74: #{tpu_custom_call.1} parent=1 // pred_check
      _
    $region75: #{tpu_custom_call.1} parent=1 // pred_check_branch
      %174 = sbr.rel (0) target = $region77
    $region76: #{tpu_custom_call.1} parent=1 // pred_region
      %175 = dma.done [#allocation12], 73728
    $region77: #{tpu_custom_call.1} parent=1 // pred_fallthru
      _
    // Predicated region
    $region78: #{tpu_custom_call.1} parent=1 // pred_check
      _
    $region79: #{tpu_custom_call.1} parent=1 // pred_check_branch
      %177 = sbr.rel (0) target = $region81
    $region80: #{tpu_custom_call.1} parent=1 // pred_region
      %178 = dma.done [#allocation15], 48
    $region81: #{tpu_custom_call.1} parent=1 // pred_fallthru
      _
    // Predicated region
    $region82: #{tpu_custom_call.1} parent=1 // pred_check
      _
    $region83: #{tpu_custom_call.1} parent=1 // pred_check_branch
      %180 = sbr.rel (0) target = $region85
    $region84: #{tpu_custom_call.1} parent=1 // pred_region
      %181 = dma.done [#allocation15], 48
    $region85: #{tpu_custom_call.1} parent=1 // pred_fallthru
      _
    // Predicated region
    $region86: #{tpu_custom_call.1} parent=1 // pred_check
      _
    $region87: #{tpu_custom_call.1} parent=1 // pred_check_branch
      %183 = sbr.rel (0) target = $region89
    $region88: #{tpu_custom_call.1} parent=1 // pred_region
      %184 = dma.done [#allocation18], 48
    $region89: #{tpu_custom_call.1} parent=1 // pred_fallthru
      _
    // Predicated region
    $region90: #{tpu_custom_call.1} parent=1 // pred_check
      _
    $region91: #{tpu_custom_call.1} parent=1 // pred_check_branch
      %186 = sbr.rel (0) target = $region93
    $region92: #{tpu_custom_call.1} parent=1 // pred_region
      %187 = dma.done [#allocation18], 48
    $region93: #{tpu_custom_call.1} parent=1 // pred_fallthru
      _
    // Predicated region
    $region94: #{tpu_custom_call.1} parent=1 // pred_check
      _
    $region95: #{tpu_custom_call.1} parent=1 // pred_check_branch
      %189 = sbr.rel (0) target = $region97
    $region96: #{tpu_custom_call.1} parent=1 // pred_region
      %190 = dma.done [#allocation21], 48
    $region97: #{tpu_custom_call.1} parent=1 // pred_fallthru
      _
    %v191 = vld [vmem:[#allocation2] sm:$0xff]
    %v192 = vld [vmem:[#allocation2 + $0x8] sm:$0xff]
    %v193 = vld [vmem:[#allocation2 + $0x10] sm:$0xff]
    %v194 = vld [vmem:[#allocation2 + $0x18] sm:$0xff]
    %v195 = vld [vmem:[#allocation2 + $0x20] sm:$0xff]
    %v196 = vld [vmem:[#allocation2 + $0x28] sm:$0xff]
    %v197 = vld [vmem:[#allocation2 + $0x30] sm:$0xff]
    %v198 = vld [vmem:[#allocation2 + $0x38] sm:$0xff]
    %v199 = vld [vmem:[#allocation2 + $0x40] sm:$0xff]
    %v200 = vld [vmem:[#allocation2 + $0x48] sm:$0xff]
    %v201 = vld [vmem:[#allocation2 + $0x50] sm:$0xff]
    %v202 = vld [vmem:[#allocation2 + $0x58] sm:$0xff]
    %v203 = vld [vmem:[#allocation2 + $0x60] sm:$0xff]
    %v204 = vld [vmem:[#allocation2 + $0x68] sm:$0xff]
    %v205 = vld [vmem:[#allocation2 + $0x70] sm:$0xff]
    %v206 = vld [vmem:[#allocation2 + $0x78] sm:$0xff]
    %v207 = vld [vmem:[#allocation2 + $0x80] sm:$0xff]
    %v208 = vld [vmem:[#allocation2 + $0x88] sm:$0xff]
    %v209 = vld [vmem:[#allocation2 + $0x90] sm:$0xff]
    %v210 = vld [vmem:[#allocation2 + $0x98] sm:$0xff]
    %v211 = vld [vmem:[#allocation2 + $0xa0] sm:$0xff]
    %v212 = vld [vmem:[#allocation2 + $0xa8] sm:$0xff]
    %v213 = vld [vmem:[#allocation2 + $0xb0] sm:$0xff]
    %v214 = vld [vmem:[#allocation2 + $0xb8] sm:$0xff]
    %v215 = vld [vmem:[#allocation5] sm:$0xff]
    %v216 = vld [vmem:[#allocation5 + $0x8] sm:$0xff]
    %v217 = vld [vmem:[#allocation5 + $0x10] sm:$0xff]
    %v218 = vld [vmem:[#allocation5 + $0x18] sm:$0xff]
    %v219 = vld [vmem:[#allocation5 + $0x20] sm:$0xff]
    %v220 = vld [vmem:[#allocation5 + $0x28] sm:$0xff]
    %v221 = vld [vmem:[#allocation5 + $0x30] sm:$0xff]
    %v222 = vld [vmem:[#allocation5 + $0x38] sm:$0xff]
    %v223 = vld [vmem:[#allocation5 + $0x40] sm:$0xff]
    %v224 = vld [vmem:[#allocation5 + $0x48] sm:$0xff]
    %v225 = vld [vmem:[#allocation5 + $0x50] sm:$0xff]
    %v226 = vld [vmem:[#allocation5 + $0x58] sm:$0xff]
    %v227 = vld [vmem:[#allocation5 + $0x60] sm:$0xff]
    %v228 = vld [vmem:[#allocation5 + $0x68] sm:$0xff]
    %v229 = vld [vmem:[#allocation5 + $0x70] sm:$0xff]
    %v230 = vld [vmem:[#allocation5 + $0x78] sm:$0xff]
    %v231 = vld [vmem:[#allocation5 + $0x80] sm:$0xff]
    %v232 = vld [vmem:[#allocation5 + $0x88] sm:$0xff]
    %v233 = vld [vmem:[#allocation5 + $0x90] sm:$0xff]
    %v234 = vld [vmem:[#allocation5 + $0x98] sm:$0xff]
    %v235 = vld [vmem:[#allocation5 + $0xa0] sm:$0xff]
    %v236 = vld [vmem:[#allocation5 + $0xa8] sm:$0xff]
    %v237 = vld [vmem:[#allocation5 + $0xb0] sm:$0xff]
    %v238 = vld [vmem:[#allocation5 + $0xb8] sm:$0xff]
    %v239 = vld [vmem:[#allocation5 + $0xc0] sm:$0xff]
    %v240 = vld [vmem:[#allocation5 + $0xc8] sm:$0xff]
    %v241 = vld [vmem:[#allocation5 + $0xd0] sm:$0xff]
    %v242 = vld [vmem:[#allocation5 + $0xd8] sm:$0xff]
    %v243 = vld [vmem:[#allocation5 + $0xe0] sm:$0xff]
    %v244 = vld [vmem:[#allocation5 + $0xe8] sm:$0xff]
    %v245 = vld [vmem:[#allocation5 + $0xf0] sm:$0xff]
    %v246 = vld [vmem:[#allocation5 + $0xf8] sm:$0xff]
    %v247 = vld [vmem:[#allocation5 + $0x100] sm:$0xff]
    %v248 = vld [vmem:[#allocation5 + $0x108] sm:$0xff]
    %v249 = vld [vmem:[#allocation5 + $0x110] sm:$0xff]
    %v250 = vld [vmem:[#allocation5 + $0x118] sm:$0xff]
    %v251 = vld [vmem:[#allocation5 + $0x120] sm:$0xff]
    %v252 = vld [vmem:[#allocation5 + $0x128] sm:$0xff]
    %v253 = vld [vmem:[#allocation5 + $0x130] sm:$0xff]
    %v254 = vld [vmem:[#allocation5 + $0x138] sm:$0xff]
    %v255 = vld [vmem:[#allocation5 + $0x140] sm:$0xff]
    %v256 = vld [vmem:[#allocation5 + $0x148] sm:$0xff]
    %v257 = vld [vmem:[#allocation5 + $0x150] sm:$0xff]
    %v258 = vld [vmem:[#allocation5 + $0x158] sm:$0xff]
    %v259 = vld [vmem:[#allocation5 + $0x160] sm:$0xff]
    %v260 = vld [vmem:[#allocation5 + $0x168] sm:$0xff]
    %v261 = vld [vmem:[#allocation5 + $0x170] sm:$0xff]
    %v262 = vld [vmem:[#allocation5 + $0x178] sm:$0xff]
    %v263 = vld [vmem:[#allocation5 + $0x180] sm:$0xff]
    %v264 = vld [vmem:[#allocation5 + $0x188] sm:$0xff]
    %v265 = vld [vmem:[#allocation5 + $0x190] sm:$0xff]
    %v266 = vld [vmem:[#allocation5 + $0x198] sm:$0xff]
    %v267 = vld [vmem:[#allocation5 + $0x1a0] sm:$0xff]
    %v268 = vld [vmem:[#allocation5 + $0x1a8] sm:$0xff]
    %v269 = vld [vmem:[#allocation5 + $0x1b0] sm:$0xff]
    %v270 = vld [vmem:[#allocation5 + $0x1b8] sm:$0xff]
    %v271 = vld [vmem:[#allocation5 + $0x1c0] sm:$0xff]
    %v272 = vld [vmem:[#allocation5 + $0x1c8] sm:$0xff]
    %v273 = vld [vmem:[#allocation5 + $0x1d0] sm:$0xff]
    %v274 = vld [vmem:[#allocation5 + $0x1d8] sm:$0xff]
    %v275 = vld [vmem:[#allocation5 + $0x1e0] sm:$0xff]
    %v276 = vld [vmem:[#allocation5 + $0x1e8] sm:$0xff]
    %v277 = vld [vmem:[#allocation5 + $0x1f0] sm:$0xff]
    %v278 = vld [vmem:[#allocation5 + $0x1f8] sm:$0xff]
    %v279 = vld [vmem:[#allocation5 + $0x200] sm:$0xff]
    %v280 = vld [vmem:[#allocation5 + $0x208] sm:$0xff]
    %v281 = vld [vmem:[#allocation5 + $0x210] sm:$0xff]
    %v282 = vld [vmem:[#allocation5 + $0x218] sm:$0xff]
    %v283 = vld [vmem:[#allocation5 + $0x220] sm:$0xff]
    %v284 = vld [vmem:[#allocation5 + $0x228] sm:$0xff]
    %v285 = vld [vmem:[#allocation5 + $0x230] sm:$0xff]
    %v286 = vld [vmem:[#allocation5 + $0x238] sm:$0xff]
    %v287 = vld [vmem:[#allocation5 + $0x240] sm:$0xff]
    %v288 = vld [vmem:[#allocation5 + $0x248] sm:$0xff]
    %v289 = vld [vmem:[#allocation5 + $0x250] sm:$0xff]
    %v290 = vld [vmem:[#allocation5 + $0x258] sm:$0xff]
    %v291 = vld [vmem:[#allocation5 + $0x260] sm:$0xff]
    %v292 = vld [vmem:[#allocation5 + $0x268] sm:$0xff]
    %v293 = vld [vmem:[#allocation5 + $0x270] sm:$0xff]
    %v294 = vld [vmem:[#allocation5 + $0x278] sm:$0xff]
    %v295 = vld [vmem:[#allocation5 + $0x280] sm:$0xff]
    %v296 = vld [vmem:[#allocation5 + $0x288] sm:$0xff]
    %v297 = vld [vmem:[#allocation5 + $0x290] sm:$0xff]
    %v298 = vld [vmem:[#allocation5 + $0x298] sm:$0xff]
    %v299 = vld [vmem:[#allocation5 + $0x2a0] sm:$0xff]
    %v300 = vld [vmem:[#allocation5 + $0x2a8] sm:$0xff]
    %v301 = vld [vmem:[#allocation5 + $0x2b0] sm:$0xff]
    %v302 = vld [vmem:[#allocation5 + $0x2b8] sm:$0xff]
    %v303 = vld [vmem:[#allocation5 + $0x2c0] sm:$0xff]
    %v304 = vld [vmem:[#allocation5 + $0x2c8] sm:$0xff]
    %v305 = vld [vmem:[#allocation5 + $0x2d0] sm:$0xff]
    %v306 = vld [vmem:[#allocation5 + $0x2d8] sm:$0xff]
    %v307 = vld [vmem:[#allocation5 + $0x2e0] sm:$0xff]
    %v308 = vld [vmem:[#allocation5 + $0x2e8] sm:$0xff]
    %v309 = vld [vmem:[#allocation5 + $0x2f0] sm:$0xff]
    %v310 = vld [vmem:[#allocation5 + $0x2f8] sm:$0xff]
    %v311 = vld [vmem:[#allocation5 + $0x300] sm:$0xff]
    %v312 = vld [vmem:[#allocation5 + $0x308] sm:$0xff]
    %v313 = vld [vmem:[#allocation5 + $0x310] sm:$0xff]
    %v314 = vld [vmem:[#allocation5 + $0x318] sm:$0xff]
    %v315 = vld [vmem:[#allocation5 + $0x320] sm:$0xff]
    %v316 = vld [vmem:[#allocation5 + $0x328] sm:$0xff]
    %v317 = vld [vmem:[#allocation5 + $0x330] sm:$0xff]
    %v318 = vld [vmem:[#allocation5 + $0x338] sm:$0xff]
    %v319 = vld [vmem:[#allocation5 + $0x340] sm:$0xff]
    %v320 = vld [vmem:[#allocation5 + $0x348] sm:$0xff]
    %v321 = vld [vmem:[#allocation5 + $0x350] sm:$0xff]
    %v322 = vld [vmem:[#allocation5 + $0x358] sm:$0xff]
    %v323 = vld [vmem:[#allocation5 + $0x360] sm:$0xff]
    %v324 = vld [vmem:[#allocation5 + $0x368] sm:$0xff]
    %v325 = vld [vmem:[#allocation5 + $0x370] sm:$0xff]
    %v326 = vld [vmem:[#allocation5 + $0x378] sm:$0xff]
    %v327 = vld [vmem:[#allocation5 + $0x380] sm:$0xff]
    %v328 = vld [vmem:[#allocation5 + $0x388] sm:$0xff]
    %v329 = vld [vmem:[#allocation5 + $0x390] sm:$0xff]
    %v330 = vld [vmem:[#allocation5 + $0x398] sm:$0xff]
    %v331 = vld [vmem:[#allocation5 + $0x3a0] sm:$0xff]
    %v332 = vld [vmem:[#allocation5 + $0x3a8] sm:$0xff]
    %v333 = vld [vmem:[#allocation5 + $0x3b0] sm:$0xff]
    %v334 = vld [vmem:[#allocation5 + $0x3b8] sm:$0xff]
    %v335 = vld [vmem:[#allocation5 + $0x3c0] sm:$0xff]
    %v336 = vld [vmem:[#allocation5 + $0x3c8] sm:$0xff]
    %v337 = vld [vmem:[#allocation5 + $0x3d0] sm:$0xff]
    %v338 = vld [vmem:[#allocation5 + $0x3d8] sm:$0xff]
    %v339 = vld [vmem:[#allocation5 + $0x3e0] sm:$0xff]
    %v340 = vld [vmem:[#allocation5 + $0x3e8] sm:$0xff]
    %v341 = vld [vmem:[#allocation5 + $0x3f0] sm:$0xff]
    %v342 = vld [vmem:[#allocation5 + $0x3f8] sm:$0xff]
    %v343 = vld [vmem:[#allocation5 + $0x400] sm:$0xff]
    %v344 = vld [vmem:[#allocation5 + $0x408] sm:$0xff]
    %v345 = vld [vmem:[#allocation5 + $0x410] sm:$0xff]
    %v346 = vld [vmem:[#allocation5 + $0x418] sm:$0xff]
    %v347 = vld [vmem:[#allocation5 + $0x420] sm:$0xff]
    %v348 = vld [vmem:[#allocation5 + $0x428] sm:$0xff]
    %v349 = vld [vmem:[#allocation5 + $0x430] sm:$0xff]
    %v350 = vld [vmem:[#allocation5 + $0x438] sm:$0xff]
    %v351 = vld [vmem:[#allocation5 + $0x440] sm:$0xff]
    %v352 = vld [vmem:[#allocation5 + $0x448] sm:$0xff]
    %v353 = vld [vmem:[#allocation5 + $0x450] sm:$0xff]
    %v354 = vld [vmem:[#allocation5 + $0x458] sm:$0xff]
    %v355 = vld [vmem:[#allocation5 + $0x460] sm:$0xff]
    %v356 = vld [vmem:[#allocation5 + $0x468] sm:$0xff]
    %v357 = vld [vmem:[#allocation5 + $0x470] sm:$0xff]
    %v358 = vld [vmem:[#allocation5 + $0x478] sm:$0xff]
    %v359 = vld [vmem:[#allocation5 + $0x480] sm:$0xff]
    %v360 = vld [vmem:[#allocation5 + $0x488] sm:$0xff]
    %v361 = vld [vmem:[#allocation5 + $0x490] sm:$0xff]
    %v362 = vld [vmem:[#allocation5 + $0x498] sm:$0xff]
    %v363 = vld [vmem:[#allocation5 + $0x4a0] sm:$0xff]
    %v364 = vld [vmem:[#allocation5 + $0x4a8] sm:$0xff]
    %v365 = vld [vmem:[#allocation5 + $0x4b0] sm:$0xff]
    %v366 = vld [vmem:[#allocation5 + $0x4b8] sm:$0xff]
    %v367 = vld [vmem:[#allocation5 + $0x4c0] sm:$0xff]
    %v368 = vld [vmem:[#allocation5 + $0x4c8] sm:$0xff]
    %v369 = vld [vmem:[#allocation5 + $0x4d0] sm:$0xff]
    %v370 = vld [vmem:[#allocation5 + $0x4d8] sm:$0xff]
    %v371 = vld [vmem:[#allocation5 + $0x4e0] sm:$0xff]
    %v372 = vld [vmem:[#allocation5 + $0x4e8] sm:$0xff]
    %v373 = vld [vmem:[#allocation5 + $0x4f0] sm:$0xff]
    %v374 = vld [vmem:[#allocation5 + $0x4f8] sm:$0xff]
    %v375 = vld [vmem:[#allocation5 + $0x500] sm:$0xff]
    %v376 = vld [vmem:[#allocation5 + $0x508] sm:$0xff]
    %v377 = vld [vmem:[#allocation5 + $0x510] sm:$0xff]
    %v378 = vld [vmem:[#allocation5 + $0x518] sm:$0xff]
    %v379 = vld [vmem:[#allocation5 + $0x520] sm:$0xff]
    %v380 = vld [vmem:[#allocation5 + $0x528] sm:$0xff]
    %v381 = vld [vmem:[#allocation5 + $0x530] sm:$0xff]
    %v382 = vld [vmem:[#allocation5 + $0x538] sm:$0xff]
    %v383 = vld [vmem:[#allocation5 + $0x540] sm:$0xff]
    %v384 = vld [vmem:[#allocation5 + $0x548] sm:$0xff]
    %v385 = vld [vmem:[#allocation5 + $0x550] sm:$0xff]
    %v386 = vld [vmem:[#allocation5 + $0x558] sm:$0xff]
    %v387 = vld [vmem:[#allocation5 + $0x560] sm:$0xff]
    %v388 = vld [vmem:[#allocation5 + $0x568] sm:$0xff]
    %v389 = vld [vmem:[#allocation5 + $0x570] sm:$0xff]
    %v390 = vld [vmem:[#allocation5 + $0x578] sm:$0xff]
    %v391 = vld [vmem:[#allocation5 + $0x580] sm:$0xff]
    %v392 = vld [vmem:[#allocation5 + $0x588] sm:$0xff]
    %v393 = vld [vmem:[#allocation5 + $0x590] sm:$0xff]
    %v394 = vld [vmem:[#allocation5 + $0x598] sm:$0xff]
    %v395 = vld [vmem:[#allocation5 + $0x5a0] sm:$0xff]
    %v396 = vld [vmem:[#allocation5 + $0x5a8] sm:$0xff]
    %v397 = vld [vmem:[#allocation5 + $0x5b0] sm:$0xff]
    %v398 = vld [vmem:[#allocation5 + $0x5b8] sm:$0xff]
    %v399 = vld [vmem:[#allocation5 + $0x5c0] sm:$0xff]
    %v400 = vld [vmem:[#allocation5 + $0x5c8] sm:$0xff]
    %v401 = vld [vmem:[#allocation5 + $0x5d0] sm:$0xff]
    %v402 = vld [vmem:[#allocation5 + $0x5d8] sm:$0xff]
    %v403 = vld [vmem:[#allocation5 + $0x5e0] sm:$0xff]
    %v404 = vld [vmem:[#allocation5 + $0x5e8] sm:$0xff]
    %v405 = vld [vmem:[#allocation5 + $0x5f0] sm:$0xff]
    %v406 = vld [vmem:[#allocation5 + $0x5f8] sm:$0xff]
    %v407 = vld [vmem:[#allocation5 + $0x600] sm:$0xff]
    %v408 = vld [vmem:[#allocation5 + $0x608] sm:$0xff]
    %v409 = vld [vmem:[#allocation5 + $0x610] sm:$0xff]
    %v410 = vld [vmem:[#allocation5 + $0x618] sm:$0xff]
    %v411 = vld [vmem:[#allocation5 + $0x620] sm:$0xff]
    %v412 = vld [vmem:[#allocation5 + $0x628] sm:$0xff]
    %v413 = vld [vmem:[#allocation5 + $0x630] sm:$0xff]
    %v414 = vld [vmem:[#allocation5 + $0x638] sm:$0xff]
    %v415 = vld [vmem:[#allocation5 + $0x640] sm:$0xff]
    %v416 = vld [vmem:[#allocation5 + $0x648] sm:$0xff]
    %v417 = vld [vmem:[#allocation5 + $0x650] sm:$0xff]
    %v418 = vld [vmem:[#allocation5 + $0x658] sm:$0xff]
    %v419 = vld [vmem:[#allocation5 + $0x660] sm:$0xff]
    %v420 = vld [vmem:[#allocation5 + $0x668] sm:$0xff]
    %v421 = vld [vmem:[#allocation5 + $0x670] sm:$0xff]
    %v422 = vld [vmem:[#allocation5 + $0x678] sm:$0xff]
    %v423 = vld [vmem:[#allocation5 + $0x680] sm:$0xff]
    %v424 = vld [vmem:[#allocation5 + $0x688] sm:$0xff]
    %v425 = vld [vmem:[#allocation5 + $0x690] sm:$0xff]
    %v426 = vld [vmem:[#allocation5 + $0x698] sm:$0xff]
    %v427 = vld [vmem:[#allocation5 + $0x6a0] sm:$0xff]
    %v428 = vld [vmem:[#allocation5 + $0x6a8] sm:$0xff]
    %v429 = vld [vmem:[#allocation5 + $0x6b0] sm:$0xff]
    %v430 = vld [vmem:[#allocation5 + $0x6b8] sm:$0xff]
    %v431 = vld [vmem:[#allocation5 + $0x6c0] sm:$0xff]
    %v432 = vld [vmem:[#allocation5 + $0x6c8] sm:$0xff]
    %v433 = vld [vmem:[#allocation5 + $0x6d0] sm:$0xff]
    %v434 = vld [vmem:[#allocation5 + $0x6d8] sm:$0xff]
    %v435 = vld [vmem:[#allocation5 + $0x6e0] sm:$0xff]
    %v436 = vld [vmem:[#allocation5 + $0x6e8] sm:$0xff]
    %v437 = vld [vmem:[#allocation5 + $0x6f0] sm:$0xff]
    %v438 = vld [vmem:[#allocation5 + $0x6f8] sm:$0xff]
    %v439 = vld [vmem:[#allocation5 + $0x700] sm:$0xff]
    %v440 = vld [vmem:[#allocation5 + $0x708] sm:$0xff]
    %v441 = vld [vmem:[#allocation5 + $0x710] sm:$0xff]
    %v442 = vld [vmem:[#allocation5 + $0x718] sm:$0xff]
    %v443 = vld [vmem:[#allocation5 + $0x720] sm:$0xff]
    %v444 = vld [vmem:[#allocation5 + $0x728] sm:$0xff]
    %v445 = vld [vmem:[#allocation5 + $0x730] sm:$0xff]
    %v446 = vld [vmem:[#allocation5 + $0x738] sm:$0xff]
    %v447 = vld [vmem:[#allocation5 + $0x740] sm:$0xff]
    %v448 = vld [vmem:[#allocation5 + $0x748] sm:$0xff]
    %v449 = vld [vmem:[#allocation5 + $0x750] sm:$0xff]
    %v450 = vld [vmem:[#allocation5 + $0x758] sm:$0xff]
    %v451 = vld [vmem:[#allocation5 + $0x760] sm:$0xff]
    %v452 = vld [vmem:[#allocation5 + $0x768] sm:$0xff]
    %v453 = vld [vmem:[#allocation5 + $0x770] sm:$0xff]
    %v454 = vld [vmem:[#allocation5 + $0x778] sm:$0xff]
    %v455 = vld [vmem:[#allocation5 + $0x780] sm:$0xff]
    %v456 = vld [vmem:[#allocation5 + $0x788] sm:$0xff]
    %v457 = vld [vmem:[#allocation5 + $0x790] sm:$0xff]
    %v458 = vld [vmem:[#allocation5 + $0x798] sm:$0xff]
    %v459 = vld [vmem:[#allocation5 + $0x7a0] sm:$0xff]
    %v460 = vld [vmem:[#allocation5 + $0x7a8] sm:$0xff]
    %v461 = vld [vmem:[#allocation5 + $0x7b0] sm:$0xff]
    %v462 = vld [vmem:[#allocation5 + $0x7b8] sm:$0xff]
    %v463 = vld [vmem:[#allocation5 + $0x7c0] sm:$0xff]
    %v464 = vld [vmem:[#allocation5 + $0x7c8] sm:$0xff]
    %v465 = vld [vmem:[#allocation5 + $0x7d0] sm:$0xff]
    %v466 = vld [vmem:[#allocation5 + $0x7d8] sm:$0xff]
    %v467 = vld [vmem:[#allocation5 + $0x7e0] sm:$0xff]
    %v468 = vld [vmem:[#allocation5 + $0x7e8] sm:$0xff]
    %v469 = vld [vmem:[#allocation5 + $0x7f0] sm:$0xff]
    %v470 = vld [vmem:[#allocation5 + $0x7f8] sm:$0xff]
    %v471 = vld [vmem:[#allocation5 + $0x800] sm:$0xff]
    %v472 = vld [vmem:[#allocation5 + $0x808] sm:$0xff]
    %v473 = vld [vmem:[#allocation5 + $0x810] sm:$0xff]
    %v474 = vld [vmem:[#allocation5 + $0x818] sm:$0xff]
    %v475 = vld [vmem:[#allocation5 + $0x820] sm:$0xff]
    %v476 = vld [vmem:[#allocation5 + $0x828] sm:$0xff]
    %v477 = vld [vmem:[#allocation5 + $0x830] sm:$0xff]
    %v478 = vld [vmem:[#allocation5 + $0x838] sm:$0xff]
    %v479 = vld [vmem:[#allocation5 + $0x840] sm:$0xff]
    %v480 = vld [vmem:[#allocation5 + $0x848] sm:$0xff]
    %v481 = vld [vmem:[#allocation5 + $0x850] sm:$0xff]
    %v482 = vld [vmem:[#allocation5 + $0x858] sm:$0xff]
    %v483 = vld [vmem:[#allocation5 + $0x860] sm:$0xff]
    %v484 = vld [vmem:[#allocation5 + $0x868] sm:$0xff]
    %v485 = vld [vmem:[#allocation5 + $0x870] sm:$0xff]
    %v486 = vld [vmem:[#allocation5 + $0x878] sm:$0xff]
    %v487 = vld [vmem:[#allocation5 + $0x880] sm:$0xff]
    %v488 = vld [vmem:[#allocation5 + $0x888] sm:$0xff]
    %v489 = vld [vmem:[#allocation5 + $0x890] sm:$0xff]
    %v490 = vld [vmem:[#allocation5 + $0x898] sm:$0xff]
    %v491 = vld [vmem:[#allocation5 + $0x8a0] sm:$0xff]
    %v492 = vld [vmem:[#allocation5 + $0x8a8] sm:$0xff]
    %v493 = vld [vmem:[#allocation5 + $0x8b0] sm:$0xff]
    %v494 = vld [vmem:[#allocation5 + $0x8b8] sm:$0xff]
    %v495 = vld [vmem:[#allocation5 + $0x8c0] sm:$0xff]
    %v496 = vld [vmem:[#allocation5 + $0x8c8] sm:$0xff]
    %v497 = vld [vmem:[#allocation5 + $0x8d0] sm:$0xff]
    %v498 = vld [vmem:[#allocation5 + $0x8d8] sm:$0xff]
    %v499 = vld [vmem:[#allocation5 + $0x8e0] sm:$0xff]
    %v500 = vld [vmem:[#allocation5 + $0x8e8] sm:$0xff]
    %v501 = vld [vmem:[#allocation5 + $0x8f0] sm:$0xff]
    %v502 = vld [vmem:[#allocation5 + $0x8f8] sm:$0xff]
    %v503 = vld [vmem:[#allocation5 + $0x900] sm:$0xff]
    %v504 = vld [vmem:[#allocation5 + $0x908] sm:$0xff]
    %v505 = vld [vmem:[#allocation5 + $0x910] sm:$0xff]
    %v506 = vld [vmem:[#allocation5 + $0x918] sm:$0xff]
    %v507 = vld [vmem:[#allocation5 + $0x920] sm:$0xff]
    %v508 = vld [vmem:[#allocation5 + $0x928] sm:$0xff]
    %v509 = vld [vmem:[#allocation5 + $0x930] sm:$0xff]
    %v510 = vld [vmem:[#allocation5 + $0x938] sm:$0xff]
    %v511 = vld [vmem:[#allocation5 + $0x940] sm:$0xff]
    %v512 = vld [vmem:[#allocation5 + $0x948] sm:$0xff]
    %v513 = vld [vmem:[#allocation5 + $0x950] sm:$0xff]
    %v514 = vld [vmem:[#allocation5 + $0x958] sm:$0xff]
    %v515 = vld [vmem:[#allocation5 + $0x960] sm:$0xff]
    %v516 = vld [vmem:[#allocation5 + $0x968] sm:$0xff]
    %v517 = vld [vmem:[#allocation5 + $0x970] sm:$0xff]
    %v518 = vld [vmem:[#allocation5 + $0x978] sm:$0xff]
    %v519 = vld [vmem:[#allocation5 + $0x980] sm:$0xff]
    %v520 = vld [vmem:[#allocation5 + $0x988] sm:$0xff]
    %v521 = vld [vmem:[#allocation5 + $0x990] sm:$0xff]
    %v522 = vld [vmem:[#allocation5 + $0x998] sm:$0xff]
    %v523 = vld [vmem:[#allocation5 + $0x9a0] sm:$0xff]
    %v524 = vld [vmem:[#allocation5 + $0x9a8] sm:$0xff]
    %v525 = vld [vmem:[#allocation5 + $0x9b0] sm:$0xff]
    %v526 = vld [vmem:[#allocation5 + $0x9b8] sm:$0xff]
    %v527 = vld [vmem:[#allocation5 + $0x9c0] sm:$0xff]
    %v528 = vld [vmem:[#allocation5 + $0x9c8] sm:$0xff]
    %v529 = vld [vmem:[#allocation5 + $0x9d0] sm:$0xff]
    %v530 = vld [vmem:[#allocation5 + $0x9d8] sm:$0xff]
    %v531 = vld [vmem:[#allocation5 + $0x9e0] sm:$0xff]
    %v532 = vld [vmem:[#allocation5 + $0x9e8] sm:$0xff]
    %v533 = vld [vmem:[#allocation5 + $0x9f0] sm:$0xff]
    %v534 = vld [vmem:[#allocation5 + $0x9f8] sm:$0xff]
    %v535 = vld [vmem:[#allocation5 + $0xa00] sm:$0xff]
    %v536 = vld [vmem:[#allocation5 + $0xa08] sm:$0xff]
    %v537 = vld [vmem:[#allocation5 + $0xa10] sm:$0xff]
    %v538 = vld [vmem:[#allocation5 + $0xa18] sm:$0xff]
    %v539 = vld [vmem:[#allocation5 + $0xa20] sm:$0xff]
    %v540 = vld [vmem:[#allocation5 + $0xa28] sm:$0xff]
    %v541 = vld [vmem:[#allocation5 + $0xa30] sm:$0xff]
    %v542 = vld [vmem:[#allocation5 + $0xa38] sm:$0xff]
    %v543 = vld [vmem:[#allocation5 + $0xa40] sm:$0xff]
    %v544 = vld [vmem:[#allocation5 + $0xa48] sm:$0xff]
    %v545 = vld [vmem:[#allocation5 + $0xa50] sm:$0xff]
    %v546 = vld [vmem:[#allocation5 + $0xa58] sm:$0xff]
    %v547 = vld [vmem:[#allocation5 + $0xa60] sm:$0xff]
    %v548 = vld [vmem:[#allocation5 + $0xa68] sm:$0xff]
    %v549 = vld [vmem:[#allocation5 + $0xa70] sm:$0xff]
    %v550 = vld [vmem:[#allocation5 + $0xa78] sm:$0xff]
    %v551 = vld [vmem:[#allocation5 + $0xa80] sm:$0xff]
    %v552 = vld [vmem:[#allocation5 + $0xa88] sm:$0xff]
    %v553 = vld [vmem:[#allocation5 + $0xa90] sm:$0xff]
    %v554 = vld [vmem:[#allocation5 + $0xa98] sm:$0xff]
    %v555 = vld [vmem:[#allocation5 + $0xaa0] sm:$0xff]
    %v556 = vld [vmem:[#allocation5 + $0xaa8] sm:$0xff]
    %v557 = vld [vmem:[#allocation5 + $0xab0] sm:$0xff]
    %v558 = vld [vmem:[#allocation5 + $0xab8] sm:$0xff]
    %v559 = vld [vmem:[#allocation5 + $0xac0] sm:$0xff]
    %v560 = vld [vmem:[#allocation5 + $0xac8] sm:$0xff]
    %v561 = vld [vmem:[#allocation5 + $0xad0] sm:$0xff]
    %v562 = vld [vmem:[#allocation5 + $0xad8] sm:$0xff]
    %v563 = vld [vmem:[#allocation5 + $0xae0] sm:$0xff]
    %v564 = vld [vmem:[#allocation5 + $0xae8] sm:$0xff]
    %v565 = vld [vmem:[#allocation5 + $0xaf0] sm:$0xff]
    %v566 = vld [vmem:[#allocation5 + $0xaf8] sm:$0xff]
    %v567 = vld [vmem:[#allocation5 + $0xb00] sm:$0xff]
    %v568 = vld [vmem:[#allocation5 + $0xb08] sm:$0xff]
    %v569 = vld [vmem:[#allocation5 + $0xb10] sm:$0xff]
    %v570 = vld [vmem:[#allocation5 + $0xb18] sm:$0xff]
    %v571 = vld [vmem:[#allocation5 + $0xb20] sm:$0xff]
    %v572 = vld [vmem:[#allocation5 + $0xb28] sm:$0xff]
    %v573 = vld [vmem:[#allocation5 + $0xb30] sm:$0xff]
    %v574 = vld [vmem:[#allocation5 + $0xb38] sm:$0xff]
    %v575 = vld [vmem:[#allocation5 + $0xb40] sm:$0xff]
    %v576 = vld [vmem:[#allocation5 + $0xb48] sm:$0xff]
    %v577 = vld [vmem:[#allocation5 + $0xb50] sm:$0xff]
    %v578 = vld [vmem:[#allocation5 + $0xb58] sm:$0xff]
    %v579 = vld [vmem:[#allocation5 + $0xb60] sm:$0xff]
    %v580 = vld [vmem:[#allocation5 + $0xb68] sm:$0xff]
    %v581 = vld [vmem:[#allocation5 + $0xb70] sm:$0xff]
    %v582 = vld [vmem:[#allocation5 + $0xb78] sm:$0xff]
    %v583 = vld [vmem:[#allocation5 + $0xb80] sm:$0xff]
    %v584 = vld [vmem:[#allocation5 + $0xb88] sm:$0xff]
    %v585 = vld [vmem:[#allocation5 + $0xb90] sm:$0xff]
    %v586 = vld [vmem:[#allocation5 + $0xb98] sm:$0xff]
    %v587 = vld [vmem:[#allocation5 + $0xba0] sm:$0xff]
    %v588 = vld [vmem:[#allocation5 + $0xba8] sm:$0xff]
    %v589 = vld [vmem:[#allocation5 + $0xbb0] sm:$0xff]
    %v590 = vld [vmem:[#allocation5 + $0xbb8] sm:$0xff]
    %v591 = vld [vmem:[#allocation5 + $0xbc0] sm:$0xff]
    %v592 = vld [vmem:[#allocation5 + $0xbc8] sm:$0xff]
    %v593 = vld [vmem:[#allocation5 + $0xbd0] sm:$0xff]
    %v594 = vld [vmem:[#allocation5 + $0xbd8] sm:$0xff]
    %v595 = vld [vmem:[#allocation5 + $0xbe0] sm:$0xff]
    %v596 = vld [vmem:[#allocation5 + $0xbe8] sm:$0xff]
    %v597 = vld [vmem:[#allocation5 + $0xbf0] sm:$0xff]
    %v598 = vld [vmem:[#allocation5 + $0xbf8] sm:$0xff]
    %v599 = vld [vmem:[#allocation5 + $0xc00] sm:$0xff]
    %v600 = vld [vmem:[#allocation5 + $0xc08] sm:$0xff]
    %v601 = vld [vmem:[#allocation5 + $0xc10] sm:$0xff]
    %v602 = vld [vmem:[#allocation5 + $0xc18] sm:$0xff]
    %v603 = vld [vmem:[#allocation5 + $0xc20] sm:$0xff]
    %v604 = vld [vmem:[#allocation5 + $0xc28] sm:$0xff]
    %v605 = vld [vmem:[#allocation5 + $0xc30] sm:$0xff]
    %v606 = vld [vmem:[#allocation5 + $0xc38] sm:$0xff]
    %v607 = vld [vmem:[#allocation5 + $0xc40] sm:$0xff]
    %v608 = vld [vmem:[#allocation5 + $0xc48] sm:$0xff]
    %v609 = vld [vmem:[#allocation5 + $0xc50] sm:$0xff]
    %v610 = vld [vmem:[#allocation5 + $0xc58] sm:$0xff]
    %v611 = vld [vmem:[#allocation5 + $0xc60] sm:$0xff]
    %v612 = vld [vmem:[#allocation5 + $0xc68] sm:$0xff]
    %v613 = vld [vmem:[#allocation5 + $0xc70] sm:$0xff]
    %v614 = vld [vmem:[#allocation5 + $0xc78] sm:$0xff]
    %v615 = vld [vmem:[#allocation5 + $0xc80] sm:$0xff]
    %v616 = vld [vmem:[#allocation5 + $0xc88] sm:$0xff]
    %v617 = vld [vmem:[#allocation5 + $0xc90] sm:$0xff]
    %v618 = vld [vmem:[#allocation5 + $0xc98] sm:$0xff]
    %v619 = vld [vmem:[#allocation5 + $0xca0] sm:$0xff]
    %v620 = vld [vmem:[#allocation5 + $0xca8] sm:$0xff]
    %v621 = vld [vmem:[#allocation5 + $0xcb0] sm:$0xff]
    %v622 = vld [vmem:[#allocation5 + $0xcb8] sm:$0xff]
    %v623 = vld [vmem:[#allocation5 + $0xcc0] sm:$0xff]
    %v624 = vld [vmem:[#allocation5 + $0xcc8] sm:$0xff]
    %v625 = vld [vmem:[#allocation5 + $0xcd0] sm:$0xff]
    %v626 = vld [vmem:[#allocation5 + $0xcd8] sm:$0xff]
    %v627 = vld [vmem:[#allocation5 + $0xce0] sm:$0xff]
    %v628 = vld [vmem:[#allocation5 + $0xce8] sm:$0xff]
    %v629 = vld [vmem:[#allocation5 + $0xcf0] sm:$0xff]
    %v630 = vld [vmem:[#allocation5 + $0xcf8] sm:$0xff]
    %v631 = vld [vmem:[#allocation5 + $0xd00] sm:$0xff]
    %v632 = vld [vmem:[#allocation5 + $0xd08] sm:$0xff]
    %v633 = vld [vmem:[#allocation5 + $0xd10] sm:$0xff]
    %v634 = vld [vmem:[#allocation5 + $0xd18] sm:$0xff]
    %v635 = vld [vmem:[#allocation5 + $0xd20] sm:$0xff]
    %v636 = vld [vmem:[#allocation5 + $0xd28] sm:$0xff]
    %v637 = vld [vmem:[#allocation5 + $0xd30] sm:$0xff]
    %v638 = vld [vmem:[#allocation5 + $0xd38] sm:$0xff]
    %v639 = vld [vmem:[#allocation5 + $0xd40] sm:$0xff]
    %v640 = vld [vmem:[#allocation5 + $0xd48] sm:$0xff]
    %v641 = vld [vmem:[#allocation5 + $0xd50] sm:$0xff]
    %v642 = vld [vmem:[#allocation5 + $0xd58] sm:$0xff]
    %v643 = vld [vmem:[#allocation5 + $0xd60] sm:$0xff]
    %v644 = vld [vmem:[#allocation5 + $0xd68] sm:$0xff]
    %v645 = vld [vmem:[#allocation5 + $0xd70] sm:$0xff]
    %v646 = vld [vmem:[#allocation5 + $0xd78] sm:$0xff]
    %v647 = vld [vmem:[#allocation5 + $0xd80] sm:$0xff]
    %v648 = vld [vmem:[#allocation5 + $0xd88] sm:$0xff]
    %v649 = vld [vmem:[#allocation5 + $0xd90] sm:$0xff]
    %v650 = vld [vmem:[#allocation5 + $0xd98] sm:$0xff]
    %v651 = vld [vmem:[#allocation5 + $0xda0] sm:$0xff]
    %v652 = vld [vmem:[#allocation5 + $0xda8] sm:$0xff]
    %v653 = vld [vmem:[#allocation5 + $0xdb0] sm:$0xff]
    %v654 = vld [vmem:[#allocation5 + $0xdb8] sm:$0xff]
    %v655 = vld [vmem:[#allocation5 + $0xdc0] sm:$0xff]
    %v656 = vld [vmem:[#allocation5 + $0xdc8] sm:$0xff]
    %v657 = vld [vmem:[#allocation5 + $0xdd0] sm:$0xff]
    %v658 = vld [vmem:[#allocation5 + $0xdd8] sm:$0xff]
    %v659 = vld [vmem:[#allocation5 + $0xde0] sm:$0xff]
    %v660 = vld [vmem:[#allocation5 + $0xde8] sm:$0xff]
    %v661 = vld [vmem:[#allocation5 + $0xdf0] sm:$0xff]
    %v662 = vld [vmem:[#allocation5 + $0xdf8] sm:$0xff]
    %v663 = vld [vmem:[#allocation5 + $0xe00] sm:$0xff]
    %v664 = vld [vmem:[#allocation5 + $0xe08] sm:$0xff]
    %v665 = vld [vmem:[#allocation5 + $0xe10] sm:$0xff]
    %v666 = vld [vmem:[#allocation5 + $0xe18] sm:$0xff]
    %v667 = vld [vmem:[#allocation5 + $0xe20] sm:$0xff]
    %v668 = vld [vmem:[#allocation5 + $0xe28] sm:$0xff]
    %v669 = vld [vmem:[#allocation5 + $0xe30] sm:$0xff]
    %v670 = vld [vmem:[#allocation5 + $0xe38] sm:$0xff]
    %v671 = vld [vmem:[#allocation5 + $0xe40] sm:$0xff]
    %v672 = vld [vmem:[#allocation5 + $0xe48] sm:$0xff]
    %v673 = vld [vmem:[#allocation5 + $0xe50] sm:$0xff]
    %v674 = vld [vmem:[#allocation5 + $0xe58] sm:$0xff]
    %v675 = vld [vmem:[#allocation5 + $0xe60] sm:$0xff]
    %v676 = vld [vmem:[#allocation5 + $0xe68] sm:$0xff]
    %v677 = vld [vmem:[#allocation5 + $0xe70] sm:$0xff]
    %v678 = vld [vmem:[#allocation5 + $0xe78] sm:$0xff]
    %v679 = vld [vmem:[#allocation5 + $0xe80] sm:$0xff]
    %v680 = vld [vmem:[#allocation5 + $0xe88] sm:$0xff]
    %v681 = vld [vmem:[#allocation5 + $0xe90] sm:$0xff]
    %v682 = vld [vmem:[#allocation5 + $0xe98] sm:$0xff]
    %v683 = vld [vmem:[#allocation5 + $0xea0] sm:$0xff]
    %v684 = vld [vmem:[#allocation5 + $0xea8] sm:$0xff]
    %v685 = vld [vmem:[#allocation5 + $0xeb0] sm:$0xff]
    %v686 = vld [vmem:[#allocation5 + $0xeb8] sm:$0xff]
    %v687 = vld [vmem:[#allocation5 + $0xec0] sm:$0xff]
    %v688 = vld [vmem:[#allocation5 + $0xec8] sm:$0xff]
    %v689 = vld [vmem:[#allocation5 + $0xed0] sm:$0xff]
    %v690 = vld [vmem:[#allocation5 + $0xed8] sm:$0xff]
    %v691 = vld [vmem:[#allocation5 + $0xee0] sm:$0xff]
    %v692 = vld [vmem:[#allocation5 + $0xee8] sm:$0xff]
    %v693 = vld [vmem:[#allocation5 + $0xef0] sm:$0xff]
    %v694 = vld [vmem:[#allocation5 + $0xef8] sm:$0xff]
    %v695 = vld [vmem:[#allocation5 + $0xf00] sm:$0xff]
    %v696 = vld [vmem:[#allocation5 + $0xf08] sm:$0xff]
    %v697 = vld [vmem:[#allocation5 + $0xf10] sm:$0xff]
    %v698 = vld [vmem:[#allocation5 + $0xf18] sm:$0xff]
    %v699 = vld [vmem:[#allocation5 + $0xf20] sm:$0xff]
    %v700 = vld [vmem:[#allocation5 + $0xf28] sm:$0xff]
    %v701 = vld [vmem:[#allocation5 + $0xf30] sm:$0xff]
    %v702 = vld [vmem:[#allocation5 + $0xf38] sm:$0xff]
    %v703 = vld [vmem:[#allocation5 + $0xf40] sm:$0xff]
    %v704 = vld [vmem:[#allocation5 + $0xf48] sm:$0xff]
    %v705 = vld [vmem:[#allocation5 + $0xf50] sm:$0xff]
    %v706 = vld [vmem:[#allocation5 + $0xf58] sm:$0xff]
    %v707 = vld [vmem:[#allocation5 + $0xf60] sm:$0xff]
    %v708 = vld [vmem:[#allocation5 + $0xf68] sm:$0xff]
    %v709 = vld [vmem:[#allocation5 + $0xf70] sm:$0xff]
    %v710 = vld [vmem:[#allocation5 + $0xf78] sm:$0xff]
    %v711 = vld [vmem:[#allocation5 + $0xf80] sm:$0xff]
    %v712 = vld [vmem:[#allocation5 + $0xf88] sm:$0xff]
    %v713 = vld [vmem:[#allocation5 + $0xf90] sm:$0xff]
    %v714 = vld [vmem:[#allocation5 + $0xf98] sm:$0xff]
    %v715 = vld [vmem:[#allocation5 + $0xfa0] sm:$0xff]
    %v716 = vld [vmem:[#allocation5 + $0xfa8] sm:$0xff]
    %v717 = vld [vmem:[#allocation5 + $0xfb0] sm:$0xff]
    %v718 = vld [vmem:[#allocation5 + $0xfb8] sm:$0xff]
    %v719 = vld [vmem:[#allocation5 + $0xfc0] sm:$0xff]
    %v720 = vld [vmem:[#allocation5 + $0xfc8] sm:$0xff]
    %v721 = vld [vmem:[#allocation5 + $0xfd0] sm:$0xff]
    %v722 = vld [vmem:[#allocation5 + $0xfd8] sm:$0xff]
    %v723 = vld [vmem:[#allocation5 + $0xfe0] sm:$0xff]
    %v724 = vld [vmem:[#allocation5 + $0xfe8] sm:$0xff]
    %v725 = vld [vmem:[#allocation5 + $0xff0] sm:$0xff]
    %v726 = vld [vmem:[#allocation5 + $0xff8] sm:$0xff]
    %v727 = vld [vmem:[#allocation5 + $0x1000] sm:$0xff]
    %v728 = vld [vmem:[#allocation5 + $0x1008] sm:$0xff]
    %v729 = vld [vmem:[#allocation5 + $0x1010] sm:$0xff]
    %v730 = vld [vmem:[#allocation5 + $0x1018] sm:$0xff]
    %v731 = vld [vmem:[#allocation5 + $0x1020] sm:$0xff]
    %v732 = vld [vmem:[#allocation5 + $0x1028] sm:$0xff]
    %v733 = vld [vmem:[#allocation5 + $0x1030] sm:$0xff]
    %v734 = vld [vmem:[#allocation5 + $0x1038] sm:$0xff]
    %v735 = vld [vmem:[#allocation5 + $0x1040] sm:$0xff]
    %v736 = vld [vmem:[#allocation5 + $0x1048] sm:$0xff]
    %v737 = vld [vmem:[#allocation5 + $0x1050] sm:$0xff]
    %v738 = vld [vmem:[#allocation5 + $0x1058] sm:$0xff]
    %v739 = vld [vmem:[#allocation5 + $0x1060] sm:$0xff]
    %v740 = vld [vmem:[#allocation5 + $0x1068] sm:$0xff]
    %v741 = vld [vmem:[#allocation5 + $0x1070] sm:$0xff]
    %v742 = vld [vmem:[#allocation5 + $0x1078] sm:$0xff]
    %v743 = vld [vmem:[#allocation5 + $0x1080] sm:$0xff]
    %v744 = vld [vmem:[#allocation5 + $0x1088] sm:$0xff]
    %v745 = vld [vmem:[#allocation5 + $0x1090] sm:$0xff]
    %v746 = vld [vmem:[#allocation5 + $0x1098] sm:$0xff]
    %v747 = vld [vmem:[#allocation5 + $0x10a0] sm:$0xff]
    %v748 = vld [vmem:[#allocation5 + $0x10a8] sm:$0xff]
    %v749 = vld [vmem:[#allocation5 + $0x10b0] sm:$0xff]
    %v750 = vld [vmem:[#allocation5 + $0x10b8] sm:$0xff]
    %v751 = vld [vmem:[#allocation5 + $0x10c0] sm:$0xff]
    %v752 = vld [vmem:[#allocation5 + $0x10c8] sm:$0xff]
    %v753 = vld [vmem:[#allocation5 + $0x10d0] sm:$0xff]
    %v754 = vld [vmem:[#allocation5 + $0x10d8] sm:$0xff]
    %v755 = vld [vmem:[#allocation5 + $0x10e0] sm:$0xff]
    %v756 = vld [vmem:[#allocation5 + $0x10e8] sm:$0xff]
    %v757 = vld [vmem:[#allocation5 + $0x10f0] sm:$0xff]
    %v758 = vld [vmem:[#allocation5 + $0x10f8] sm:$0xff]
    %v759 = vld [vmem:[#allocation5 + $0x1100] sm:$0xff]
    %v760 = vld [vmem:[#allocation5 + $0x1108] sm:$0xff]
    %v761 = vld [vmem:[#allocation5 + $0x1110] sm:$0xff]
    %v762 = vld [vmem:[#allocation5 + $0x1118] sm:$0xff]
    %v763 = vld [vmem:[#allocation5 + $0x1120] sm:$0xff]
    %v764 = vld [vmem:[#allocation5 + $0x1128] sm:$0xff]
    %v765 = vld [vmem:[#allocation5 + $0x1130] sm:$0xff]
    %v766 = vld [vmem:[#allocation5 + $0x1138] sm:$0xff]
    %v767 = vld [vmem:[#allocation5 + $0x1140] sm:$0xff]
    %v768 = vld [vmem:[#allocation5 + $0x1148] sm:$0xff]
    %v769 = vld [vmem:[#allocation5 + $0x1150] sm:$0xff]
    %v770 = vld [vmem:[#allocation5 + $0x1158] sm:$0xff]
    %v771 = vld [vmem:[#allocation5 + $0x1160] sm:$0xff]
    %v772 = vld [vmem:[#allocation5 + $0x1168] sm:$0xff]
    %v773 = vld [vmem:[#allocation5 + $0x1170] sm:$0xff]
    %v774 = vld [vmem:[#allocation5 + $0x1178] sm:$0xff]
    %v775 = vld [vmem:[#allocation5 + $0x1180] sm:$0xff]
    %v776 = vld [vmem:[#allocation5 + $0x1188] sm:$0xff]
    %v777 = vld [vmem:[#allocation5 + $0x1190] sm:$0xff]
    %v778 = vld [vmem:[#allocation5 + $0x1198] sm:$0xff]
    %v779 = vld [vmem:[#allocation5 + $0x11a0] sm:$0xff]
    %v780 = vld [vmem:[#allocation5 + $0x11a8] sm:$0xff]
    %v781 = vld [vmem:[#allocation5 + $0x11b0] sm:$0xff]
    %v782 = vld [vmem:[#allocation5 + $0x11b8] sm:$0xff]
    %v783 = vld [vmem:[#allocation5 + $0x11c0] sm:$0xff]
    %v784 = vld [vmem:[#allocation5 + $0x11c8] sm:$0xff]
    %v785 = vld [vmem:[#allocation5 + $0x11d0] sm:$0xff]
    %v786 = vld [vmem:[#allocation5 + $0x11d8] sm:$0xff]
    %v787 = vld [vmem:[#allocation5 + $0x11e0] sm:$0xff]
    %v788 = vld [vmem:[#allocation5 + $0x11e8] sm:$0xff]
    %v789 = vld [vmem:[#allocation5 + $0x11f0] sm:$0xff]
    %v790 = vld [vmem:[#allocation5 + $0x11f8] sm:$0xff]
    %791 = vmatprep.subr.mxu0 %v216
    %792 = vmatpush1.msra.mxu0 %v215
    %793 = vmatprep.subr.mxu0 %v228
    %794 = vmatpush1.msra.mxu0 %v227
    %795 = vmatprep.subr.mxu0 %v240
    %796 = vmatpush1.msra.mxu0 %v239
    %797 = vmatprep.subr.mxu0 %v252
    %798 = vmatpush1.msra.mxu0 %v251
    %799 = vmatprep.subr.mxu0 %v264
    %800 = vmatpush1.msra.mxu0 %v263
    %801 = vmatprep.subr.mxu0 %v276
    %802 = vmatpush1.msra.mxu0 %v275
    %803 = vmatprep.subr.mxu0 %v288
    %804 = vmatpush1.msra.mxu0 %v287
    %805 = vmatprep.subr.mxu0 %v300
    %806 = vmatpush1.msra.mxu0 %v299
    %807 = vmatprep.subr.mxu0 %v312
    %808 = vmatpush1.msra.mxu0 %v311
    %809 = vmatprep.subr.mxu0 %v324
    %810 = vmatpush1.msra.mxu0 %v323
    %811 = vmatprep.subr.mxu0 %v336
    %812 = vmatpush1.msra.mxu0 %v335
    %813 = vmatprep.subr.mxu0 %v348
    %814 = vmatpush1.msra.mxu0 %v347
    %815 = vmatprep.subr.mxu0 %v360
    %816 = vmatpush1.msra.mxu0 %v359
    %817 = vmatprep.subr.mxu0 %v372
    %818 = vmatpush1.msra.mxu0 %v371
    %819 = vmatprep.subr.mxu0 %v384
    %820 = vmatpush1.msra.mxu0 %v383
    %821 = vmatprep.subr.mxu0 %v396
    %822 = vmatpush1.msra.mxu0 %v395
    %823 = vmatprep.subr.mxu0 %v408
    %824 = vmatpush1.msra.mxu0 %v407
    %825 = vmatprep.subr.mxu0 %v420
    %826 = vmatpush1.msra.mxu0 %v419
    %827 = vmatprep.subr.mxu0 %v432
    %828 = vmatpush1.msra.mxu0 %v431
    %829 = vmatprep.subr.mxu0 %v444
    %830 = vmatpush1.msra.mxu0 %v443
    %831 = vmatprep.subr.mxu0 %v456
    %832 = vmatpush1.msra.mxu0 %v455
    %833 = vmatprep.subr.mxu0 %v468
    %834 = vmatpush1.msra.mxu0 %v467
    %835 = vmatprep.subr.mxu0 %v480
    %836 = vmatpush1.msra.mxu0 %v479
    %837 = vmatprep.subr.mxu0 %v492
    %838 = vmatpush1.msra.mxu0 %v491
    %839 = vmatprep.subr.mxu0 %v504
    %840 = vmatpush1.msra.mxu0 %v503
    %841 = vmatprep.subr.mxu0 %v516
    %842 = vmatpush1.msra.mxu0 %v515
    %843 = vmatprep.subr.mxu0 %v528
    %844 = vmatpush1.msra.mxu0 %v527
    %845 = vmatprep.subr.mxu0 %v540
    %846 = vmatpush1.msra.mxu0 %v539
    %847 = vmatprep.subr.mxu0 %v552
    %848 = vmatpush1.msra.mxu0 %v551
    %849 = vmatprep.subr.mxu0 %v564
    %850 = vmatpush1.msra.mxu0 %v563
    %851 = vmatprep.subr.mxu0 %v576
    %852 = vmatpush1.msra.mxu0 %v575
    %853 = vmatprep.subr.mxu0 %v588
    %854 = vmatpush1.msra.mxu0 %v587
    %855 = vmatprep.mubr.f32.mxu0 %v192
    %856 = vmatmul.mubr.f32.gmra.mrb[0].mxu0 %v191
    %v857 = vpop.f32.mrb[0].mxu0
    %v858 = vadd.f32 0.0, %v857
    %v859 = vpop.f32.mrb[0].mxu0
    %v860 = vadd.f32 0.0, %v859
    %861 = vmatprep.mubr.f32.mxu0 %v195
    %862 = vmatmul.mubr.f32.gmra.mrb[0].mxu0 %v194
    %v863 = vpop.f32.mrb[0].mxu0
    %v864 = vadd.f32 0.0, %v863
    %v865 = vpop.f32.mrb[0].mxu0
    %v866 = vadd.f32 0.0, %v865
    %867 = vmatprep.mubr.f32.mxu0 %v198
    %868 = vmatmul.mubr.f32.gmra.mrb[0].mxu0 %v197
    %v869 = vpop.f32.mrb[0].mxu0
    %v870 = vadd.f32 0.0, %v869
    %v871 = vpop.f32.mrb[0].mxu0
    %v872 = vadd.f32 0.0, %v871
    %873 = vmatprep.mubr.f32.mxu0 %v201
    %874 = vmatmul.mubr.f32.gmra.mrb[0].mxu0 %v200
    %v875 = vpop.f32.mrb[0].mxu0
    %v876 = vadd.f32 0.0, %v875
    %v877 = vpop.f32.mrb[0].mxu0
    %v878 = vadd.f32 0.0, %v877
    %879 = vmatprep.mubr.f32.mxu0 %v204
    %880 = vmatmul.mubr.f32.gmra.mrb[0].mxu0 %v203
    %v881 = vpop.f32.mrb[0].mxu0
    %v882 = vadd.f32 0.0, %v881
    %v883 = vpop.f32.mrb[0].mxu0
    %v884 = vadd.f32 0.0, %v883
    %885 = vmatprep.mubr.f32.mxu0 %v207
    %886 = vmatmul.mubr.f32.gmra.mrb[0].mxu0 %v206
    %v887 = vpop.f32.mrb[0].mxu0
    %v888 = vadd.f32 0.0, %v887
    %v889 = vpop.f32.mrb[0].mxu0
    %v890 = vadd.f32 0.0, %v889
    %891 = vmatprep.mubr.f32.mxu0 %v210
    %892 = vmatmul.mubr.f32.gmra.mrb[0].mxu0 %v209
    %v893 = vpop.f32.mrb[0].mxu0
    %v894 = vadd.f32 0.0, %v893
    %v895 = vpop.f32.mrb[0].mxu0
    %v896 = vadd.f32 0.0, %v895
    %897 = vmatprep.mubr.f32.mxu0 %v213
    %898 = vmatmul.mubr.f32.gmra.mrb[0].mxu0 %v212
    %v899 = vpop.f32.mrb[0].mxu0
    %v900 = vadd.f32 0.0, %v899
    %v901 = vpop.f32.mrb[0].mxu0
    %v902 = vadd.f32 0.0, %v901
    %903 = vdwg.mxu0
    %904 = vmatprep.subr.mxu0 %v600
    %905 = vmatpush1.msra.mxu0 %v599
    %906 = vmatprep.subr.mxu0 %v612
    %907 = vmatpush1.msra.mxu0 %v611
    %908 = vmatprep.subr.mxu0 %v624
    %909 = vmatpush1.msra.mxu0 %v623
    %910 = vmatprep.subr.mxu0 %v636
    %911 = vmatpush1.msra.mxu0 %v635
    %912 = vmatprep.subr.mxu0 %v648
    %913 = vmatpush1.msra.mxu0 %v647
    %914 = vmatprep.subr.mxu0 %v660
    %915 = vmatpush1.msra.mxu0 %v659
    %916 = vmatprep.subr.mxu0 %v672
    %917 = vmatpush1.msra.mxu0 %v671
    %918 = vmatprep.subr.mxu0 %v684
    %919 = vmatpush1.msra.mxu0 %v683
    %920 = vmatprep.subr.mxu0 %v696
    %921 = vmatpush1.msra.mxu0 %v695
    %922 = vmatprep.subr.mxu0 %v708
    %923 = vmatpush1.msra.mxu0 %v707
    %924 = vmatprep.subr.mxu0 %v720
    %925 = vmatpush1.msra.mxu0 %v719
    %926 = vmatprep.subr.mxu0 %v732
    %927 = vmatpush1.msra.mxu0 %v731
    %928 = vmatprep.subr.mxu0 %v744
    %929 = vmatpush1.msra.mxu0 %v743
    %930 = vmatprep.subr.mxu0 %v756
    %931 = vmatpush1.msra.mxu0 %v755
    %932 = vmatprep.subr.mxu0 %v768
    %933 = vmatpush1.msra.mxu0 %v767
    %934 = vmatprep.subr.mxu0 %v780
    %935 = vmatpush1.msra.mxu0 %v779
    %936 = vmatprep.subr.mxu0 0.0
    %937 = vmatpush1.msra.mxu0 0.0
    %938 = vmatprep.subr.mxu0 0.0
    %939 = vmatpush1.msra.mxu0 0.0
    %940 = vmatprep.subr.mxu0 0.0
    %941 = vmatpush1.msra.mxu0 0.0
    %942 = vmatprep.subr.mxu0 0.0
    %943 = vmatpush1.msra.mxu0 0.0
    %944 = vmatprep.subr.mxu0 0.0
    %945 = vmatpush1.msra.mxu0 0.0
    %946 = vmatprep.subr.mxu0 0.0
    %947 = vmatpush1.msra.mxu0 0.0
    %948 = vmatprep.subr.mxu0 0.0
    %949 = vmatpush1.msra.mxu0 0.0
    %950 = vmatprep.subr.mxu0 0.0
    %951 = vmatpush1.msra.mxu0 0.0
    %952 = vmatprep.subr.mxu0 0.0
    %953 = vmatpush1.msra.mxu0 0.0
    %954 = vmatprep.subr.mxu0 0.0
    %955 = vmatpush1.msra.mxu0 0.0
    %956 = vmatprep.subr.mxu0 0.0
    %957 = vmatpush1.msra.mxu0 0.0
    %958 = vmatprep.subr.mxu0 0.0
    %959 = vmatpush1.msra.mxu0 0.0
    %960 = vmatprep.subr.mxu0 0.0
    %961 = vmatpush1.msra.mxu0 0.0
    %962 = vmatprep.subr.mxu0 0.0
    %963 = vmatpush1.msra.mxu0 0.0
    %964 = vmatprep.subr.mxu0 0.0
    %965 = vmatpush1.msra.mxu0 0.0
    %966 = vmatprep.subr.mxu0 0.0
    %967 = vmatpush1.msra.mxu0 0.0
    %968 = vmatprep.mubr.f32.mxu0 0.0
    %969 = vmatmul.mubr.f32.gmra.mrb[0].mxu0 %v193
    %v970 = vpop.f32.mrb[0].mxu0
    %v971 = vadd.f32 %v858, %v970
    %v972 = vpop.f32.mrb[0].mxu0
    %v973 = vadd.f32 %v860, %v972
    %974 = vmatprep.mubr.f32.mxu0 0.0
    %975 = vmatmul.mubr.f32.gmra.mrb[0].mxu0 %v196
    %v976 = vpop.f32.mrb[0].mxu0
    %v977 = vadd.f32 %v864, %v976
    %v978 = vpop.f32.mrb[0].mxu0
    %v979 = vadd.f32 %v866, %v978
    %980 = vmatprep.mubr.f32.mxu0 0.0
    %981 = vmatmul.mubr.f32.gmra.mrb[0].mxu0 %v199
    %v982 = vpop.f32.mrb[0].mxu0
    %v983 = vadd.f32 %v870, %v982
    %v984 = vpop.f32.mrb[0].mxu0
    %v985 = vadd.f32 %v872, %v984
    %986 = vmatprep.mubr.f32.mxu0 0.0
    %987 = vmatmul.mubr.f32.gmra.mrb[0].mxu0 %v202
    %v988 = vpop.f32.mrb[0].mxu0
    %v989 = vadd.f32 %v876, %v988
    %v990 = vpop.f32.mrb[0].mxu0
    %v991 = vadd.f32 %v878, %v990
    %992 = vmatprep.mubr.f32.mxu0 0.0
    %993 = vmatmul.mubr.f32.gmra.mrb[0].mxu0 %v205
    %v994 = vpop.f32.mrb[0].mxu0
    %v995 = vadd.f32 %v882, %v994
    %v996 = vpop.f32.mrb[0].mxu0
    %v997 = vadd.f32 %v884, %v996
    %998 = vmatprep.mubr.f32.mxu0 0.0
    %999 = vmatmul.mubr.f32.gmra.mrb[0].mxu0 %v208
    %v1000 = vpop.f32.mrb[0].mxu0
    %v1001 = vadd.f32 %v888, %v1000
    %v1002 = vpop.f32.mrb[0].mxu0
    %v1003 = vadd.f32 %v890, %v1002
    %1004 = vmatprep.mubr.f32.mxu0 0.0
    %1005 = vmatmul.mubr.f32.gmra.mrb[0].mxu0 %v211
    %v1006 = vpop.f32.mrb[0].mxu0
    %v1007 = vadd.f32 %v894, %v1006
    %v1008 = vpop.f32.mrb[0].mxu0
    %v1009 = vadd.f32 %v896, %v1008
    %1010 = vmatprep.mubr.f32.mxu0 0.0
    %1011 = vmatmul.mubr.f32.gmra.mrb[0].mxu0 %v214
    %v1012 = vpop.f32.mrb[0].mxu0
    %v1013 = vadd.f32 %v900, %v1012
    %v1014 = vpop.f32.mrb[0].mxu0
    %v1015 = vadd.f32 %v902, %v1014
    %1016 = vdwg.mxu0
    %1017 = vmatprep.subr.mxu0 %v218
    %1018 = vmatpush1.msra.mxu0 %v217
    %1019 = vmatprep.subr.mxu0 %v230
    %1020 = vmatpush1.msra.mxu0 %v229
    %1021 = vmatprep.subr.mxu0 %v242
    %1022 = vmatpush1.msra.mxu0 %v241
    %1023 = vmatprep.subr.mxu0 %v254
    %1024 = vmatpush1.msra.mxu0 %v253
    %1025 = vmatprep.subr.mxu0 %v266
    %1026 = vmatpush1.msra.mxu0 %v265
    %1027 = vmatprep.subr.mxu0 %v278
    %1028 = vmatpush1.msra.mxu0 %v277
    %1029 = vmatprep.subr.mxu0 %v290
    %1030 = vmatpush1.msra.mxu0 %v289
    %1031 = vmatprep.subr.mxu0 %v302
    %1032 = vmatpush1.msra.mxu0 %v301
    %1033 = vmatprep.subr.mxu0 %v314
    %1034 = vmatpush1.msra.mxu0 %v313
    %1035 = vmatprep.subr.mxu0 %v326
    %1036 = vmatpush1.msra.mxu0 %v325
    %1037 = vmatprep.subr.mxu0 %v338
    %1038 = vmatpush1.msra.mxu0 %v337
    %1039 = vmatprep.subr.mxu0 %v350
    %1040 = vmatpush1.msra.mxu0 %v349
    %1041 = vmatprep.subr.mxu0 %v362
    %1042 = vmatpush1.msra.mxu0 %v361
    %1043 = vmatprep.subr.mxu0 %v374
    %1044 = vmatpush1.msra.mxu0 %v373
    %1045 = vmatprep.subr.mxu0 %v386
    %1046 = vmatpush1.msra.mxu0 %v385
    %1047 = vmatprep.subr.mxu0 %v398
    %1048 = vmatpush1.msra.mxu0 %v397
    %1049 = vmatprep.subr.mxu0 %v410
    %1050 = vmatpush1.msra.mxu0 %v409
    %1051 = vmatprep.subr.mxu0 %v422
    %1052 = vmatpush1.msra.mxu0 %v421
    %1053 = vmatprep.subr.mxu0 %v434
    %1054 = vmatpush1.msra.mxu0 %v433
    %1055 = vmatprep.subr.mxu0 %v446
    %1056 = vmatpush1.msra.mxu0 %v445
    %1057 = vmatprep.subr.mxu0 %v458
    %1058 = vmatpush1.msra.mxu0 %v457
    %1059 = vmatprep.subr.mxu0 %v470
    %1060 = vmatpush1.msra.mxu0 %v469
    %1061 = vmatprep.subr.mxu0 %v482
    %1062 = vmatpush1.msra.mxu0 %v481
    %1063 = vmatprep.subr.mxu0 %v494
    %1064 = vmatpush1.msra.mxu0 %v493
    %1065 = vmatprep.subr.mxu0 %v506
    %1066 = vmatpush1.msra.mxu0 %v505
    %1067 = vmatprep.subr.mxu0 %v518
    %1068 = vmatpush1.msra.mxu0 %v517
    %1069 = vmatprep.subr.mxu0 %v530
    %1070 = vmatpush1.msra.mxu0 %v529
    %1071 = vmatprep.subr.mxu0 %v542
    %1072 = vmatpush1.msra.mxu0 %v541
    %1073 = vmatprep.subr.mxu0 %v554
    %1074 = vmatpush1.msra.mxu0 %v553
    %1075 = vmatprep.subr.mxu0 %v566
    %1076 = vmatpush1.msra.mxu0 %v565
    %1077 = vmatprep.subr.mxu0 %v578
    %1078 = vmatpush1.msra.mxu0 %v577
    %1079 = vmatprep.subr.mxu0 %v590
    %1080 = vmatpush1.msra.mxu0 %v589
    %1081 = vmatprep.mubr.f32.mxu0 %v192
    %1082 = vmatmul.mubr.f32.gmra.mrb[0].mxu0 %v191
    %v1083 = vpop.f32.mrb[0].mxu0
    %v1084 = vadd.f32 0.0, %v1083
    %v1085 = vpop.f32.mrb[0].mxu0
    %v1086 = vadd.f32 0.0, %v1085
    %1087 = vmatprep.mubr.f32.mxu0 %v195
    %1088 = vmatmul.mubr.f32.gmra.mrb[0].mxu0 %v194
    %v1089 = vpop.f32.mrb[0].mxu0
    %v1090 = vadd.f32 0.0, %v1089
    %v1091 = vpop.f32.mrb[0].mxu0
    %v1092 = vadd.f32 0.0, %v1091
    %1093 = vmatprep.mubr.f32.mxu0 %v198
    %1094 = vmatmul.mubr.f32.gmra.mrb[0].mxu0 %v197
    %v1095 = vpop.f32.mrb[0].mxu0
    %v1096 = vadd.f32 0.0, %v1095
    %v1097 = vpop.f32.mrb[0].mxu0
    %v1098 = vadd.f32 0.0, %v1097
    %1099 = vmatprep.mubr.f32.mxu0 %v201
    %1100 = vmatmul.mubr.f32.gmra.mrb[0].mxu0 %v200
    %v1101 = vpop.f32.mrb[0].mxu0
    %v1102 = vadd.f32 0.0, %v1101
    %v1103 = vpop.f32.mrb[0].mxu0
    %v1104 = vadd.f32 0.0, %v1103
    %1105 = vmatprep.mubr.f32.mxu0 %v204
    %1106 = vmatmul.mubr.f32.gmra.mrb[0].mxu0 %v203
    %v1107 = vpop.f32.mrb[0].mxu0
    %v1108 = vadd.f32 0.0, %v1107
    %v1109 = vpop.f32.mrb[0].mxu0
    %v1110 = vadd.f32 0.0, %v1109
    %1111 = vmatprep.mubr.f32.mxu0 %v207
    %1112 = vmatmul.mubr.f32.gmra.mrb[0].mxu0 %v206
    %v1113 = vpop.f32.mrb[0].mxu0
    %v1114 = vadd.f32 0.0, %v1113
    %v1115 = vpop.f32.mrb[0].mxu0
    %v1116 = vadd.f32 0.0, %v1115
    %1117 = vmatprep.mubr.f32.mxu0 %v210
    %1118 = vmatmul.mubr.f32.gmra.mrb[0].mxu0 %v209
    %v1119 = vpop.f32.mrb[0].mxu0
    %v1120 = vadd.f32 0.0, %v1119
    %v1121 = vpop.f32.mrb[0].mxu0
    %v1122 = vadd.f32 0.0, %v1121
    %1123 = vmatprep.mubr.f32.mxu0 %v213
    %1124 = vmatmul.mubr.f32.gmra.mrb[0].mxu0 %v212
    %v1125 = vpop.f32.mrb[0].mxu0
    %v1126 = vadd.f32 0.0, %v1125
    %v1127 = vpop.f32.mrb[0].mxu0
    %v1128 = vadd.f32 0.0, %v1127
    %1129 = vdwg.mxu0
    %1130 = vmatprep.subr.mxu0 %v602
    %1131 = vmatpush1.msra.mxu0 %v601
    %1132 = vmatprep.subr.mxu0 %v614
    %1133 = vmatpush1.msra.mxu0 %v613
    %1134 = vmatprep.subr.mxu0 %v626
    %1135 = vmatpush1.msra.mxu0 %v625
    %1136 = vmatprep.subr.mxu0 %v638
    %1137 = vmatpush1.msra.mxu0 %v637
    %1138 = vmatprep.subr.mxu0 %v650
    %1139 = vmatpush1.msra.mxu0 %v649
    %1140 = vmatprep.subr.mxu0 %v662
    %1141 = vmatpush1.msra.mxu0 %v661
    %1142 = vmatprep.subr.mxu0 %v674
    %1143 = vmatpush1.msra.mxu0 %v673
    %1144 = vmatprep.subr.mxu0 %v686
    %1145 = vmatpush1.msra.mxu0 %v685
    %1146 = vmatprep.subr.mxu0 %v698
    %1147 = vmatpush1.msra.mxu0 %v697
    %1148 = vmatprep.subr.mxu0 %v710
    %1149 = vmatpush1.msra.mxu0 %v709
    %1150 = vmatprep.subr.mxu0 %v722
    %1151 = vmatpush1.msra.mxu0 %v721
    %1152 = vmatprep.subr.mxu0 %v734
    %1153 = vmatpush1.msra.mxu0 %v733
    %1154 = vmatprep.subr.mxu0 %v746
    %1155 = vmatpush1.msra.mxu0 %v745
    %1156 = vmatprep.subr.mxu0 %v758
    %1157 = vmatpush1.msra.mxu0 %v757
    %1158 = vmatprep.subr.mxu0 %v770
    %1159 = vmatpush1.msra.mxu0 %v769
    %1160 = vmatprep.subr.mxu0 %v782
    %1161 = vmatpush1.msra.mxu0 %v781
    %1162 = vmatprep.subr.mxu0 0.0
    %1163 = vmatpush1.msra.mxu0 0.0
    %1164 = vmatprep.subr.mxu0 0.0
    %1165 = vmatpush1.msra.mxu0 0.0
    %1166 = vmatprep.subr.mxu0 0.0
    %1167 = vmatpush1.msra.mxu0 0.0
    %1168 = vmatprep.subr.mxu0 0.0
    %1169 = vmatpush1.msra.mxu0 0.0
    %1170 = vmatprep.subr.mxu0 0.0
    %1171 = vmatpush1.msra.mxu0 0.0
    %1172 = vmatprep.subr.mxu0 0.0
    %1173 = vmatpush1.msra.mxu0 0.0
    %1174 = vmatprep.subr.mxu0 0.0
    %1175 = vmatpush1.msra.mxu0 0.0
    %1176 = vmatprep.subr.mxu0 0.0
    %1177 = vmatpush1.msra.mxu0 0.0
    %1178 = vmatprep.subr.mxu0 0.0
    %1179 = vmatpush1.msra.mxu0 0.0
    %1180 = vmatprep.subr.mxu0 0.0
    %1181 = vmatpush1.msra.mxu0 0.0
    %1182 = vmatprep.subr.mxu0 0.0
    %1183 = vmatpush1.msra.mxu0 0.0
    %1184 = vmatprep.subr.mxu0 0.0
    %1185 = vmatpush1.msra.mxu0 0.0
    %1186 = vmatprep.subr.mxu0 0.0
    %1187 = vmatpush1.msra.mxu0 0.0
    %1188 = vmatprep.subr.mxu0 0.0
    %1189 = vmatpush1.msra.mxu0 0.0
    %1190 = vmatprep.subr.mxu0 0.0
    %1191 = vmatpush1.msra.mxu0 0.0
    %1192 = vmatprep.subr.mxu0 0.0
    %1193 = vmatpush1.msra.mxu0 0.0
    %1194 = vmatprep.mubr.f32.mxu0 0.0
    %1195 = vmatmul.mubr.f32.gmra.mrb[0].mxu0 %v193
    %v1196 = vpop.f32.mrb[0].mxu0
    %v1197 = vadd.f32 %v1084, %v1196
    %v1198 = vpop.f32.mrb[0].mxu0
    %v1199 = vadd.f32 %v1086, %v1198
    %1200 = vmatprep.mubr.f32.mxu0 0.0
    %1201 = vmatmul.mubr.f32.gmra.mrb[0].mxu0 %v196
    %v1202 = vpop.f32.mrb[0].mxu0
    %v1203 = vadd.f32 %v1090, %v1202
    %v1204 = vpop.f32.mrb[0].mxu0
    %v1205 = vadd.f32 %v1092, %v1204
    %1206 = vmatprep.mubr.f32.mxu0 0.0
    %1207 = vmatmul.mubr.f32.gmra.mrb[0].mxu0 %v199
    %v1208 = vpop.f32.mrb[0].mxu0
    %v1209 = vadd.f32 %v1096, %v1208
    %v1210 = vpop.f32.mrb[0].mxu0
    %v1211 = vadd.f32 %v1098, %v1210
    %1212 = vmatprep.mubr.f32.mxu0 0.0
    %1213 = vmatmul.mubr.f32.gmra.mrb[0].mxu0 %v202
    %v1214 = vpop.f32.mrb[0].mxu0
    %v1215 = vadd.f32 %v1102, %v1214
    %v1216 = vpop.f32.mrb[0].mxu0
    %v1217 = vadd.f32 %v1104, %v1216
    %1218 = vmatprep.mubr.f32.mxu0 0.0
    %1219 = vmatmul.mubr.f32.gmra.mrb[0].mxu0 %v205
    %v1220 = vpop.f32.mrb[0].mxu0
    %v1221 = vadd.f32 %v1108, %v1220
    %v1222 = vpop.f32.mrb[0].mxu0
    %v1223 = vadd.f32 %v1110, %v1222
    %1224 = vmatprep.mubr.f32.mxu0 0.0
    %1225 = vmatmul.mubr.f32.gmra.mrb[0].mxu0 %v208
    %v1226 = vpop.f32.mrb[0].mxu0
    %v1227 = vadd.f32 %v1114, %v1226
    %v1228 = vpop.f32.mrb[0].mxu0
    %v1229 = vadd.f32 %v1116, %v1228
    %1230 = vmatprep.mubr.f32.mxu0 0.0
    %1231 = vmatmul.mubr.f32.gmra.mrb[0].mxu0 %v211
    %v1232 = vpop.f32.mrb[0].mxu0
    %v1233 = vadd.f32 %v1120, %v1232
    %v1234 = vpop.f32.mrb[0].mxu0
    %v1235 = vadd.f32 %v1122, %v1234
    %1236 = vmatprep.mubr.f32.mxu0 0.0
    %1237 = vmatmul.mubr.f32.gmra.mrb[0].mxu0 %v214
    %v1238 = vpop.f32.mrb[0].mxu0
    %v1239 = vadd.f32 %v1126, %v1238
    %v1240 = vpop.f32.mrb[0].mxu0
    %v1241 = vadd.f32 %v1128, %v1240
    %1242 = vdwg.mxu0
    %1243 = vmatprep.subr.mxu0 %v220
    %1244 = vmatpush1.msra.mxu0 %v219
    %1245 = vmatprep.subr.mxu0 %v232
    %1246 = vmatpush1.msra.mxu0 %v231
    %1247 = vmatprep.subr.mxu0 %v244
    %1248 = vmatpush1.msra.mxu0 %v243
    %1249 = vmatprep.subr.mxu0 %v256
    %1250 = vmatpush1.msra.mxu0 %v255
    %1251 = vmatprep.subr.mxu0 %v268
    %1252 = vmatpush1.msra.mxu0 %v267
    %1253 = vmatprep.subr.mxu0 %v280
    %1254 = vmatpush1.msra.mxu0 %v279
    %1255 = vmatprep.subr.mxu0 %v292
    %1256 = vmatpush1.msra.mxu0 %v291
    %1257 = vmatprep.subr.mxu0 %v304
    %1258 = vmatpush1.msra.mxu0 %v303
    %1259 = vmatprep.subr.mxu0 %v316
    %1260 = vmatpush1.msra.mxu0 %v315
    %1261 = vmatprep.subr.mxu0 %v328
    %1262 = vmatpush1.msra.mxu0 %v327
    %1263 = vmatprep.subr.mxu0 %v340
    %1264 = vmatpush1.msra.mxu0 %v339
    %1265 = vmatprep.subr.mxu0 %v352
    %1266 = vmatpush1.msra.mxu0 %v351
    %1267 = vmatprep.subr.mxu0 %v364
    %1268 = vmatpush1.msra.mxu0 %v363
    %1269 = vmatprep.subr.mxu0 %v376
    %1270 = vmatpush1.msra.mxu0 %v375
    %1271 = vmatprep.subr.mxu0 %v388
    %1272 = vmatpush1.msra.mxu0 %v387
    %1273 = vmatprep.subr.mxu0 %v400
    %1274 = vmatpush1.msra.mxu0 %v399
    %1275 = vmatprep.subr.mxu0 %v412
    %1276 = vmatpush1.msra.mxu0 %v411
    %1277 = vmatprep.subr.mxu0 %v424
    %1278 = vmatpush1.msra.mxu0 %v423
    %1279 = vmatprep.subr.mxu0 %v436
    %1280 = vmatpush1.msra.mxu0 %v435
    %1281 = vmatprep.subr.mxu0 %v448
    %1282 = vmatpush1.msra.mxu0 %v447
    %1283 = vmatprep.subr.mxu0 %v460
    %1284 = vmatpush1.msra.mxu0 %v459
    %1285 = vmatprep.subr.mxu0 %v472
    %1286 = vmatpush1.msra.mxu0 %v471
    %1287 = vmatprep.subr.mxu0 %v484
    %1288 = vmatpush1.msra.mxu0 %v483
    %1289 = vmatprep.subr.mxu0 %v496
    %1290 = vmatpush1.msra.mxu0 %v495
    %1291 = vmatprep.subr.mxu0 %v508
    %1292 = vmatpush1.msra.mxu0 %v507
    %1293 = vmatprep.subr.mxu0 %v520
    %1294 = vmatpush1.msra.mxu0 %v519
    %1295 = vmatprep.subr.mxu0 %v532
    %1296 = vmatpush1.msra.mxu0 %v531
    %1297 = vmatprep.subr.mxu0 %v544
    %1298 = vmatpush1.msra.mxu0 %v543
    %1299 = vmatprep.subr.mxu0 %v556
    %1300 = vmatpush1.msra.mxu0 %v555
    %1301 = vmatprep.subr.mxu0 %v568
    %1302 = vmatpush1.msra.mxu0 %v567
    %1303 = vmatprep.subr.mxu0 %v580
    %1304 = vmatpush1.msra.mxu0 %v579
    %1305 = vmatprep.subr.mxu0 %v592
    %1306 = vmatpush1.msra.mxu0 %v591
    %1307 = vmatprep.mubr.f32.mxu0 %v192
    %1308 = vmatmul.mubr.f32.gmra.mrb[0].mxu0 %v191
    %v1309 = vpop.f32.mrb[0].mxu0
    %v1310 = vadd.f32 0.0, %v1309
    %v1311 = vpop.f32.mrb[0].mxu0
    %v1312 = vadd.f32 0.0, %v1311
    %1313 = vmatprep.mubr.f32.mxu0 %v195
    %1314 = vmatmul.mubr.f32.gmra.mrb[0].mxu0 %v194
    %v1315 = vpop.f32.mrb[0].mxu0
    %v1316 = vadd.f32 0.0, %v1315
    %v1317 = vpop.f32.mrb[0].mxu0
    %v1318 = vadd.f32 0.0, %v1317
    %1319 = vmatprep.mubr.f32.mxu0 %v198
    %1320 = vmatmul.mubr.f32.gmra.mrb[0].mxu0 %v197
    %v1321 = vpop.f32.mrb[0].mxu0
    %v1322 = vadd.f32 0.0, %v1321
    %v1323 = vpop.f32.mrb[0].mxu0
    %v1324 = vadd.f32 0.0, %v1323
    %1325 = vmatprep.mubr.f32.mxu0 %v201
    %1326 = vmatmul.mubr.f32.gmra.mrb[0].mxu0 %v200
    %v1327 = vpop.f32.mrb[0].mxu0
    %v1328 = vadd.f32 0.0, %v1327
    %v1329 = vpop.f32.mrb[0].mxu0
    %v1330 = vadd.f32 0.0, %v1329
    %1331 = vmatprep.mubr.f32.mxu0 %v204
    %1332 = vmatmul.mubr.f32.gmra.mrb[0].mxu0 %v203
    %v1333 = vpop.f32.mrb[0].mxu0
    %v1334 = vadd.f32 0.0, %v1333
    %v1335 = vpop.f32.mrb[0].mxu0
    %v1336 = vadd.f32 0.0, %v1335
    %1337 = vmatprep.mubr.f32.mxu0 %v207
    %1338 = vmatmul.mubr.f32.gmra.mrb[0].mxu0 %v206
    %v1339 = vpop.f32.mrb[0].mxu0
    %v1340 = vadd.f32 0.0, %v1339
    %v1341 = vpop.f32.mrb[0].mxu0
    %v1342 = vadd.f32 0.0, %v1341
    %1343 = vmatprep.mubr.f32.mxu0 %v210
    %1344 = vmatmul.mubr.f32.gmra.mrb[0].mxu0 %v209
    %v1345 = vpop.f32.mrb[0].mxu0
    %v1346 = vadd.f32 0.0, %v1345
    %v1347 = vpop.f32.mrb[0].mxu0
    %v1348 = vadd.f32 0.0, %v1347
    %1349 = vmatprep.mubr.f32.mxu0 %v213
    %1350 = vmatmul.mubr.f32.gmra.mrb[0].mxu0 %v212
    %v1351 = vpop.f32.mrb[0].mxu0
    %v1352 = vadd.f32 0.0, %v1351
    %v1353 = vpop.f32.mrb[0].mxu0
    %v1354 = vadd.f32 0.0, %v1353
    %1355 = vdwg.mxu0
    %1356 = vmatprep.subr.mxu0 %v604
    %1357 = vmatpush1.msra.mxu0 %v603
    %1358 = vmatprep.subr.mxu0 %v616
    %1359 = vmatpush1.msra.mxu0 %v615
    %1360 = vmatprep.subr.mxu0 %v628
    %1361 = vmatpush1.msra.mxu0 %v627
    %1362 = vmatprep.subr.mxu0 %v640
    %1363 = vmatpush1.msra.mxu0 %v639
    %1364 = vmatprep.subr.mxu0 %v652
    %1365 = vmatpush1.msra.mxu0 %v651
    %1366 = vmatprep.subr.mxu0 %v664
    %1367 = vmatpush1.msra.mxu0 %v663
    %1368 = vmatprep.subr.mxu0 %v676
    %1369 = vmatpush1.msra.mxu0 %v675
    %1370 = vmatprep.subr.mxu0 %v688
    %1371 = vmatpush1.msra.mxu0 %v687
    %1372 = vmatprep.subr.mxu0 %v700
    %1373 = vmatpush1.msra.mxu0 %v699
    %1374 = vmatprep.subr.mxu0 %v712
    %1375 = vmatpush1.msra.mxu0 %v711
    %1376 = vmatprep.subr.mxu0 %v724
    %1377 = vmatpush1.msra.mxu0 %v723
    %1378 = vmatprep.subr.mxu0 %v736
    %1379 = vmatpush1.msra.mxu0 %v735
    %1380 = vmatprep.subr.mxu0 %v748
    %1381 = vmatpush1.msra.mxu0 %v747
    %1382 = vmatprep.subr.mxu0 %v760
    %1383 = vmatpush1.msra.mxu0 %v759
    %1384 = vmatprep.subr.mxu0 %v772
    %1385 = vmatpush1.msra.mxu0 %v771
    %1386 = vmatprep.subr.mxu0 %v784
    %1387 = vmatpush1.msra.mxu0 %v783
    %1388 = vmatprep.subr.mxu0 0.0
    %1389 = vmatpush1.msra.mxu0 0.0
    %1390 = vmatprep.subr.mxu0 0.0
    %1391 = vmatpush1.msra.mxu0 0.0
    %1392 = vmatprep.subr.mxu0 0.0
    %1393 = vmatpush1.msra.mxu0 0.0
    %1394 = vmatprep.subr.mxu0 0.0
    %1395 = vmatpush1.msra.mxu0 0.0
    %1396 = vmatprep.subr.mxu0 0.0
    %1397 = vmatpush1.msra.mxu0 0.0
    %1398 = vmatprep.subr.mxu0 0.0
    %1399 = vmatpush1.msra.mxu0 0.0
    %1400 = vmatprep.subr.mxu0 0.0
    %1401 = vmatpush1.msra.mxu0 0.0
    %1402 = vmatprep.subr.mxu0 0.0
    %1403 = vmatpush1.msra.mxu0 0.0
    %1404 = vmatprep.subr.mxu0 0.0
    %1405 = vmatpush1.msra.mxu0 0.0
    %1406 = vmatprep.subr.mxu0 0.0
    %1407 = vmatpush1.msra.mxu0 0.0
    %1408 = vmatprep.subr.mxu0 0.0
    %1409 = vmatpush1.msra.mxu0 0.0
    %1410 = vmatprep.subr.mxu0 0.0
    %1411 = vmatpush1.msra.mxu0 0.0
    %1412 = vmatprep.subr.mxu0 0.0
    %1413 = vmatpush1.msra.mxu0 0.0
    %1414 = vmatprep.subr.mxu0 0.0
    %1415 = vmatpush1.msra.mxu0 0.0
    %1416 = vmatprep.subr.mxu0 0.0
    %1417 = vmatpush1.msra.mxu0 0.0
    %1418 = vmatprep.subr.mxu0 0.0
    %1419 = vmatpush1.msra.mxu0 0.0
    %1420 = vmatprep.mubr.f32.mxu0 0.0
    %1421 = vmatmul.mubr.f32.gmra.mrb[0].mxu0 %v193
    %v1422 = vpop.f32.mrb[0].mxu0
    %v1423 = vadd.f32 %v1310, %v1422
    %v1424 = vpop.f32.mrb[0].mxu0
    %v1425 = vadd.f32 %v1312, %v1424
    %1426 = vmatprep.mubr.f32.mxu0 0.0
    %1427 = vmatmul.mubr.f32.gmra.mrb[0].mxu0 %v196
    %v1428 = vpop.f32.mrb[0].mxu0
    %v1429 = vadd.f32 %v1316, %v1428
    %v1430 = vpop.f32.mrb[0].mxu0
    %v1431 = vadd.f32 %v1318, %v1430
    %1432 = vmatprep.mubr.f32.mxu0 0.0
    %1433 = vmatmul.mubr.f32.gmra.mrb[0].mxu0 %v199
    %v1434 = vpop.f32.mrb[0].mxu0
    %v1435 = vadd.f32 %v1322, %v1434
    %v1436 = vpop.f32.mrb[0].mxu0
    %v1437 = vadd.f32 %v1324, %v1436
    %1438 = vmatprep.mubr.f32.mxu0 0.0
    %1439 = vmatmul.mubr.f32.gmra.mrb[0].mxu0 %v202
    %v1440 = vpop.f32.mrb[0].mxu0
    %v1441 = vadd.f32 %v1328, %v1440
    %v1442 = vpop.f32.mrb[0].mxu0
    %v1443 = vadd.f32 %v1330, %v1442
    %1444 = vmatprep.mubr.f32.mxu0 0.0
    %1445 = vmatmul.mubr.f32.gmra.mrb[0].mxu0 %v205
    %v1446 = vpop.f32.mrb[0].mxu0
    %v1447 = vadd.f32 %v1334, %v1446
    %v1448 = vpop.f32.mrb[0].mxu0
    %v1449 = vadd.f32 %v1336, %v1448
    %1450 = vmatprep.mubr.f32.mxu0 0.0
    %1451 = vmatmul.mubr.f32.gmra.mrb[0].mxu0 %v208
    %v1452 = vpop.f32.mrb[0].mxu0
    %v1453 = vadd.f32 %v1340, %v1452
    %v1454 = vpop.f32.mrb[0].mxu0
    %v1455 = vadd.f32 %v1342, %v1454
    %1456 = vmatprep.mubr.f32.mxu0 0.0
    %1457 = vmatmul.mubr.f32.gmra.mrb[0].mxu0 %v211
    %v1458 = vpop.f32.mrb[0].mxu0
    %v1459 = vadd.f32 %v1346, %v1458
    %v1460 = vpop.f32.mrb[0].mxu0
    %v1461 = vadd.f32 %v1348, %v1460
    %1462 = vmatprep.mubr.f32.mxu0 0.0
    %1463 = vmatmul.mubr.f32.gmra.mrb[0].mxu0 %v214
    %v1464 = vpop.f32.mrb[0].mxu0
    %v1465 = vadd.f32 %v1352, %v1464
    %v1466 = vpop.f32.mrb[0].mxu0
    %v1467 = vadd.f32 %v1354, %v1466
    %1468 = vdwg.mxu0
    %1469 = vmatprep.subr.mxu0 %v222
    %1470 = vmatpush1.msra.mxu0 %v221
    %1471 = vmatprep.subr.mxu0 %v234
    %1472 = vmatpush1.msra.mxu0 %v233
    %1473 = vmatprep.subr.mxu0 %v246
    %1474 = vmatpush1.msra.mxu0 %v245
    %1475 = vmatprep.subr.mxu0 %v258
    %1476 = vmatpush1.msra.mxu0 %v257
    %1477 = vmatprep.subr.mxu0 %v270
    %1478 = vmatpush1.msra.mxu0 %v269
    %1479 = vmatprep.subr.mxu0 %v282
    %1480 = vmatpush1.msra.mxu0 %v281
    %1481 = vmatprep.subr.mxu0 %v294
    %1482 = vmatpush1.msra.mxu0 %v293
    %1483 = vmatprep.subr.mxu0 %v306
    %1484 = vmatpush1.msra.mxu0 %v305
    %1485 = vmatprep.subr.mxu0 %v318
    %1486 = vmatpush1.msra.mxu0 %v317
    %1487 = vmatprep.subr.mxu0 %v330
    %1488 = vmatpush1.msra.mxu0 %v329
    %1489 = vmatprep.subr.mxu0 %v342
    %1490 = vmatpush1.msra.mxu0 %v341
    %1491 = vmatprep.subr.mxu0 %v354
    %1492 = vmatpush1.msra.mxu0 %v353
    %1493 = vmatprep.subr.mxu0 %v366
    %1494 = vmatpush1.msra.mxu0 %v365
    %1495 = vmatprep.subr.mxu0 %v378
    %1496 = vmatpush1.msra.mxu0 %v377
    %1497 = vmatprep.subr.mxu0 %v390
    %1498 = vmatpush1.msra.mxu0 %v389
    %1499 = vmatprep.subr.mxu0 %v402
    %1500 = vmatpush1.msra.mxu0 %v401
    %1501 = vmatprep.subr.mxu0 %v414
    %1502 = vmatpush1.msra.mxu0 %v413
    %1503 = vmatprep.subr.mxu0 %v426
    %1504 = vmatpush1.msra.mxu0 %v425
    %1505 = vmatprep.subr.mxu0 %v438
    %1506 = vmatpush1.msra.mxu0 %v437
    %1507 = vmatprep.subr.mxu0 %v450
    %1508 = vmatpush1.msra.mxu0 %v449
    %1509 = vmatprep.subr.mxu0 %v462
    %1510 = vmatpush1.msra.mxu0 %v461
    %1511 = vmatprep.subr.mxu0 %v474
    %1512 = vmatpush1.msra.mxu0 %v473
    %1513 = vmatprep.subr.mxu0 %v486
    %1514 = vmatpush1.msra.mxu0 %v485
    %1515 = vmatprep.subr.mxu0 %v498
    %1516 = vmatpush1.msra.mxu0 %v497
    %1517 = vmatprep.subr.mxu0 %v510
    %1518 = vmatpush1.msra.mxu0 %v509
    %1519 = vmatprep.subr.mxu0 %v522
    %1520 = vmatpush1.msra.mxu0 %v521
    %1521 = vmatprep.subr.mxu0 %v534
    %1522 = vmatpush1.msra.mxu0 %v533
    %1523 = vmatprep.subr.mxu0 %v546
    %1524 = vmatpush1.msra.mxu0 %v545
    %1525 = vmatprep.subr.mxu0 %v558
    %1526 = vmatpush1.msra.mxu0 %v557
    %1527 = vmatprep.subr.mxu0 %v570
    %1528 = vmatpush1.msra.mxu0 %v569
    %1529 = vmatprep.subr.mxu0 %v582
    %1530 = vmatpush1.msra.mxu0 %v581
    %1531 = vmatprep.subr.mxu0 %v594
    %1532 = vmatpush1.msra.mxu0 %v593
    %1533 = vmatprep.mubr.f32.mxu0 %v192
    %1534 = vmatmul.mubr.f32.gmra.mrb[0].mxu0 %v191
    %v1535 = vpop.f32.mrb[0].mxu0
    %v1536 = vadd.f32 0.0, %v1535
    %v1537 = vpop.f32.mrb[0].mxu0
    %v1538 = vadd.f32 0.0, %v1537
    %1539 = vmatprep.mubr.f32.mxu0 %v195
    %1540 = vmatmul.mubr.f32.gmra.mrb[0].mxu0 %v194
    %v1541 = vpop.f32.mrb[0].mxu0
    %v1542 = vadd.f32 0.0, %v1541
    %v1543 = vpop.f32.mrb[0].mxu0
    %v1544 = vadd.f32 0.0, %v1543
    %1545 = vmatprep.mubr.f32.mxu0 %v198
    %1546 = vmatmul.mubr.f32.gmra.mrb[0].mxu0 %v197
    %v1547 = vpop.f32.mrb[0].mxu0
    %v1548 = vadd.f32 0.0, %v1547
    %v1549 = vpop.f32.mrb[0].mxu0
    %v1550 = vadd.f32 0.0, %v1549
    %1551 = vmatprep.mubr.f32.mxu0 %v201
    %1552 = vmatmul.mubr.f32.gmra.mrb[0].mxu0 %v200
    %v1553 = vpop.f32.mrb[0].mxu0
    %v1554 = vadd.f32 0.0, %v1553
    %v1555 = vpop.f32.mrb[0].mxu0
    %v1556 = vadd.f32 0.0, %v1555
    %1557 = vmatprep.mubr.f32.mxu0 %v204
    %1558 = vmatmul.mubr.f32.gmra.mrb[0].mxu0 %v203
    %v1559 = vpop.f32.mrb[0].mxu0
    %v1560 = vadd.f32 0.0, %v1559
    %v1561 = vpop.f32.mrb[0].mxu0
    %v1562 = vadd.f32 0.0, %v1561
    %1563 = vmatprep.mubr.f32.mxu0 %v207
    %1564 = vmatmul.mubr.f32.gmra.mrb[0].mxu0 %v206
    %v1565 = vpop.f32.mrb[0].mxu0
    %v1566 = vadd.f32 0.0, %v1565
    %v1567 = vpop.f32.mrb[0].mxu0
    %v1568 = vadd.f32 0.0, %v1567
    %1569 = vmatprep.mubr.f32.mxu0 %v210
    %1570 = vmatmul.mubr.f32.gmra.mrb[0].mxu0 %v209
    %v1571 = vpop.f32.mrb[0].mxu0
    %v1572 = vadd.f32 0.0, %v1571
    %v1573 = vpop.f32.mrb[0].mxu0
    %v1574 = vadd.f32 0.0, %v1573
    %1575 = vmatprep.mubr.f32.mxu0 %v213
    %1576 = vmatmul.mubr.f32.gmra.mrb[0].mxu0 %v212
    %v1577 = vpop.f32.mrb[0].mxu0
    %v1578 = vadd.f32 0.0, %v1577
    %v1579 = vpop.f32.mrb[0].mxu0
    %v1580 = vadd.f32 0.0, %v1579
    %1581 = vdwg.mxu0
    %1582 = vmatprep.subr.mxu0 %v606
    %1583 = vmatpush1.msra.mxu0 %v605
    %1584 = vmatprep.subr.mxu0 %v618
    %1585 = vmatpush1.msra.mxu0 %v617
    %1586 = vmatprep.subr.mxu0 %v630
    %1587 = vmatpush1.msra.mxu0 %v629
    %1588 = vmatprep.subr.mxu0 %v642
    %1589 = vmatpush1.msra.mxu0 %v641
    %1590 = vmatprep.subr.mxu0 %v654
    %1591 = vmatpush1.msra.mxu0 %v653
    %1592 = vmatprep.subr.mxu0 %v666
    %1593 = vmatpush1.msra.mxu0 %v665
    %1594 = vmatprep.subr.mxu0 %v678
    %1595 = vmatpush1.msra.mxu0 %v677
    %1596 = vmatprep.subr.mxu0 %v690
    %1597 = vmatpush1.msra.mxu0 %v689
    %1598 = vmatprep.subr.mxu0 %v702
    %1599 = vmatpush1.msra.mxu0 %v701
    %1600 = vmatprep.subr.mxu0 %v714
    %1601 = vmatpush1.msra.mxu0 %v713
    %1602 = vmatprep.subr.mxu0 %v726
    %1603 = vmatpush1.msra.mxu0 %v725
    %1604 = vmatprep.subr.mxu0 %v738
    %1605 = vmatpush1.msra.mxu0 %v737
    %1606 = vmatprep.subr.mxu0 %v750
    %1607 = vmatpush1.msra.mxu0 %v749
    %1608 = vmatprep.subr.mxu0 %v762
    %1609 = vmatpush1.msra.mxu0 %v761
    %1610 = vmatprep.subr.mxu0 %v774
    %1611 = vmatpush1.msra.mxu0 %v773
    %1612 = vmatprep.subr.mxu0 %v786
    %1613 = vmatpush1.msra.mxu0 %v785
    %1614 = vmatprep.subr.mxu0 0.0
    %1615 = vmatpush1.msra.mxu0 0.0
    %1616 = vmatprep.subr.mxu0 0.0
    %1617 = vmatpush1.msra.mxu0 0.0
    %1618 = vmatprep.subr.mxu0 0.0
    %1619 = vmatpush1.msra.mxu0 0.0
    %1620 = vmatprep.subr.mxu0 0.0
    %1621 = vmatpush1.msra.mxu0 0.0
    %1622 = vmatprep.subr.mxu0 0.0
    %1623 = vmatpush1.msra.mxu0 0.0
    %1624 = vmatprep.subr.mxu0 0.0
    %1625 = vmatpush1.msra.mxu0 0.0
    %1626 = vmatprep.subr.mxu0 0.0
    %1627 = vmatpush1.msra.mxu0 0.0
    %1628 = vmatprep.subr.mxu0 0.0
    %1629 = vmatpush1.msra.mxu0 0.0
    %1630 = vmatprep.subr.mxu0 0.0
    %1631 = vmatpush1.msra.mxu0 0.0
    %1632 = vmatprep.subr.mxu0 0.0
    %1633 = vmatpush1.msra.mxu0 0.0
    %1634 = vmatprep.subr.mxu0 0.0
    %1635 = vmatpush1.msra.mxu0 0.0
    %1636 = vmatprep.subr.mxu0 0.0
    %1637 = vmatpush1.msra.mxu0 0.0
    %1638 = vmatprep.subr.mxu0 0.0
    %1639 = vmatpush1.msra.mxu0 0.0
    %1640 = vmatprep.subr.mxu0 0.0
    %1641 = vmatpush1.msra.mxu0 0.0
    %1642 = vmatprep.subr.mxu0 0.0
    %1643 = vmatpush1.msra.mxu0 0.0
    %1644 = vmatprep.subr.mxu0 0.0
    %1645 = vmatpush1.msra.mxu0 0.0
    %1646 = vmatprep.mubr.f32.mxu0 0.0
    %1647 = vmatmul.mubr.f32.gmra.mrb[0].mxu0 %v193
    %v1648 = vpop.f32.mrb[0].mxu0
    %v1649 = vadd.f32 %v1536, %v1648
    %v1650 = vpop.f32.mrb[0].mxu0
    %v1651 = vadd.f32 %v1538, %v1650
    %1652 = vmatprep.mubr.f32.mxu0 0.0
    %1653 = vmatmul.mubr.f32.gmra.mrb[0].mxu0 %v196
    %v1654 = vpop.f32.mrb[0].mxu0
    %v1655 = vadd.f32 %v1542, %v1654
    %v1656 = vpop.f32.mrb[0].mxu0
    %v1657 = vadd.f32 %v1544, %v1656
    %1658 = vmatprep.mubr.f32.mxu0 0.0
    %1659 = vmatmul.mubr.f32.gmra.mrb[0].mxu0 %v199
    %v1660 = vpop.f32.mrb[0].mxu0
    %v1661 = vadd.f32 %v1548, %v1660
    %v1662 = vpop.f32.mrb[0].mxu0
    %v1663 = vadd.f32 %v1550, %v1662
    %1664 = vmatprep.mubr.f32.mxu0 0.0
    %1665 = vmatmul.mubr.f32.gmra.mrb[0].mxu0 %v202
    %v1666 = vpop.f32.mrb[0].mxu0
    %v1667 = vadd.f32 %v1554, %v1666
    %v1668 = vpop.f32.mrb[0].mxu0
    %v1669 = vadd.f32 %v1556, %v1668
    %1670 = vmatprep.mubr.f32.mxu0 0.0
    %1671 = vmatmul.mubr.f32.gmra.mrb[0].mxu0 %v205
    %v1672 = vpop.f32.mrb[0].mxu0
    %v1673 = vadd.f32 %v1560, %v1672
    %v1674 = vpop.f32.mrb[0].mxu0
    %v1675 = vadd.f32 %v1562, %v1674
    %1676 = vmatprep.mubr.f32.mxu0 0.0
    %1677 = vmatmul.mubr.f32.gmra.mrb[0].mxu0 %v208
    %v1678 = vpop.f32.mrb[0].mxu0
    %v1679 = vadd.f32 %v1566, %v1678
    %v1680 = vpop.f32.mrb[0].mxu0
    %v1681 = vadd.f32 %v1568, %v1680
    %1682 = vmatprep.mubr.f32.mxu0 0.0
    %1683 = vmatmul.mubr.f32.gmra.mrb[0].mxu0 %v211
    %v1684 = vpop.f32.mrb[0].mxu0
    %v1685 = vadd.f32 %v1572, %v1684
    %v1686 = vpop.f32.mrb[0].mxu0
    %v1687 = vadd.f32 %v1574, %v1686
    %1688 = vmatprep.mubr.f32.mxu0 0.0
    %1689 = vmatmul.mubr.f32.gmra.mrb[0].mxu0 %v214
    %v1690 = vpop.f32.mrb[0].mxu0
    %v1691 = vadd.f32 %v1578, %v1690
    %v1692 = vpop.f32.mrb[0].mxu0
    %v1693 = vadd.f32 %v1580, %v1692
    %1694 = vdwg.mxu0
    %1695 = vmatprep.subr.mxu0 %v224
    %1696 = vmatpush1.msra.mxu0 %v223
    %1697 = vmatprep.subr.mxu0 %v236
    %1698 = vmatpush1.msra.mxu0 %v235
    %1699 = vmatprep.subr.mxu0 %v248
    %1700 = vmatpush1.msra.mxu0 %v247
    %1701 = vmatprep.subr.mxu0 %v260
    %1702 = vmatpush1.msra.mxu0 %v259
    %1703 = vmatprep.subr.mxu0 %v272
    %1704 = vmatpush1.msra.mxu0 %v271
    %1705 = vmatprep.subr.mxu0 %v284
    %1706 = vmatpush1.msra.mxu0 %v283
    %1707 = vmatprep.subr.mxu0 %v296
    %1708 = vmatpush1.msra.mxu0 %v295
    %1709 = vmatprep.subr.mxu0 %v308
    %1710 = vmatpush1.msra.mxu0 %v307
    %1711 = vmatprep.subr.mxu0 %v320
    %1712 = vmatpush1.msra.mxu0 %v319
    %1713 = vmatprep.subr.mxu0 %v332
    %1714 = vmatpush1.msra.mxu0 %v331
    %1715 = vmatprep.subr.mxu0 %v344
    %1716 = vmatpush1.msra.mxu0 %v343
    %1717 = vmatprep.subr.mxu0 %v356
    %1718 = vmatpush1.msra.mxu0 %v355
    %1719 = vmatprep.subr.mxu0 %v368
    %1720 = vmatpush1.msra.mxu0 %v367
    %1721 = vmatprep.subr.mxu0 %v380
    %1722 = vmatpush1.msra.mxu0 %v379
    %1723 = vmatprep.subr.mxu0 %v392
    %1724 = vmatpush1.msra.mxu0 %v391
    %1725 = vmatprep.subr.mxu0 %v404
    %1726 = vmatpush1.msra.mxu0 %v403
    %1727 = vmatprep.subr.mxu0 %v416
    %1728 = vmatpush1.msra.mxu0 %v415
    %1729 = vmatprep.subr.mxu0 %v428
    %1730 = vmatpush1.msra.mxu0 %v427
    %1731 = vmatprep.subr.mxu0 %v440
    %1732 = vmatpush1.msra.mxu0 %v439
    %1733 = vmatprep.subr.mxu0 %v452
    %1734 = vmatpush1.msra.mxu0 %v451
    %1735 = vmatprep.subr.mxu0 %v464
    %1736 = vmatpush1.msra.mxu0 %v463
    %1737 = vmatprep.subr.mxu0 %v476
    %1738 = vmatpush1.msra.mxu0 %v475
    %1739 = vmatprep.subr.mxu0 %v488
    %1740 = vmatpush1.msra.mxu0 %v487
    %1741 = vmatprep.subr.mxu0 %v500
    %1742 = vmatpush1.msra.mxu0 %v499
    %1743 = vmatprep.subr.mxu0 %v512
    %1744 = vmatpush1.msra.mxu0 %v511
    %1745 = vmatprep.subr.mxu0 %v524
    %1746 = vmatpush1.msra.mxu0 %v523
    %1747 = vmatprep.subr.mxu0 %v536
    %1748 = vmatpush1.msra.mxu0 %v535
    %1749 = vmatprep.subr.mxu0 %v548
    %1750 = vmatpush1.msra.mxu0 %v547
    %1751 = vmatprep.subr.mxu0 %v560
    %1752 = vmatpush1.msra.mxu0 %v559
    %1753 = vmatprep.subr.mxu0 %v572
    %1754 = vmatpush1.msra.mxu0 %v571
    %1755 = vmatprep.subr.mxu0 %v584
    %1756 = vmatpush1.msra.mxu0 %v583
    %1757 = vmatprep.subr.mxu0 %v596
    %1758 = vmatpush1.msra.mxu0 %v595
    %1759 = vmatprep.mubr.f32.mxu0 %v192
    %1760 = vmatmul.mubr.f32.gmra.mrb[0].mxu0 %v191
    %v1761 = vpop.f32.mrb[0].mxu0
    %v1762 = vadd.f32 0.0, %v1761
    %v1763 = vpop.f32.mrb[0].mxu0
    %v1764 = vadd.f32 0.0, %v1763
    %1765 = vmatprep.mubr.f32.mxu0 %v195
    %1766 = vmatmul.mubr.f32.gmra.mrb[0].mxu0 %v194
    %v1767 = vpop.f32.mrb[0].mxu0
    %v1768 = vadd.f32 0.0, %v1767
    %v1769 = vpop.f32.mrb[0].mxu0
    %v1770 = vadd.f32 0.0, %v1769
    %1771 = vmatprep.mubr.f32.mxu0 %v198
    %1772 = vmatmul.mubr.f32.gmra.mrb[0].mxu0 %v197
    %v1773 = vpop.f32.mrb[0].mxu0
    %v1774 = vadd.f32 0.0, %v1773
    %v1775 = vpop.f32.mrb[0].mxu0
    %v1776 = vadd.f32 0.0, %v1775
    %1777 = vmatprep.mubr.f32.mxu0 %v201
    %1778 = vmatmul.mubr.f32.gmra.mrb[0].mxu0 %v200
    %v1779 = vpop.f32.mrb[0].mxu0
    %v1780 = vadd.f32 0.0, %v1779
    %v1781 = vpop.f32.mrb[0].mxu0
    %v1782 = vadd.f32 0.0, %v1781
    %1783 = vmatprep.mubr.f32.mxu0 %v204
    %1784 = vmatmul.mubr.f32.gmra.mrb[0].mxu0 %v203
    %v1785 = vpop.f32.mrb[0].mxu0
    %v1786 = vadd.f32 0.0, %v1785
    %v1787 = vpop.f32.mrb[0].mxu0
    %v1788 = vadd.f32 0.0, %v1787
    %1789 = vmatprep.mubr.f32.mxu0 %v207
    %1790 = vmatmul.mubr.f32.gmra.mrb[0].mxu0 %v206
    %v1791 = vpop.f32.mrb[0].mxu0
    %v1792 = vadd.f32 0.0, %v1791
    %v1793 = vpop.f32.mrb[0].mxu0
    %v1794 = vadd.f32 0.0, %v1793
    %1795 = vmatprep.mubr.f32.mxu0 %v210
    %1796 = vmatmul.mubr.f32.gmra.mrb[0].mxu0 %v209
    %v1797 = vpop.f32.mrb[0].mxu0
    %v1798 = vadd.f32 0.0, %v1797
    %v1799 = vpop.f32.mrb[0].mxu0
    %v1800 = vadd.f32 0.0, %v1799
    %1801 = vmatprep.mubr.f32.mxu0 %v213
    %1802 = vmatmul.mubr.f32.gmra.mrb[0].mxu0 %v212
    %v1803 = vpop.f32.mrb[0].mxu0
    %v1804 = vadd.f32 0.0, %v1803
    %v1805 = vpop.f32.mrb[0].mxu0
    %v1806 = vadd.f32 0.0, %v1805
    %1807 = vdwg.mxu0
    %1808 = vmatprep.subr.mxu0 %v608
    %1809 = vmatpush1.msra.mxu0 %v607
    %1810 = vmatprep.subr.mxu0 %v620
    %1811 = vmatpush1.msra.mxu0 %v619
    %1812 = vmatprep.subr.mxu0 %v632
    %1813 = vmatpush1.msra.mxu0 %v631
    %1814 = vmatprep.subr.mxu0 %v644
    %1815 = vmatpush1.msra.mxu0 %v643
    %1816 = vmatprep.subr.mxu0 %v656
    %1817 = vmatpush1.msra.mxu0 %v655
    %1818 = vmatprep.subr.mxu0 %v668
    %1819 = vmatpush1.msra.mxu0 %v667
    %1820 = vmatprep.subr.mxu0 %v680
    %1821 = vmatpush1.msra.mxu0 %v679
    %1822 = vmatprep.subr.mxu0 %v692
    %1823 = vmatpush1.msra.mxu0 %v691
    %1824 = vmatprep.subr.mxu0 %v704
    %1825 = vmatpush1.msra.mxu0 %v703
    %1826 = vmatprep.subr.mxu0 %v716
    %1827 = vmatpush1.msra.mxu0 %v715
    %1828 = vmatprep.subr.mxu0 %v728
    %1829 = vmatpush1.msra.mxu0 %v727
    %1830 = vmatprep.subr.mxu0 %v740
    %1831 = vmatpush1.msra.mxu0 %v739
    %1832 = vmatprep.subr.mxu0 %v752
    %1833 = vmatpush1.msra.mxu0 %v751
    %1834 = vmatprep.subr.mxu0 %v764
    %1835 = vmatpush1.msra.mxu0 %v763
    %1836 = vmatprep.subr.mxu0 %v776
    %1837 = vmatpush1.msra.mxu0 %v775
    %1838 = vmatprep.subr.mxu0 %v788
    %1839 = vmatpush1.msra.mxu0 %v787
    %1840 = vmatprep.subr.mxu0 0.0
    %1841 = vmatpush1.msra.mxu0 0.0
    %1842 = vmatprep.subr.mxu0 0.0
    %1843 = vmatpush1.msra.mxu0 0.0
    %1844 = vmatprep.subr.mxu0 0.0
    %1845 = vmatpush1.msra.mxu0 0.0
    %1846 = vmatprep.subr.mxu0 0.0
    %1847 = vmatpush1.msra.mxu0 0.0
    %1848 = vmatprep.subr.mxu0 0.0
    %1849 = vmatpush1.msra.mxu0 0.0
    %1850 = vmatprep.subr.mxu0 0.0
    %1851 = vmatpush1.msra.mxu0 0.0
    %1852 = vmatprep.subr.mxu0 0.0
    %1853 = vmatpush1.msra.mxu0 0.0
    %1854 = vmatprep.subr.mxu0 0.0
    %1855 = vmatpush1.msra.mxu0 0.0
    %1856 = vmatprep.subr.mxu0 0.0
    %1857 = vmatpush1.msra.mxu0 0.0
    %1858 = vmatprep.subr.mxu0 0.0
    %1859 = vmatpush1.msra.mxu0 0.0
    %1860 = vmatprep.subr.mxu0 0.0
    %1861 = vmatpush1.msra.mxu0 0.0
    %1862 = vmatprep.subr.mxu0 0.0
    %1863 = vmatpush1.msra.mxu0 0.0
    %1864 = vmatprep.subr.mxu0 0.0
    %1865 = vmatpush1.msra.mxu0 0.0
    %1866 = vmatprep.subr.mxu0 0.0
    %1867 = vmatpush1.msra.mxu0 0.0
    %1868 = vmatprep.subr.mxu0 0.0
    %1869 = vmatpush1.msra.mxu0 0.0
    %1870 = vmatprep.subr.mxu0 0.0
    %1871 = vmatpush1.msra.mxu0 0.0
    %1872 = vmatprep.mubr.f32.mxu0 0.0
    %1873 = vmatmul.mubr.f32.gmra.mrb[0].mxu0 %v193
    %v1874 = vpop.f32.mrb[0].mxu0
    %v1875 = vadd.f32 %v1762, %v1874
    %v1876 = vpop.f32.mrb[0].mxu0
    %v1877 = vadd.f32 %v1764, %v1876
    %1878 = vmatprep.mubr.f32.mxu0 0.0
    %1879 = vmatmul.mubr.f32.gmra.mrb[0].mxu0 %v196
    %v1880 = vpop.f32.mrb[0].mxu0
    %v1881 = vadd.f32 %v1768, %v1880
    %v1882 = vpop.f32.mrb[0].mxu0
    %v1883 = vadd.f32 %v1770, %v1882
    %1884 = vmatprep.mubr.f32.mxu0 0.0
    %1885 = vmatmul.mubr.f32.gmra.mrb[0].mxu0 %v199
    %v1886 = vpop.f32.mrb[0].mxu0
    %v1887 = vadd.f32 %v1774, %v1886
    %v1888 = vpop.f32.mrb[0].mxu0
    %v1889 = vadd.f32 %v1776, %v1888
    %1890 = vmatprep.mubr.f32.mxu0 0.0
    %1891 = vmatmul.mubr.f32.gmra.mrb[0].mxu0 %v202
    %v1892 = vpop.f32.mrb[0].mxu0
    %v1893 = vadd.f32 %v1780, %v1892
    %v1894 = vpop.f32.mrb[0].mxu0
    %v1895 = vadd.f32 %v1782, %v1894
    %1896 = vmatprep.mubr.f32.mxu0 0.0
    %1897 = vmatmul.mubr.f32.gmra.mrb[0].mxu0 %v205
    %v1898 = vpop.f32.mrb[0].mxu0
    %v1899 = vadd.f32 %v1786, %v1898
    %v1900 = vpop.f32.mrb[0].mxu0
    %v1901 = vadd.f32 %v1788, %v1900
    %1902 = vmatprep.mubr.f32.mxu0 0.0
    %1903 = vmatmul.mubr.f32.gmra.mrb[0].mxu0 %v208
    %v1904 = vpop.f32.mrb[0].mxu0
    %v1905 = vadd.f32 %v1792, %v1904
    %v1906 = vpop.f32.mrb[0].mxu0
    %v1907 = vadd.f32 %v1794, %v1906
    %1908 = vmatprep.mubr.f32.mxu0 0.0
    %1909 = vmatmul.mubr.f32.gmra.mrb[0].mxu0 %v211
    %v1910 = vpop.f32.mrb[0].mxu0
    %v1911 = vadd.f32 %v1798, %v1910
    %v1912 = vpop.f32.mrb[0].mxu0
    %v1913 = vadd.f32 %v1800, %v1912
    %1914 = vmatprep.mubr.f32.mxu0 0.0
    %1915 = vmatmul.mubr.f32.gmra.mrb[0].mxu0 %v214
    %v1916 = vpop.f32.mrb[0].mxu0
    %v1917 = vadd.f32 %v1804, %v1916
    %v1918 = vpop.f32.mrb[0].mxu0
    %v1919 = vadd.f32 %v1806, %v1918
    %1920 = vdwg.mxu0
    %1921 = vmatprep.subr.mxu0 %v226
    %1922 = vmatpush1.msra.mxu0 %v225
    %1923 = vmatprep.subr.mxu0 %v238
    %1924 = vmatpush1.msra.mxu0 %v237
    %1925 = vmatprep.subr.mxu0 %v250
    %1926 = vmatpush1.msra.mxu0 %v249
    %1927 = vmatprep.subr.mxu0 %v262
    %1928 = vmatpush1.msra.mxu0 %v261
    %1929 = vmatprep.subr.mxu0 %v274
    %1930 = vmatpush1.msra.mxu0 %v273
    %1931 = vmatprep.subr.mxu0 %v286
    %1932 = vmatpush1.msra.mxu0 %v285
    %1933 = vmatprep.subr.mxu0 %v298
    %1934 = vmatpush1.msra.mxu0 %v297
    %1935 = vmatprep.subr.mxu0 %v310
    %1936 = vmatpush1.msra.mxu0 %v309
    %1937 = vmatprep.subr.mxu0 %v322
    %1938 = vmatpush1.msra.mxu0 %v321
    %1939 = vmatprep.subr.mxu0 %v334
    %1940 = vmatpush1.msra.mxu0 %v333
    %1941 = vmatprep.subr.mxu0 %v346
    %1942 = vmatpush1.msra.mxu0 %v345
    %1943 = vmatprep.subr.mxu0 %v358
    %1944 = vmatpush1.msra.mxu0 %v357
    %1945 = vmatprep.subr.mxu0 %v370
    %1946 = vmatpush1.msra.mxu0 %v369
    %1947 = vmatprep.subr.mxu0 %v382
    %1948 = vmatpush1.msra.mxu0 %v381
    %1949 = vmatprep.subr.mxu0 %v394
    %1950 = vmatpush1.msra.mxu0 %v393
    %1951 = vmatprep.subr.mxu0 %v406
    %1952 = vmatpush1.msra.mxu0 %v405
    %1953 = vmatprep.subr.mxu0 %v418
    %1954 = vmatpush1.msra.mxu0 %v417
    %1955 = vmatprep.subr.mxu0 %v430
    %1956 = vmatpush1.msra.mxu0 %v429
    %1957 = vmatprep.subr.mxu0 %v442
    %1958 = vmatpush1.msra.mxu0 %v441
    %1959 = vmatprep.subr.mxu0 %v454
    %1960 = vmatpush1.msra.mxu0 %v453
    %1961 = vmatprep.subr.mxu0 %v466
    %1962 = vmatpush1.msra.mxu0 %v465
    %1963 = vmatprep.subr.mxu0 %v478
    %1964 = vmatpush1.msra.mxu0 %v477
    %1965 = vmatprep.subr.mxu0 %v490
    %1966 = vmatpush1.msra.mxu0 %v489
    %1967 = vmatprep.subr.mxu0 %v502
    %1968 = vmatpush1.msra.mxu0 %v501
    %1969 = vmatprep.subr.mxu0 %v514
    %1970 = vmatpush1.msra.mxu0 %v513
    %1971 = vmatprep.subr.mxu0 %v526
    %1972 = vmatpush1.msra.mxu0 %v525
    %1973 = vmatprep.subr.mxu0 %v538
    %1974 = vmatpush1.msra.mxu0 %v537
    %1975 = vmatprep.subr.mxu0 %v550
    %1976 = vmatpush1.msra.mxu0 %v549
    %1977 = vmatprep.subr.mxu0 %v562
    %1978 = vmatpush1.msra.mxu0 %v561
    %1979 = vmatprep.subr.mxu0 %v574
    %1980 = vmatpush1.msra.mxu0 %v573
    %1981 = vmatprep.subr.mxu0 %v586
    %1982 = vmatpush1.msra.mxu0 %v585
    %1983 = vmatprep.subr.mxu0 %v598
    %1984 = vmatpush1.msra.mxu0 %v597
    %1985 = vmatprep.mubr.f32.mxu0 %v192
    %1986 = vmatmul.mubr.f32.gmra.mrb[0].mxu0 %v191
    %v1987 = vpop.f32.mrb[0].mxu0
    %v1988 = vadd.f32 0.0, %v1987
    %v1989 = vpop.f32.mrb[0].mxu0
    %v1990 = vadd.f32 0.0, %v1989
    %1991 = vmatprep.mubr.f32.mxu0 %v195
    %1992 = vmatmul.mubr.f32.gmra.mrb[0].mxu0 %v194
    %v1993 = vpop.f32.mrb[0].mxu0
    %v1994 = vadd.f32 0.0, %v1993
    %v1995 = vpop.f32.mrb[0].mxu0
    %v1996 = vadd.f32 0.0, %v1995
    %1997 = vmatprep.mubr.f32.mxu0 %v198
    %1998 = vmatmul.mubr.f32.gmra.mrb[0].mxu0 %v197
    %v1999 = vpop.f32.mrb[0].mxu0
    %v2000 = vadd.f32 0.0, %v1999
    %v2001 = vpop.f32.mrb[0].mxu0
    %v2002 = vadd.f32 0.0, %v2001
    %2003 = vmatprep.mubr.f32.mxu0 %v201
    %2004 = vmatmul.mubr.f32.gmra.mrb[0].mxu0 %v200
    %v2005 = vpop.f32.mrb[0].mxu0
    %v2006 = vadd.f32 0.0, %v2005
    %v2007 = vpop.f32.mrb[0].mxu0
    %v2008 = vadd.f32 0.0, %v2007
    %2009 = vmatprep.mubr.f32.mxu0 %v204
    %2010 = vmatmul.mubr.f32.gmra.mrb[0].mxu0 %v203
    %v2011 = vpop.f32.mrb[0].mxu0
    %v2012 = vadd.f32 0.0, %v2011
    %v2013 = vpop.f32.mrb[0].mxu0
    %v2014 = vadd.f32 0.0, %v2013
    %2015 = vmatprep.mubr.f32.mxu0 %v207
    %2016 = vmatmul.mubr.f32.gmra.mrb[0].mxu0 %v206
    %v2017 = vpop.f32.mrb[0].mxu0
    %v2018 = vadd.f32 0.0, %v2017
    %v2019 = vpop.f32.mrb[0].mxu0
    %v2020 = vadd.f32 0.0, %v2019
    %2021 = vmatprep.mubr.f32.mxu0 %v210
    %2022 = vmatmul.mubr.f32.gmra.mrb[0].mxu0 %v209
    %v2023 = vpop.f32.mrb[0].mxu0
    %v2024 = vadd.f32 0.0, %v2023
    %v2025 = vpop.f32.mrb[0].mxu0
    %v2026 = vadd.f32 0.0, %v2025
    %2027 = vmatprep.mubr.f32.mxu0 %v213
    %2028 = vmatmul.mubr.f32.gmra.mrb[0].mxu0 %v212
    %v2029 = vpop.f32.mrb[0].mxu0
    %v2030 = vadd.f32 0.0, %v2029
    %v2031 = vpop.f32.mrb[0].mxu0
    %v2032 = vadd.f32 0.0, %v2031
    %2033 = vdwg.mxu0
    %2034 = vmatprep.subr.mxu0 %v610
    %2035 = vmatpush1.msra.mxu0 %v609
    %2036 = vmatprep.subr.mxu0 %v622
    %2037 = vmatpush1.msra.mxu0 %v621
    %2038 = vmatprep.subr.mxu0 %v634
    %2039 = vmatpush1.msra.mxu0 %v633
    %2040 = vmatprep.subr.mxu0 %v646
    %2041 = vmatpush1.msra.mxu0 %v645
    %2042 = vmatprep.subr.mxu0 %v658
    %2043 = vmatpush1.msra.mxu0 %v657
    %2044 = vmatprep.subr.mxu0 %v670
    %2045 = vmatpush1.msra.mxu0 %v669
    %2046 = vmatprep.subr.mxu0 %v682
    %2047 = vmatpush1.msra.mxu0 %v681
    %2048 = vmatprep.subr.mxu0 %v694
    %2049 = vmatpush1.msra.mxu0 %v693
    %2050 = vmatprep.subr.mxu0 %v706
    %2051 = vmatpush1.msra.mxu0 %v705
    %2052 = vmatprep.subr.mxu0 %v718
    %2053 = vmatpush1.msra.mxu0 %v717
    %2054 = vmatprep.subr.mxu0 %v730
    %2055 = vmatpush1.msra.mxu0 %v729
    %2056 = vmatprep.subr.mxu0 %v742
    %2057 = vmatpush1.msra.mxu0 %v741
    %2058 = vmatprep.subr.mxu0 %v754
    %2059 = vmatpush1.msra.mxu0 %v753
    %2060 = vmatprep.subr.mxu0 %v766
    %2061 = vmatpush1.msra.mxu0 %v765
    %2062 = vmatprep.subr.mxu0 %v778
    %2063 = vmatpush1.msra.mxu0 %v777
    %2064 = vmatprep.subr.mxu0 %v790
    %2065 = vmatpush1.msra.mxu0 %v789
    %2066 = vmatprep.subr.mxu0 0.0
    %2067 = vmatpush1.msra.mxu0 0.0
    %2068 = vmatprep.subr.mxu0 0.0
    %2069 = vmatpush1.msra.mxu0 0.0
    %2070 = vmatprep.subr.mxu0 0.0
    %2071 = vmatpush1.msra.mxu0 0.0
    %2072 = vmatprep.subr.mxu0 0.0
    %2073 = vmatpush1.msra.mxu0 0.0
    %2074 = vmatprep.subr.mxu0 0.0
    %2075 = vmatpush1.msra.mxu0 0.0
    %2076 = vmatprep.subr.mxu0 0.0
    %2077 = vmatpush1.msra.mxu0 0.0
    %2078 = vmatprep.subr.mxu0 0.0
    %2079 = vmatpush1.msra.mxu0 0.0
    %2080 = vmatprep.subr.mxu0 0.0
    %2081 = vmatpush1.msra.mxu0 0.0
    %2082 = vmatprep.subr.mxu0 0.0
    %2083 = vmatpush1.msra.mxu0 0.0
    %2084 = vmatprep.subr.mxu0 0.0
    %2085 = vmatpush1.msra.mxu0 0.0
    %2086 = vmatprep.subr.mxu0 0.0
    %2087 = vmatpush1.msra.mxu0 0.0
    %2088 = vmatprep.subr.mxu0 0.0
    %2089 = vmatpush1.msra.mxu0 0.0
    %2090 = vmatprep.subr.mxu0 0.0
    %2091 = vmatpush1.msra.mxu0 0.0
    %2092 = vmatprep.subr.mxu0 0.0
    %2093 = vmatpush1.msra.mxu0 0.0
    %2094 = vmatprep.subr.mxu0 0.0
    %2095 = vmatpush1.msra.mxu0 0.0
    %2096 = vmatprep.subr.mxu0 0.0
    %2097 = vmatpush1.msra.mxu0 0.0
    %2098 = vmatprep.mubr.f32.mxu0 0.0
    %2099 = vmatmul.mubr.f32.gmra.mrb[0].mxu0 %v193
    %v2100 = vpop.f32.mrb[0].mxu0
    %v2101 = vadd.f32 %v1988, %v2100
    %v2102 = vpop.f32.mrb[0].mxu0
    %v2103 = vadd.f32 %v1990, %v2102
    %2104 = vmatprep.mubr.f32.mxu0 0.0
    %2105 = vmatmul.mubr.f32.gmra.mrb[0].mxu0 %v196
    %v2106 = vpop.f32.mrb[0].mxu0
    %v2107 = vadd.f32 %v1994, %v2106
    %v2108 = vpop.f32.mrb[0].mxu0
    %v2109 = vadd.f32 %v1996, %v2108
    %2110 = vmatprep.mubr.f32.mxu0 0.0
    %2111 = vmatmul.mubr.f32.gmra.mrb[0].mxu0 %v199
    %v2112 = vpop.f32.mrb[0].mxu0
    %v2113 = vadd.f32 %v2000, %v2112
    %v2114 = vpop.f32.mrb[0].mxu0
    %v2115 = vadd.f32 %v2002, %v2114
    %2116 = vmatprep.mubr.f32.mxu0 0.0
    %2117 = vmatmul.mubr.f32.gmra.mrb[0].mxu0 %v202
    %v2118 = vpop.f32.mrb[0].mxu0
    %v2119 = vadd.f32 %v2006, %v2118
    %v2120 = vpop.f32.mrb[0].mxu0
    %v2121 = vadd.f32 %v2008, %v2120
    %2122 = vmatprep.mubr.f32.mxu0 0.0
    %2123 = vmatmul.mubr.f32.gmra.mrb[0].mxu0 %v205
    %v2124 = vpop.f32.mrb[0].mxu0
    %v2125 = vadd.f32 %v2012, %v2124
    %v2126 = vpop.f32.mrb[0].mxu0
    %v2127 = vadd.f32 %v2014, %v2126
    %2128 = vmatprep.mubr.f32.mxu0 0.0
    %2129 = vmatmul.mubr.f32.gmra.mrb[0].mxu0 %v208
    %v2130 = vpop.f32.mrb[0].mxu0
    %v2131 = vadd.f32 %v2018, %v2130
    %v2132 = vpop.f32.mrb[0].mxu0
    %v2133 = vadd.f32 %v2020, %v2132
    %2134 = vmatprep.mubr.f32.mxu0 0.0
    %2135 = vmatmul.mubr.f32.gmra.mrb[0].mxu0 %v211
    %v2136 = vpop.f32.mrb[0].mxu0
    %v2137 = vadd.f32 %v2024, %v2136
    %v2138 = vpop.f32.mrb[0].mxu0
    %v2139 = vadd.f32 %v2026, %v2138
    %2140 = vmatprep.mubr.f32.mxu0 0.0
    %2141 = vmatmul.mubr.f32.gmra.mrb[0].mxu0 %v214
    %v2142 = vpop.f32.mrb[0].mxu0
    %v2143 = vadd.f32 %v2030, %v2142
    %v2144 = vpop.f32.mrb[0].mxu0
    %v2145 = vadd.f32 %v2032, %v2144
    %2146 = vdwg.mxu0
    %v2147 = vlaneseq
    %v2148 = vshrl.u32 %v2147, 7
    %v2149 = vadd.s32 %v2148, 8
    %v2150 = vadd.s32 %v2148, 16
    %v2151 = vadd.s32 %v2148, 24
    %v2152 = vlaneseq
    %v2153 = vand.u32 %v2152, 127
    %vm2154 = vcmp.le.s32.totalorder %v2153, %v2148
    %vm2155 = vcmp.le.s32.totalorder %v2153, %v2149
    %vm2156 = vcmp.le.s32.totalorder %v2153, %v2150
    %vm2157 = vcmp.le.s32.totalorder %v2153, %v2151
    %2158 = vmatprep.subr.mxu0 0.0
    %2159 = vmatpush1.xpose.msra.mxu0 %v1423
    %2160 = vmatprep.subr.mxu0 0.0
    %2161 = vmatpush1.xpose.msra.mxu0 %v1429
    %2162 = vmatprep.subr.mxu0 0.0
    %2163 = vmatpush1.xpose.msra.mxu0 %v1435
    %2164 = vmatprep.subr.mxu0 0.0
    %2165 = vmatpush1.xpose.msra.mxu0 %v1441
    %2166 = vmatprep.subr.mxu0 0.0
    %2167 = vmatpush1.xpose.msra.mxu0 0.0
    %2168 = vmatprep.subr.mxu0 0.0
    %2169 = vmatpush1.xpose.msra.mxu0 0.0
    %2170 = vmatprep.subr.mxu0 0.0
    %2171 = vmatpush1.xpose.msra.mxu0 0.0
    %2172 = vmatprep.subr.mxu0 0.0
    %2173 = vmatpush1.xpose.msra.mxu0 0.0
    %2174 = vmatprep.subr.mxu0 0.0
    %2175 = vmatpush1.xpose.msra.mxu0 0.0
    %2176 = vmatprep.subr.mxu0 0.0
    %2177 = vmatpush1.xpose.msra.mxu0 0.0
    %2178 = vmatprep.subr.mxu0 0.0
    %2179 = vmatpush1.xpose.msra.mxu0 0.0
    %2180 = vmatprep.subr.mxu0 0.0
    %2181 = vmatpush1.xpose.msra.mxu0 0.0
    %2182 = vmatprep.subr.mxu0 0.0
    %2183 = vmatpush1.xpose.msra.mxu0 0.0
    %2184 = vmatprep.subr.mxu0 0.0
    %2185 = vmatpush1.xpose.msra.mxu0 0.0
    %2186 = vmatprep.subr.mxu0 0.0
    %2187 = vmatpush1.xpose.msra.mxu0 0.0
    %2188 = vmatprep.subr.mxu0 0.0
    %2189 = vmatpush1.xpose.msra.mxu0 0.0
    %2190 = vmatprep.subr.mxu0 0.0
    %2191 = vmatpush1.xpose.msra.mxu0 0.0
    %2192 = vmatprep.subr.mxu0 0.0
    %2193 = vmatpush1.xpose.msra.mxu0 0.0
    %2194 = vmatprep.subr.mxu0 0.0
    %2195 = vmatpush1.xpose.msra.mxu0 0.0
    %2196 = vmatprep.subr.mxu0 0.0
    %2197 = vmatpush1.xpose.msra.mxu0 0.0
    %2198 = vmatprep.subr.mxu0 0.0
    %2199 = vmatpush1.xpose.msra.mxu0 0.0
    %2200 = vmatprep.subr.mxu0 0.0
    %2201 = vmatpush1.xpose.msra.mxu0 0.0
    %2202 = vmatprep.subr.mxu0 0.0
    %2203 = vmatpush1.xpose.msra.mxu0 0.0
    %2204 = vmatprep.subr.mxu0 0.0
    %2205 = vmatpush1.xpose.msra.mxu0 0.0
    %2206 = vmatprep.subr.mxu0 0.0
    %2207 = vmatpush1.xpose.msra.mxu0 0.0
    %2208 = vmatprep.subr.mxu0 0.0
    %2209 = vmatpush1.xpose.msra.mxu0 0.0
    %2210 = vmatprep.subr.mxu0 0.0
    %2211 = vmatpush1.xpose.msra.mxu0 0.0
    %2212 = vmatprep.subr.mxu0 0.0
    %2213 = vmatpush1.xpose.msra.mxu0 0.0
    %2214 = vmatprep.subr.mxu0 0.0
    %2215 = vmatpush1.xpose.msra.mxu0 0.0
    %2216 = vmatprep.subr.mxu0 0.0
    %2217 = vmatpush1.xpose.msra.mxu0 0.0
    %2218 = vmatprep.subr.mxu0 0.0
    %2219 = vmatpush1.xpose.msra.mxu0 0.0
    %2220 = vmatprep.subr.mxu0 0.0
    %2221 = vmatpush1.xpose.msra.mxu0 0.0
    %2222 = vmatprep.mubr.f32.mxu0 0.0
    %2223 = vmatmul.mubr.f32.gmra.mrb[0].mxu0 %v971
    %v2224 = vpop.f32.mrb[0].mxu0
    %v2225 = vadd.f32 0.0, %v2224
    %v2226 = vpop.f32.mrb[0].mxu0
    %2227 = vmatprep.mubr.f32.mxu0 0.0
    %2228 = vmatmul.mubr.f32.gmra.mrb[0].mxu0 %v977
    %v2229 = vpop.f32.mrb[0].mxu0
    %v2230 = vadd.f32 0.0, %v2229
    %v2231 = vpop.f32.mrb[0].mxu0
    %2232 = vmatprep.mubr.f32.mxu0 0.0
    %2233 = vmatmul.mubr.f32.gmra.mrb[0].mxu0 %v983
    %v2234 = vpop.f32.mrb[0].mxu0
    %v2235 = vadd.f32 0.0, %v2234
    %v2236 = vpop.f32.mrb[0].mxu0
    %2237 = vmatprep.mubr.f32.mxu0 0.0
    %2238 = vmatmul.mubr.f32.gmra.mrb[0].mxu0 %v989
    %v2239 = vpop.f32.mrb[0].mxu0
    %v2240 = vadd.f32 0.0, %v2239
    %v2241 = vpop.f32.mrb[0].mxu0
    %2242 = vdwg.mxu0
    %2243 = vmatprep.subr.mxu0 0.0
    %2244 = vmatpush1.xpose.msra.mxu0 %v1447
    %2245 = vmatprep.subr.mxu0 0.0
    %2246 = vmatpush1.xpose.msra.mxu0 %v1453
    %2247 = vmatprep.subr.mxu0 0.0
    %2248 = vmatpush1.xpose.msra.mxu0 %v1459
    %2249 = vmatprep.subr.mxu0 0.0
    %2250 = vmatpush1.xpose.msra.mxu0 %v1465
    %2251 = vmatprep.subr.mxu0 0.0
    %2252 = vmatpush1.xpose.msra.mxu0 0.0
    %2253 = vmatprep.subr.mxu0 0.0
    %2254 = vmatpush1.xpose.msra.mxu0 0.0
    %2255 = vmatprep.subr.mxu0 0.0
    %2256 = vmatpush1.xpose.msra.mxu0 0.0
    %2257 = vmatprep.subr.mxu0 0.0
    %2258 = vmatpush1.xpose.msra.mxu0 0.0
    %2259 = vmatprep.subr.mxu0 0.0
    %2260 = vmatpush1.xpose.msra.mxu0 0.0
    %2261 = vmatprep.subr.mxu0 0.0
    %2262 = vmatpush1.xpose.msra.mxu0 0.0
    %2263 = vmatprep.subr.mxu0 0.0
    %2264 = vmatpush1.xpose.msra.mxu0 0.0
    %2265 = vmatprep.subr.mxu0 0.0
    %2266 = vmatpush1.xpose.msra.mxu0 0.0
    %2267 = vmatprep.subr.mxu0 0.0
    %2268 = vmatpush1.xpose.msra.mxu0 0.0
    %2269 = vmatprep.subr.mxu0 0.0
    %2270 = vmatpush1.xpose.msra.mxu0 0.0
    %2271 = vmatprep.subr.mxu0 0.0
    %2272 = vmatpush1.xpose.msra.mxu0 0.0
    %2273 = vmatprep.subr.mxu0 0.0
    %2274 = vmatpush1.xpose.msra.mxu0 0.0
    %2275 = vmatprep.subr.mxu0 0.0
    %2276 = vmatpush1.xpose.msra.mxu0 0.0
    %2277 = vmatprep.subr.mxu0 0.0
    %2278 = vmatpush1.xpose.msra.mxu0 0.0
    %2279 = vmatprep.subr.mxu0 0.0
    %2280 = vmatpush1.xpose.msra.mxu0 0.0
    %2281 = vmatprep.subr.mxu0 0.0
    %2282 = vmatpush1.xpose.msra.mxu0 0.0
    %2283 = vmatprep.subr.mxu0 0.0
    %2284 = vmatpush1.xpose.msra.mxu0 0.0
    %2285 = vmatprep.subr.mxu0 0.0
    %2286 = vmatpush1.xpose.msra.mxu0 0.0
    %2287 = vmatprep.subr.mxu0 0.0
    %2288 = vmatpush1.xpose.msra.mxu0 0.0
    %2289 = vmatprep.subr.mxu0 0.0
    %2290 = vmatpush1.xpose.msra.mxu0 0.0
    %2291 = vmatprep.subr.mxu0 0.0
    %2292 = vmatpush1.xpose.msra.mxu0 0.0
    %2293 = vmatprep.subr.mxu0 0.0
    %2294 = vmatpush1.xpose.msra.mxu0 0.0
    %2295 = vmatprep.subr.mxu0 0.0
    %2296 = vmatpush1.xpose.msra.mxu0 0.0
    %2297 = vmatprep.subr.mxu0 0.0
    %2298 = vmatpush1.xpose.msra.mxu0 0.0
    %2299 = vmatprep.subr.mxu0 0.0
    %2300 = vmatpush1.xpose.msra.mxu0 0.0
    %2301 = vmatprep.subr.mxu0 0.0
    %2302 = vmatpush1.xpose.msra.mxu0 0.0
    %2303 = vmatprep.subr.mxu0 0.0
    %2304 = vmatpush1.xpose.msra.mxu0 0.0
    %2305 = vmatprep.subr.mxu0 0.0
    %2306 = vmatpush1.xpose.msra.mxu0 0.0
    %2307 = vmatprep.mubr.f32.mxu0 0.0
    %2308 = vmatmul.mubr.f32.gmra.mrb[0].mxu0 %v995
    %v2309 = vpop.f32.mrb[0].mxu0
    %v2310 = vadd.f32 0.0, %v2309
    %v2311 = vpop.f32.mrb[0].mxu0
    %2312 = vmatprep.mubr.f32.mxu0 0.0
    %2313 = vmatmul.mubr.f32.gmra.mrb[0].mxu0 %v1001
    %v2314 = vpop.f32.mrb[0].mxu0
    %v2315 = vadd.f32 0.0, %v2314
    %v2316 = vpop.f32.mrb[0].mxu0
    %2317 = vmatprep.mubr.f32.mxu0 0.0
    %2318 = vmatmul.mubr.f32.gmra.mrb[0].mxu0 %v1007
    %v2319 = vpop.f32.mrb[0].mxu0
    %v2320 = vadd.f32 0.0, %v2319
    %v2321 = vpop.f32.mrb[0].mxu0
    %2322 = vmatprep.mubr.f32.mxu0 0.0
    %2323 = vmatmul.mubr.f32.gmra.mrb[0].mxu0 %v1013
    %v2324 = vpop.f32.mrb[0].mxu0
    %v2325 = vadd.f32 0.0, %v2324
    %v2326 = vpop.f32.mrb[0].mxu0
    %2327 = vdwg.mxu0
    %v2328 = vmul.f32 %v2225, 9.797959
    %v2329 = vmul.f32 %v2230, 9.797959
    %v2330 = vmul.f32 %v2235, 9.797959
    %v2331 = vmul.f32 %v2240, 9.797959
    %v2332 = vmul.f32 %v2310, 9.797959
    %v2333 = vmul.f32 %v2315, 9.797959
    %v2334 = vmul.f32 %v2320, 9.797959
    %v2335 = vmul.f32 %v2325, 9.797959
    %v2336 = vsel %vm2154, 1, 0
    %v2337 = vsel %vm2155, 1, 0
    %v2338 = vsel %vm2156, 1, 0
    %v2339 = vsel %vm2157, 1, 0
    %vm2340 = vcmp.eq.s32.totalorder %v2336, 1
    %vm2341 = vcmp.eq.s32.totalorder %v2337, 1
    %vm2342 = vcmp.eq.s32.totalorder %v2338, 1
    %vm2343 = vcmp.eq.s32.totalorder %v2339, 1
    %v2344 = vsel %vm2340, %v2328, -inf
    %v2345 = vsel %vm2341, %v2329, -inf
    %v2346 = vsel %vm2342, %v2330, -inf
    %v2347 = vsel %vm2343, %v2331, -inf
    %v2348 = vsel %vm2340, %v2332, -inf
    %v2349 = vsel %vm2341, %v2333, -inf
    %v2350 = vsel %vm2342, %v2334, -inf
    %v2351 = vsel %vm2343, %v2335, -inf
    %vm2352 = vcmask 261120
    %v2353 = vsel %vm2352, %v2344, -inf
    %2354 = vmax.xlane.f32.xlu0 %v2353
    %v2355 = vpop.xlane.xlu0 %2354
    %v2356 = vsel %vm2352, %v2345, -inf
    %2357 = vmax.xlane.f32.xlu0 %v2356
    %v2358 = vpop.xlane.xlu0 %2357
    %v2359 = vsel %vm2352, %v2346, -inf
    %2360 = vmax.xlane.f32.xlu0 %v2359
    %v2361 = vpop.xlane.xlu0 %2360
    %v2362 = vsel %vm2352, %v2347, -inf
    %2363 = vmax.xlane.f32.xlu0 %v2362
    %v2364 = vpop.xlane.xlu0 %2363
    %v2365 = vsel %vm2352, %v2348, -inf
    %2366 = vmax.xlane.f32.xlu0 %v2365
    %v2367 = vpop.xlane.xlu0 %2366
    %v2368 = vsel %vm2352, %v2349, -inf
    %2369 = vmax.xlane.f32.xlu0 %v2368
    %v2370 = vpop.xlane.xlu0 %2369
    %v2371 = vsel %vm2352, %v2350, -inf
    %2372 = vmax.xlane.f32.xlu0 %v2371
    %v2373 = vpop.xlane.xlu0 %2372
    %v2374 = vsel %vm2352, %v2351, -inf
    %2375 = vmax.xlane.f32.xlu0 %v2374
    %v2376 = vpop.xlane.xlu0 %2375
    %v2377 = vsub.f32 %v2344, %v2355
    %v2378 = vsub.f32 %v2345, %v2358
    %v2379 = vsub.f32 %v2346, %v2361
    %v2380 = vsub.f32 %v2347, %v2364
    %v2381 = vsub.f32 %v2348, %v2367
    %v2382 = vsub.f32 %v2349, %v2370
    %v2383 = vsub.f32 %v2350, %v2373
    %v2384 = vsub.f32 %v2351, %v2376
    %v2385 = vmul.f32 %v2377, 1.442695
    %v2386 = vpow.pop %v2385
    %v2387 = vmul.f32 %v2378, 1.442695
    %v2388 = vpow.pop %v2387
    %v2389 = vmul.f32 %v2379, 1.442695
    %v2390 = vpow.pop %v2389
    %v2391 = vmul.f32 %v2380, 1.442695
    %v2392 = vpow.pop %v2391
    %v2393 = vmul.f32 %v2381, 1.442695
    %v2394 = vpow.pop %v2393
    %v2395 = vmul.f32 %v2382, 1.442695
    %v2396 = vpow.pop %v2395
    %v2397 = vmul.f32 %v2383, 1.442695
    %v2398 = vpow.pop %v2397
    %v2399 = vmul.f32 %v2384, 1.442695
    %v2400 = vpow.pop %v2399
    %v2401 = vsel %vm2352, %v2386, 0.0
    %2402 = vadd.xlane.f32.xlu0 %v2401
    %v2403 = vpop.xlane.xlu0 %2402
    %v2404 = vsel %vm2352, %v2388, 0.0
    %2405 = vadd.xlane.f32.xlu0 %v2404
    %v2406 = vpop.xlane.xlu0 %2405
    %v2407 = vsel %vm2352, %v2390, 0.0
    %2408 = vadd.xlane.f32.xlu0 %v2407
    %v2409 = vpop.xlane.xlu0 %2408
    %v2410 = vsel %vm2352, %v2392, 0.0
    %2411 = vadd.xlane.f32.xlu0 %v2410
    %v2412 = vpop.xlane.xlu0 %2411
    %v2413 = vsel %vm2352, %v2394, 0.0
    %2414 = vadd.xlane.f32.xlu0 %v2413
    %v2415 = vpop.xlane.xlu0 %2414
    %v2416 = vsel %vm2352, %v2396, 0.0
    %2417 = vadd.xlane.f32.xlu0 %v2416
    %v2418 = vpop.xlane.xlu0 %2417
    %v2419 = vsel %vm2352, %v2398, 0.0
    %2420 = vadd.xlane.f32.xlu0 %v2419
    %v2421 = vpop.xlane.xlu0 %2420
    %v2422 = vsel %vm2352, %v2400, 0.0
    %2423 = vadd.xlane.f32.xlu0 %v2422
    %v2424 = vpop.xlane.xlu0 %2423
    %v2425 = vrcp.pop %v2403
    %v2426 = vrcp.pop %v2406
    %v2427 = vrcp.pop %v2409
    %v2428 = vrcp.pop %v2412
    %v2429 = vrcp.pop %v2415
    %v2430 = vrcp.pop %v2418
    %v2431 = vrcp.pop %v2421
    %v2432 = vrcp.pop %v2424
    %v2433 = vmul.f32 %v2386, %v2425
    %v2434 = vmul.f32 %v2388, %v2426
    %v2435 = vmul.f32 %v2390, %v2427
    %v2436 = vmul.f32 %v2392, %v2428
    %v2437 = vmul.f32 %v2394, %v2429
    %v2438 = vmul.f32 %v2396, %v2430
    %v2439 = vmul.f32 %v2398, %v2431
    %v2440 = vmul.f32 %v2400, %v2432
    %v2442 = vsel %vm2352, %v2433, 0
    %v2445 = vsel %vm2352, %v2434, 0
    %v2448 = vsel %vm2352, %v2435, 0
    %v2451 = vsel %vm2352, %v2436, 0
    %2453 = vmatprep.subr.mxu0 0.0
    %2454 = vmatpush1.msra.mxu0 %v1875
    %2455 = vmatprep.subr.mxu0 0.0
    %2456 = vmatpush1.msra.mxu0 %v1881
    %2457 = vmatprep.subr.mxu0 0.0
    %2458 = vmatpush1.msra.mxu0 %v1887
    %2459 = vmatprep.subr.mxu0 0.0
    %2460 = vmatpush1.msra.mxu0 %v1893
    %2461 = vmatprep.subr.mxu0 0.0
    %2462 = vmatpush1.msra.mxu0 0.0
    %2463 = vmatprep.subr.mxu0 0.0
    %2464 = vmatpush1.msra.mxu0 0.0
    %2465 = vmatprep.subr.mxu0 0.0
    %2466 = vmatpush1.msra.mxu0 0.0
    %2467 = vmatprep.subr.mxu0 0.0
    %2468 = vmatpush1.msra.mxu0 0.0
    %2469 = vmatprep.subr.mxu0 0.0
    %2470 = vmatpush1.msra.mxu0 0.0
    %2471 = vmatprep.subr.mxu0 0.0
    %2472 = vmatpush1.msra.mxu0 0.0
    %2473 = vmatprep.subr.mxu0 0.0
    %2474 = vmatpush1.msra.mxu0 0.0
    %2475 = vmatprep.subr.mxu0 0.0
    %2476 = vmatpush1.msra.mxu0 0.0
    %2477 = vmatprep.subr.mxu0 0.0
    %2478 = vmatpush1.msra.mxu0 0.0
    %2479 = vmatprep.subr.mxu0 0.0
    %2480 = vmatpush1.msra.mxu0 0.0
    %2481 = vmatprep.subr.mxu0 0.0
    %2482 = vmatpush1.msra.mxu0 0.0
    %2483 = vmatprep.subr.mxu0 0.0
    %2484 = vmatpush1.msra.mxu0 0.0
    %2485 = vmatprep.subr.mxu0 0.0
    %2486 = vmatpush1.msra.mxu0 0.0
    %2487 = vmatprep.subr.mxu0 0.0
    %2488 = vmatpush1.msra.mxu0 0.0
    %2489 = vmatprep.subr.mxu0 0.0
    %2490 = vmatpush1.msra.mxu0 0.0
    %2491 = vmatprep.subr.mxu0 0.0
    %2492 = vmatpush1.msra.mxu0 0.0
    %2493 = vmatprep.subr.mxu0 0.0
    %2494 = vmatpush1.msra.mxu0 0.0
    %2495 = vmatprep.subr.mxu0 0.0
    %2496 = vmatpush1.msra.mxu0 0.0
    %2497 = vmatprep.subr.mxu0 0.0
    %2498 = vmatpush1.msra.mxu0 0.0
    %2499 = vmatprep.subr.mxu0 0.0
    %2500 = vmatpush1.msra.mxu0 0.0
    %2501 = vmatprep.subr.mxu0 0.0
    %2502 = vmatpush1.msra.mxu0 0.0
    %2503 = vmatprep.subr.mxu0 0.0
    %2504 = vmatpush1.msra.mxu0 0.0
    %2505 = vmatprep.subr.mxu0 0.0
    %2506 = vmatpush1.msra.mxu0 0.0
    %2507 = vmatprep.subr.mxu0 0.0
    %2508 = vmatpush1.msra.mxu0 0.0
    %2509 = vmatprep.subr.mxu0 0.0
    %2510 = vmatpush1.msra.mxu0 0.0
    %2511 = vmatprep.subr.mxu0 0.0
    %2512 = vmatpush1.msra.mxu0 0.0
    %2513 = vmatprep.subr.mxu0 0.0
    %2514 = vmatpush1.msra.mxu0 0.0
    %2515 = vmatprep.subr.mxu0 0.0
    %2516 = vmatpush1.msra.mxu0 0.0
    %2517 = vmatprep.mubr.f32.mxu0 0.0
    %2518 = vmatmul.mubr.f32.gmra.mrb[0].mxu0 %v2442
    %v2519 = vpop.f32.mrb[0].mxu0
    %v2520 = vadd.f32 0.0, %v2519
    %v2521 = vpop.f32.mrb[0].mxu0
    %2522 = vmatprep.mubr.f32.mxu0 0.0
    %2523 = vmatmul.mubr.f32.gmra.mrb[0].mxu0 %v2445
    %v2524 = vpop.f32.mrb[0].mxu0
    %v2525 = vadd.f32 0.0, %v2524
    %v2526 = vpop.f32.mrb[0].mxu0
    %2527 = vmatprep.mubr.f32.mxu0 0.0
    %2528 = vmatmul.mubr.f32.gmra.mrb[0].mxu0 %v2448
    %v2529 = vpop.f32.mrb[0].mxu0
    %v2530 = vadd.f32 0.0, %v2529
    %v2531 = vpop.f32.mrb[0].mxu0
    %2532 = vmatprep.mubr.f32.mxu0 0.0
    %2533 = vmatmul.mubr.f32.gmra.mrb[0].mxu0 %v2451
    %v2534 = vpop.f32.mrb[0].mxu0
    %v2535 = vadd.f32 0.0, %v2534
    %v2536 = vpop.f32.mrb[0].mxu0
    %2537 = vdwg.mxu0
    %v2539 = vsel %vm2352, %v2437, 0
    %v2542 = vsel %vm2352, %v2438, 0
    %v2545 = vsel %vm2352, %v2439, 0
    %v2548 = vsel %vm2352, %v2440, 0
    %2550 = vmatprep.subr.mxu0 0.0
    %2551 = vmatpush1.msra.mxu0 %v1899
    %2552 = vmatprep.subr.mxu0 0.0
    %2553 = vmatpush1.msra.mxu0 %v1905
    %2554 = vmatprep.subr.mxu0 0.0
    %2555 = vmatpush1.msra.mxu0 %v1911
    %2556 = vmatprep.subr.mxu0 0.0
    %2557 = vmatpush1.msra.mxu0 %v1917
    %2558 = vmatprep.subr.mxu0 0.0
    %2559 = vmatpush1.msra.mxu0 0.0
    %2560 = vmatprep.subr.mxu0 0.0
    %2561 = vmatpush1.msra.mxu0 0.0
    %2562 = vmatprep.subr.mxu0 0.0
    %2563 = vmatpush1.msra.mxu0 0.0
    %2564 = vmatprep.subr.mxu0 0.0
    %2565 = vmatpush1.msra.mxu0 0.0
    %2566 = vmatprep.subr.mxu0 0.0
    %2567 = vmatpush1.msra.mxu0 0.0
    %2568 = vmatprep.subr.mxu0 0.0
    %2569 = vmatpush1.msra.mxu0 0.0
    %2570 = vmatprep.subr.mxu0 0.0
    %2571 = vmatpush1.msra.mxu0 0.0
    %2572 = vmatprep.subr.mxu0 0.0
    %2573 = vmatpush1.msra.mxu0 0.0
    %2574 = vmatprep.subr.mxu0 0.0
    %2575 = vmatpush1.msra.mxu0 0.0
    %2576 = vmatprep.subr.mxu0 0.0
    %2577 = vmatpush1.msra.mxu0 0.0
    %2578 = vmatprep.subr.mxu0 0.0
    %2579 = vmatpush1.msra.mxu0 0.0
    %2580 = vmatprep.subr.mxu0 0.0
    %2581 = vmatpush1.msra.mxu0 0.0
    %2582 = vmatprep.subr.mxu0 0.0
    %2583 = vmatpush1.msra.mxu0 0.0
    %2584 = vmatprep.subr.mxu0 0.0
    %2585 = vmatpush1.msra.mxu0 0.0
    %2586 = vmatprep.subr.mxu0 0.0
    %2587 = vmatpush1.msra.mxu0 0.0
    %2588 = vmatprep.subr.mxu0 0.0
    %2589 = vmatpush1.msra.mxu0 0.0
    %2590 = vmatprep.subr.mxu0 0.0
    %2591 = vmatpush1.msra.mxu0 0.0
    %2592 = vmatprep.subr.mxu0 0.0
    %2593 = vmatpush1.msra.mxu0 0.0
    %2594 = vmatprep.subr.mxu0 0.0
    %2595 = vmatpush1.msra.mxu0 0.0
    %2596 = vmatprep.subr.mxu0 0.0
    %2597 = vmatpush1.msra.mxu0 0.0
    %2598 = vmatprep.subr.mxu0 0.0
    %2599 = vmatpush1.msra.mxu0 0.0
    %2600 = vmatprep.subr.mxu0 0.0
    %2601 = vmatpush1.msra.mxu0 0.0
    %2602 = vmatprep.subr.mxu0 0.0
    %2603 = vmatpush1.msra.mxu0 0.0
    %2604 = vmatprep.subr.mxu0 0.0
    %2605 = vmatpush1.msra.mxu0 0.0
    %2606 = vmatprep.subr.mxu0 0.0
    %2607 = vmatpush1.msra.mxu0 0.0
    %2608 = vmatprep.subr.mxu0 0.0
    %2609 = vmatpush1.msra.mxu0 0.0
    %2610 = vmatprep.subr.mxu0 0.0
    %2611 = vmatpush1.msra.mxu0 0.0
    %2612 = vmatprep.subr.mxu0 0.0
    %2613 = vmatpush1.msra.mxu0 0.0
    %2614 = vmatprep.mubr.f32.mxu0 0.0
    %2615 = vmatmul.mubr.f32.gmra.mrb[0].mxu0 %v2539
    %v2616 = vpop.f32.mrb[0].mxu0
    %v2617 = vadd.f32 0.0, %v2616
    %v2618 = vpop.f32.mrb[0].mxu0
    %2619 = vmatprep.mubr.f32.mxu0 0.0
    %2620 = vmatmul.mubr.f32.gmra.mrb[0].mxu0 %v2542
    %v2621 = vpop.f32.mrb[0].mxu0
    %v2622 = vadd.f32 0.0, %v2621
    %v2623 = vpop.f32.mrb[0].mxu0
    %2624 = vmatprep.mubr.f32.mxu0 0.0
    %2625 = vmatmul.mubr.f32.gmra.mrb[0].mxu0 %v2545
    %v2626 = vpop.f32.mrb[0].mxu0
    %v2627 = vadd.f32 0.0, %v2626
    %v2628 = vpop.f32.mrb[0].mxu0
    %2629 = vmatprep.mubr.f32.mxu0 0.0
    %2630 = vmatmul.mubr.f32.gmra.mrb[0].mxu0 %v2548
    %v2631 = vpop.f32.mrb[0].mxu0
    %v2632 = vadd.f32 0.0, %v2631
    %v2633 = vpop.f32.mrb[0].mxu0
    %2634 = vdwg.mxu0
    %v2635 = vld [vmem:[#allocation7] sm:$0xff]
    %v2636 = vld [vmem:[#allocation7 + $0x8] sm:$0xff]
    %v2637 = vld [vmem:[#allocation7 + $0x10] sm:$0xff]
    %v2638 = vld [vmem:[#allocation7 + $0x18] sm:$0xff]
    %v2639 = vld [vmem:[#allocation7 + $0x20] sm:$0xff]
    %v2640 = vld [vmem:[#allocation7 + $0x28] sm:$0xff]
    %v2641 = vld [vmem:[#allocation7 + $0x30] sm:$0xff]
    %v2642 = vld [vmem:[#allocation7 + $0x38] sm:$0xff]
    %v2643 = vld [vmem:[#allocation7 + $0x40] sm:$0xff]
    %v2644 = vld [vmem:[#allocation7 + $0x48] sm:$0xff]
    %v2645 = vld [vmem:[#allocation7 + $0x50] sm:$0xff]
    %v2646 = vld [vmem:[#allocation7 + $0x58] sm:$0xff]
    %v2647 = vld [vmem:[#allocation7 + $0x60] sm:$0xff]
    %v2648 = vld [vmem:[#allocation7 + $0x68] sm:$0xff]
    %v2649 = vld [vmem:[#allocation7 + $0x70] sm:$0xff]
    %v2650 = vld [vmem:[#allocation7 + $0x78] sm:$0xff]
    %v2651 = vld [vmem:[#allocation7 + $0x80] sm:$0xff]
    %v2652 = vld [vmem:[#allocation7 + $0x88] sm:$0xff]
    %v2653 = vld [vmem:[#allocation7 + $0x90] sm:$0xff]
    %v2654 = vld [vmem:[#allocation7 + $0x98] sm:$0xff]
    %v2655 = vld [vmem:[#allocation7 + $0xa0] sm:$0xff]
    %v2656 = vld [vmem:[#allocation7 + $0xa8] sm:$0xff]
    %v2657 = vld [vmem:[#allocation7 + $0xb0] sm:$0xff]
    %v2658 = vld [vmem:[#allocation7 + $0xb8] sm:$0xff]
    %v2659 = vld [vmem:[#allocation7 + $0xc0] sm:$0xff]
    %v2660 = vld [vmem:[#allocation7 + $0xc8] sm:$0xff]
    %v2661 = vld [vmem:[#allocation7 + $0xd0] sm:$0xff]
    %v2662 = vld [vmem:[#allocation7 + $0xd8] sm:$0xff]
    %v2663 = vld [vmem:[#allocation7 + $0xe0] sm:$0xff]
    %v2664 = vld [vmem:[#allocation7 + $0xe8] sm:$0xff]
    %v2665 = vld [vmem:[#allocation7 + $0xf0] sm:$0xff]
    %v2666 = vld [vmem:[#allocation7 + $0xf8] sm:$0xff]
    %v2667 = vld [vmem:[#allocation7 + $0x100] sm:$0xff]
    %v2668 = vld [vmem:[#allocation7 + $0x108] sm:$0xff]
    %v2669 = vld [vmem:[#allocation7 + $0x110] sm:$0xff]
    %v2670 = vld [vmem:[#allocation7 + $0x118] sm:$0xff]
    %v2671 = vld [vmem:[#allocation7 + $0x120] sm:$0xff]
    %v2672 = vld [vmem:[#allocation7 + $0x128] sm:$0xff]
    %v2673 = vld [vmem:[#allocation7 + $0x130] sm:$0xff]
    %v2674 = vld [vmem:[#allocation7 + $0x138] sm:$0xff]
    %v2675 = vld [vmem:[#allocation7 + $0x140] sm:$0xff]
    %v2676 = vld [vmem:[#allocation7 + $0x148] sm:$0xff]
    %v2677 = vld [vmem:[#allocation7 + $0x150] sm:$0xff]
    %v2678 = vld [vmem:[#allocation7 + $0x158] sm:$0xff]
    %v2679 = vld [vmem:[#allocation7 + $0x160] sm:$0xff]
    %v2680 = vld [vmem:[#allocation7 + $0x168] sm:$0xff]
    %v2681 = vld [vmem:[#allocation7 + $0x170] sm:$0xff]
    %v2682 = vld [vmem:[#allocation7 + $0x178] sm:$0xff]
    %2683 = vmatprep.subr.mxu0 0.0
    %2684 = vmatpush1.xpose.msra.mxu0 %v1425
    %2685 = vmatprep.subr.mxu0 0.0
    %2686 = vmatpush1.xpose.msra.mxu0 %v1431
    %2687 = vmatprep.subr.mxu0 0.0
    %2688 = vmatpush1.xpose.msra.mxu0 %v1437
    %2689 = vmatprep.subr.mxu0 0.0
    %2690 = vmatpush1.xpose.msra.mxu0 %v1443
    %2691 = vmatprep.subr.mxu0 0.0
    %2692 = vmatpush1.xpose.msra.mxu0 0.0
    %2693 = vmatprep.subr.mxu0 0.0
    %2694 = vmatpush1.xpose.msra.mxu0 0.0
    %2695 = vmatprep.subr.mxu0 0.0
    %2696 = vmatpush1.xpose.msra.mxu0 0.0
    %2697 = vmatprep.subr.mxu0 0.0
    %2698 = vmatpush1.xpose.msra.mxu0 0.0
    %2699 = vmatprep.subr.mxu0 0.0
    %2700 = vmatpush1.xpose.msra.mxu0 0.0
    %2701 = vmatprep.subr.mxu0 0.0
    %2702 = vmatpush1.xpose.msra.mxu0 0.0
    %2703 = vmatprep.subr.mxu0 0.0
    %2704 = vmatpush1.xpose.msra.mxu0 0.0
    %2705 = vmatprep.subr.mxu0 0.0
    %2706 = vmatpush1.xpose.msra.mxu0 0.0
    %2707 = vmatprep.subr.mxu0 0.0
    %2708 = vmatpush1.xpose.msra.mxu0 0.0
    %2709 = vmatprep.subr.mxu0 0.0
    %2710 = vmatpush1.xpose.msra.mxu0 0.0
    %2711 = vmatprep.subr.mxu0 0.0
    %2712 = vmatpush1.xpose.msra.mxu0 0.0
    %2713 = vmatprep.subr.mxu0 0.0
    %2714 = vmatpush1.xpose.msra.mxu0 0.0
    %2715 = vmatprep.subr.mxu0 0.0
    %2716 = vmatpush1.xpose.msra.mxu0 0.0
    %2717 = vmatprep.subr.mxu0 0.0
    %2718 = vmatpush1.xpose.msra.mxu0 0.0
    %2719 = vmatprep.subr.mxu0 0.0
    %2720 = vmatpush1.xpose.msra.mxu0 0.0
    %2721 = vmatprep.subr.mxu0 0.0
    %2722 = vmatpush1.xpose.msra.mxu0 0.0
    %2723 = vmatprep.subr.mxu0 0.0
    %2724 = vmatpush1.xpose.msra.mxu0 0.0
    %2725 = vmatprep.subr.mxu0 0.0
    %2726 = vmatpush1.xpose.msra.mxu0 0.0
    %2727 = vmatprep.subr.mxu0 0.0
    %2728 = vmatpush1.xpose.msra.mxu0 0.0
    %2729 = vmatprep.subr.mxu0 0.0
    %2730 = vmatpush1.xpose.msra.mxu0 0.0
    %2731 = vmatprep.subr.mxu0 0.0
    %2732 = vmatpush1.xpose.msra.mxu0 0.0
    %2733 = vmatprep.subr.mxu0 0.0
    %2734 = vmatpush1.xpose.msra.mxu0 0.0
    %2735 = vmatprep.subr.mxu0 0.0
    %2736 = vmatpush1.xpose.msra.mxu0 0.0
    %2737 = vmatprep.subr.mxu0 0.0
    %2738 = vmatpush1.xpose.msra.mxu0 0.0
    %2739 = vmatprep.subr.mxu0 0.0
    %2740 = vmatpush1.xpose.msra.mxu0 0.0
    %2741 = vmatprep.subr.mxu0 0.0
    %2742 = vmatpush1.xpose.msra.mxu0 0.0
    %2743 = vmatprep.subr.mxu0 0.0
    %2744 = vmatpush1.xpose.msra.mxu0 0.0
    %2745 = vmatprep.subr.mxu0 0.0
    %2746 = vmatpush1.xpose.msra.mxu0 0.0
    %2747 = vmatprep.mubr.f32.mxu0 0.0
    %2748 = vmatmul.mubr.f32.gmra.mrb[0].mxu0 %v973
    %v2749 = vpop.f32.mrb[0].mxu0
    %v2750 = vadd.f32 0.0, %v2749
    %v2751 = vpop.f32.mrb[0].mxu0
    %2752 = vmatprep.mubr.f32.mxu0 0.0
    %2753 = vmatmul.mubr.f32.gmra.mrb[0].mxu0 %v979
    %v2754 = vpop.f32.mrb[0].mxu0
    %v2755 = vadd.f32 0.0, %v2754
    %v2756 = vpop.f32.mrb[0].mxu0
    %2757 = vmatprep.mubr.f32.mxu0 0.0
    %2758 = vmatmul.mubr.f32.gmra.mrb[0].mxu0 %v985
    %v2759 = vpop.f32.mrb[0].mxu0
    %v2760 = vadd.f32 0.0, %v2759
    %v2761 = vpop.f32.mrb[0].mxu0
    %2762 = vmatprep.mubr.f32.mxu0 0.0
    %2763 = vmatmul.mubr.f32.gmra.mrb[0].mxu0 %v991
    %v2764 = vpop.f32.mrb[0].mxu0
    %v2765 = vadd.f32 0.0, %v2764
    %v2766 = vpop.f32.mrb[0].mxu0
    %2767 = vdwg.mxu0
    %2768 = vmatprep.subr.mxu0 0.0
    %2769 = vmatpush1.xpose.msra.mxu0 %v1449
    %2770 = vmatprep.subr.mxu0 0.0
    %2771 = vmatpush1.xpose.msra.mxu0 %v1455
    %2772 = vmatprep.subr.mxu0 0.0
    %2773 = vmatpush1.xpose.msra.mxu0 %v1461
    %2774 = vmatprep.subr.mxu0 0.0
    %2775 = vmatpush1.xpose.msra.mxu0 %v1467
    %2776 = vmatprep.subr.mxu0 0.0
    %2777 = vmatpush1.xpose.msra.mxu0 0.0
    %2778 = vmatprep.subr.mxu0 0.0
    %2779 = vmatpush1.xpose.msra.mxu0 0.0
    %2780 = vmatprep.subr.mxu0 0.0
    %2781 = vmatpush1.xpose.msra.mxu0 0.0
    %2782 = vmatprep.subr.mxu0 0.0
    %2783 = vmatpush1.xpose.msra.mxu0 0.0
    %2784 = vmatprep.subr.mxu0 0.0
    %2785 = vmatpush1.xpose.msra.mxu0 0.0
    %2786 = vmatprep.subr.mxu0 0.0
    %2787 = vmatpush1.xpose.msra.mxu0 0.0
    %2788 = vmatprep.subr.mxu0 0.0
    %2789 = vmatpush1.xpose.msra.mxu0 0.0
    %2790 = vmatprep.subr.mxu0 0.0
    %2791 = vmatpush1.xpose.msra.mxu0 0.0
    %2792 = vmatprep.subr.mxu0 0.0
    %2793 = vmatpush1.xpose.msra.mxu0 0.0
    %2794 = vmatprep.subr.mxu0 0.0
    %2795 = vmatpush1.xpose.msra.mxu0 0.0
    %2796 = vmatprep.subr.mxu0 0.0
    %2797 = vmatpush1.xpose.msra.mxu0 0.0
    %2798 = vmatprep.subr.mxu0 0.0
    %2799 = vmatpush1.xpose.msra.mxu0 0.0
    %2800 = vmatprep.subr.mxu0 0.0
    %2801 = vmatpush1.xpose.msra.mxu0 0.0
    %2802 = vmatprep.subr.mxu0 0.0
    %2803 = vmatpush1.xpose.msra.mxu0 0.0
    %2804 = vmatprep.subr.mxu0 0.0
    %2805 = vmatpush1.xpose.msra.mxu0 0.0
    %2806 = vmatprep.subr.mxu0 0.0
    %2807 = vmatpush1.xpose.msra.mxu0 0.0
    %2808 = vmatprep.subr.mxu0 0.0
    %2809 = vmatpush1.xpose.msra.mxu0 0.0
    %2810 = vmatprep.subr.mxu0 0.0
    %2811 = vmatpush1.xpose.msra.mxu0 0.0
    %2812 = vmatprep.subr.mxu0 0.0
    %2813 = vmatpush1.xpose.msra.mxu0 0.0
    %2814 = vmatprep.subr.mxu0 0.0
    %2815 = vmatpush1.xpose.msra.mxu0 0.0
    %2816 = vmatprep.subr.mxu0 0.0
    %2817 = vmatpush1.xpose.msra.mxu0 0.0
    %2818 = vmatprep.subr.mxu0 0.0
    %2819 = vmatpush1.xpose.msra.mxu0 0.0
    %2820 = vmatprep.subr.mxu0 0.0
    %2821 = vmatpush1.xpose.msra.mxu0 0.0
    %2822 = vmatprep.subr.mxu0 0.0
    %2823 = vmatpush1.xpose.msra.mxu0 0.0
    %2824 = vmatprep.subr.mxu0 0.0
    %2825 = vmatpush1.xpose.msra.mxu0 0.0
    %2826 = vmatprep.subr.mxu0 0.0
    %2827 = vmatpush1.xpose.msra.mxu0 0.0
    %2828 = vmatprep.subr.mxu0 0.0
    %2829 = vmatpush1.xpose.msra.mxu0 0.0
    %2830 = vmatprep.subr.mxu0 0.0
    %2831 = vmatpush1.xpose.msra.mxu0 0.0
    %2832 = vmatprep.mubr.f32.mxu0 0.0
    %2833 = vmatmul.mubr.f32.gmra.mrb[0].mxu0 %v997
    %v2834 = vpop.f32.mrb[0].mxu0
    %v2835 = vadd.f32 0.0, %v2834
    %v2836 = vpop.f32.mrb[0].mxu0
    %2837 = vmatprep.mubr.f32.mxu0 0.0
    %2838 = vmatmul.mubr.f32.gmra.mrb[0].mxu0 %v1003
    %v2839 = vpop.f32.mrb[0].mxu0
    %v2840 = vadd.f32 0.0, %v2839
    %v2841 = vpop.f32.mrb[0].mxu0
    %2842 = vmatprep.mubr.f32.mxu0 0.0
    %2843 = vmatmul.mubr.f32.gmra.mrb[0].mxu0 %v1009
    %v2844 = vpop.f32.mrb[0].mxu0
    %v2845 = vadd.f32 0.0, %v2844
    %v2846 = vpop.f32.mrb[0].mxu0
    %2847 = vmatprep.mubr.f32.mxu0 0.0
    %2848 = vmatmul.mubr.f32.gmra.mrb[0].mxu0 %v1015
    %v2849 = vpop.f32.mrb[0].mxu0
    %v2850 = vadd.f32 0.0, %v2849
    %v2851 = vpop.f32.mrb[0].mxu0
    %2852 = vdwg.mxu0
    %v2853 = vmul.f32 %v2750, 9.797959
    %v2854 = vmul.f32 %v2755, 9.797959
    %v2855 = vmul.f32 %v2760, 9.797959
    %v2856 = vmul.f32 %v2765, 9.797959
    %v2857 = vmul.f32 %v2835, 9.797959
    %v2858 = vmul.f32 %v2840, 9.797959
    %v2859 = vmul.f32 %v2845, 9.797959
    %v2860 = vmul.f32 %v2850, 9.797959
    %v2861 = vsel %vm2340, %v2853, -inf
    %v2862 = vsel %vm2341, %v2854, -inf
    %v2863 = vsel %vm2342, %v2855, -inf
    %v2864 = vsel %vm2343, %v2856, -inf
    %v2865 = vsel %vm2340, %v2857, -inf
    %v2866 = vsel %vm2341, %v2858, -inf
    %v2867 = vsel %vm2342, %v2859, -inf
    %v2868 = vsel %vm2343, %v2860, -inf
    %v2869 = vsel %vm2352, %v2861, -inf
    %2870 = vmax.xlane.f32.xlu0 %v2869
    %v2871 = vpop.xlane.xlu0 %2870
    %v2872 = vsel %vm2352, %v2862, -inf
    %2873 = vmax.xlane.f32.xlu0 %v2872
    %v2874 = vpop.xlane.xlu0 %2873
    %v2875 = vsel %vm2352, %v2863, -inf
    %2876 = vmax.xlane.f32.xlu0 %v2875
    %v2877 = vpop.xlane.xlu0 %2876
    %v2878 = vsel %vm2352, %v2864, -inf
    %2879 = vmax.xlane.f32.xlu0 %v2878
    %v2880 = vpop.xlane.xlu0 %2879
    %v2881 = vsel %vm2352, %v2865, -inf
    %2882 = vmax.xlane.f32.xlu0 %v2881
    %v2883 = vpop.xlane.xlu0 %2882
    %v2884 = vsel %vm2352, %v2866, -inf
    %2885 = vmax.xlane.f32.xlu0 %v2884
    %v2886 = vpop.xlane.xlu0 %2885
    %v2887 = vsel %vm2352, %v2867, -inf
    %2888 = vmax.xlane.f32.xlu0 %v2887
    %v2889 = vpop.xlane.xlu0 %2888
    %v2890 = vsel %vm2352, %v2868, -inf
    %2891 = vmax.xlane.f32.xlu0 %v2890
    %v2892 = vpop.xlane.xlu0 %2891
    %v2893 = vsub.f32 %v2861, %v2871
    %v2894 = vsub.f32 %v2862, %v2874
    %v2895 = vsub.f32 %v2863, %v2877
    %v2896 = vsub.f32 %v2864, %v2880
    %v2897 = vsub.f32 %v2865, %v2883
    %v2898 = vsub.f32 %v2866, %v2886
    %v2899 = vsub.f32 %v2867, %v2889
    %v2900 = vsub.f32 %v2868, %v2892
    %v2901 = vmul.f32 %v2893, 1.442695
    %v2902 = vpow.pop %v2901
    %v2903 = vmul.f32 %v2894, 1.442695
    %v2904 = vpow.pop %v2903
    %v2905 = vmul.f32 %v2895, 1.442695
    %v2906 = vpow.pop %v2905
    %v2907 = vmul.f32 %v2896, 1.442695
    %v2908 = vpow.pop %v2907
    %v2909 = vmul.f32 %v2897, 1.442695
    %v2910 = vpow.pop %v2909
    %v2911 = vmul.f32 %v2898, 1.442695
    %v2912 = vpow.pop %v2911
    %v2913 = vmul.f32 %v2899, 1.442695
    %v2914 = vpow.pop %v2913
    %v2915 = vmul.f32 %v2900, 1.442695
    %v2916 = vpow.pop %v2915
    %v2917 = vsel %vm2352, %v2902, 0.0
    %2918 = vadd.xlane.f32.xlu0 %v2917
    %v2919 = vpop.xlane.xlu0 %2918
    %v2920 = vsel %vm2352, %v2904, 0.0
    %2921 = vadd.xlane.f32.xlu0 %v2920
    %v2922 = vpop.xlane.xlu0 %2921
    %v2923 = vsel %vm2352, %v2906, 0.0
    %2924 = vadd.xlane.f32.xlu0 %v2923
    %v2925 = vpop.xlane.xlu0 %2924
    %v2926 = vsel %vm2352, %v2908, 0.0
    %2927 = vadd.xlane.f32.xlu0 %v2926
    %v2928 = vpop.xlane.xlu0 %2927
    %v2929 = vsel %vm2352, %v2910, 0.0
    %2930 = vadd.xlane.f32.xlu0 %v2929
    %v2931 = vpop.xlane.xlu0 %2930
    %v2932 = vsel %vm2352, %v2912, 0.0
    %2933 = vadd.xlane.f32.xlu0 %v2932
    %v2934 = vpop.xlane.xlu0 %2933
    %v2935 = vsel %vm2352, %v2914, 0.0
    %2936 = vadd.xlane.f32.xlu0 %v2935
    %v2937 = vpop.xlane.xlu0 %2936
    %v2938 = vsel %vm2352, %v2916, 0.0
    %2939 = vadd.xlane.f32.xlu0 %v2938
    %v2940 = vpop.xlane.xlu0 %2939
    %v2941 = vrcp.pop %v2919
    %v2942 = vrcp.pop %v2922
    %v2943 = vrcp.pop %v2925
    %v2944 = vrcp.pop %v2928
    %v2945 = vrcp.pop %v2931
    %v2946 = vrcp.pop %v2934
    %v2947 = vrcp.pop %v2937
    %v2948 = vrcp.pop %v2940
    %v2949 = vmul.f32 %v2902, %v2941
    %v2950 = vmul.f32 %v2904, %v2942
    %v2951 = vmul.f32 %v2906, %v2943
    %v2952 = vmul.f32 %v2908, %v2944
    %v2953 = vmul.f32 %v2910, %v2945
    %v2954 = vmul.f32 %v2912, %v2946
    %v2955 = vmul.f32 %v2914, %v2947
    %v2956 = vmul.f32 %v2916, %v2948
    %v2958 = vsel %vm2352, %v2949, 0
    %v2961 = vsel %vm2352, %v2950, 0
    %v2964 = vsel %vm2352, %v2951, 0
    %v2967 = vsel %vm2352, %v2952, 0
    %2969 = vmatprep.subr.mxu0 0.0
    %2970 = vmatpush1.msra.mxu0 %v1877
    %2971 = vmatprep.subr.mxu0 0.0
    %2972 = vmatpush1.msra.mxu0 %v1883
    %2973 = vmatprep.subr.mxu0 0.0
    %2974 = vmatpush1.msra.mxu0 %v1889
    %2975 = vmatprep.subr.mxu0 0.0
    %2976 = vmatpush1.msra.mxu0 %v1895
    %2977 = vmatprep.subr.mxu0 0.0
    %2978 = vmatpush1.msra.mxu0 0.0
    %2979 = vmatprep.subr.mxu0 0.0
    %2980 = vmatpush1.msra.mxu0 0.0
    %2981 = vmatprep.subr.mxu0 0.0
    %2982 = vmatpush1.msra.mxu0 0.0
    %2983 = vmatprep.subr.mxu0 0.0
    %2984 = vmatpush1.msra.mxu0 0.0
    %2985 = vmatprep.subr.mxu0 0.0
    %2986 = vmatpush1.msra.mxu0 0.0
    %2987 = vmatprep.subr.mxu0 0.0
    %2988 = vmatpush1.msra.mxu0 0.0
    %2989 = vmatprep.subr.mxu0 0.0
    %2990 = vmatpush1.msra.mxu0 0.0
    %2991 = vmatprep.subr.mxu0 0.0
    %2992 = vmatpush1.msra.mxu0 0.0
    %2993 = vmatprep.subr.mxu0 0.0
    %2994 = vmatpush1.msra.mxu0 0.0
    %2995 = vmatprep.subr.mxu0 0.0
    %2996 = vmatpush1.msra.mxu0 0.0
    %2997 = vmatprep.subr.mxu0 0.0
    %2998 = vmatpush1.msra.mxu0 0.0
    %2999 = vmatprep.subr.mxu0 0.0
    %3000 = vmatpush1.msra.mxu0 0.0
    %3001 = vmatprep.subr.mxu0 0.0
    %3002 = vmatpush1.msra.mxu0 0.0
    %3003 = vmatprep.subr.mxu0 0.0
    %3004 = vmatpush1.msra.mxu0 0.0
    %3005 = vmatprep.subr.mxu0 0.0
    %3006 = vmatpush1.msra.mxu0 0.0
    %3007 = vmatprep.subr.mxu0 0.0
    %3008 = vmatpush1.msra.mxu0 0.0
    %3009 = vmatprep.subr.mxu0 0.0
    %3010 = vmatpush1.msra.mxu0 0.0
    %3011 = vmatprep.subr.mxu0 0.0
    %3012 = vmatpush1.msra.mxu0 0.0
    %3013 = vmatprep.subr.mxu0 0.0
    %3014 = vmatpush1.msra.mxu0 0.0
    %3015 = vmatprep.subr.mxu0 0.0
    %3016 = vmatpush1.msra.mxu0 0.0
    %3017 = vmatprep.subr.mxu0 0.0
    %3018 = vmatpush1.msra.mxu0 0.0
    %3019 = vmatprep.subr.mxu0 0.0
    %3020 = vmatpush1.msra.mxu0 0.0
    %3021 = vmatprep.subr.mxu0 0.0
    %3022 = vmatpush1.msra.mxu0 0.0
    %3023 = vmatprep.subr.mxu0 0.0
    %3024 = vmatpush1.msra.mxu0 0.0
    %3025 = vmatprep.subr.mxu0 0.0
    %3026 = vmatpush1.msra.mxu0 0.0
    %3027 = vmatprep.subr.mxu0 0.0
    %3028 = vmatpush1.msra.mxu0 0.0
    %3029 = vmatprep.subr.mxu0 0.0
    %3030 = vmatpush1.msra.mxu0 0.0
    %3031 = vmatprep.subr.mxu0 0.0
    %3032 = vmatpush1.msra.mxu0 0.0
    %3033 = vmatprep.mubr.f32.mxu0 0.0
    %3034 = vmatmul.mubr.f32.gmra.mrb[0].mxu0 %v2958
    %v3035 = vpop.f32.mrb[0].mxu0
    %v3036 = vadd.f32 0.0, %v3035
    %v3037 = vpop.f32.mrb[0].mxu0
    %3038 = vmatprep.mubr.f32.mxu0 0.0
    %3039 = vmatmul.mubr.f32.gmra.mrb[0].mxu0 %v2961
    %v3040 = vpop.f32.mrb[0].mxu0
    %v3041 = vadd.f32 0.0, %v3040
    %v3042 = vpop.f32.mrb[0].mxu0
    %3043 = vmatprep.mubr.f32.mxu0 0.0
    %3044 = vmatmul.mubr.f32.gmra.mrb[0].mxu0 %v2964
    %v3045 = vpop.f32.mrb[0].mxu0
    %v3046 = vadd.f32 0.0, %v3045
    %v3047 = vpop.f32.mrb[0].mxu0
    %3048 = vmatprep.mubr.f32.mxu0 0.0
    %3049 = vmatmul.mubr.f32.gmra.mrb[0].mxu0 %v2967
    %v3050 = vpop.f32.mrb[0].mxu0
    %v3051 = vadd.f32 0.0, %v3050
    %v3052 = vpop.f32.mrb[0].mxu0
    %3053 = vdwg.mxu0
    %v3055 = vsel %vm2352, %v2953, 0
    %v3058 = vsel %vm2352, %v2954, 0
    %v3061 = vsel %vm2352, %v2955, 0
    %v3064 = vsel %vm2352, %v2956, 0
    %3066 = vmatprep.subr.mxu0 0.0
    %3067 = vmatpush1.msra.mxu0 %v1901
    %3068 = vmatprep.subr.mxu0 0.0
    %3069 = vmatpush1.msra.mxu0 %v1907
    %3070 = vmatprep.subr.mxu0 0.0
    %3071 = vmatpush1.msra.mxu0 %v1913
    %3072 = vmatprep.subr.mxu0 0.0
    %3073 = vmatpush1.msra.mxu0 %v1919
    %3074 = vmatprep.subr.mxu0 0.0
    %3075 = vmatpush1.msra.mxu0 0.0
    %3076 = vmatprep.subr.mxu0 0.0
    %3077 = vmatpush1.msra.mxu0 0.0
    %3078 = vmatprep.subr.mxu0 0.0
    %3079 = vmatpush1.msra.mxu0 0.0
    %3080 = vmatprep.subr.mxu0 0.0
    %3081 = vmatpush1.msra.mxu0 0.0
    %3082 = vmatprep.subr.mxu0 0.0
    %3083 = vmatpush1.msra.mxu0 0.0
    %3084 = vmatprep.subr.mxu0 0.0
    %3085 = vmatpush1.msra.mxu0 0.0
    %3086 = vmatprep.subr.mxu0 0.0
    %3087 = vmatpush1.msra.mxu0 0.0
    %3088 = vmatprep.subr.mxu0 0.0
    %3089 = vmatpush1.msra.mxu0 0.0
    %3090 = vmatprep.subr.mxu0 0.0
    %3091 = vmatpush1.msra.mxu0 0.0
    %3092 = vmatprep.subr.mxu0 0.0
    %3093 = vmatpush1.msra.mxu0 0.0
    %3094 = vmatprep.subr.mxu0 0.0
    %3095 = vmatpush1.msra.mxu0 0.0
    %3096 = vmatprep.subr.mxu0 0.0
    %3097 = vmatpush1.msra.mxu0 0.0
    %3098 = vmatprep.subr.mxu0 0.0
    %3099 = vmatpush1.msra.mxu0 0.0
    %3100 = vmatprep.subr.mxu0 0.0
    %3101 = vmatpush1.msra.mxu0 0.0
    %3102 = vmatprep.subr.mxu0 0.0
    %3103 = vmatpush1.msra.mxu0 0.0
    %3104 = vmatprep.subr.mxu0 0.0
    %3105 = vmatpush1.msra.mxu0 0.0
    %3106 = vmatprep.subr.mxu0 0.0
    %3107 = vmatpush1.msra.mxu0 0.0
    %3108 = vmatprep.subr.mxu0 0.0
    %3109 = vmatpush1.msra.mxu0 0.0
    %3110 = vmatprep.subr.mxu0 0.0
    %3111 = vmatpush1.msra.mxu0 0.0
    %3112 = vmatprep.subr.mxu0 0.0
    %3113 = vmatpush1.msra.mxu0 0.0
    %3114 = vmatprep.subr.mxu0 0.0
    %3115 = vmatpush1.msra.mxu0 0.0
    %3116 = vmatprep.subr.mxu0 0.0
    %3117 = vmatpush1.msra.mxu0 0.0
    %3118 = vmatprep.subr.mxu0 0.0
    %3119 = vmatpush1.msra.mxu0 0.0
    %3120 = vmatprep.subr.mxu0 0.0
    %3121 = vmatpush1.msra.mxu0 0.0
    %3122 = vmatprep.subr.mxu0 0.0
    %3123 = vmatpush1.msra.mxu0 0.0
    %3124 = vmatprep.subr.mxu0 0.0
    %3125 = vmatpush1.msra.mxu0 0.0
    %3126 = vmatprep.subr.mxu0 0.0
    %3127 = vmatpush1.msra.mxu0 0.0
    %3128 = vmatprep.subr.mxu0 0.0
    %3129 = vmatpush1.msra.mxu0 0.0
    %3130 = vmatprep.mubr.f32.mxu0 0.0
    %3131 = vmatmul.mubr.f32.gmra.mrb[0].mxu0 %v3055
    %v3132 = vpop.f32.mrb[0].mxu0
    %v3133 = vadd.f32 0.0, %v3132
    %v3134 = vpop.f32.mrb[0].mxu0
    %3135 = vmatprep.mubr.f32.mxu0 0.0
    %3136 = vmatmul.mubr.f32.gmra.mrb[0].mxu0 %v3058
    %v3137 = vpop.f32.mrb[0].mxu0
    %v3138 = vadd.f32 0.0, %v3137
    %v3139 = vpop.f32.mrb[0].mxu0
    %3140 = vmatprep.mubr.f32.mxu0 0.0
    %3141 = vmatmul.mubr.f32.gmra.mrb[0].mxu0 %v3061
    %v3142 = vpop.f32.mrb[0].mxu0
    %v3143 = vadd.f32 0.0, %v3142
    %v3144 = vpop.f32.mrb[0].mxu0
    %3145 = vmatprep.mubr.f32.mxu0 0.0
    %3146 = vmatmul.mubr.f32.gmra.mrb[0].mxu0 %v3064
    %v3147 = vpop.f32.mrb[0].mxu0
    %v3148 = vadd.f32 0.0, %v3147
    %v3149 = vpop.f32.mrb[0].mxu0
    %3150 = vdwg.mxu0
    %s3151 = scalar_lea.vmem [#allocation7], 384
    %v3152 = vld [vmem:[%s3151] sm:$0xff]
    %v3153 = vld [vmem:[%s3151 + $0x8] sm:$0xff]
    %v3154 = vld [vmem:[%s3151 + $0x10] sm:$0xff]
    %v3155 = vld [vmem:[%s3151 + $0x18] sm:$0xff]
    %v3156 = vld [vmem:[%s3151 + $0x20] sm:$0xff]
    %v3157 = vld [vmem:[%s3151 + $0x28] sm:$0xff]
    %v3158 = vld [vmem:[%s3151 + $0x30] sm:$0xff]
    %v3159 = vld [vmem:[%s3151 + $0x38] sm:$0xff]
    %v3160 = vld [vmem:[%s3151 + $0x40] sm:$0xff]
    %v3161 = vld [vmem:[%s3151 + $0x48] sm:$0xff]
    %v3162 = vld [vmem:[%s3151 + $0x50] sm:$0xff]
    %v3163 = vld [vmem:[%s3151 + $0x58] sm:$0xff]
    %v3164 = vld [vmem:[%s3151 + $0x60] sm:$0xff]
    %v3165 = vld [vmem:[%s3151 + $0x68] sm:$0xff]
    %v3166 = vld [vmem:[%s3151 + $0x70] sm:$0xff]
    %v3167 = vld [vmem:[%s3151 + $0x78] sm:$0xff]
    %v3168 = vld [vmem:[%s3151 + $0x80] sm:$0xff]
    %v3169 = vld [vmem:[%s3151 + $0x88] sm:$0xff]
    %v3170 = vld [vmem:[%s3151 + $0x90] sm:$0xff]
    %v3171 = vld [vmem:[%s3151 + $0x98] sm:$0xff]
    %v3172 = vld [vmem:[%s3151 + $0xa0] sm:$0xff]
    %v3173 = vld [vmem:[%s3151 + $0xa8] sm:$0xff]
    %v3174 = vld [vmem:[%s3151 + $0xb0] sm:$0xff]
    %v3175 = vld [vmem:[%s3151 + $0xb8] sm:$0xff]
    %v3176 = vld [vmem:[%s3151 + $0xc0] sm:$0xff]
    %v3177 = vld [vmem:[%s3151 + $0xc8] sm:$0xff]
    %v3178 = vld [vmem:[%s3151 + $0xd0] sm:$0xff]
    %v3179 = vld [vmem:[%s3151 + $0xd8] sm:$0xff]
    %v3180 = vld [vmem:[%s3151 + $0xe0] sm:$0xff]
    %v3181 = vld [vmem:[%s3151 + $0xe8] sm:$0xff]
    %v3182 = vld [vmem:[%s3151 + $0xf0] sm:$0xff]
    %v3183 = vld [vmem:[%s3151 + $0xf8] sm:$0xff]
    %v3184 = vld [vmem:[%s3151 + $0x100] sm:$0xff]
    %v3185 = vld [vmem:[%s3151 + $0x108] sm:$0xff]
    %v3186 = vld [vmem:[%s3151 + $0x110] sm:$0xff]
    %v3187 = vld [vmem:[%s3151 + $0x118] sm:$0xff]
    %v3188 = vld [vmem:[%s3151 + $0x120] sm:$0xff]
    %v3189 = vld [vmem:[%s3151 + $0x128] sm:$0xff]
    %v3190 = vld [vmem:[%s3151 + $0x130] sm:$0xff]
    %v3191 = vld [vmem:[%s3151 + $0x138] sm:$0xff]
    %v3192 = vld [vmem:[%s3151 + $0x140] sm:$0xff]
    %v3193 = vld [vmem:[%s3151 + $0x148] sm:$0xff]
    %v3194 = vld [vmem:[%s3151 + $0x150] sm:$0xff]
    %v3195 = vld [vmem:[%s3151 + $0x158] sm:$0xff]
    %v3196 = vld [vmem:[%s3151 + $0x160] sm:$0xff]
    %v3197 = vld [vmem:[%s3151 + $0x168] sm:$0xff]
    %v3198 = vld [vmem:[%s3151 + $0x170] sm:$0xff]
    %v3199 = vld [vmem:[%s3151 + $0x178] sm:$0xff]
    %3200 = vmatprep.subr.mxu0 %v3153
    %3201 = vmatpush1.msra.mxu0 %v3152
    %3202 = vmatprep.subr.mxu0 %v3156
    %3203 = vmatpush1.msra.mxu0 %v3155
    %3204 = vmatprep.subr.mxu0 %v3159
    %3205 = vmatpush1.msra.mxu0 %v3158
    %3206 = vmatprep.subr.mxu0 %v3162
    %3207 = vmatpush1.msra.mxu0 %v3161
    %3208 = vmatprep.subr.mxu0 %v3165
    %3209 = vmatpush1.msra.mxu0 %v3164
    %3210 = vmatprep.subr.mxu0 %v3168
    %3211 = vmatpush1.msra.mxu0 %v3167
    %3212 = vmatprep.subr.mxu0 %v3171
    %3213 = vmatpush1.msra.mxu0 %v3170
    %3214 = vmatprep.subr.mxu0 %v3174
    %3215 = vmatpush1.msra.mxu0 %v3173
    %3216 = vmatprep.subr.mxu0 %v3177
    %3217 = vmatpush1.msra.mxu0 %v3176
    %3218 = vmatprep.subr.mxu0 %v3180
    %3219 = vmatpush1.msra.mxu0 %v3179
    %3220 = vmatprep.subr.mxu0 %v3183
    %3221 = vmatpush1.msra.mxu0 %v3182
    %3222 = vmatprep.subr.mxu0 %v3186
    %3223 = vmatpush1.msra.mxu0 %v3185
    %3224 = vmatprep.subr.mxu0 %v3189
    %3225 = vmatpush1.msra.mxu0 %v3188
    %3226 = vmatprep.subr.mxu0 %v3192
    %3227 = vmatpush1.msra.mxu0 %v3191
    %3228 = vmatprep.subr.mxu0 %v3195
    %3229 = vmatpush1.msra.mxu0 %v3194
    %3230 = vmatprep.subr.mxu0 %v3198
    %3231 = vmatpush1.msra.mxu0 %v3197
    %3232 = vmatprep.subr.mxu0 0.0
    %3233 = vmatpush1.msra.mxu0 0.0
    %3234 = vmatprep.subr.mxu0 0.0
    %3235 = vmatpush1.msra.mxu0 0.0
    %3236 = vmatprep.subr.mxu0 0.0
    %3237 = vmatpush1.msra.mxu0 0.0
    %3238 = vmatprep.subr.mxu0 0.0
    %3239 = vmatpush1.msra.mxu0 0.0
    %3240 = vmatprep.subr.mxu0 0.0
    %3241 = vmatpush1.msra.mxu0 0.0
    %3242 = vmatprep.subr.mxu0 0.0
    %3243 = vmatpush1.msra.mxu0 0.0
    %3244 = vmatprep.subr.mxu0 0.0
    %3245 = vmatpush1.msra.mxu0 0.0
    %3246 = vmatprep.subr.mxu0 0.0
    %3247 = vmatpush1.msra.mxu0 0.0
    %3248 = vmatprep.subr.mxu0 0.0
    %3249 = vmatpush1.msra.mxu0 0.0
    %3250 = vmatprep.subr.mxu0 0.0
    %3251 = vmatpush1.msra.mxu0 0.0
    %3252 = vmatprep.subr.mxu0 0.0
    %3253 = vmatpush1.msra.mxu0 0.0
    %3254 = vmatprep.subr.mxu0 0.0
    %3255 = vmatpush1.msra.mxu0 0.0
    %3256 = vmatprep.subr.mxu0 0.0
    %3257 = vmatpush1.msra.mxu0 0.0
    %3258 = vmatprep.subr.mxu0 0.0
    %3259 = vmatpush1.msra.mxu0 0.0
    %3260 = vmatprep.subr.mxu0 0.0
    %3261 = vmatpush1.msra.mxu0 0.0
    %3262 = vmatprep.subr.mxu0 0.0
    %3263 = vmatpush1.msra.mxu0 0.0
    %3264 = vmatprep.mubr.f32.mxu0 0.0
    %3265 = vmatmul.mubr.f32.gmra.mrb[0].mxu0 %v3036
    %v3266 = vpop.f32.mrb[0].mxu0
    %v3267 = vadd.f32 0.0, %v3266
    %v3268 = vpop.f32.mrb[0].mxu0
    %v3269 = vadd.f32 0.0, %v3268
    %3270 = vmatprep.mubr.f32.mxu0 0.0
    %3271 = vmatmul.mubr.f32.gmra.mrb[0].mxu0 %v3041
    %v3272 = vpop.f32.mrb[0].mxu0
    %v3273 = vadd.f32 0.0, %v3272
    %v3274 = vpop.f32.mrb[0].mxu0
    %v3275 = vadd.f32 0.0, %v3274
    %3276 = vmatprep.mubr.f32.mxu0 0.0
    %3277 = vmatmul.mubr.f32.gmra.mrb[0].mxu0 %v3046
    %v3278 = vpop.f32.mrb[0].mxu0
    %v3279 = vadd.f32 0.0, %v3278
    %v3280 = vpop.f32.mrb[0].mxu0
    %v3281 = vadd.f32 0.0, %v3280
    %3282 = vmatprep.mubr.f32.mxu0 0.0
    %3283 = vmatmul.mubr.f32.gmra.mrb[0].mxu0 %v3051
    %v3284 = vpop.f32.mrb[0].mxu0
    %v3285 = vadd.f32 0.0, %v3284
    %v3286 = vpop.f32.mrb[0].mxu0
    %v3287 = vadd.f32 0.0, %v3286
    %3288 = vmatprep.mubr.f32.mxu0 0.0
    %3289 = vmatmul.mubr.f32.gmra.mrb[0].mxu0 %v3133
    %v3290 = vpop.f32.mrb[0].mxu0
    %v3291 = vadd.f32 0.0, %v3290
    %v3292 = vpop.f32.mrb[0].mxu0
    %v3293 = vadd.f32 0.0, %v3292
    %3294 = vmatprep.mubr.f32.mxu0 0.0
    %3295 = vmatmul.mubr.f32.gmra.mrb[0].mxu0 %v3138
    %v3296 = vpop.f32.mrb[0].mxu0
    %v3297 = vadd.f32 0.0, %v3296
    %v3298 = vpop.f32.mrb[0].mxu0
    %v3299 = vadd.f32 0.0, %v3298
    %3300 = vmatprep.mubr.f32.mxu0 0.0
    %3301 = vmatmul.mubr.f32.gmra.mrb[0].mxu0 %v3143
    %v3302 = vpop.f32.mrb[0].mxu0
    %v3303 = vadd.f32 0.0, %v3302
    %v3304 = vpop.f32.mrb[0].mxu0
    %v3305 = vadd.f32 0.0, %v3304
    %3306 = vmatprep.mubr.f32.mxu0 0.0
    %3307 = vmatmul.mubr.f32.gmra.mrb[0].mxu0 %v3148
    %v3308 = vpop.f32.mrb[0].mxu0
    %v3309 = vadd.f32 0.0, %v3308
    %v3310 = vpop.f32.mrb[0].mxu0
    %v3311 = vadd.f32 0.0, %v3310
    %3312 = vdwg.mxu0
    %3313 = vmatprep.subr.mxu0 0.0
    %3314 = vmatpush1.msra.mxu0 %v3154
    %3315 = vmatprep.subr.mxu0 0.0
    %3316 = vmatpush1.msra.mxu0 %v3157
    %3317 = vmatprep.subr.mxu0 0.0
    %3318 = vmatpush1.msra.mxu0 %v3160
    %3319 = vmatprep.subr.mxu0 0.0
    %3320 = vmatpush1.msra.mxu0 %v3163
    %3321 = vmatprep.subr.mxu0 0.0
    %3322 = vmatpush1.msra.mxu0 %v3166
    %3323 = vmatprep.subr.mxu0 0.0
    %3324 = vmatpush1.msra.mxu0 %v3169
    %3325 = vmatprep.subr.mxu0 0.0
    %3326 = vmatpush1.msra.mxu0 %v3172
    %3327 = vmatprep.subr.mxu0 0.0
    %3328 = vmatpush1.msra.mxu0 %v3175
    %3329 = vmatprep.subr.mxu0 0.0
    %3330 = vmatpush1.msra.mxu0 %v3178
    %3331 = vmatprep.subr.mxu0 0.0
    %3332 = vmatpush1.msra.mxu0 %v3181
    %3333 = vmatprep.subr.mxu0 0.0
    %3334 = vmatpush1.msra.mxu0 %v3184
    %3335 = vmatprep.subr.mxu0 0.0
    %3336 = vmatpush1.msra.mxu0 %v3187
    %3337 = vmatprep.subr.mxu0 0.0
    %3338 = vmatpush1.msra.mxu0 %v3190
    %3339 = vmatprep.subr.mxu0 0.0
    %3340 = vmatpush1.msra.mxu0 %v3193
    %3341 = vmatprep.subr.mxu0 0.0
    %3342 = vmatpush1.msra.mxu0 %v3196
    %3343 = vmatprep.subr.mxu0 0.0
    %3344 = vmatpush1.msra.mxu0 %v3199
    %3345 = vmatprep.subr.mxu0 0.0
    %3346 = vmatpush1.msra.mxu0 0.0
    %3347 = vmatprep.subr.mxu0 0.0
    %3348 = vmatpush1.msra.mxu0 0.0
    %3349 = vmatprep.subr.mxu0 0.0
    %3350 = vmatpush1.msra.mxu0 0.0
    %3351 = vmatprep.subr.mxu0 0.0
    %3352 = vmatpush1.msra.mxu0 0.0
    %3353 = vmatprep.subr.mxu0 0.0
    %3354 = vmatpush1.msra.mxu0 0.0
    %3355 = vmatprep.subr.mxu0 0.0
    %3356 = vmatpush1.msra.mxu0 0.0
    %3357 = vmatprep.subr.mxu0 0.0
    %3358 = vmatpush1.msra.mxu0 0.0
    %3359 = vmatprep.subr.mxu0 0.0
    %3360 = vmatpush1.msra.mxu0 0.0
    %3361 = vmatprep.subr.mxu0 0.0
    %3362 = vmatpush1.msra.mxu0 0.0
    %3363 = vmatprep.subr.mxu0 0.0
    %3364 = vmatpush1.msra.mxu0 0.0
    %3365 = vmatprep.subr.mxu0 0.0
    %3366 = vmatpush1.msra.mxu0 0.0
    %3367 = vmatprep.subr.mxu0 0.0
    %3368 = vmatpush1.msra.mxu0 0.0
    %3369 = vmatprep.subr.mxu0 0.0
    %3370 = vmatpush1.msra.mxu0 0.0
    %3371 = vmatprep.subr.mxu0 0.0
    %3372 = vmatpush1.msra.mxu0 0.0
    %3373 = vmatprep.subr.mxu0 0.0
    %3374 = vmatpush1.msra.mxu0 0.0
    %3375 = vmatprep.subr.mxu0 0.0
    %3376 = vmatpush1.msra.mxu0 0.0
    %3377 = vmatprep.mubr.f32.mxu0 0.0
    %3378 = vmatmul.mubr.f32.gmra.mrb[0].mxu0 %v3036
    %v3379 = vpop.f32.mrb[0].mxu0
    %v3380 = vadd.f32 0.0, %v3379
    %v3381 = vpop.f32.mrb[0].mxu0
    %3382 = vmatprep.mubr.f32.mxu0 0.0
    %3383 = vmatmul.mubr.f32.gmra.mrb[0].mxu0 %v3041
    %v3384 = vpop.f32.mrb[0].mxu0
    %v3385 = vadd.f32 0.0, %v3384
    %v3386 = vpop.f32.mrb[0].mxu0
    %3387 = vmatprep.mubr.f32.mxu0 0.0
    %3388 = vmatmul.mubr.f32.gmra.mrb[0].mxu0 %v3046
    %v3389 = vpop.f32.mrb[0].mxu0
    %v3390 = vadd.f32 0.0, %v3389
    %v3391 = vpop.f32.mrb[0].mxu0
    %3392 = vmatprep.mubr.f32.mxu0 0.0
    %3393 = vmatmul.mubr.f32.gmra.mrb[0].mxu0 %v3051
    %v3394 = vpop.f32.mrb[0].mxu0
    %v3395 = vadd.f32 0.0, %v3394
    %v3396 = vpop.f32.mrb[0].mxu0
    %3397 = vmatprep.mubr.f32.mxu0 0.0
    %3398 = vmatmul.mubr.f32.gmra.mrb[0].mxu0 %v3133
    %v3399 = vpop.f32.mrb[0].mxu0
    %v3400 = vadd.f32 0.0, %v3399
    %v3401 = vpop.f32.mrb[0].mxu0
    %3402 = vmatprep.mubr.f32.mxu0 0.0
    %3403 = vmatmul.mubr.f32.gmra.mrb[0].mxu0 %v3138
    %v3404 = vpop.f32.mrb[0].mxu0
    %v3405 = vadd.f32 0.0, %v3404
    %v3406 = vpop.f32.mrb[0].mxu0
    %3407 = vmatprep.mubr.f32.mxu0 0.0
    %3408 = vmatmul.mubr.f32.gmra.mrb[0].mxu0 %v3143
    %v3409 = vpop.f32.mrb[0].mxu0
    %v3410 = vadd.f32 0.0, %v3409
    %v3411 = vpop.f32.mrb[0].mxu0
    %3412 = vmatprep.mubr.f32.mxu0 0.0
    %3413 = vmatmul.mubr.f32.gmra.mrb[0].mxu0 %v3148
    %v3414 = vpop.f32.mrb[0].mxu0
    %v3415 = vadd.f32 0.0, %v3414
    %v3416 = vpop.f32.mrb[0].mxu0
    %3417 = vdwg.mxu0
    %3418 = vmatprep.subr.mxu0 %v2636
    %3419 = vmatpush1.msra.mxu0 %v2635
    %3420 = vmatprep.subr.mxu0 %v2639
    %3421 = vmatpush1.msra.mxu0 %v2638
    %3422 = vmatprep.subr.mxu0 %v2642
    %3423 = vmatpush1.msra.mxu0 %v2641
    %3424 = vmatprep.subr.mxu0 %v2645
    %3425 = vmatpush1.msra.mxu0 %v2644
    %3426 = vmatprep.subr.mxu0 %v2648
    %3427 = vmatpush1.msra.mxu0 %v2647
    %3428 = vmatprep.subr.mxu0 %v2651
    %3429 = vmatpush1.msra.mxu0 %v2650
    %3430 = vmatprep.subr.mxu0 %v2654
    %3431 = vmatpush1.msra.mxu0 %v2653
    %3432 = vmatprep.subr.mxu0 %v2657
    %3433 = vmatpush1.msra.mxu0 %v2656
    %3434 = vmatprep.subr.mxu0 %v2660
    %3435 = vmatpush1.msra.mxu0 %v2659
    %3436 = vmatprep.subr.mxu0 %v2663
    %3437 = vmatpush1.msra.mxu0 %v2662
    %3438 = vmatprep.subr.mxu0 %v2666
    %3439 = vmatpush1.msra.mxu0 %v2665
    %3440 = vmatprep.subr.mxu0 %v2669
    %3441 = vmatpush1.msra.mxu0 %v2668
    %3442 = vmatprep.subr.mxu0 %v2672
    %3443 = vmatpush1.msra.mxu0 %v2671
    %3444 = vmatprep.subr.mxu0 %v2675
    %3445 = vmatpush1.msra.mxu0 %v2674
    %3446 = vmatprep.subr.mxu0 %v2678
    %3447 = vmatpush1.msra.mxu0 %v2677
    %3448 = vmatprep.subr.mxu0 %v2681
    %3449 = vmatpush1.msra.mxu0 %v2680
    %3450 = vmatprep.subr.mxu0 0.0
    %3451 = vmatpush1.msra.mxu0 0.0
    %3452 = vmatprep.subr.mxu0 0.0
    %3453 = vmatpush1.msra.mxu0 0.0
    %3454 = vmatprep.subr.mxu0 0.0
    %3455 = vmatpush1.msra.mxu0 0.0
    %3456 = vmatprep.subr.mxu0 0.0
    %3457 = vmatpush1.msra.mxu0 0.0
    %3458 = vmatprep.subr.mxu0 0.0
    %3459 = vmatpush1.msra.mxu0 0.0
    %3460 = vmatprep.subr.mxu0 0.0
    %3461 = vmatpush1.msra.mxu0 0.0
    %3462 = vmatprep.subr.mxu0 0.0
    %3463 = vmatpush1.msra.mxu0 0.0
    %3464 = vmatprep.subr.mxu0 0.0
    %3465 = vmatpush1.msra.mxu0 0.0
    %3466 = vmatprep.subr.mxu0 0.0
    %3467 = vmatpush1.msra.mxu0 0.0
    %3468 = vmatprep.subr.mxu0 0.0
    %3469 = vmatpush1.msra.mxu0 0.0
    %3470 = vmatprep.subr.mxu0 0.0
    %3471 = vmatpush1.msra.mxu0 0.0
    %3472 = vmatprep.subr.mxu0 0.0
    %3473 = vmatpush1.msra.mxu0 0.0
    %3474 = vmatprep.subr.mxu0 0.0
    %3475 = vmatpush1.msra.mxu0 0.0
    %3476 = vmatprep.subr.mxu0 0.0
    %3477 = vmatpush1.msra.mxu0 0.0
    %3478 = vmatprep.subr.mxu0 0.0
    %3479 = vmatpush1.msra.mxu0 0.0
    %3480 = vmatprep.subr.mxu0 0.0
    %3481 = vmatpush1.msra.mxu0 0.0
    %3482 = vmatprep.mubr.f32.mxu0 0.0
    %3483 = vmatmul.mubr.f32.gmra.mrb[0].mxu0 %v2520
    %v3484 = vpop.f32.mrb[0].mxu0
    %v3485 = vadd.f32 %v3267, %v3484
    %v3486 = vpop.f32.mrb[0].mxu0
    %v3487 = vadd.f32 %v3269, %v3486
    %3488 = vmatprep.mubr.f32.mxu0 0.0
    %3489 = vmatmul.mubr.f32.gmra.mrb[0].mxu0 %v2525
    %v3490 = vpop.f32.mrb[0].mxu0
    %v3491 = vadd.f32 %v3273, %v3490
    %v3492 = vpop.f32.mrb[0].mxu0
    %v3493 = vadd.f32 %v3275, %v3492
    %3494 = vmatprep.mubr.f32.mxu0 0.0
    %3495 = vmatmul.mubr.f32.gmra.mrb[0].mxu0 %v2530
    %v3496 = vpop.f32.mrb[0].mxu0
    %v3497 = vadd.f32 %v3279, %v3496
    %v3498 = vpop.f32.mrb[0].mxu0
    %v3499 = vadd.f32 %v3281, %v3498
    %3500 = vmatprep.mubr.f32.mxu0 0.0
    %3501 = vmatmul.mubr.f32.gmra.mrb[0].mxu0 %v2535
    %v3502 = vpop.f32.mrb[0].mxu0
    %v3503 = vadd.f32 %v3285, %v3502
    %v3504 = vpop.f32.mrb[0].mxu0
    %v3505 = vadd.f32 %v3287, %v3504
    %3506 = vmatprep.mubr.f32.mxu0 0.0
    %3507 = vmatmul.mubr.f32.gmra.mrb[0].mxu0 %v2617
    %v3508 = vpop.f32.mrb[0].mxu0
    %v3509 = vadd.f32 %v3291, %v3508
    %v3510 = vpop.f32.mrb[0].mxu0
    %v3511 = vadd.f32 %v3293, %v3510
    %3512 = vmatprep.mubr.f32.mxu0 0.0
    %3513 = vmatmul.mubr.f32.gmra.mrb[0].mxu0 %v2622
    %v3514 = vpop.f32.mrb[0].mxu0
    %v3515 = vadd.f32 %v3297, %v3514
    %v3516 = vpop.f32.mrb[0].mxu0
    %v3517 = vadd.f32 %v3299, %v3516
    %3518 = vmatprep.mubr.f32.mxu0 0.0
    %3519 = vmatmul.mubr.f32.gmra.mrb[0].mxu0 %v2627
    %v3520 = vpop.f32.mrb[0].mxu0
    %v3521 = vadd.f32 %v3303, %v3520
    %v3522 = vpop.f32.mrb[0].mxu0
    %v3523 = vadd.f32 %v3305, %v3522
    %3524 = vmatprep.mubr.f32.mxu0 0.0
    %3525 = vmatmul.mubr.f32.gmra.mrb[0].mxu0 %v2632
    %v3526 = vpop.f32.mrb[0].mxu0
    %v3527 = vadd.f32 %v3309, %v3526
    %v3528 = vpop.f32.mrb[0].mxu0
    %v3529 = vadd.f32 %v3311, %v3528
    %3530 = vdwg.mxu0
    %3531 = vmatprep.subr.mxu0 0.0
    %3532 = vmatpush1.msra.mxu0 %v2637
    %3533 = vmatprep.subr.mxu0 0.0
    %3534 = vmatpush1.msra.mxu0 %v2640
    %3535 = vmatprep.subr.mxu0 0.0
    %3536 = vmatpush1.msra.mxu0 %v2643
    %3537 = vmatprep.subr.mxu0 0.0
    %3538 = vmatpush1.msra.mxu0 %v2646
    %3539 = vmatprep.subr.mxu0 0.0
    %3540 = vmatpush1.msra.mxu0 %v2649
    %3541 = vmatprep.subr.mxu0 0.0
    %3542 = vmatpush1.msra.mxu0 %v2652
    %3543 = vmatprep.subr.mxu0 0.0
    %3544 = vmatpush1.msra.mxu0 %v2655
    %3545 = vmatprep.subr.mxu0 0.0
    %3546 = vmatpush1.msra.mxu0 %v2658
    %3547 = vmatprep.subr.mxu0 0.0
    %3548 = vmatpush1.msra.mxu0 %v2661
    %3549 = vmatprep.subr.mxu0 0.0
    %3550 = vmatpush1.msra.mxu0 %v2664
    %3551 = vmatprep.subr.mxu0 0.0
    %3552 = vmatpush1.msra.mxu0 %v2667
    %3553 = vmatprep.subr.mxu0 0.0
    %3554 = vmatpush1.msra.mxu0 %v2670
    %3555 = vmatprep.subr.mxu0 0.0
    %3556 = vmatpush1.msra.mxu0 %v2673
    %3557 = vmatprep.subr.mxu0 0.0
    %3558 = vmatpush1.msra.mxu0 %v2676
    %3559 = vmatprep.subr.mxu0 0.0
    %3560 = vmatpush1.msra.mxu0 %v2679
    %3561 = vmatprep.subr.mxu0 0.0
    %3562 = vmatpush1.msra.mxu0 %v2682
    %3563 = vmatprep.subr.mxu0 0.0
    %3564 = vmatpush1.msra.mxu0 0.0
    %3565 = vmatprep.subr.mxu0 0.0
    %3566 = vmatpush1.msra.mxu0 0.0
    %3567 = vmatprep.subr.mxu0 0.0
    %3568 = vmatpush1.msra.mxu0 0.0
    %3569 = vmatprep.subr.mxu0 0.0
    %3570 = vmatpush1.msra.mxu0 0.0
    %3571 = vmatprep.subr.mxu0 0.0
    %3572 = vmatpush1.msra.mxu0 0.0
    %3573 = vmatprep.subr.mxu0 0.0
    %3574 = vmatpush1.msra.mxu0 0.0
    %3575 = vmatprep.subr.mxu0 0.0
    %3576 = vmatpush1.msra.mxu0 0.0
    %3577 = vmatprep.subr.mxu0 0.0
    %3578 = vmatpush1.msra.mxu0 0.0
    %3579 = vmatprep.subr.mxu0 0.0
    %3580 = vmatpush1.msra.mxu0 0.0
    %3581 = vmatprep.subr.mxu0 0.0
    %3582 = vmatpush1.msra.mxu0 0.0
    %3583 = vmatprep.subr.mxu0 0.0
    %3584 = vmatpush1.msra.mxu0 0.0
    %3585 = vmatprep.subr.mxu0 0.0
    %3586 = vmatpush1.msra.mxu0 0.0
    %3587 = vmatprep.subr.mxu0 0.0
    %3588 = vmatpush1.msra.mxu0 0.0
    %3589 = vmatprep.subr.mxu0 0.0
    %3590 = vmatpush1.msra.mxu0 0.0
    %3591 = vmatprep.subr.mxu0 0.0
    %3592 = vmatpush1.msra.mxu0 0.0
    %3593 = vmatprep.subr.mxu0 0.0
    %3594 = vmatpush1.msra.mxu0 0.0
    %3595 = vmatprep.mubr.f32.mxu0 0.0
    %3596 = vmatmul.mubr.f32.gmra.mrb[0].mxu0 %v2520
    %v3597 = vpop.f32.mrb[0].mxu0
    %v3598 = vadd.f32 %v3380, %v3597
    %v3599 = vpop.f32.mrb[0].mxu0
    %3600 = vmatprep.mubr.f32.mxu0 0.0
    %3601 = vmatmul.mubr.f32.gmra.mrb[0].mxu0 %v2525
    %v3602 = vpop.f32.mrb[0].mxu0
    %v3603 = vadd.f32 %v3385, %v3602
    %v3604 = vpop.f32.mrb[0].mxu0
    %3605 = vmatprep.mubr.f32.mxu0 0.0
    %3606 = vmatmul.mubr.f32.gmra.mrb[0].mxu0 %v2530
    %v3607 = vpop.f32.mrb[0].mxu0
    %v3608 = vadd.f32 %v3390, %v3607
    %v3609 = vpop.f32.mrb[0].mxu0
    %3610 = vmatprep.mubr.f32.mxu0 0.0
    %3611 = vmatmul.mubr.f32.gmra.mrb[0].mxu0 %v2535
    %v3612 = vpop.f32.mrb[0].mxu0
    %v3613 = vadd.f32 %v3395, %v3612
    %v3614 = vpop.f32.mrb[0].mxu0
    %3615 = vmatprep.mubr.f32.mxu0 0.0
    %3616 = vmatmul.mubr.f32.gmra.mrb[0].mxu0 %v2617
    %v3617 = vpop.f32.mrb[0].mxu0
    %v3618 = vadd.f32 %v3400, %v3617
    %v3619 = vpop.f32.mrb[0].mxu0
    %3620 = vmatprep.mubr.f32.mxu0 0.0
    %3621 = vmatmul.mubr.f32.gmra.mrb[0].mxu0 %v2622
    %v3622 = vpop.f32.mrb[0].mxu0
    %v3623 = vadd.f32 %v3405, %v3622
    %v3624 = vpop.f32.mrb[0].mxu0
    %3625 = vmatprep.mubr.f32.mxu0 0.0
    %3626 = vmatmul.mubr.f32.gmra.mrb[0].mxu0 %v2627
    %v3627 = vpop.f32.mrb[0].mxu0
    %v3628 = vadd.f32 %v3410, %v3627
    %v3629 = vpop.f32.mrb[0].mxu0
    %3630 = vmatprep.mubr.f32.mxu0 0.0
    %3631 = vmatmul.mubr.f32.gmra.mrb[0].mxu0 %v2632
    %v3632 = vpop.f32.mrb[0].mxu0
    %v3633 = vadd.f32 %v3415, %v3632
    %v3634 = vpop.f32.mrb[0].mxu0
    %3635 = vdwg.mxu0
    %3636 = vmatprep.subr.mxu0 0.0
    %3637 = vmatpush1.xpose.msra.mxu0 %v1649
    %3638 = vmatprep.subr.mxu0 0.0
    %3639 = vmatpush1.xpose.msra.mxu0 %v1655
    %3640 = vmatprep.subr.mxu0 0.0
    %3641 = vmatpush1.xpose.msra.mxu0 %v1661
    %3642 = vmatprep.subr.mxu0 0.0
    %3643 = vmatpush1.xpose.msra.mxu0 %v1667
    %3644 = vmatprep.subr.mxu0 0.0
    %3645 = vmatpush1.xpose.msra.mxu0 0.0
    %3646 = vmatprep.subr.mxu0 0.0
    %3647 = vmatpush1.xpose.msra.mxu0 0.0
    %3648 = vmatprep.subr.mxu0 0.0
    %3649 = vmatpush1.xpose.msra.mxu0 0.0
    %3650 = vmatprep.subr.mxu0 0.0
    %3651 = vmatpush1.xpose.msra.mxu0 0.0
    %3652 = vmatprep.subr.mxu0 0.0
    %3653 = vmatpush1.xpose.msra.mxu0 0.0
    %3654 = vmatprep.subr.mxu0 0.0
    %3655 = vmatpush1.xpose.msra.mxu0 0.0
    %3656 = vmatprep.subr.mxu0 0.0
    %3657 = vmatpush1.xpose.msra.mxu0 0.0
    %3658 = vmatprep.subr.mxu0 0.0
    %3659 = vmatpush1.xpose.msra.mxu0 0.0
    %3660 = vmatprep.subr.mxu0 0.0
    %3661 = vmatpush1.xpose.msra.mxu0 0.0
    %3662 = vmatprep.subr.mxu0 0.0
    %3663 = vmatpush1.xpose.msra.mxu0 0.0
    %3664 = vmatprep.subr.mxu0 0.0
    %3665 = vmatpush1.xpose.msra.mxu0 0.0
    %3666 = vmatprep.subr.mxu0 0.0
    %3667 = vmatpush1.xpose.msra.mxu0 0.0
    %3668 = vmatprep.subr.mxu0 0.0
    %3669 = vmatpush1.xpose.msra.mxu0 0.0
    %3670 = vmatprep.subr.mxu0 0.0
    %3671 = vmatpush1.xpose.msra.mxu0 0.0
    %3672 = vmatprep.subr.mxu0 0.0
    %3673 = vmatpush1.xpose.msra.mxu0 0.0
    %3674 = vmatprep.subr.mxu0 0.0
    %3675 = vmatpush1.xpose.msra.mxu0 0.0
    %3676 = vmatprep.subr.mxu0 0.0
    %3677 = vmatpush1.xpose.msra.mxu0 0.0
    %3678 = vmatprep.subr.mxu0 0.0
    %3679 = vmatpush1.xpose.msra.mxu0 0.0
    %3680 = vmatprep.subr.mxu0 0.0
    %3681 = vmatpush1.xpose.msra.mxu0 0.0
    %3682 = vmatprep.subr.mxu0 0.0
    %3683 = vmatpush1.xpose.msra.mxu0 0.0
    %3684 = vmatprep.subr.mxu0 0.0
    %3685 = vmatpush1.xpose.msra.mxu0 0.0
    %3686 = vmatprep.subr.mxu0 0.0
    %3687 = vmatpush1.xpose.msra.mxu0 0.0
    %3688 = vmatprep.subr.mxu0 0.0
    %3689 = vmatpush1.xpose.msra.mxu0 0.0
    %3690 = vmatprep.subr.mxu0 0.0
    %3691 = vmatpush1.xpose.msra.mxu0 0.0
    %3692 = vmatprep.subr.mxu0 0.0
    %3693 = vmatpush1.xpose.msra.mxu0 0.0
    %3694 = vmatprep.subr.mxu0 0.0
    %3695 = vmatpush1.xpose.msra.mxu0 0.0
    %3696 = vmatprep.subr.mxu0 0.0
    %3697 = vmatpush1.xpose.msra.mxu0 0.0
    %3698 = vmatprep.subr.mxu0 0.0
    %3699 = vmatpush1.xpose.msra.mxu0 0.0
    %3700 = vmatprep.mubr.f32.mxu0 0.0
    %3701 = vmatmul.mubr.f32.gmra.mrb[0].mxu0 %v1197
    %v3702 = vpop.f32.mrb[0].mxu0
    %v3703 = vadd.f32 0.0, %v3702
    %v3704 = vpop.f32.mrb[0].mxu0
    %3705 = vmatprep.mubr.f32.mxu0 0.0
    %3706 = vmatmul.mubr.f32.gmra.mrb[0].mxu0 %v1203
    %v3707 = vpop.f32.mrb[0].mxu0
    %v3708 = vadd.f32 0.0, %v3707
    %v3709 = vpop.f32.mrb[0].mxu0
    %3710 = vmatprep.mubr.f32.mxu0 0.0
    %3711 = vmatmul.mubr.f32.gmra.mrb[0].mxu0 %v1209
    %v3712 = vpop.f32.mrb[0].mxu0
    %v3713 = vadd.f32 0.0, %v3712
    %v3714 = vpop.f32.mrb[0].mxu0
    %3715 = vmatprep.mubr.f32.mxu0 0.0
    %3716 = vmatmul.mubr.f32.gmra.mrb[0].mxu0 %v1215
    %v3717 = vpop.f32.mrb[0].mxu0
    %v3718 = vadd.f32 0.0, %v3717
    %v3719 = vpop.f32.mrb[0].mxu0
    %3720 = vdwg.mxu0
    %3721 = vmatprep.subr.mxu0 0.0
    %3722 = vmatpush1.xpose.msra.mxu0 %v1673
    %3723 = vmatprep.subr.mxu0 0.0
    %3724 = vmatpush1.xpose.msra.mxu0 %v1679
    %3725 = vmatprep.subr.mxu0 0.0
    %3726 = vmatpush1.xpose.msra.mxu0 %v1685
    %3727 = vmatprep.subr.mxu0 0.0
    %3728 = vmatpush1.xpose.msra.mxu0 %v1691
    %3729 = vmatprep.subr.mxu0 0.0
    %3730 = vmatpush1.xpose.msra.mxu0 0.0
    %3731 = vmatprep.subr.mxu0 0.0
    %3732 = vmatpush1.xpose.msra.mxu0 0.0
    %3733 = vmatprep.subr.mxu0 0.0
    %3734 = vmatpush1.xpose.msra.mxu0 0.0
    %3735 = vmatprep.subr.mxu0 0.0
    %3736 = vmatpush1.xpose.msra.mxu0 0.0
    %3737 = vmatprep.subr.mxu0 0.0
    %3738 = vmatpush1.xpose.msra.mxu0 0.0
    %3739 = vmatprep.subr.mxu0 0.0
    %3740 = vmatpush1.xpose.msra.mxu0 0.0
    %3741 = vmatprep.subr.mxu0 0.0
    %3742 = vmatpush1.xpose.msra.mxu0 0.0
    %3743 = vmatprep.subr.mxu0 0.0
    %3744 = vmatpush1.xpose.msra.mxu0 0.0
    %3745 = vmatprep.subr.mxu0 0.0
    %3746 = vmatpush1.xpose.msra.mxu0 0.0
    %3747 = vmatprep.subr.mxu0 0.0
    %3748 = vmatpush1.xpose.msra.mxu0 0.0
    %3749 = vmatprep.subr.mxu0 0.0
    %3750 = vmatpush1.xpose.msra.mxu0 0.0
    %3751 = vmatprep.subr.mxu0 0.0
    %3752 = vmatpush1.xpose.msra.mxu0 0.0
    %3753 = vmatprep.subr.mxu0 0.0
    %3754 = vmatpush1.xpose.msra.mxu0 0.0
    %3755 = vmatprep.subr.mxu0 0.0
    %3756 = vmatpush1.xpose.msra.mxu0 0.0
    %3757 = vmatprep.subr.mxu0 0.0
    %3758 = vmatpush1.xpose.msra.mxu0 0.0
    %3759 = vmatprep.subr.mxu0 0.0
    %3760 = vmatpush1.xpose.msra.mxu0 0.0
    %3761 = vmatprep.subr.mxu0 0.0
    %3762 = vmatpush1.xpose.msra.mxu0 0.0
    %3763 = vmatprep.subr.mxu0 0.0
    %3764 = vmatpush1.xpose.msra.mxu0 0.0
    %3765 = vmatprep.subr.mxu0 0.0
    %3766 = vmatpush1.xpose.msra.mxu0 0.0
    %3767 = vmatprep.subr.mxu0 0.0
    %3768 = vmatpush1.xpose.msra.mxu0 0.0
    %3769 = vmatprep.subr.mxu0 0.0
    %3770 = vmatpush1.xpose.msra.mxu0 0.0
    %3771 = vmatprep.subr.mxu0 0.0
    %3772 = vmatpush1.xpose.msra.mxu0 0.0
    %3773 = vmatprep.subr.mxu0 0.0
    %3774 = vmatpush1.xpose.msra.mxu0 0.0
    %3775 = vmatprep.subr.mxu0 0.0
    %3776 = vmatpush1.xpose.msra.mxu0 0.0
    %3777 = vmatprep.subr.mxu0 0.0
    %3778 = vmatpush1.xpose.msra.mxu0 0.0
    %3779 = vmatprep.subr.mxu0 0.0
    %3780 = vmatpush1.xpose.msra.mxu0 0.0
    %3781 = vmatprep.subr.mxu0 0.0
    %3782 = vmatpush1.xpose.msra.mxu0 0.0
    %3783 = vmatprep.subr.mxu0 0.0
    %3784 = vmatpush1.xpose.msra.mxu0 0.0
    %3785 = vmatprep.mubr.f32.mxu0 0.0
    %3786 = vmatmul.mubr.f32.gmra.mrb[0].mxu0 %v1221
    %v3787 = vpop.f32.mrb[0].mxu0
    %v3788 = vadd.f32 0.0, %v3787
    %v3789 = vpop.f32.mrb[0].mxu0
    %3790 = vmatprep.mubr.f32.mxu0 0.0
    %3791 = vmatmul.mubr.f32.gmra.mrb[0].mxu0 %v1227
    %v3792 = vpop.f32.mrb[0].mxu0
    %v3793 = vadd.f32 0.0, %v3792
    %v3794 = vpop.f32.mrb[0].mxu0
    %3795 = vmatprep.mubr.f32.mxu0 0.0
    %3796 = vmatmul.mubr.f32.gmra.mrb[0].mxu0 %v1233
    %v3797 = vpop.f32.mrb[0].mxu0
    %v3798 = vadd.f32 0.0, %v3797
    %v3799 = vpop.f32.mrb[0].mxu0
    %3800 = vmatprep.mubr.f32.mxu0 0.0
    %3801 = vmatmul.mubr.f32.gmra.mrb[0].mxu0 %v1239
    %v3802 = vpop.f32.mrb[0].mxu0
    %v3803 = vadd.f32 0.0, %v3802
    %v3804 = vpop.f32.mrb[0].mxu0
    %3805 = vdwg.mxu0
    %v3806 = vmul.f32 %v3703, 9.797959
    %v3807 = vmul.f32 %v3708, 9.797959
    %v3808 = vmul.f32 %v3713, 9.797959
    %v3809 = vmul.f32 %v3718, 9.797959
    %v3810 = vmul.f32 %v3788, 9.797959
    %v3811 = vmul.f32 %v3793, 9.797959
    %v3812 = vmul.f32 %v3798, 9.797959
    %v3813 = vmul.f32 %v3803, 9.797959
    %v3814 = vsel %vm2340, %v3806, -inf
    %v3815 = vsel %vm2341, %v3807, -inf
    %v3816 = vsel %vm2342, %v3808, -inf
    %v3817 = vsel %vm2343, %v3809, -inf
    %v3818 = vsel %vm2340, %v3810, -inf
    %v3819 = vsel %vm2341, %v3811, -inf
    %v3820 = vsel %vm2342, %v3812, -inf
    %v3821 = vsel %vm2343, %v3813, -inf
    %v3822 = vsel %vm2352, %v3814, -inf
    %3823 = vmax.xlane.f32.xlu0 %v3822
    %v3824 = vpop.xlane.xlu0 %3823
    %v3825 = vsel %vm2352, %v3815, -inf
    %3826 = vmax.xlane.f32.xlu0 %v3825
    %v3827 = vpop.xlane.xlu0 %3826
    %v3828 = vsel %vm2352, %v3816, -inf
    %3829 = vmax.xlane.f32.xlu0 %v3828
    %v3830 = vpop.xlane.xlu0 %3829
    %v3831 = vsel %vm2352, %v3817, -inf
    %3832 = vmax.xlane.f32.xlu0 %v3831
    %v3833 = vpop.xlane.xlu0 %3832
    %v3834 = vsel %vm2352, %v3818, -inf
    %3835 = vmax.xlane.f32.xlu0 %v3834
    %v3836 = vpop.xlane.xlu0 %3835
    %v3837 = vsel %vm2352, %v3819, -inf
    %3838 = vmax.xlane.f32.xlu0 %v3837
    %v3839 = vpop.xlane.xlu0 %3838
    %v3840 = vsel %vm2352, %v3820, -inf
    %3841 = vmax.xlane.f32.xlu0 %v3840
    %v3842 = vpop.xlane.xlu0 %3841
    %v3843 = vsel %vm2352, %v3821, -inf
    %3844 = vmax.xlane.f32.xlu0 %v3843
    %v3845 = vpop.xlane.xlu0 %3844
    %v3846 = vsub.f32 %v3814, %v3824
    %v3847 = vsub.f32 %v3815, %v3827
    %v3848 = vsub.f32 %v3816, %v3830
    %v3849 = vsub.f32 %v3817, %v3833
    %v3850 = vsub.f32 %v3818, %v3836
    %v3851 = vsub.f32 %v3819, %v3839
    %v3852 = vsub.f32 %v3820, %v3842
    %v3853 = vsub.f32 %v3821, %v3845
    %v3854 = vmul.f32 %v3846, 1.442695
    %v3855 = vpow.pop %v3854
    %v3856 = vmul.f32 %v3847, 1.442695
    %v3857 = vpow.pop %v3856
    %v3858 = vmul.f32 %v3848, 1.442695
    %v3859 = vpow.pop %v3858
    %v3860 = vmul.f32 %v3849, 1.442695
    %v3861 = vpow.pop %v3860
    %v3862 = vmul.f32 %v3850, 1.442695
    %v3863 = vpow.pop %v3862
    %v3864 = vmul.f32 %v3851, 1.442695
    %v3865 = vpow.pop %v3864
    %v3866 = vmul.f32 %v3852, 1.442695
    %v3867 = vpow.pop %v3866
    %v3868 = vmul.f32 %v3853, 1.442695
    %v3869 = vpow.pop %v3868
    %v3870 = vsel %vm2352, %v3855, 0.0
    %3871 = vadd.xlane.f32.xlu0 %v3870
    %v3872 = vpop.xlane.xlu0 %3871
    %v3873 = vsel %vm2352, %v3857, 0.0
    %3874 = vadd.xlane.f32.xlu0 %v3873
    %v3875 = vpop.xlane.xlu0 %3874
    %v3876 = vsel %vm2352, %v3859, 0.0
    %3877 = vadd.xlane.f32.xlu0 %v3876
    %v3878 = vpop.xlane.xlu0 %3877
    %v3879 = vsel %vm2352, %v3861, 0.0
    %3880 = vadd.xlane.f32.xlu0 %v3879
    %v3881 = vpop.xlane.xlu0 %3880
    %v3882 = vsel %vm2352, %v3863, 0.0
    %3883 = vadd.xlane.f32.xlu0 %v3882
    %v3884 = vpop.xlane.xlu0 %3883
    %v3885 = vsel %vm2352, %v3865, 0.0
    %3886 = vadd.xlane.f32.xlu0 %v3885
    %v3887 = vpop.xlane.xlu0 %3886
    %v3888 = vsel %vm2352, %v3867, 0.0
    %3889 = vadd.xlane.f32.xlu0 %v3888
    %v3890 = vpop.xlane.xlu0 %3889
    %v3891 = vsel %vm2352, %v3869, 0.0
    %3892 = vadd.xlane.f32.xlu0 %v3891
    %v3893 = vpop.xlane.xlu0 %3892
    %v3894 = vrcp.pop %v3872
    %v3895 = vrcp.pop %v3875
    %v3896 = vrcp.pop %v3878
    %v3897 = vrcp.pop %v3881
    %v3898 = vrcp.pop %v3884
    %v3899 = vrcp.pop %v3887
    %v3900 = vrcp.pop %v3890
    %v3901 = vrcp.pop %v3893
    %v3902 = vmul.f32 %v3855, %v3894
    %v3903 = vmul.f32 %v3857, %v3895
    %v3904 = vmul.f32 %v3859, %v3896
    %v3905 = vmul.f32 %v3861, %v3897
    %v3906 = vmul.f32 %v3863, %v3898
    %v3907 = vmul.f32 %v3865, %v3899
    %v3908 = vmul.f32 %v3867, %v3900
    %v3909 = vmul.f32 %v3869, %v3901
    %v3911 = vsel %vm2352, %v3902, 0
    %v3914 = vsel %vm2352, %v3903, 0
    %v3917 = vsel %vm2352, %v3904, 0
    %v3920 = vsel %vm2352, %v3905, 0
    %3922 = vmatprep.subr.mxu0 0.0
    %3923 = vmatpush1.msra.mxu0 %v2101
    %3924 = vmatprep.subr.mxu0 0.0
    %3925 = vmatpush1.msra.mxu0 %v2107
    %3926 = vmatprep.subr.mxu0 0.0
    %3927 = vmatpush1.msra.mxu0 %v2113
    %3928 = vmatprep.subr.mxu0 0.0
    %3929 = vmatpush1.msra.mxu0 %v2119
    %3930 = vmatprep.subr.mxu0 0.0
    %3931 = vmatpush1.msra.mxu0 0.0
    %3932 = vmatprep.subr.mxu0 0.0
    %3933 = vmatpush1.msra.mxu0 0.0
    %3934 = vmatprep.subr.mxu0 0.0
    %3935 = vmatpush1.msra.mxu0 0.0
    %3936 = vmatprep.subr.mxu0 0.0
    %3937 = vmatpush1.msra.mxu0 0.0
    %3938 = vmatprep.subr.mxu0 0.0
    %3939 = vmatpush1.msra.mxu0 0.0
    %3940 = vmatprep.subr.mxu0 0.0
    %3941 = vmatpush1.msra.mxu0 0.0
    %3942 = vmatprep.subr.mxu0 0.0
    %3943 = vmatpush1.msra.mxu0 0.0
    %3944 = vmatprep.subr.mxu0 0.0
    %3945 = vmatpush1.msra.mxu0 0.0
    %3946 = vmatprep.subr.mxu0 0.0
    %3947 = vmatpush1.msra.mxu0 0.0
    %3948 = vmatprep.subr.mxu0 0.0
    %3949 = vmatpush1.msra.mxu0 0.0
    %3950 = vmatprep.subr.mxu0 0.0
    %3951 = vmatpush1.msra.mxu0 0.0
    %3952 = vmatprep.subr.mxu0 0.0
    %3953 = vmatpush1.msra.mxu0 0.0
    %3954 = vmatprep.subr.mxu0 0.0
    %3955 = vmatpush1.msra.mxu0 0.0
    %3956 = vmatprep.subr.mxu0 0.0
    %3957 = vmatpush1.msra.mxu0 0.0
    %3958 = vmatprep.subr.mxu0 0.0
    %3959 = vmatpush1.msra.mxu0 0.0
    %3960 = vmatprep.subr.mxu0 0.0
    %3961 = vmatpush1.msra.mxu0 0.0
    %3962 = vmatprep.subr.mxu0 0.0
    %3963 = vmatpush1.msra.mxu0 0.0
    %3964 = vmatprep.subr.mxu0 0.0
    %3965 = vmatpush1.msra.mxu0 0.0
    %3966 = vmatprep.subr.mxu0 0.0
    %3967 = vmatpush1.msra.mxu0 0.0
    %3968 = vmatprep.subr.mxu0 0.0
    %3969 = vmatpush1.msra.mxu0 0.0
    %3970 = vmatprep.subr.mxu0 0.0
    %3971 = vmatpush1.msra.mxu0 0.0
    %3972 = vmatprep.subr.mxu0 0.0
    %3973 = vmatpush1.msra.mxu0 0.0
    %3974 = vmatprep.subr.mxu0 0.0
    %3975 = vmatpush1.msra.mxu0 0.0
    %3976 = vmatprep.subr.mxu0 0.0
    %3977 = vmatpush1.msra.mxu0 0.0
    %3978 = vmatprep.subr.mxu0 0.0
    %3979 = vmatpush1.msra.mxu0 0.0
    %3980 = vmatprep.subr.mxu0 0.0
    %3981 = vmatpush1.msra.mxu0 0.0
    %3982 = vmatprep.subr.mxu0 0.0
    %3983 = vmatpush1.msra.mxu0 0.0
    %3984 = vmatprep.subr.mxu0 0.0
    %3985 = vmatpush1.msra.mxu0 0.0
    %3986 = vmatprep.mubr.f32.mxu0 0.0
    %3987 = vmatmul.mubr.f32.gmra.mrb[0].mxu0 %v3911
    %v3988 = vpop.f32.mrb[0].mxu0
    %v3989 = vadd.f32 0.0, %v3988
    %v3990 = vpop.f32.mrb[0].mxu0
    %3991 = vmatprep.mubr.f32.mxu0 0.0
    %3992 = vmatmul.mubr.f32.gmra.mrb[0].mxu0 %v3914
    %v3993 = vpop.f32.mrb[0].mxu0
    %v3994 = vadd.f32 0.0, %v3993
    %v3995 = vpop.f32.mrb[0].mxu0
    %3996 = vmatprep.mubr.f32.mxu0 0.0
    %3997 = vmatmul.mubr.f32.gmra.mrb[0].mxu0 %v3917
    %v3998 = vpop.f32.mrb[0].mxu0
    %v3999 = vadd.f32 0.0, %v3998
    %v4000 = vpop.f32.mrb[0].mxu0
    %4001 = vmatprep.mubr.f32.mxu0 0.0
    %4002 = vmatmul.mubr.f32.gmra.mrb[0].mxu0 %v3920
    %v4003 = vpop.f32.mrb[0].mxu0
    %v4004 = vadd.f32 0.0, %v4003
    %v4005 = vpop.f32.mrb[0].mxu0
    %4006 = vdwg.mxu0
    %v4008 = vsel %vm2352, %v3906, 0
    %v4011 = vsel %vm2352, %v3907, 0
    %v4014 = vsel %vm2352, %v3908, 0
    %v4017 = vsel %vm2352, %v3909, 0
    %4019 = vmatprep.subr.mxu0 0.0
    %4020 = vmatpush1.msra.mxu0 %v2125
    %4021 = vmatprep.subr.mxu0 0.0
    %4022 = vmatpush1.msra.mxu0 %v2131
    %4023 = vmatprep.subr.mxu0 0.0
    %4024 = vmatpush1.msra.mxu0 %v2137
    %4025 = vmatprep.subr.mxu0 0.0
    %4026 = vmatpush1.msra.mxu0 %v2143
    %4027 = vmatprep.subr.mxu0 0.0
    %4028 = vmatpush1.msra.mxu0 0.0
    %4029 = vmatprep.subr.mxu0 0.0
    %4030 = vmatpush1.msra.mxu0 0.0
    %4031 = vmatprep.subr.mxu0 0.0
    %4032 = vmatpush1.msra.mxu0 0.0
    %4033 = vmatprep.subr.mxu0 0.0
    %4034 = vmatpush1.msra.mxu0 0.0
    %4035 = vmatprep.subr.mxu0 0.0
    %4036 = vmatpush1.msra.mxu0 0.0
    %4037 = vmatprep.subr.mxu0 0.0
    %4038 = vmatpush1.msra.mxu0 0.0
    %4039 = vmatprep.subr.mxu0 0.0
    %4040 = vmatpush1.msra.mxu0 0.0
    %4041 = vmatprep.subr.mxu0 0.0
    %4042 = vmatpush1.msra.mxu0 0.0
    %4043 = vmatprep.subr.mxu0 0.0
    %4044 = vmatpush1.msra.mxu0 0.0
    %4045 = vmatprep.subr.mxu0 0.0
    %4046 = vmatpush1.msra.mxu0 0.0
    %4047 = vmatprep.subr.mxu0 0.0
    %4048 = vmatpush1.msra.mxu0 0.0
    %4049 = vmatprep.subr.mxu0 0.0
    %4050 = vmatpush1.msra.mxu0 0.0
    %4051 = vmatprep.subr.mxu0 0.0
    %4052 = vmatpush1.msra.mxu0 0.0
    %4053 = vmatprep.subr.mxu0 0.0
    %4054 = vmatpush1.msra.mxu0 0.0
    %4055 = vmatprep.subr.mxu0 0.0
    %4056 = vmatpush1.msra.mxu0 0.0
    %4057 = vmatprep.subr.mxu0 0.0
    %4058 = vmatpush1.msra.mxu0 0.0
    %4059 = vmatprep.subr.mxu0 0.0
    %4060 = vmatpush1.msra.mxu0 0.0
    %4061 = vmatprep.subr.mxu0 0.0
    %4062 = vmatpush1.msra.mxu0 0.0
    %4063 = vmatprep.subr.mxu0 0.0
    %4064 = vmatpush1.msra.mxu0 0.0
    %4065 = vmatprep.subr.mxu0 0.0
    %4066 = vmatpush1.msra.mxu0 0.0
    %4067 = vmatprep.subr.mxu0 0.0
    %4068 = vmatpush1.msra.mxu0 0.0
    %4069 = vmatprep.subr.mxu0 0.0
    %4070 = vmatpush1.msra.mxu0 0.0
    %4071 = vmatprep.subr.mxu0 0.0
    %4072 = vmatpush1.msra.mxu0 0.0
    %4073 = vmatprep.subr.mxu0 0.0
    %4074 = vmatpush1.msra.mxu0 0.0
    %4075 = vmatprep.subr.mxu0 0.0
    %4076 = vmatpush1.msra.mxu0 0.0
    %4077 = vmatprep.subr.mxu0 0.0
    %4078 = vmatpush1.msra.mxu0 0.0
    %4079 = vmatprep.subr.mxu0 0.0
    %4080 = vmatpush1.msra.mxu0 0.0
    %4081 = vmatprep.subr.mxu0 0.0
    %4082 = vmatpush1.msra.mxu0 0.0
    %4083 = vmatprep.mubr.f32.mxu0 0.0
    %4084 = vmatmul.mubr.f32.gmra.mrb[0].mxu0 %v4008
    %v4085 = vpop.f32.mrb[0].mxu0
    %v4086 = vadd.f32 0.0, %v4085
    %v4087 = vpop.f32.mrb[0].mxu0
    %4088 = vmatprep.mubr.f32.mxu0 0.0
    %4089 = vmatmul.mubr.f32.gmra.mrb[0].mxu0 %v4011
    %v4090 = vpop.f32.mrb[0].mxu0
    %v4091 = vadd.f32 0.0, %v4090
    %v4092 = vpop.f32.mrb[0].mxu0
    %4093 = vmatprep.mubr.f32.mxu0 0.0
    %4094 = vmatmul.mubr.f32.gmra.mrb[0].mxu0 %v4014
    %v4095 = vpop.f32.mrb[0].mxu0
    %v4096 = vadd.f32 0.0, %v4095
    %v4097 = vpop.f32.mrb[0].mxu0
    %4098 = vmatprep.mubr.f32.mxu0 0.0
    %4099 = vmatmul.mubr.f32.gmra.mrb[0].mxu0 %v4017
    %v4100 = vpop.f32.mrb[0].mxu0
    %v4101 = vadd.f32 0.0, %v4100
    %v4102 = vpop.f32.mrb[0].mxu0
    %4103 = vdwg.mxu0
    %s4104 = scalar_lea.vmem [#allocation7], 768
    %v4105 = vld [vmem:[%s4104] sm:$0xff]
    %v4106 = vld [vmem:[%s4104 + $0x8] sm:$0xff]
    %v4107 = vld [vmem:[%s4104 + $0x10] sm:$0xff]
    %v4108 = vld [vmem:[%s4104 + $0x18] sm:$0xff]
    %v4109 = vld [vmem:[%s4104 + $0x20] sm:$0xff]
    %v4110 = vld [vmem:[%s4104 + $0x28] sm:$0xff]
    %v4111 = vld [vmem:[%s4104 + $0x30] sm:$0xff]
    %v4112 = vld [vmem:[%s4104 + $0x38] sm:$0xff]
    %v4113 = vld [vmem:[%s4104 + $0x40] sm:$0xff]
    %v4114 = vld [vmem:[%s4104 + $0x48] sm:$0xff]
    %v4115 = vld [vmem:[%s4104 + $0x50] sm:$0xff]
    %v4116 = vld [vmem:[%s4104 + $0x58] sm:$0xff]
    %v4117 = vld [vmem:[%s4104 + $0x60] sm:$0xff]
    %v4118 = vld [vmem:[%s4104 + $0x68] sm:$0xff]
    %v4119 = vld [vmem:[%s4104 + $0x70] sm:$0xff]
    %v4120 = vld [vmem:[%s4104 + $0x78] sm:$0xff]
    %v4121 = vld [vmem:[%s4104 + $0x80] sm:$0xff]
    %v4122 = vld [vmem:[%s4104 + $0x88] sm:$0xff]
    %v4123 = vld [vmem:[%s4104 + $0x90] sm:$0xff]
    %v4124 = vld [vmem:[%s4104 + $0x98] sm:$0xff]
    %v4125 = vld [vmem:[%s4104 + $0xa0] sm:$0xff]
    %v4126 = vld [vmem:[%s4104 + $0xa8] sm:$0xff]
    %v4127 = vld [vmem:[%s4104 + $0xb0] sm:$0xff]
    %v4128 = vld [vmem:[%s4104 + $0xb8] sm:$0xff]
    %v4129 = vld [vmem:[%s4104 + $0xc0] sm:$0xff]
    %v4130 = vld [vmem:[%s4104 + $0xc8] sm:$0xff]
    %v4131 = vld [vmem:[%s4104 + $0xd0] sm:$0xff]
    %v4132 = vld [vmem:[%s4104 + $0xd8] sm:$0xff]
    %v4133 = vld [vmem:[%s4104 + $0xe0] sm:$0xff]
    %v4134 = vld [vmem:[%s4104 + $0xe8] sm:$0xff]
    %v4135 = vld [vmem:[%s4104 + $0xf0] sm:$0xff]
    %v4136 = vld [vmem:[%s4104 + $0xf8] sm:$0xff]
    %v4137 = vld [vmem:[%s4104 + $0x100] sm:$0xff]
    %v4138 = vld [vmem:[%s4104 + $0x108] sm:$0xff]
    %v4139 = vld [vmem:[%s4104 + $0x110] sm:$0xff]
    %v4140 = vld [vmem:[%s4104 + $0x118] sm:$0xff]
    %v4141 = vld [vmem:[%s4104 + $0x120] sm:$0xff]
    %v4142 = vld [vmem:[%s4104 + $0x128] sm:$0xff]
    %v4143 = vld [vmem:[%s4104 + $0x130] sm:$0xff]
    %v4144 = vld [vmem:[%s4104 + $0x138] sm:$0xff]
    %v4145 = vld [vmem:[%s4104 + $0x140] sm:$0xff]
    %v4146 = vld [vmem:[%s4104 + $0x148] sm:$0xff]
    %v4147 = vld [vmem:[%s4104 + $0x150] sm:$0xff]
    %v4148 = vld [vmem:[%s4104 + $0x158] sm:$0xff]
    %v4149 = vld [vmem:[%s4104 + $0x160] sm:$0xff]
    %v4150 = vld [vmem:[%s4104 + $0x168] sm:$0xff]
    %v4151 = vld [vmem:[%s4104 + $0x170] sm:$0xff]
    %v4152 = vld [vmem:[%s4104 + $0x178] sm:$0xff]
    %4153 = vmatprep.subr.mxu0 %v4106
    %4154 = vmatpush1.msra.mxu0 %v4105
    %4155 = vmatprep.subr.mxu0 %v4109
    %4156 = vmatpush1.msra.mxu0 %v4108
    %4157 = vmatprep.subr.mxu0 %v4112
    %4158 = vmatpush1.msra.mxu0 %v4111
    %4159 = vmatprep.subr.mxu0 %v4115
    %4160 = vmatpush1.msra.mxu0 %v4114
    %4161 = vmatprep.subr.mxu0 %v4118
    %4162 = vmatpush1.msra.mxu0 %v4117
    %4163 = vmatprep.subr.mxu0 %v4121
    %4164 = vmatpush1.msra.mxu0 %v4120
    %4165 = vmatprep.subr.mxu0 %v4124
    %4166 = vmatpush1.msra.mxu0 %v4123
    %4167 = vmatprep.subr.mxu0 %v4127
    %4168 = vmatpush1.msra.mxu0 %v4126
    %4169 = vmatprep.subr.mxu0 %v4130
    %4170 = vmatpush1.msra.mxu0 %v4129
    %4171 = vmatprep.subr.mxu0 %v4133
    %4172 = vmatpush1.msra.mxu0 %v4132
    %4173 = vmatprep.subr.mxu0 %v4136
    %4174 = vmatpush1.msra.mxu0 %v4135
    %4175 = vmatprep.subr.mxu0 %v4139
    %4176 = vmatpush1.msra.mxu0 %v4138
    %4177 = vmatprep.subr.mxu0 %v4142
    %4178 = vmatpush1.msra.mxu0 %v4141
    %4179 = vmatprep.subr.mxu0 %v4145
    %4180 = vmatpush1.msra.mxu0 %v4144
    %4181 = vmatprep.subr.mxu0 %v4148
    %4182 = vmatpush1.msra.mxu0 %v4147
    %4183 = vmatprep.subr.mxu0 %v4151
    %4184 = vmatpush1.msra.mxu0 %v4150
    %4185 = vmatprep.subr.mxu0 0.0
    %4186 = vmatpush1.msra.mxu0 0.0
    %4187 = vmatprep.subr.mxu0 0.0
    %4188 = vmatpush1.msra.mxu0 0.0
    %4189 = vmatprep.subr.mxu0 0.0
    %4190 = vmatpush1.msra.mxu0 0.0
    %4191 = vmatprep.subr.mxu0 0.0
    %4192 = vmatpush1.msra.mxu0 0.0
    %4193 = vmatprep.subr.mxu0 0.0
    %4194 = vmatpush1.msra.mxu0 0.0
    %4195 = vmatprep.subr.mxu0 0.0
    %4196 = vmatpush1.msra.mxu0 0.0
    %4197 = vmatprep.subr.mxu0 0.0
    %4198 = vmatpush1.msra.mxu0 0.0
    %4199 = vmatprep.subr.mxu0 0.0
    %4200 = vmatpush1.msra.mxu0 0.0
    %4201 = vmatprep.subr.mxu0 0.0
    %4202 = vmatpush1.msra.mxu0 0.0
    %4203 = vmatprep.subr.mxu0 0.0
    %4204 = vmatpush1.msra.mxu0 0.0
    %4205 = vmatprep.subr.mxu0 0.0
    %4206 = vmatpush1.msra.mxu0 0.0
    %4207 = vmatprep.subr.mxu0 0.0
    %4208 = vmatpush1.msra.mxu0 0.0
    %4209 = vmatprep.subr.mxu0 0.0
    %4210 = vmatpush1.msra.mxu0 0.0
    %4211 = vmatprep.subr.mxu0 0.0
    %4212 = vmatpush1.msra.mxu0 0.0
    %4213 = vmatprep.subr.mxu0 0.0
    %4214 = vmatpush1.msra.mxu0 0.0
    %4215 = vmatprep.subr.mxu0 0.0
    %4216 = vmatpush1.msra.mxu0 0.0
    %4217 = vmatprep.mubr.f32.mxu0 0.0
    %4218 = vmatmul.mubr.f32.gmra.mrb[0].mxu0 %v3989
    %v4219 = vpop.f32.mrb[0].mxu0
    %v4220 = vadd.f32 0.0, %v4219
    %v4221 = vpop.f32.mrb[0].mxu0
    %v4222 = vadd.f32 0.0, %v4221
    %4223 = vmatprep.mubr.f32.mxu0 0.0
    %4224 = vmatmul.mubr.f32.gmra.mrb[0].mxu0 %v3994
    %v4225 = vpop.f32.mrb[0].mxu0
    %v4226 = vadd.f32 0.0, %v4225
    %v4227 = vpop.f32.mrb[0].mxu0
    %v4228 = vadd.f32 0.0, %v4227
    %4229 = vmatprep.mubr.f32.mxu0 0.0
    %4230 = vmatmul.mubr.f32.gmra.mrb[0].mxu0 %v3999
    %v4231 = vpop.f32.mrb[0].mxu0
    %v4232 = vadd.f32 0.0, %v4231
    %v4233 = vpop.f32.mrb[0].mxu0
    %v4234 = vadd.f32 0.0, %v4233
    %4235 = vmatprep.mubr.f32.mxu0 0.0
    %4236 = vmatmul.mubr.f32.gmra.mrb[0].mxu0 %v4004
    %v4237 = vpop.f32.mrb[0].mxu0
    %v4238 = vadd.f32 0.0, %v4237
    %v4239 = vpop.f32.mrb[0].mxu0
    %v4240 = vadd.f32 0.0, %v4239
    %4241 = vmatprep.mubr.f32.mxu0 0.0
    %4242 = vmatmul.mubr.f32.gmra.mrb[0].mxu0 %v4086
    %v4243 = vpop.f32.mrb[0].mxu0
    %v4244 = vadd.f32 0.0, %v4243
    %v4245 = vpop.f32.mrb[0].mxu0
    %v4246 = vadd.f32 0.0, %v4245
    %4247 = vmatprep.mubr.f32.mxu0 0.0
    %4248 = vmatmul.mubr.f32.gmra.mrb[0].mxu0 %v4091
    %v4249 = vpop.f32.mrb[0].mxu0
    %v4250 = vadd.f32 0.0, %v4249
    %v4251 = vpop.f32.mrb[0].mxu0
    %v4252 = vadd.f32 0.0, %v4251
    %4253 = vmatprep.mubr.f32.mxu0 0.0
    %4254 = vmatmul.mubr.f32.gmra.mrb[0].mxu0 %v4096
    %v4255 = vpop.f32.mrb[0].mxu0
    %v4256 = vadd.f32 0.0, %v4255
    %v4257 = vpop.f32.mrb[0].mxu0
    %v4258 = vadd.f32 0.0, %v4257
    %4259 = vmatprep.mubr.f32.mxu0 0.0
    %4260 = vmatmul.mubr.f32.gmra.mrb[0].mxu0 %v4101
    %v4261 = vpop.f32.mrb[0].mxu0
    %v4262 = vadd.f32 0.0, %v4261
    %v4263 = vpop.f32.mrb[0].mxu0
    %v4264 = vadd.f32 0.0, %v4263
    %4265 = vdwg.mxu0
    %4266 = vmatprep.subr.mxu0 0.0
    %4267 = vmatpush1.msra.mxu0 %v4107
    %4268 = vmatprep.subr.mxu0 0.0
    %4269 = vmatpush1.msra.mxu0 %v4110
    %4270 = vmatprep.subr.mxu0 0.0
    %4271 = vmatpush1.msra.mxu0 %v4113
    %4272 = vmatprep.subr.mxu0 0.0
    %4273 = vmatpush1.msra.mxu0 %v4116
    %4274 = vmatprep.subr.mxu0 0.0
    %4275 = vmatpush1.msra.mxu0 %v4119
    %4276 = vmatprep.subr.mxu0 0.0
    %4277 = vmatpush1.msra.mxu0 %v4122
    %4278 = vmatprep.subr.mxu0 0.0
    %4279 = vmatpush1.msra.mxu0 %v4125
    %4280 = vmatprep.subr.mxu0 0.0
    %4281 = vmatpush1.msra.mxu0 %v4128
    %4282 = vmatprep.subr.mxu0 0.0
    %4283 = vmatpush1.msra.mxu0 %v4131
    %4284 = vmatprep.subr.mxu0 0.0
    %4285 = vmatpush1.msra.mxu0 %v4134
    %4286 = vmatprep.subr.mxu0 0.0
    %4287 = vmatpush1.msra.mxu0 %v4137
    %4288 = vmatprep.subr.mxu0 0.0
    %4289 = vmatpush1.msra.mxu0 %v4140
    %4290 = vmatprep.subr.mxu0 0.0
    %4291 = vmatpush1.msra.mxu0 %v4143
    %4292 = vmatprep.subr.mxu0 0.0
    %4293 = vmatpush1.msra.mxu0 %v4146
    %4294 = vmatprep.subr.mxu0 0.0
    %4295 = vmatpush1.msra.mxu0 %v4149
    %4296 = vmatprep.subr.mxu0 0.0
    %4297 = vmatpush1.msra.mxu0 %v4152
    %4298 = vmatprep.subr.mxu0 0.0
    %4299 = vmatpush1.msra.mxu0 0.0
    %4300 = vmatprep.subr.mxu0 0.0
    %4301 = vmatpush1.msra.mxu0 0.0
    %4302 = vmatprep.subr.mxu0 0.0
    %4303 = vmatpush1.msra.mxu0 0.0
    %4304 = vmatprep.subr.mxu0 0.0
    %4305 = vmatpush1.msra.mxu0 0.0
    %4306 = vmatprep.subr.mxu0 0.0
    %4307 = vmatpush1.msra.mxu0 0.0
    %4308 = vmatprep.subr.mxu0 0.0
    %4309 = vmatpush1.msra.mxu0 0.0
    %4310 = vmatprep.subr.mxu0 0.0
    %4311 = vmatpush1.msra.mxu0 0.0
    %4312 = vmatprep.subr.mxu0 0.0
    %4313 = vmatpush1.msra.mxu0 0.0
    %4314 = vmatprep.subr.mxu0 0.0
    %4315 = vmatpush1.msra.mxu0 0.0
    %4316 = vmatprep.subr.mxu0 0.0
    %4317 = vmatpush1.msra.mxu0 0.0
    %4318 = vmatprep.subr.mxu0 0.0
    %4319 = vmatpush1.msra.mxu0 0.0
    %4320 = vmatprep.subr.mxu0 0.0
    %4321 = vmatpush1.msra.mxu0 0.0
    %4322 = vmatprep.subr.mxu0 0.0
    %4323 = vmatpush1.msra.mxu0 0.0
    %4324 = vmatprep.subr.mxu0 0.0
    %4325 = vmatpush1.msra.mxu0 0.0
    %4326 = vmatprep.subr.mxu0 0.0
    %4327 = vmatpush1.msra.mxu0 0.0
    %4328 = vmatprep.subr.mxu0 0.0
    %4329 = vmatpush1.msra.mxu0 0.0
    %4330 = vmatprep.mubr.f32.mxu0 0.0
    %4331 = vmatmul.mubr.f32.gmra.mrb[0].mxu0 %v3989
    %v4332 = vpop.f32.mrb[0].mxu0
    %v4333 = vadd.f32 0.0, %v4332
    %v4334 = vpop.f32.mrb[0].mxu0
    %4335 = vmatprep.mubr.f32.mxu0 0.0
    %4336 = vmatmul.mubr.f32.gmra.mrb[0].mxu0 %v3994
    %v4337 = vpop.f32.mrb[0].mxu0
    %v4338 = vadd.f32 0.0, %v4337
    %v4339 = vpop.f32.mrb[0].mxu0
    %4340 = vmatprep.mubr.f32.mxu0 0.0
    %4341 = vmatmul.mubr.f32.gmra.mrb[0].mxu0 %v3999
    %v4342 = vpop.f32.mrb[0].mxu0
    %v4343 = vadd.f32 0.0, %v4342
    %v4344 = vpop.f32.mrb[0].mxu0
    %4345 = vmatprep.mubr.f32.mxu0 0.0
    %4346 = vmatmul.mubr.f32.gmra.mrb[0].mxu0 %v4004
    %v4347 = vpop.f32.mrb[0].mxu0
    %v4348 = vadd.f32 0.0, %v4347
    %v4349 = vpop.f32.mrb[0].mxu0
    %4350 = vmatprep.mubr.f32.mxu0 0.0
    %4351 = vmatmul.mubr.f32.gmra.mrb[0].mxu0 %v4086
    %v4352 = vpop.f32.mrb[0].mxu0
    %v4353 = vadd.f32 0.0, %v4352
    %v4354 = vpop.f32.mrb[0].mxu0
    %4355 = vmatprep.mubr.f32.mxu0 0.0
    %4356 = vmatmul.mubr.f32.gmra.mrb[0].mxu0 %v4091
    %v4357 = vpop.f32.mrb[0].mxu0
    %v4358 = vadd.f32 0.0, %v4357
    %v4359 = vpop.f32.mrb[0].mxu0
    %4360 = vmatprep.mubr.f32.mxu0 0.0
    %4361 = vmatmul.mubr.f32.gmra.mrb[0].mxu0 %v4096
    %v4362 = vpop.f32.mrb[0].mxu0
    %v4363 = vadd.f32 0.0, %v4362
    %v4364 = vpop.f32.mrb[0].mxu0
    %4365 = vmatprep.mubr.f32.mxu0 0.0
    %4366 = vmatmul.mubr.f32.gmra.mrb[0].mxu0 %v4101
    %v4367 = vpop.f32.mrb[0].mxu0
    %v4368 = vadd.f32 0.0, %v4367
    %v4369 = vpop.f32.mrb[0].mxu0
    %4370 = vdwg.mxu0
    %v4371 = vadd.f32 %v3485, %v4220
    %v4372 = vadd.f32 %v3487, %v4222
    %v4373 = vadd.f32 %v3598, %v4333
    %v4374 = vadd.f32 %v3491, %v4226
    %v4375 = vadd.f32 %v3493, %v4228
    %v4376 = vadd.f32 %v3603, %v4338
    %v4377 = vadd.f32 %v3497, %v4232
    %v4378 = vadd.f32 %v3499, %v4234
    %v4379 = vadd.f32 %v3608, %v4343
    %v4380 = vadd.f32 %v3503, %v4238
    %v4381 = vadd.f32 %v3505, %v4240
    %v4382 = vadd.f32 %v3613, %v4348
    %v4383 = vadd.f32 %v3509, %v4244
    %v4384 = vadd.f32 %v3511, %v4246
    %v4385 = vadd.f32 %v3618, %v4353
    %v4386 = vadd.f32 %v3515, %v4250
    %v4387 = vadd.f32 %v3517, %v4252
    %v4388 = vadd.f32 %v3623, %v4358
    %v4389 = vadd.f32 %v3521, %v4256
    %v4390 = vadd.f32 %v3523, %v4258
    %v4391 = vadd.f32 %v3628, %v4363
    %v4392 = vadd.f32 %v3527, %v4262
    %v4393 = vadd.f32 %v3529, %v4264
    %v4394 = vadd.f32 %v3633, %v4368
    %4395 = vmatprep.subr.mxu0 0.0
    %4396 = vmatpush1.xpose.msra.mxu0 %v1651
    %4397 = vmatprep.subr.mxu0 0.0
    %4398 = vmatpush1.xpose.msra.mxu0 %v1657
    %4399 = vmatprep.subr.mxu0 0.0
    %4400 = vmatpush1.xpose.msra.mxu0 %v1663
    %4401 = vmatprep.subr.mxu0 0.0
    %4402 = vmatpush1.xpose.msra.mxu0 %v1669
    %4403 = vmatprep.subr.mxu0 0.0
    %4404 = vmatpush1.xpose.msra.mxu0 0.0
    %4405 = vmatprep.subr.mxu0 0.0
    %4406 = vmatpush1.xpose.msra.mxu0 0.0
    %4407 = vmatprep.subr.mxu0 0.0
    %4408 = vmatpush1.xpose.msra.mxu0 0.0
    %4409 = vmatprep.subr.mxu0 0.0
    %4410 = vmatpush1.xpose.msra.mxu0 0.0
    %4411 = vmatprep.subr.mxu0 0.0
    %4412 = vmatpush1.xpose.msra.mxu0 0.0
    %4413 = vmatprep.subr.mxu0 0.0
    %4414 = vmatpush1.xpose.msra.mxu0 0.0
    %4415 = vmatprep.subr.mxu0 0.0
    %4416 = vmatpush1.xpose.msra.mxu0 0.0
    %4417 = vmatprep.subr.mxu0 0.0
    %4418 = vmatpush1.xpose.msra.mxu0 0.0
    %4419 = vmatprep.subr.mxu0 0.0
    %4420 = vmatpush1.xpose.msra.mxu0 0.0
    %4421 = vmatprep.subr.mxu0 0.0
    %4422 = vmatpush1.xpose.msra.mxu0 0.0
    %4423 = vmatprep.subr.mxu0 0.0
    %4424 = vmatpush1.xpose.msra.mxu0 0.0
    %4425 = vmatprep.subr.mxu0 0.0
    %4426 = vmatpush1.xpose.msra.mxu0 0.0
    %4427 = vmatprep.subr.mxu0 0.0
    %4428 = vmatpush1.xpose.msra.mxu0 0.0
    %4429 = vmatprep.subr.mxu0 0.0
    %4430 = vmatpush1.xpose.msra.mxu0 0.0
    %4431 = vmatprep.subr.mxu0 0.0
    %4432 = vmatpush1.xpose.msra.mxu0 0.0
    %4433 = vmatprep.subr.mxu0 0.0
    %4434 = vmatpush1.xpose.msra.mxu0 0.0
    %4435 = vmatprep.subr.mxu0 0.0
    %4436 = vmatpush1.xpose.msra.mxu0 0.0
    %4437 = vmatprep.subr.mxu0 0.0
    %4438 = vmatpush1.xpose.msra.mxu0 0.0
    %4439 = vmatprep.subr.mxu0 0.0
    %4440 = vmatpush1.xpose.msra.mxu0 0.0
    %4441 = vmatprep.subr.mxu0 0.0
    %4442 = vmatpush1.xpose.msra.mxu0 0.0
    %4443 = vmatprep.subr.mxu0 0.0
    %4444 = vmatpush1.xpose.msra.mxu0 0.0
    %4445 = vmatprep.subr.mxu0 0.0
    %4446 = vmatpush1.xpose.msra.mxu0 0.0
    %4447 = vmatprep.subr.mxu0 0.0
    %4448 = vmatpush1.xpose.msra.mxu0 0.0
    %4449 = vmatprep.subr.mxu0 0.0
    %4450 = vmatpush1.xpose.msra.mxu0 0.0
    %4451 = vmatprep.subr.mxu0 0.0
    %4452 = vmatpush1.xpose.msra.mxu0 0.0
    %4453 = vmatprep.subr.mxu0 0.0
    %4454 = vmatpush1.xpose.msra.mxu0 0.0
    %4455 = vmatprep.subr.mxu0 0.0
    %4456 = vmatpush1.xpose.msra.mxu0 0.0
    %4457 = vmatprep.subr.mxu0 0.0
    %4458 = vmatpush1.xpose.msra.mxu0 0.0
    %4459 = vmatprep.mubr.f32.mxu0 0.0
    %4460 = vmatmul.mubr.f32.gmra.mrb[0].mxu0 %v1199
    %v4461 = vpop.f32.mrb[0].mxu0
    %v4462 = vadd.f32 0.0, %v4461
    %v4463 = vpop.f32.mrb[0].mxu0
    %4464 = vmatprep.mubr.f32.mxu0 0.0
    %4465 = vmatmul.mubr.f32.gmra.mrb[0].mxu0 %v1205
    %v4466 = vpop.f32.mrb[0].mxu0
    %v4467 = vadd.f32 0.0, %v4466
    %v4468 = vpop.f32.mrb[0].mxu0
    %4469 = vmatprep.mubr.f32.mxu0 0.0
    %4470 = vmatmul.mubr.f32.gmra.mrb[0].mxu0 %v1211
    %v4471 = vpop.f32.mrb[0].mxu0
    %v4472 = vadd.f32 0.0, %v4471
    %v4473 = vpop.f32.mrb[0].mxu0
    %4474 = vmatprep.mubr.f32.mxu0 0.0
    %4475 = vmatmul.mubr.f32.gmra.mrb[0].mxu0 %v1217
    %v4476 = vpop.f32.mrb[0].mxu0
    %v4477 = vadd.f32 0.0, %v4476
    %v4478 = vpop.f32.mrb[0].mxu0
    %4479 = vdwg.mxu0
    %4480 = vmatprep.subr.mxu0 0.0
    %4481 = vmatpush1.xpose.msra.mxu0 %v1675
    %4482 = vmatprep.subr.mxu0 0.0
    %4483 = vmatpush1.xpose.msra.mxu0 %v1681
    %4484 = vmatprep.subr.mxu0 0.0
    %4485 = vmatpush1.xpose.msra.mxu0 %v1687
    %4486 = vmatprep.subr.mxu0 0.0
    %4487 = vmatpush1.xpose.msra.mxu0 %v1693
    %4488 = vmatprep.subr.mxu0 0.0
    %4489 = vmatpush1.xpose.msra.mxu0 0.0
    %4490 = vmatprep.subr.mxu0 0.0
    %4491 = vmatpush1.xpose.msra.mxu0 0.0
    %4492 = vmatprep.subr.mxu0 0.0
    %4493 = vmatpush1.xpose.msra.mxu0 0.0
    %4494 = vmatprep.subr.mxu0 0.0
    %4495 = vmatpush1.xpose.msra.mxu0 0.0
    %4496 = vmatprep.subr.mxu0 0.0
    %4497 = vmatpush1.xpose.msra.mxu0 0.0
    %4498 = vmatprep.subr.mxu0 0.0
    %4499 = vmatpush1.xpose.msra.mxu0 0.0
    %4500 = vmatprep.subr.mxu0 0.0
    %4501 = vmatpush1.xpose.msra.mxu0 0.0
    %4502 = vmatprep.subr.mxu0 0.0
    %4503 = vmatpush1.xpose.msra.mxu0 0.0
    %4504 = vmatprep.subr.mxu0 0.0
    %4505 = vmatpush1.xpose.msra.mxu0 0.0
    %4506 = vmatprep.subr.mxu0 0.0
    %4507 = vmatpush1.xpose.msra.mxu0 0.0
    %4508 = vmatprep.subr.mxu0 0.0
    %4509 = vmatpush1.xpose.msra.mxu0 0.0
    %4510 = vmatprep.subr.mxu0 0.0
    %4511 = vmatpush1.xpose.msra.mxu0 0.0
    %4512 = vmatprep.subr.mxu0 0.0
    %4513 = vmatpush1.xpose.msra.mxu0 0.0
    %4514 = vmatprep.subr.mxu0 0.0
    %4515 = vmatpush1.xpose.msra.mxu0 0.0
    %4516 = vmatprep.subr.mxu0 0.0
    %4517 = vmatpush1.xpose.msra.mxu0 0.0
    %4518 = vmatprep.subr.mxu0 0.0
    %4519 = vmatpush1.xpose.msra.mxu0 0.0
    %4520 = vmatprep.subr.mxu0 0.0
    %4521 = vmatpush1.xpose.msra.mxu0 0.0
    %4522 = vmatprep.subr.mxu0 0.0
    %4523 = vmatpush1.xpose.msra.mxu0 0.0
    %4524 = vmatprep.subr.mxu0 0.0
    %4525 = vmatpush1.xpose.msra.mxu0 0.0
    %4526 = vmatprep.subr.mxu0 0.0
    %4527 = vmatpush1.xpose.msra.mxu0 0.0
    %4528 = vmatprep.subr.mxu0 0.0
    %4529 = vmatpush1.xpose.msra.mxu0 0.0
    %4530 = vmatprep.subr.mxu0 0.0
    %4531 = vmatpush1.xpose.msra.mxu0 0.0
    %4532 = vmatprep.subr.mxu0 0.0
    %4533 = vmatpush1.xpose.msra.mxu0 0.0
    %4534 = vmatprep.subr.mxu0 0.0
    %4535 = vmatpush1.xpose.msra.mxu0 0.0
    %4536 = vmatprep.subr.mxu0 0.0
    %4537 = vmatpush1.xpose.msra.mxu0 0.0
    %4538 = vmatprep.subr.mxu0 0.0
    %4539 = vmatpush1.xpose.msra.mxu0 0.0
    %4540 = vmatprep.subr.mxu0 0.0
    %4541 = vmatpush1.xpose.msra.mxu0 0.0
    %4542 = vmatprep.subr.mxu0 0.0
    %4543 = vmatpush1.xpose.msra.mxu0 0.0
    %4544 = vmatprep.mubr.f32.mxu0 0.0
    %4545 = vmatmul.mubr.f32.gmra.mrb[0].mxu0 %v1223
    %v4546 = vpop.f32.mrb[0].mxu0
    %v4547 = vadd.f32 0.0, %v4546
    %v4548 = vpop.f32.mrb[0].mxu0
    %4549 = vmatprep.mubr.f32.mxu0 0.0
    %4550 = vmatmul.mubr.f32.gmra.mrb[0].mxu0 %v1229
    %v4551 = vpop.f32.mrb[0].mxu0
    %v4552 = vadd.f32 0.0, %v4551
    %v4553 = vpop.f32.mrb[0].mxu0
    %4554 = vmatprep.mubr.f32.mxu0 0.0
    %4555 = vmatmul.mubr.f32.gmra.mrb[0].mxu0 %v1235
    %v4556 = vpop.f32.mrb[0].mxu0
    %v4557 = vadd.f32 0.0, %v4556
    %v4558 = vpop.f32.mrb[0].mxu0
    %4559 = vmatprep.mubr.f32.mxu0 0.0
    %4560 = vmatmul.mubr.f32.gmra.mrb[0].mxu0 %v1241
    %v4561 = vpop.f32.mrb[0].mxu0
    %v4562 = vadd.f32 0.0, %v4561
    %v4563 = vpop.f32.mrb[0].mxu0
    %4564 = vdwg.mxu0
    %v4565 = vmul.f32 %v4462, 9.797959
    %v4566 = vmul.f32 %v4467, 9.797959
    %v4567 = vmul.f32 %v4472, 9.797959
    %v4568 = vmul.f32 %v4477, 9.797959
    %v4569 = vmul.f32 %v4547, 9.797959
    %v4570 = vmul.f32 %v4552, 9.797959
    %v4571 = vmul.f32 %v4557, 9.797959
    %v4572 = vmul.f32 %v4562, 9.797959
    %v4573 = vsel %vm2340, %v4565, -inf
    %v4574 = vsel %vm2341, %v4566, -inf
    %v4575 = vsel %vm2342, %v4567, -inf
    %v4576 = vsel %vm2343, %v4568, -inf
    %v4577 = vsel %vm2340, %v4569, -inf
    %v4578 = vsel %vm2341, %v4570, -inf
    %v4579 = vsel %vm2342, %v4571, -inf
    %v4580 = vsel %vm2343, %v4572, -inf
    %v4581 = vsel %vm2352, %v4573, -inf
    %4582 = vmax.xlane.f32.xlu0 %v4581
    %v4583 = vpop.xlane.xlu0 %4582
    %v4584 = vsel %vm2352, %v4574, -inf
    %4585 = vmax.xlane.f32.xlu0 %v4584
    %v4586 = vpop.xlane.xlu0 %4585
    %v4587 = vsel %vm2352, %v4575, -inf
    %4588 = vmax.xlane.f32.xlu0 %v4587
    %v4589 = vpop.xlane.xlu0 %4588
    %v4590 = vsel %vm2352, %v4576, -inf
    %4591 = vmax.xlane.f32.xlu0 %v4590
    %v4592 = vpop.xlane.xlu0 %4591
    %v4593 = vsel %vm2352, %v4577, -inf
    %4594 = vmax.xlane.f32.xlu0 %v4593
    %v4595 = vpop.xlane.xlu0 %4594
    %v4596 = vsel %vm2352, %v4578, -inf
    %4597 = vmax.xlane.f32.xlu0 %v4596
    %v4598 = vpop.xlane.xlu0 %4597
    %v4599 = vsel %vm2352, %v4579, -inf
    %4600 = vmax.xlane.f32.xlu0 %v4599
    %v4601 = vpop.xlane.xlu0 %4600
    %v4602 = vsel %vm2352, %v4580, -inf
    %4603 = vmax.xlane.f32.xlu0 %v4602
    %v4604 = vpop.xlane.xlu0 %4603
    %v4605 = vsub.f32 %v4573, %v4583
    %v4606 = vsub.f32 %v4574, %v4586
    %v4607 = vsub.f32 %v4575, %v4589
    %v4608 = vsub.f32 %v4576, %v4592
    %v4609 = vsub.f32 %v4577, %v4595
    %v4610 = vsub.f32 %v4578, %v4598
    %v4611 = vsub.f32 %v4579, %v4601
    %v4612 = vsub.f32 %v4580, %v4604
    %v4613 = vmul.f32 %v4605, 1.442695
    %v4614 = vpow.pop %v4613
    %v4615 = vmul.f32 %v4606, 1.442695
    %v4616 = vpow.pop %v4615
    %v4617 = vmul.f32 %v4607, 1.442695
    %v4618 = vpow.pop %v4617
    %v4619 = vmul.f32 %v4608, 1.442695
    %v4620 = vpow.pop %v4619
    %v4621 = vmul.f32 %v4609, 1.442695
    %v4622 = vpow.pop %v4621
    %v4623 = vmul.f32 %v4610, 1.442695
    %v4624 = vpow.pop %v4623
    %v4625 = vmul.f32 %v4611, 1.442695
    %v4626 = vpow.pop %v4625
    %v4627 = vmul.f32 %v4612, 1.442695
    %v4628 = vpow.pop %v4627
    %v4629 = vsel %vm2352, %v4614, 0.0
    %4630 = vadd.xlane.f32.xlu0 %v4629
    %v4631 = vpop.xlane.xlu0 %4630
    %v4632 = vsel %vm2352, %v4616, 0.0
    %4633 = vadd.xlane.f32.xlu0 %v4632
    %v4634 = vpop.xlane.xlu0 %4633
    %v4635 = vsel %vm2352, %v4618, 0.0
    %4636 = vadd.xlane.f32.xlu0 %v4635
    %v4637 = vpop.xlane.xlu0 %4636
    %v4638 = vsel %vm2352, %v4620, 0.0
    %4639 = vadd.xlane.f32.xlu0 %v4638
    %v4640 = vpop.xlane.xlu0 %4639
    %v4641 = vsel %vm2352, %v4622, 0.0
    %4642 = vadd.xlane.f32.xlu0 %v4641
    %v4643 = vpop.xlane.xlu0 %4642
    %v4644 = vsel %vm2352, %v4624, 0.0
    %4645 = vadd.xlane.f32.xlu0 %v4644
    %v4646 = vpop.xlane.xlu0 %4645
    %v4647 = vsel %vm2352, %v4626, 0.0
    %4648 = vadd.xlane.f32.xlu0 %v4647
    %v4649 = vpop.xlane.xlu0 %4648
    %v4650 = vsel %vm2352, %v4628, 0.0
    %4651 = vadd.xlane.f32.xlu0 %v4650
    %v4652 = vpop.xlane.xlu0 %4651
    %v4653 = vrcp.pop %v4631
    %v4654 = vrcp.pop %v4634
    %v4655 = vrcp.pop %v4637
    %v4656 = vrcp.pop %v4640
    %v4657 = vrcp.pop %v4643
    %v4658 = vrcp.pop %v4646
    %v4659 = vrcp.pop %v4649
    %v4660 = vrcp.pop %v4652
    %v4661 = vmul.f32 %v4614, %v4653
    %v4662 = vmul.f32 %v4616, %v4654
    %v4663 = vmul.f32 %v4618, %v4655
    %v4664 = vmul.f32 %v4620, %v4656
    %v4665 = vmul.f32 %v4622, %v4657
    %v4666 = vmul.f32 %v4624, %v4658
    %v4667 = vmul.f32 %v4626, %v4659
    %v4668 = vmul.f32 %v4628, %v4660
    %v4670 = vsel %vm2352, %v4661, 0
    %v4673 = vsel %vm2352, %v4662, 0
    %v4676 = vsel %vm2352, %v4663, 0
    %v4679 = vsel %vm2352, %v4664, 0
    %4681 = vmatprep.subr.mxu0 0.0
    %4682 = vmatpush1.msra.mxu0 %v2103
    %4683 = vmatprep.subr.mxu0 0.0
    %4684 = vmatpush1.msra.mxu0 %v2109
    %4685 = vmatprep.subr.mxu0 0.0
    %4686 = vmatpush1.msra.mxu0 %v2115
    %4687 = vmatprep.subr.mxu0 0.0
    %4688 = vmatpush1.msra.mxu0 %v2121
    %4689 = vmatprep.subr.mxu0 0.0
    %4690 = vmatpush1.msra.mxu0 0.0
    %4691 = vmatprep.subr.mxu0 0.0
    %4692 = vmatpush1.msra.mxu0 0.0
    %4693 = vmatprep.subr.mxu0 0.0
    %4694 = vmatpush1.msra.mxu0 0.0
    %4695 = vmatprep.subr.mxu0 0.0
    %4696 = vmatpush1.msra.mxu0 0.0
    %4697 = vmatprep.subr.mxu0 0.0
    %4698 = vmatpush1.msra.mxu0 0.0
    %4699 = vmatprep.subr.mxu0 0.0
    %4700 = vmatpush1.msra.mxu0 0.0
    %4701 = vmatprep.subr.mxu0 0.0
    %4702 = vmatpush1.msra.mxu0 0.0
    %4703 = vmatprep.subr.mxu0 0.0
    %4704 = vmatpush1.msra.mxu0 0.0
    %4705 = vmatprep.subr.mxu0 0.0
    %4706 = vmatpush1.msra.mxu0 0.0
    %4707 = vmatprep.subr.mxu0 0.0
    %4708 = vmatpush1.msra.mxu0 0.0
    %4709 = vmatprep.subr.mxu0 0.0
    %4710 = vmatpush1.msra.mxu0 0.0
    %4711 = vmatprep.subr.mxu0 0.0
    %4712 = vmatpush1.msra.mxu0 0.0
    %4713 = vmatprep.subr.mxu0 0.0
    %4714 = vmatpush1.msra.mxu0 0.0
    %4715 = vmatprep.subr.mxu0 0.0
    %4716 = vmatpush1.msra.mxu0 0.0
    %4717 = vmatprep.subr.mxu0 0.0
    %4718 = vmatpush1.msra.mxu0 0.0
    %4719 = vmatprep.subr.mxu0 0.0
    %4720 = vmatpush1.msra.mxu0 0.0
    %4721 = vmatprep.subr.mxu0 0.0
    %4722 = vmatpush1.msra.mxu0 0.0
    %4723 = vmatprep.subr.mxu0 0.0
    %4724 = vmatpush1.msra.mxu0 0.0
    %4725 = vmatprep.subr.mxu0 0.0
    %4726 = vmatpush1.msra.mxu0 0.0
    %4727 = vmatprep.subr.mxu0 0.0
    %4728 = vmatpush1.msra.mxu0 0.0
    %4729 = vmatprep.subr.mxu0 0.0
    %4730 = vmatpush1.msra.mxu0 0.0
    %4731 = vmatprep.subr.mxu0 0.0
    %4732 = vmatpush1.msra.mxu0 0.0
    %4733 = vmatprep.subr.mxu0 0.0
    %4734 = vmatpush1.msra.mxu0 0.0
    %4735 = vmatprep.subr.mxu0 0.0
    %4736 = vmatpush1.msra.mxu0 0.0
    %4737 = vmatprep.subr.mxu0 0.0
    %4738 = vmatpush1.msra.mxu0 0.0
    %4739 = vmatprep.subr.mxu0 0.0
    %4740 = vmatpush1.msra.mxu0 0.0
    %4741 = vmatprep.subr.mxu0 0.0
    %4742 = vmatpush1.msra.mxu0 0.0
    %4743 = vmatprep.subr.mxu0 0.0
    %4744 = vmatpush1.msra.mxu0 0.0
    %4745 = vmatprep.mubr.f32.mxu0 0.0
    %4746 = vmatmul.mubr.f32.gmra.mrb[0].mxu0 %v4670
    %v4747 = vpop.f32.mrb[0].mxu0
    %v4748 = vadd.f32 0.0, %v4747
    %v4749 = vpop.f32.mrb[0].mxu0
    %4750 = vmatprep.mubr.f32.mxu0 0.0
    %4751 = vmatmul.mubr.f32.gmra.mrb[0].mxu0 %v4673
    %v4752 = vpop.f32.mrb[0].mxu0
    %v4753 = vadd.f32 0.0, %v4752
    %v4754 = vpop.f32.mrb[0].mxu0
    %4755 = vmatprep.mubr.f32.mxu0 0.0
    %4756 = vmatmul.mubr.f32.gmra.mrb[0].mxu0 %v4676
    %v4757 = vpop.f32.mrb[0].mxu0
    %v4758 = vadd.f32 0.0, %v4757
    %v4759 = vpop.f32.mrb[0].mxu0
    %4760 = vmatprep.mubr.f32.mxu0 0.0
    %4761 = vmatmul.mubr.f32.gmra.mrb[0].mxu0 %v4679
    %v4762 = vpop.f32.mrb[0].mxu0
    %v4763 = vadd.f32 0.0, %v4762
    %v4764 = vpop.f32.mrb[0].mxu0
    %4765 = vdwg.mxu0
    %v4767 = vsel %vm2352, %v4665, 0
    %v4770 = vsel %vm2352, %v4666, 0
    %v4773 = vsel %vm2352, %v4667, 0
    %v4776 = vsel %vm2352, %v4668, 0
    %4778 = vmatprep.subr.mxu0 0.0
    %4779 = vmatpush1.msra.mxu0 %v2127
    %4780 = vmatprep.subr.mxu0 0.0
    %4781 = vmatpush1.msra.mxu0 %v2133
    %4782 = vmatprep.subr.mxu0 0.0
    %4783 = vmatpush1.msra.mxu0 %v2139
    %4784 = vmatprep.subr.mxu0 0.0
    %4785 = vmatpush1.msra.mxu0 %v2145
    %4786 = vmatprep.subr.mxu0 0.0
    %4787 = vmatpush1.msra.mxu0 0.0
    %4788 = vmatprep.subr.mxu0 0.0
    %4789 = vmatpush1.msra.mxu0 0.0
    %4790 = vmatprep.subr.mxu0 0.0
    %4791 = vmatpush1.msra.mxu0 0.0
    %4792 = vmatprep.subr.mxu0 0.0
    %4793 = vmatpush1.msra.mxu0 0.0
    %4794 = vmatprep.subr.mxu0 0.0
    %4795 = vmatpush1.msra.mxu0 0.0
    %4796 = vmatprep.subr.mxu0 0.0
    %4797 = vmatpush1.msra.mxu0 0.0
    %4798 = vmatprep.subr.mxu0 0.0
    %4799 = vmatpush1.msra.mxu0 0.0
    %4800 = vmatprep.subr.mxu0 0.0
    %4801 = vmatpush1.msra.mxu0 0.0
    %4802 = vmatprep.subr.mxu0 0.0
    %4803 = vmatpush1.msra.mxu0 0.0
    %4804 = vmatprep.subr.mxu0 0.0
    %4805 = vmatpush1.msra.mxu0 0.0
    %4806 = vmatprep.subr.mxu0 0.0
    %4807 = vmatpush1.msra.mxu0 0.0
    %4808 = vmatprep.subr.mxu0 0.0
    %4809 = vmatpush1.msra.mxu0 0.0
    %4810 = vmatprep.subr.mxu0 0.0
    %4811 = vmatpush1.msra.mxu0 0.0
    %4812 = vmatprep.subr.mxu0 0.0
    %4813 = vmatpush1.msra.mxu0 0.0
    %4814 = vmatprep.subr.mxu0 0.0
    %4815 = vmatpush1.msra.mxu0 0.0
    %4816 = vmatprep.subr.mxu0 0.0
    %4817 = vmatpush1.msra.mxu0 0.0
    %4818 = vmatprep.subr.mxu0 0.0
    %4819 = vmatpush1.msra.mxu0 0.0
    %4820 = vmatprep.subr.mxu0 0.0
    %4821 = vmatpush1.msra.mxu0 0.0
    %4822 = vmatprep.subr.mxu0 0.0
    %4823 = vmatpush1.msra.mxu0 0.0
    %4824 = vmatprep.subr.mxu0 0.0
    %4825 = vmatpush1.msra.mxu0 0.0
    %4826 = vmatprep.subr.mxu0 0.0
    %4827 = vmatpush1.msra.mxu0 0.0
    %4828 = vmatprep.subr.mxu0 0.0
    %4829 = vmatpush1.msra.mxu0 0.0
    %4830 = vmatprep.subr.mxu0 0.0
    %4831 = vmatpush1.msra.mxu0 0.0
    %4832 = vmatprep.subr.mxu0 0.0
    %4833 = vmatpush1.msra.mxu0 0.0
    %4834 = vmatprep.subr.mxu0 0.0
    %4835 = vmatpush1.msra.mxu0 0.0
    %4836 = vmatprep.subr.mxu0 0.0
    %4837 = vmatpush1.msra.mxu0 0.0
    %4838 = vmatprep.subr.mxu0 0.0
    %4839 = vmatpush1.msra.mxu0 0.0
    %4840 = vmatprep.subr.mxu0 0.0
    %4841 = vmatpush1.msra.mxu0 0.0
    %4842 = vmatprep.mubr.f32.mxu0 0.0
    %4843 = vmatmul.mubr.f32.gmra.mrb[0].mxu0 %v4767
    %v4844 = vpop.f32.mrb[0].mxu0
    %v4845 = vadd.f32 0.0, %v4844
    %v4846 = vpop.f32.mrb[0].mxu0
    %4847 = vmatprep.mubr.f32.mxu0 0.0
    %4848 = vmatmul.mubr.f32.gmra.mrb[0].mxu0 %v4770
    %v4849 = vpop.f32.mrb[0].mxu0
    %v4850 = vadd.f32 0.0, %v4849
    %v4851 = vpop.f32.mrb[0].mxu0
    %4852 = vmatprep.mubr.f32.mxu0 0.0
    %4853 = vmatmul.mubr.f32.gmra.mrb[0].mxu0 %v4773
    %v4854 = vpop.f32.mrb[0].mxu0
    %v4855 = vadd.f32 0.0, %v4854
    %v4856 = vpop.f32.mrb[0].mxu0
    %4857 = vmatprep.mubr.f32.mxu0 0.0
    %4858 = vmatmul.mubr.f32.gmra.mrb[0].mxu0 %v4776
    %v4859 = vpop.f32.mrb[0].mxu0
    %v4860 = vadd.f32 0.0, %v4859
    %v4861 = vpop.f32.mrb[0].mxu0
    %4862 = vdwg.mxu0
    %s4863 = scalar_lea.vmem [#allocation7], 1152
    %v4864 = vld [vmem:[%s4863] sm:$0xff]
    %v4865 = vld [vmem:[%s4863 + $0x8] sm:$0xff]
    %v4866 = vld [vmem:[%s4863 + $0x10] sm:$0xff]
    %v4867 = vld [vmem:[%s4863 + $0x18] sm:$0xff]
    %v4868 = vld [vmem:[%s4863 + $0x20] sm:$0xff]
    %v4869 = vld [vmem:[%s4863 + $0x28] sm:$0xff]
    %v4870 = vld [vmem:[%s4863 + $0x30] sm:$0xff]
    %v4871 = vld [vmem:[%s4863 + $0x38] sm:$0xff]
    %v4872 = vld [vmem:[%s4863 + $0x40] sm:$0xff]
    %v4873 = vld [vmem:[%s4863 + $0x48] sm:$0xff]
    %v4874 = vld [vmem:[%s4863 + $0x50] sm:$0xff]
    %v4875 = vld [vmem:[%s4863 + $0x58] sm:$0xff]
    %v4876 = vld [vmem:[%s4863 + $0x60] sm:$0xff]
    %v4877 = vld [vmem:[%s4863 + $0x68] sm:$0xff]
    %v4878 = vld [vmem:[%s4863 + $0x70] sm:$0xff]
    %v4879 = vld [vmem:[%s4863 + $0x78] sm:$0xff]
    %v4880 = vld [vmem:[%s4863 + $0x80] sm:$0xff]
    %v4881 = vld [vmem:[%s4863 + $0x88] sm:$0xff]
    %v4882 = vld [vmem:[%s4863 + $0x90] sm:$0xff]
    %v4883 = vld [vmem:[%s4863 + $0x98] sm:$0xff]
    %v4884 = vld [vmem:[%s4863 + $0xa0] sm:$0xff]
    %v4885 = vld [vmem:[%s4863 + $0xa8] sm:$0xff]
    %v4886 = vld [vmem:[%s4863 + $0xb0] sm:$0xff]
    %v4887 = vld [vmem:[%s4863 + $0xb8] sm:$0xff]
    %v4888 = vld [vmem:[%s4863 + $0xc0] sm:$0xff]
    %v4889 = vld [vmem:[%s4863 + $0xc8] sm:$0xff]
    %v4890 = vld [vmem:[%s4863 + $0xd0] sm:$0xff]
    %v4891 = vld [vmem:[%s4863 + $0xd8] sm:$0xff]
    %v4892 = vld [vmem:[%s4863 + $0xe0] sm:$0xff]
    %v4893 = vld [vmem:[%s4863 + $0xe8] sm:$0xff]
    %v4894 = vld [vmem:[%s4863 + $0xf0] sm:$0xff]
    %v4895 = vld [vmem:[%s4863 + $0xf8] sm:$0xff]
    %v4896 = vld [vmem:[%s4863 + $0x100] sm:$0xff]
    %v4897 = vld [vmem:[%s4863 + $0x108] sm:$0xff]
    %v4898 = vld [vmem:[%s4863 + $0x110] sm:$0xff]
    %v4899 = vld [vmem:[%s4863 + $0x118] sm:$0xff]
    %v4900 = vld [vmem:[%s4863 + $0x120] sm:$0xff]
    %v4901 = vld [vmem:[%s4863 + $0x128] sm:$0xff]
    %v4902 = vld [vmem:[%s4863 + $0x130] sm:$0xff]
    %v4903 = vld [vmem:[%s4863 + $0x138] sm:$0xff]
    %v4904 = vld [vmem:[%s4863 + $0x140] sm:$0xff]
    %v4905 = vld [vmem:[%s4863 + $0x148] sm:$0xff]
    %v4906 = vld [vmem:[%s4863 + $0x150] sm:$0xff]
    %v4907 = vld [vmem:[%s4863 + $0x158] sm:$0xff]
    %v4908 = vld [vmem:[%s4863 + $0x160] sm:$0xff]
    %v4909 = vld [vmem:[%s4863 + $0x168] sm:$0xff]
    %v4910 = vld [vmem:[%s4863 + $0x170] sm:$0xff]
    %v4911 = vld [vmem:[%s4863 + $0x178] sm:$0xff]
    %4912 = vmatprep.subr.mxu0 %v4865
    %4913 = vmatpush1.msra.mxu0 %v4864
    %4914 = vmatprep.subr.mxu0 %v4868
    %4915 = vmatpush1.msra.mxu0 %v4867
    %4916 = vmatprep.subr.mxu0 %v4871
    %4917 = vmatpush1.msra.mxu0 %v4870
    %4918 = vmatprep.subr.mxu0 %v4874
    %4919 = vmatpush1.msra.mxu0 %v4873
    %4920 = vmatprep.subr.mxu0 %v4877
    %4921 = vmatpush1.msra.mxu0 %v4876
    %4922 = vmatprep.subr.mxu0 %v4880
    %4923 = vmatpush1.msra.mxu0 %v4879
    %4924 = vmatprep.subr.mxu0 %v4883
    %4925 = vmatpush1.msra.mxu0 %v4882
    %4926 = vmatprep.subr.mxu0 %v4886
    %4927 = vmatpush1.msra.mxu0 %v4885
    %4928 = vmatprep.subr.mxu0 %v4889
    %4929 = vmatpush1.msra.mxu0 %v4888
    %4930 = vmatprep.subr.mxu0 %v4892
    %4931 = vmatpush1.msra.mxu0 %v4891
    %4932 = vmatprep.subr.mxu0 %v4895
    %4933 = vmatpush1.msra.mxu0 %v4894
    %4934 = vmatprep.subr.mxu0 %v4898
    %4935 = vmatpush1.msra.mxu0 %v4897
    %4936 = vmatprep.subr.mxu0 %v4901
    %4937 = vmatpush1.msra.mxu0 %v4900
    %4938 = vmatprep.subr.mxu0 %v4904
    %4939 = vmatpush1.msra.mxu0 %v4903
    %4940 = vmatprep.subr.mxu0 %v4907
    %4941 = vmatpush1.msra.mxu0 %v4906
    %4942 = vmatprep.subr.mxu0 %v4910
    %4943 = vmatpush1.msra.mxu0 %v4909
    %4944 = vmatprep.subr.mxu0 0.0
    %4945 = vmatpush1.msra.mxu0 0.0
    %4946 = vmatprep.subr.mxu0 0.0
    %4947 = vmatpush1.msra.mxu0 0.0
    %4948 = vmatprep.subr.mxu0 0.0
    %4949 = vmatpush1.msra.mxu0 0.0
    %4950 = vmatprep.subr.mxu0 0.0
    %4951 = vmatpush1.msra.mxu0 0.0
    %4952 = vmatprep.subr.mxu0 0.0
    %4953 = vmatpush1.msra.mxu0 0.0
    %4954 = vmatprep.subr.mxu0 0.0
    %4955 = vmatpush1.msra.mxu0 0.0
    %4956 = vmatprep.subr.mxu0 0.0
    %4957 = vmatpush1.msra.mxu0 0.0
    %4958 = vmatprep.subr.mxu0 0.0
    %4959 = vmatpush1.msra.mxu0 0.0
    %4960 = vmatprep.subr.mxu0 0.0
    %4961 = vmatpush1.msra.mxu0 0.0
    %4962 = vmatprep.subr.mxu0 0.0
    %4963 = vmatpush1.msra.mxu0 0.0
    %4964 = vmatprep.subr.mxu0 0.0
    %4965 = vmatpush1.msra.mxu0 0.0
    %4966 = vmatprep.subr.mxu0 0.0
    %4967 = vmatpush1.msra.mxu0 0.0
    %4968 = vmatprep.subr.mxu0 0.0
    %4969 = vmatpush1.msra.mxu0 0.0
    %4970 = vmatprep.subr.mxu0 0.0
    %4971 = vmatpush1.msra.mxu0 0.0
    %4972 = vmatprep.subr.mxu0 0.0
    %4973 = vmatpush1.msra.mxu0 0.0
    %4974 = vmatprep.subr.mxu0 0.0
    %4975 = vmatpush1.msra.mxu0 0.0
    %4976 = vmatprep.mubr.f32.mxu0 0.0
    %4977 = vmatmul.mubr.f32.gmra.mrb[0].mxu0 %v4748
    %v4978 = vpop.f32.mrb[0].mxu0
    %v4979 = vadd.f32 0.0, %v4978
    %v4980 = vpop.f32.mrb[0].mxu0
    %v4981 = vadd.f32 0.0, %v4980
    %4982 = vmatprep.mubr.f32.mxu0 0.0
    %4983 = vmatmul.mubr.f32.gmra.mrb[0].mxu0 %v4753
    %v4984 = vpop.f32.mrb[0].mxu0
    %v4985 = vadd.f32 0.0, %v4984
    %v4986 = vpop.f32.mrb[0].mxu0
    %v4987 = vadd.f32 0.0, %v4986
    %4988 = vmatprep.mubr.f32.mxu0 0.0
    %4989 = vmatmul.mubr.f32.gmra.mrb[0].mxu0 %v4758
    %v4990 = vpop.f32.mrb[0].mxu0
    %v4991 = vadd.f32 0.0, %v4990
    %v4992 = vpop.f32.mrb[0].mxu0
    %v4993 = vadd.f32 0.0, %v4992
    %4994 = vmatprep.mubr.f32.mxu0 0.0
    %4995 = vmatmul.mubr.f32.gmra.mrb[0].mxu0 %v4763
    %v4996 = vpop.f32.mrb[0].mxu0
    %v4997 = vadd.f32 0.0, %v4996
    %v4998 = vpop.f32.mrb[0].mxu0
    %v4999 = vadd.f32 0.0, %v4998
    %5000 = vmatprep.mubr.f32.mxu0 0.0
    %5001 = vmatmul.mubr.f32.gmra.mrb[0].mxu0 %v4845
    %v5002 = vpop.f32.mrb[0].mxu0
    %v5003 = vadd.f32 0.0, %v5002
    %v5004 = vpop.f32.mrb[0].mxu0
    %v5005 = vadd.f32 0.0, %v5004
    %5006 = vmatprep.mubr.f32.mxu0 0.0
    %5007 = vmatmul.mubr.f32.gmra.mrb[0].mxu0 %v4850
    %v5008 = vpop.f32.mrb[0].mxu0
    %v5009 = vadd.f32 0.0, %v5008
    %v5010 = vpop.f32.mrb[0].mxu0
    %v5011 = vadd.f32 0.0, %v5010
    %5012 = vmatprep.mubr.f32.mxu0 0.0
    %5013 = vmatmul.mubr.f32.gmra.mrb[0].mxu0 %v4855
    %v5014 = vpop.f32.mrb[0].mxu0
    %v5015 = vadd.f32 0.0, %v5014
    %v5016 = vpop.f32.mrb[0].mxu0
    %v5017 = vadd.f32 0.0, %v5016
    %5018 = vmatprep.mubr.f32.mxu0 0.0
    %5019 = vmatmul.mubr.f32.gmra.mrb[0].mxu0 %v4860
    %v5020 = vpop.f32.mrb[0].mxu0
    %v5021 = vadd.f32 0.0, %v5020
    %v5022 = vpop.f32.mrb[0].mxu0
    %v5023 = vadd.f32 0.0, %v5022
    %5024 = vdwg.mxu0
    %5025 = vmatprep.subr.mxu0 0.0
    %5026 = vmatpush1.msra.mxu0 %v4866
    %5027 = vmatprep.subr.mxu0 0.0
    %5028 = vmatpush1.msra.mxu0 %v4869
    %5029 = vmatprep.subr.mxu0 0.0
    %5030 = vmatpush1.msra.mxu0 %v4872
    %5031 = vmatprep.subr.mxu0 0.0
    %5032 = vmatpush1.msra.mxu0 %v4875
    %5033 = vmatprep.subr.mxu0 0.0
    %5034 = vmatpush1.msra.mxu0 %v4878
    %5035 = vmatprep.subr.mxu0 0.0
    %5036 = vmatpush1.msra.mxu0 %v4881
    %5037 = vmatprep.subr.mxu0 0.0
    %5038 = vmatpush1.msra.mxu0 %v4884
    %5039 = vmatprep.subr.mxu0 0.0
    %5040 = vmatpush1.msra.mxu0 %v4887
    %5041 = vmatprep.subr.mxu0 0.0
    %5042 = vmatpush1.msra.mxu0 %v4890
    %5043 = vmatprep.subr.mxu0 0.0
    %5044 = vmatpush1.msra.mxu0 %v4893
    %5045 = vmatprep.subr.mxu0 0.0
    %5046 = vmatpush1.msra.mxu0 %v4896
    %5047 = vmatprep.subr.mxu0 0.0
    %5048 = vmatpush1.msra.mxu0 %v4899
    %5049 = vmatprep.subr.mxu0 0.0
    %5050 = vmatpush1.msra.mxu0 %v4902
    %5051 = vmatprep.subr.mxu0 0.0
    %5052 = vmatpush1.msra.mxu0 %v4905
    %5053 = vmatprep.subr.mxu0 0.0
    %5054 = vmatpush1.msra.mxu0 %v4908
    %5055 = vmatprep.subr.mxu0 0.0
    %5056 = vmatpush1.msra.mxu0 %v4911
    %5057 = vmatprep.subr.mxu0 0.0
    %5058 = vmatpush1.msra.mxu0 0.0
    %5059 = vmatprep.subr.mxu0 0.0
    %5060 = vmatpush1.msra.mxu0 0.0
    %5061 = vmatprep.subr.mxu0 0.0
    %5062 = vmatpush1.msra.mxu0 0.0
    %5063 = vmatprep.subr.mxu0 0.0
    %5064 = vmatpush1.msra.mxu0 0.0
    %5065 = vmatprep.subr.mxu0 0.0
    %5066 = vmatpush1.msra.mxu0 0.0
    %5067 = vmatprep.subr.mxu0 0.0
    %5068 = vmatpush1.msra.mxu0 0.0
    %5069 = vmatprep.subr.mxu0 0.0
    %5070 = vmatpush1.msra.mxu0 0.0
    %5071 = vmatprep.subr.mxu0 0.0
    %5072 = vmatpush1.msra.mxu0 0.0
    %5073 = vmatprep.subr.mxu0 0.0
    %5074 = vmatpush1.msra.mxu0 0.0
    %5075 = vmatprep.subr.mxu0 0.0
    %5076 = vmatpush1.msra.mxu0 0.0
    %5077 = vmatprep.subr.mxu0 0.0
    %5078 = vmatpush1.msra.mxu0 0.0
    %5079 = vmatprep.subr.mxu0 0.0
    %5080 = vmatpush1.msra.mxu0 0.0
    %5081 = vmatprep.subr.mxu0 0.0
    %5082 = vmatpush1.msra.mxu0 0.0
    %5083 = vmatprep.subr.mxu0 0.0
    %5084 = vmatpush1.msra.mxu0 0.0
    %5085 = vmatprep.subr.mxu0 0.0
    %5086 = vmatpush1.msra.mxu0 0.0
    %5087 = vmatprep.subr.mxu0 0.0
    %5088 = vmatpush1.msra.mxu0 0.0
    %5089 = vmatprep.mubr.f32.mxu0 0.0
    %5090 = vmatmul.mubr.f32.gmra.mrb[0].mxu0 %v4748
    %v5091 = vpop.f32.mrb[0].mxu0
    %v5092 = vadd.f32 0.0, %v5091
    %v5093 = vpop.f32.mrb[0].mxu0
    %5094 = vmatprep.mubr.f32.mxu0 0.0
    %5095 = vmatmul.mubr.f32.gmra.mrb[0].mxu0 %v4753
    %v5096 = vpop.f32.mrb[0].mxu0
    %v5097 = vadd.f32 0.0, %v5096
    %v5098 = vpop.f32.mrb[0].mxu0
    %5099 = vmatprep.mubr.f32.mxu0 0.0
    %5100 = vmatmul.mubr.f32.gmra.mrb[0].mxu0 %v4758
    %v5101 = vpop.f32.mrb[0].mxu0
    %v5102 = vadd.f32 0.0, %v5101
    %v5103 = vpop.f32.mrb[0].mxu0
    %5104 = vmatprep.mubr.f32.mxu0 0.0
    %5105 = vmatmul.mubr.f32.gmra.mrb[0].mxu0 %v4763
    %v5106 = vpop.f32.mrb[0].mxu0
    %v5107 = vadd.f32 0.0, %v5106
    %v5108 = vpop.f32.mrb[0].mxu0
    %5109 = vmatprep.mubr.f32.mxu0 0.0
    %5110 = vmatmul.mubr.f32.gmra.mrb[0].mxu0 %v4845
    %v5111 = vpop.f32.mrb[0].mxu0
    %v5112 = vadd.f32 0.0, %v5111
    %v5113 = vpop.f32.mrb[0].mxu0
    %5114 = vmatprep.mubr.f32.mxu0 0.0
    %5115 = vmatmul.mubr.f32.gmra.mrb[0].mxu0 %v4850
    %v5116 = vpop.f32.mrb[0].mxu0
    %v5117 = vadd.f32 0.0, %v5116
    %v5118 = vpop.f32.mrb[0].mxu0
    %5119 = vmatprep.mubr.f32.mxu0 0.0
    %5120 = vmatmul.mubr.f32.gmra.mrb[0].mxu0 %v4855
    %v5121 = vpop.f32.mrb[0].mxu0
    %v5122 = vadd.f32 0.0, %v5121
    %v5123 = vpop.f32.mrb[0].mxu0
    %5124 = vmatprep.mubr.f32.mxu0 0.0
    %5125 = vmatmul.mubr.f32.gmra.mrb[0].mxu0 %v4860
    %v5126 = vpop.f32.mrb[0].mxu0
    %v5127 = vadd.f32 0.0, %v5126
    %v5128 = vpop.f32.mrb[0].mxu0
    %5129 = vdwg.mxu0
    %v5130 = vadd.f32 %v4371, %v4979
    %v5131 = vadd.f32 %v4372, %v4981
    %v5132 = vadd.f32 %v4373, %v5092
    %v5133 = vadd.f32 %v4374, %v4985
    %v5134 = vadd.f32 %v4375, %v4987
    %v5135 = vadd.f32 %v4376, %v5097
    %v5136 = vadd.f32 %v4377, %v4991
    %v5137 = vadd.f32 %v4378, %v4993
    %v5138 = vadd.f32 %v4379, %v5102
    %v5139 = vadd.f32 %v4380, %v4997
    %v5140 = vadd.f32 %v4381, %v4999
    %v5141 = vadd.f32 %v4382, %v5107
    %v5142 = vadd.f32 %v4383, %v5003
    %v5143 = vadd.f32 %v4384, %v5005
    %v5144 = vadd.f32 %v4385, %v5112
    %v5145 = vadd.f32 %v4386, %v5009
    %v5146 = vadd.f32 %v4387, %v5011
    %v5147 = vadd.f32 %v4388, %v5117
    %v5148 = vadd.f32 %v4389, %v5015
    %v5149 = vadd.f32 %v4390, %v5017
    %v5150 = vadd.f32 %v4391, %v5122
    %v5151 = vadd.f32 %v4392, %v5021
    %v5152 = vadd.f32 %v4393, %v5023
    %v5153 = vadd.f32 %v4394, %v5127
    %v5154 = vld [vmem:[#allocation8] sm:$0x7]
    %v5156 = vlaneseq
    %v5157 = vshrl.u32 %v5156, 7
    %v5158 = vsub.s32 0, %v5157
    %v5159 = vrot.slane %v5154, %v5158
    %v5160 = vlaneseq
    %v5161 = vshrl.u32 %v5160, 7
    %v5162 = vsub.s32 1, %v5161
    %v5163 = vrot.slane %v5154, %v5162
    %v5164 = vlaneseq
    %v5165 = vshrl.u32 %v5164, 7
    %v5166 = vsub.s32 2, %v5165
    %v5167 = vrot.slane %v5154, %v5166
    %v5171 = vadd.f32 %v5130, %v5159
    %v5172 = vadd.f32 %v5131, %v5163
    %v5173 = vadd.f32 %v5132, %v5167
    %v5174 = vadd.f32 %v5133, %v5159
    %v5175 = vadd.f32 %v5134, %v5163
    %v5176 = vadd.f32 %v5135, %v5167
    %v5177 = vadd.f32 %v5136, %v5159
    %v5178 = vadd.f32 %v5137, %v5163
    %v5179 = vadd.f32 %v5138, %v5167
    %v5180 = vadd.f32 %v5139, %v5159
    %v5181 = vadd.f32 %v5140, %v5163
    %v5182 = vadd.f32 %v5141, %v5167
    %v5183 = vadd.f32 %v5142, %v5159
    %v5184 = vadd.f32 %v5143, %v5163
    %v5185 = vadd.f32 %v5144, %v5167
    %v5186 = vadd.f32 %v5145, %v5159
    %v5187 = vadd.f32 %v5146, %v5163
    %v5188 = vadd.f32 %v5147, %v5167
    %v5189 = vadd.f32 %v5148, %v5159
    %v5190 = vadd.f32 %v5149, %v5163
    %v5191 = vadd.f32 %v5150, %v5167
    %v5192 = vadd.f32 %v5151, %v5159
    %v5193 = vadd.f32 %v5152, %v5163
    %v5194 = vadd.f32 %v5153, %v5167
    %v5195 = vadd.f32 %v191, %v5171
    %v5196 = vadd.f32 %v192, %v5172
    %v5197 = vadd.f32 %v193, %v5173
    %v5198 = vadd.f32 %v194, %v5174
    %v5199 = vadd.f32 %v195, %v5175
    %v5200 = vadd.f32 %v196, %v5176
    %v5201 = vadd.f32 %v197, %v5177
    %v5202 = vadd.f32 %v198, %v5178
    %v5203 = vadd.f32 %v199, %v5179
    %v5204 = vadd.f32 %v200, %v5180
    %v5205 = vadd.f32 %v201, %v5181
    %v5206 = vadd.f32 %v202, %v5182
    %v5207 = vadd.f32 %v203, %v5183
    %v5208 = vadd.f32 %v204, %v5184
    %v5209 = vadd.f32 %v205, %v5185
    %v5210 = vadd.f32 %v206, %v5186
    %v5211 = vadd.f32 %v207, %v5187
    %v5212 = vadd.f32 %v208, %v5188
    %v5213 = vadd.f32 %v209, %v5189
    %v5214 = vadd.f32 %v210, %v5190
    %v5215 = vadd.f32 %v211, %v5191
    %v5216 = vadd.f32 %v212, %v5192
    %v5217 = vadd.f32 %v213, %v5193
    %v5218 = vadd.f32 %v214, %v5194
    %v5219 = vld [vmem:[#allocation16] sm:$0x7]
    %v5220 = vld [vmem:[#allocation17] sm:$0x7]
    %v5221 = vadd.f32 %v5195, %v5196
    %v5222 = vadd.f32 %v5221, %v5197
    %5223 = vadd.xlane.f32.xlu0 %v5222
    %v5224 = vpop.xlane.xlu0 %5223
    %v5225 = vadd.f32 %v5198, %v5199
    %v5226 = vadd.f32 %v5225, %v5200
    %5227 = vadd.xlane.f32.xlu0 %v5226
    %v5228 = vpop.xlane.xlu0 %5227
    %v5229 = vadd.f32 %v5201, %v5202
    %v5230 = vadd.f32 %v5229, %v5203
    %5231 = vadd.xlane.f32.xlu0 %v5230
    %v5232 = vpop.xlane.xlu0 %5231
    %v5233 = vadd.f32 %v5204, %v5205
    %v5234 = vadd.f32 %v5233, %v5206
    %5235 = vadd.xlane.f32.xlu0 %v5234
    %v5236 = vpop.xlane.xlu0 %5235
    %v5237 = vadd.f32 %v5207, %v5208
    %v5238 = vadd.f32 %v5237, %v5209
    %5239 = vadd.xlane.f32.xlu0 %v5238
    %v5240 = vpop.xlane.xlu0 %5239
    %v5241 = vadd.f32 %v5210, %v5211
    %v5242 = vadd.f32 %v5241, %v5212
    %5243 = vadd.xlane.f32.xlu0 %v5242
    %v5244 = vpop.xlane.xlu0 %5243
    %v5245 = vadd.f32 %v5213, %v5214
    %v5246 = vadd.f32 %v5245, %v5215
    %5247 = vadd.xlane.f32.xlu0 %v5246
    %v5248 = vpop.xlane.xlu0 %5247
    %v5249 = vadd.f32 %v5216, %v5217
    %v5250 = vadd.f32 %v5249, %v5218
    %5251 = vadd.xlane.f32.xlu0 %v5250
    %v5252 = vpop.xlane.xlu0 %5251
    %v5253 = vrcp.pop 384.0
    %v5254 = vmul.f32 %v5224, %v5253
    %v5255 = vmul.f32 %v5228, %v5253
    %v5256 = vmul.f32 %v5232, %v5253
    %v5257 = vmul.f32 %v5236, %v5253
    %v5258 = vmul.f32 %v5240, %v5253
    %v5259 = vmul.f32 %v5244, %v5253
    %v5260 = vmul.f32 %v5248, %v5253
    %v5261 = vmul.f32 %v5252, %v5253
    %v5262 = vsub.f32 %v5195, %v5254
    %v5263 = vsub.f32 %v5196, %v5254
    %v5264 = vsub.f32 %v5197, %v5254
    %v5265 = vsub.f32 %v5198, %v5255
    %v5266 = vsub.f32 %v5199, %v5255
    %v5267 = vsub.f32 %v5200, %v5255
    %v5268 = vsub.f32 %v5201, %v5256
    %v5269 = vsub.f32 %v5202, %v5256
    %v5270 = vsub.f32 %v5203, %v5256
    %v5271 = vsub.f32 %v5204, %v5257
    %v5272 = vsub.f32 %v5205, %v5257
    %v5273 = vsub.f32 %v5206, %v5257
    %v5274 = vsub.f32 %v5207, %v5258
    %v5275 = vsub.f32 %v5208, %v5258
    %v5276 = vsub.f32 %v5209, %v5258
    %v5277 = vsub.f32 %v5210, %v5259
    %v5278 = vsub.f32 %v5211, %v5259
    %v5279 = vsub.f32 %v5212, %v5259
    %v5280 = vsub.f32 %v5213, %v5260
    %v5281 = vsub.f32 %v5214, %v5260
    %v5282 = vsub.f32 %v5215, %v5260
    %v5283 = vsub.f32 %v5216, %v5261
    %v5284 = vsub.f32 %v5217, %v5261
    %v5285 = vsub.f32 %v5218, %v5261
    %v5286 = vmul.f32 %v5262, %v5262
    %v5287 = vmul.f32 %v5263, %v5263
    %v5288 = vmul.f32 %v5264, %v5264
    %v5289 = vmul.f32 %v5265, %v5265
    %v5290 = vmul.f32 %v5266, %v5266
    %v5291 = vmul.f32 %v5267, %v5267
    %v5292 = vmul.f32 %v5268, %v5268
    %v5293 = vmul.f32 %v5269, %v5269
    %v5294 = vmul.f32 %v5270, %v5270
    %v5295 = vmul.f32 %v5271, %v5271
    %v5296 = vmul.f32 %v5272, %v5272
    %v5297 = vmul.f32 %v5273, %v5273
    %v5298 = vmul.f32 %v5274, %v5274
    %v5299 = vmul.f32 %v5275, %v5275
    %v5300 = vmul.f32 %v5276, %v5276
    %v5301 = vmul.f32 %v5277, %v5277
    %v5302 = vmul.f32 %v5278, %v5278
    %v5303 = vmul.f32 %v5279, %v5279
    %v5304 = vmul.f32 %v5280, %v5280
    %v5305 = vmul.f32 %v5281, %v5281
    %v5306 = vmul.f32 %v5282, %v5282
    %v5307 = vmul.f32 %v5283, %v5283
    %v5308 = vmul.f32 %v5284, %v5284
    %v5309 = vmul.f32 %v5285, %v5285
    %v5310 = vadd.f32 %v5286, %v5287
    %v5311 = vadd.f32 %v5310, %v5288
    %5312 = vadd.xlane.f32.xlu0 %v5311
    %v5313 = vpop.xlane.xlu0 %5312
    %v5314 = vadd.f32 %v5289, %v5290
    %v5315 = vadd.f32 %v5314, %v5291
    %5316 = vadd.xlane.f32.xlu0 %v5315
    %v5317 = vpop.xlane.xlu0 %5316
    %v5318 = vadd.f32 %v5292, %v5293
    %v5319 = vadd.f32 %v5318, %v5294
    %5320 = vadd.xlane.f32.xlu0 %v5319
    %v5321 = vpop.xlane.xlu0 %5320
    %v5322 = vadd.f32 %v5295, %v5296
    %v5323 = vadd.f32 %v5322, %v5297
    %5324 = vadd.xlane.f32.xlu0 %v5323
    %v5325 = vpop.xlane.xlu0 %5324
    %v5326 = vadd.f32 %v5298, %v5299
    %v5327 = vadd.f32 %v5326, %v5300
    %5328 = vadd.xlane.f32.xlu0 %v5327
    %v5329 = vpop.xlane.xlu0 %5328
    %v5330 = vadd.f32 %v5301, %v5302
    %v5331 = vadd.f32 %v5330, %v5303
    %5332 = vadd.xlane.f32.xlu0 %v5331
    %v5333 = vpop.xlane.xlu0 %5332
    %v5334 = vadd.f32 %v5304, %v5305
    %v5335 = vadd.f32 %v5334, %v5306
    %5336 = vadd.xlane.f32.xlu0 %v5335
    %v5337 = vpop.xlane.xlu0 %5336
    %v5338 = vadd.f32 %v5307, %v5308
    %v5339 = vadd.f32 %v5338, %v5309
    %5340 = vadd.xlane.f32.xlu0 %v5339
    %v5341 = vpop.xlane.xlu0 %5340
    %v5342 = vmul.f32 %v5313, %v5253
    %v5343 = vmul.f32 %v5317, %v5253
    %v5344 = vmul.f32 %v5321, %v5253
    %v5345 = vmul.f32 %v5325, %v5253
    %v5346 = vmul.f32 %v5329, %v5253
    %v5347 = vmul.f32 %v5333, %v5253
    %v5348 = vmul.f32 %v5337, %v5253
    %v5349 = vmul.f32 %v5341, %v5253
    %v5350 = vadd.f32 %v5342, 1e-05
    %v5351 = vadd.f32 %v5343, 1e-05
    %v5352 = vadd.f32 %v5344, 1e-05
    %v5353 = vadd.f32 %v5345, 1e-05
    %v5354 = vadd.f32 %v5346, 1e-05
    %v5355 = vadd.f32 %v5347, 1e-05
    %v5356 = vadd.f32 %v5348, 1e-05
    %v5357 = vadd.f32 %v5349, 1e-05
    %v5358 = vrsqrt.pop %v5350
    %v5359 = vrsqrt.pop %v5351
    %v5360 = vrsqrt.pop %v5352
    %v5361 = vrsqrt.pop %v5353
    %v5362 = vrsqrt.pop %v5354
    %v5363 = vrsqrt.pop %v5355
    %v5364 = vrsqrt.pop %v5356
    %v5365 = vrsqrt.pop %v5357
    %v5366 = vmul.f32 %v5262, %v5358
    %v5367 = vmul.f32 %v5263, %v5358
    %v5368 = vmul.f32 %v5264, %v5358
    %v5369 = vmul.f32 %v5265, %v5359
    %v5370 = vmul.f32 %v5266, %v5359
    %v5371 = vmul.f32 %v5267, %v5359
    %v5372 = vmul.f32 %v5268, %v5360
    %v5373 = vmul.f32 %v5269, %v5360
    %v5374 = vmul.f32 %v5270, %v5360
    %v5375 = vmul.f32 %v5271, %v5361
    %v5376 = vmul.f32 %v5272, %v5361
    %v5377 = vmul.f32 %v5273, %v5361
    %v5378 = vmul.f32 %v5274, %v5362
    %v5379 = vmul.f32 %v5275, %v5362
    %v5380 = vmul.f32 %v5276, %v5362
    %v5381 = vmul.f32 %v5277, %v5363
    %v5382 = vmul.f32 %v5278, %v5363
    %v5383 = vmul.f32 %v5279, %v5363
    %v5384 = vmul.f32 %v5280, %v5364
    %v5385 = vmul.f32 %v5281, %v5364
    %v5386 = vmul.f32 %v5282, %v5364
    %v5387 = vmul.f32 %v5283, %v5365
    %v5388 = vmul.f32 %v5284, %v5365
    %v5389 = vmul.f32 %v5285, %v5365
    %v5391 = vlaneseq
    %v5392 = vshrl.u32 %v5391, 7
    %v5393 = vsub.s32 0, %v5392
    %v5394 = vrot.slane %v5219, %v5393
    %v5395 = vlaneseq
    %v5396 = vshrl.u32 %v5395, 7
    %v5397 = vsub.s32 1, %v5396
    %v5398 = vrot.slane %v5219, %v5397
    %v5399 = vlaneseq
    %v5400 = vshrl.u32 %v5399, 7
    %v5401 = vsub.s32 2, %v5400
    %v5402 = vrot.slane %v5219, %v5401
    %v5406 = vmul.f32 %v5366, %v5394
    %v5407 = vmul.f32 %v5367, %v5398
    %v5408 = vmul.f32 %v5368, %v5402
    %v5409 = vmul.f32 %v5369, %v5394
    %v5410 = vmul.f32 %v5370, %v5398
    %v5411 = vmul.f32 %v5371, %v5402
    %v5412 = vmul.f32 %v5372, %v5394
    %v5413 = vmul.f32 %v5373, %v5398
    %v5414 = vmul.f32 %v5374, %v5402
    %v5415 = vmul.f32 %v5375, %v5394
    %v5416 = vmul.f32 %v5376, %v5398
    %v5417 = vmul.f32 %v5377, %v5402
    %v5418 = vmul.f32 %v5378, %v5394
    %v5419 = vmul.f32 %v5379, %v5398
    %v5420 = vmul.f32 %v5380, %v5402
    %v5421 = vmul.f32 %v5381, %v5394
    %v5422 = vmul.f32 %v5382, %v5398
    %v5423 = vmul.f32 %v5383, %v5402
    %v5424 = vmul.f32 %v5384, %v5394
    %v5425 = vmul.f32 %v5385, %v5398
    %v5426 = vmul.f32 %v5386, %v5402
    %v5427 = vmul.f32 %v5387, %v5394
    %v5428 = vmul.f32 %v5388, %v5398
    %v5429 = vmul.f32 %v5389, %v5402
    %v5431 = vlaneseq
    %v5432 = vshrl.u32 %v5431, 7
    %v5433 = vsub.s32 0, %v5432
    %v5434 = vrot.slane %v5220, %v5433
    %v5435 = vlaneseq
    %v5436 = vshrl.u32 %v5435, 7
    %v5437 = vsub.s32 1, %v5436
    %v5438 = vrot.slane %v5220, %v5437
    %v5439 = vlaneseq
    %v5440 = vshrl.u32 %v5439, 7
    %v5441 = vsub.s32 2, %v5440
    %v5442 = vrot.slane %v5220, %v5441
    %v5446 = vadd.f32 %v5406, %v5434
    %v5447 = vadd.f32 %v5407, %v5438
    %v5448 = vadd.f32 %v5408, %v5442
    %v5449 = vadd.f32 %v5409, %v5434
    %v5450 = vadd.f32 %v5410, %v5438
    %v5451 = vadd.f32 %v5411, %v5442
    %v5452 = vadd.f32 %v5412, %v5434
    %v5453 = vadd.f32 %v5413, %v5438
    %v5454 = vadd.f32 %v5414, %v5442
    %v5455 = vadd.f32 %v5415, %v5434
    %v5456 = vadd.f32 %v5416, %v5438
    %v5457 = vadd.f32 %v5417, %v5442
    %v5458 = vadd.f32 %v5418, %v5434
    %v5459 = vadd.f32 %v5419, %v5438
    %v5460 = vadd.f32 %v5420, %v5442
    %v5461 = vadd.f32 %v5421, %v5434
    %v5462 = vadd.f32 %v5422, %v5438
    %v5463 = vadd.f32 %v5423, %v5442
    %v5464 = vadd.f32 %v5424, %v5434
    %v5465 = vadd.f32 %v5425, %v5438
    %v5466 = vadd.f32 %v5426, %v5442
    %v5467 = vadd.f32 %v5427, %v5434
    %v5468 = vadd.f32 %v5428, %v5438
    %v5469 = vadd.f32 %v5429, %v5442
    %v5470 = vld [vmem:[#allocation10] sm:$0xff]
    %v5471 = vld [vmem:[#allocation10 + $0x8] sm:$0xff]
    %v5472 = vld [vmem:[#allocation10 + $0x10] sm:$0xff]
    %v5473 = vld [vmem:[#allocation10 + $0x18] sm:$0xff]
    %v5474 = vld [vmem:[#allocation10 + $0x20] sm:$0xff]
    %v5475 = vld [vmem:[#allocation10 + $0x28] sm:$0xff]
    %v5476 = vld [vmem:[#allocation10 + $0x30] sm:$0xff]
    %v5477 = vld [vmem:[#allocation10 + $0x38] sm:$0xff]
    %v5478 = vld [vmem:[#allocation10 + $0x40] sm:$0xff]
    %v5479 = vld [vmem:[#allocation10 + $0x48] sm:$0xff]
    %v5480 = vld [vmem:[#allocation10 + $0x50] sm:$0xff]
    %v5481 = vld [vmem:[#allocation10 + $0x58] sm:$0xff]
    %v5482 = vld [vmem:[#allocation10 + $0x60] sm:$0xff]
    %v5483 = vld [vmem:[#allocation10 + $0x68] sm:$0xff]
    %v5484 = vld [vmem:[#allocation10 + $0x70] sm:$0xff]
    %v5485 = vld [vmem:[#allocation10 + $0x78] sm:$0xff]
    %v5486 = vld [vmem:[#allocation10 + $0x80] sm:$0xff]
    %v5487 = vld [vmem:[#allocation10 + $0x88] sm:$0xff]
    %v5488 = vld [vmem:[#allocation10 + $0x90] sm:$0xff]
    %v5489 = vld [vmem:[#allocation10 + $0x98] sm:$0xff]
    %v5490 = vld [vmem:[#allocation10 + $0xa0] sm:$0xff]
    %v5491 = vld [vmem:[#allocation10 + $0xa8] sm:$0xff]
    %v5492 = vld [vmem:[#allocation10 + $0xb0] sm:$0xff]
    %v5493 = vld [vmem:[#allocation10 + $0xb8] sm:$0xff]
    %v5494 = vld [vmem:[#allocation10 + $0xc0] sm:$0xff]
    %v5495 = vld [vmem:[#allocation10 + $0xc8] sm:$0xff]
    %v5496 = vld [vmem:[#allocation10 + $0xd0] sm:$0xff]
    %v5497 = vld [vmem:[#allocation10 + $0xd8] sm:$0xff]
    %v5498 = vld [vmem:[#allocation10 + $0xe0] sm:$0xff]
    %v5499 = vld [vmem:[#allocation10 + $0xe8] sm:$0xff]
    %v5500 = vld [vmem:[#allocation10 + $0xf0] sm:$0xff]
    %v5501 = vld [vmem:[#allocation10 + $0xf8] sm:$0xff]
    %v5502 = vld [vmem:[#allocation10 + $0x100] sm:$0xff]
    %v5503 = vld [vmem:[#allocation10 + $0x108] sm:$0xff]
    %v5504 = vld [vmem:[#allocation10 + $0x110] sm:$0xff]
    %v5505 = vld [vmem:[#allocation10 + $0x118] sm:$0xff]
    %v5506 = vld [vmem:[#allocation10 + $0x120] sm:$0xff]
    %v5507 = vld [vmem:[#allocation10 + $0x128] sm:$0xff]
    %v5508 = vld [vmem:[#allocation10 + $0x130] sm:$0xff]
    %v5509 = vld [vmem:[#allocation10 + $0x138] sm:$0xff]
    %v5510 = vld [vmem:[#allocation10 + $0x140] sm:$0xff]
    %v5511 = vld [vmem:[#allocation10 + $0x148] sm:$0xff]
    %v5512 = vld [vmem:[#allocation10 + $0x150] sm:$0xff]
    %v5513 = vld [vmem:[#allocation10 + $0x158] sm:$0xff]
    %v5514 = vld [vmem:[#allocation10 + $0x160] sm:$0xff]
    %v5515 = vld [vmem:[#allocation10 + $0x168] sm:$0xff]
    %v5516 = vld [vmem:[#allocation10 + $0x170] sm:$0xff]
    %v5517 = vld [vmem:[#allocation10 + $0x178] sm:$0xff]
    %v5518 = vld [vmem:[#allocation10 + $0x180] sm:$0xff]
    %v5519 = vld [vmem:[#allocation10 + $0x188] sm:$0xff]
    %v5520 = vld [vmem:[#allocation10 + $0x190] sm:$0xff]
    %v5521 = vld [vmem:[#allocation10 + $0x198] sm:$0xff]
    %v5522 = vld [vmem:[#allocation10 + $0x1a0] sm:$0xff]
    %v5523 = vld [vmem:[#allocation10 + $0x1a8] sm:$0xff]
    %v5524 = vld [vmem:[#allocation10 + $0x1b0] sm:$0xff]
    %v5525 = vld [vmem:[#allocation10 + $0x1b8] sm:$0xff]
    %v5526 = vld [vmem:[#allocation10 + $0x1c0] sm:$0xff]
    %v5527 = vld [vmem:[#allocation10 + $0x1c8] sm:$0xff]
    %v5528 = vld [vmem:[#allocation10 + $0x1d0] sm:$0xff]
    %v5529 = vld [vmem:[#allocation10 + $0x1d8] sm:$0xff]
    %v5530 = vld [vmem:[#allocation10 + $0x1e0] sm:$0xff]
    %v5531 = vld [vmem:[#allocation10 + $0x1e8] sm:$0xff]
    %v5532 = vld [vmem:[#allocation10 + $0x1f0] sm:$0xff]
    %v5533 = vld [vmem:[#allocation10 + $0x1f8] sm:$0xff]
    %v5534 = vld [vmem:[#allocation10 + $0x200] sm:$0xff]
    %v5535 = vld [vmem:[#allocation10 + $0x208] sm:$0xff]
    %v5536 = vld [vmem:[#allocation10 + $0x210] sm:$0xff]
    %v5537 = vld [vmem:[#allocation10 + $0x218] sm:$0xff]
    %v5538 = vld [vmem:[#allocation10 + $0x220] sm:$0xff]
    %v5539 = vld [vmem:[#allocation10 + $0x228] sm:$0xff]
    %v5540 = vld [vmem:[#allocation10 + $0x230] sm:$0xff]
    %v5541 = vld [vmem:[#allocation10 + $0x238] sm:$0xff]
    %v5542 = vld [vmem:[#allocation10 + $0x240] sm:$0xff]
    %v5543 = vld [vmem:[#allocation10 + $0x248] sm:$0xff]
    %v5544 = vld [vmem:[#allocation10 + $0x250] sm:$0xff]
    %v5545 = vld [vmem:[#allocation10 + $0x258] sm:$0xff]
    %v5546 = vld [vmem:[#allocation10 + $0x260] sm:$0xff]
    %v5547 = vld [vmem:[#allocation10 + $0x268] sm:$0xff]
    %v5548 = vld [vmem:[#allocation10 + $0x270] sm:$0xff]
    %v5549 = vld [vmem:[#allocation10 + $0x278] sm:$0xff]
    %v5550 = vld [vmem:[#allocation10 + $0x280] sm:$0xff]
    %v5551 = vld [vmem:[#allocation10 + $0x288] sm:$0xff]
    %v5552 = vld [vmem:[#allocation10 + $0x290] sm:$0xff]
    %v5553 = vld [vmem:[#allocation10 + $0x298] sm:$0xff]
    %v5554 = vld [vmem:[#allocation10 + $0x2a0] sm:$0xff]
    %v5555 = vld [vmem:[#allocation10 + $0x2a8] sm:$0xff]
    %v5556 = vld [vmem:[#allocation10 + $0x2b0] sm:$0xff]
    %v5557 = vld [vmem:[#allocation10 + $0x2b8] sm:$0xff]
    %v5558 = vld [vmem:[#allocation10 + $0x2c0] sm:$0xff]
    %v5559 = vld [vmem:[#allocation10 + $0x2c8] sm:$0xff]
    %v5560 = vld [vmem:[#allocation10 + $0x2d0] sm:$0xff]
    %v5561 = vld [vmem:[#allocation10 + $0x2d8] sm:$0xff]
    %v5562 = vld [vmem:[#allocation10 + $0x2e0] sm:$0xff]
    %v5563 = vld [vmem:[#allocation10 + $0x2e8] sm:$0xff]
    %v5564 = vld [vmem:[#allocation10 + $0x2f0] sm:$0xff]
    %v5565 = vld [vmem:[#allocation10 + $0x2f8] sm:$0xff]
    %v5566 = vld [vmem:[#allocation10 + $0x300] sm:$0xff]
    %v5567 = vld [vmem:[#allocation10 + $0x308] sm:$0xff]
    %v5568 = vld [vmem:[#allocation10 + $0x310] sm:$0xff]
    %v5569 = vld [vmem:[#allocation10 + $0x318] sm:$0xff]
    %v5570 = vld [vmem:[#allocation10 + $0x320] sm:$0xff]
    %v5571 = vld [vmem:[#allocation10 + $0x328] sm:$0xff]
    %v5572 = vld [vmem:[#allocation10 + $0x330] sm:$0xff]
    %v5573 = vld [vmem:[#allocation10 + $0x338] sm:$0xff]
    %v5574 = vld [vmem:[#allocation10 + $0x340] sm:$0xff]
    %v5575 = vld [vmem:[#allocation10 + $0x348] sm:$0xff]
    %v5576 = vld [vmem:[#allocation10 + $0x350] sm:$0xff]
    %v5577 = vld [vmem:[#allocation10 + $0x358] sm:$0xff]
    %v5578 = vld [vmem:[#allocation10 + $0x360] sm:$0xff]
    %v5579 = vld [vmem:[#allocation10 + $0x368] sm:$0xff]
    %v5580 = vld [vmem:[#allocation10 + $0x370] sm:$0xff]
    %v5581 = vld [vmem:[#allocation10 + $0x378] sm:$0xff]
    %v5582 = vld [vmem:[#allocation10 + $0x380] sm:$0xff]
    %v5583 = vld [vmem:[#allocation10 + $0x388] sm:$0xff]
    %v5584 = vld [vmem:[#allocation10 + $0x390] sm:$0xff]
    %v5585 = vld [vmem:[#allocation10 + $0x398] sm:$0xff]
    %v5586 = vld [vmem:[#allocation10 + $0x3a0] sm:$0xff]
    %v5587 = vld [vmem:[#allocation10 + $0x3a8] sm:$0xff]
    %v5588 = vld [vmem:[#allocation10 + $0x3b0] sm:$0xff]
    %v5589 = vld [vmem:[#allocation10 + $0x3b8] sm:$0xff]
    %v5590 = vld [vmem:[#allocation10 + $0x3c0] sm:$0xff]
    %v5591 = vld [vmem:[#allocation10 + $0x3c8] sm:$0xff]
    %v5592 = vld [vmem:[#allocation10 + $0x3d0] sm:$0xff]
    %v5593 = vld [vmem:[#allocation10 + $0x3d8] sm:$0xff]
    %v5594 = vld [vmem:[#allocation10 + $0x3e0] sm:$0xff]
    %v5595 = vld [vmem:[#allocation10 + $0x3e8] sm:$0xff]
    %v5596 = vld [vmem:[#allocation10 + $0x3f0] sm:$0xff]
    %v5597 = vld [vmem:[#allocation10 + $0x3f8] sm:$0xff]
    %v5598 = vld [vmem:[#allocation10 + $0x400] sm:$0xff]
    %v5599 = vld [vmem:[#allocation10 + $0x408] sm:$0xff]
    %v5600 = vld [vmem:[#allocation10 + $0x410] sm:$0xff]
    %v5601 = vld [vmem:[#allocation10 + $0x418] sm:$0xff]
    %v5602 = vld [vmem:[#allocation10 + $0x420] sm:$0xff]
    %v5603 = vld [vmem:[#allocation10 + $0x428] sm:$0xff]
    %v5604 = vld [vmem:[#allocation10 + $0x430] sm:$0xff]
    %v5605 = vld [vmem:[#allocation10 + $0x438] sm:$0xff]
    %v5606 = vld [vmem:[#allocation10 + $0x440] sm:$0xff]
    %v5607 = vld [vmem:[#allocation10 + $0x448] sm:$0xff]
    %v5608 = vld [vmem:[#allocation10 + $0x450] sm:$0xff]
    %v5609 = vld [vmem:[#allocation10 + $0x458] sm:$0xff]
    %v5610 = vld [vmem:[#allocation10 + $0x460] sm:$0xff]
    %v5611 = vld [vmem:[#allocation10 + $0x468] sm:$0xff]
    %v5612 = vld [vmem:[#allocation10 + $0x470] sm:$0xff]
    %v5613 = vld [vmem:[#allocation10 + $0x478] sm:$0xff]
    %v5614 = vld [vmem:[#allocation10 + $0x480] sm:$0xff]
    %v5615 = vld [vmem:[#allocation10 + $0x488] sm:$0xff]
    %v5616 = vld [vmem:[#allocation10 + $0x490] sm:$0xff]
    %v5617 = vld [vmem:[#allocation10 + $0x498] sm:$0xff]
    %v5618 = vld [vmem:[#allocation10 + $0x4a0] sm:$0xff]
    %v5619 = vld [vmem:[#allocation10 + $0x4a8] sm:$0xff]
    %v5620 = vld [vmem:[#allocation10 + $0x4b0] sm:$0xff]
    %v5621 = vld [vmem:[#allocation10 + $0x4b8] sm:$0xff]
    %v5622 = vld [vmem:[#allocation10 + $0x4c0] sm:$0xff]
    %v5623 = vld [vmem:[#allocation10 + $0x4c8] sm:$0xff]
    %v5624 = vld [vmem:[#allocation10 + $0x4d0] sm:$0xff]
    %v5625 = vld [vmem:[#allocation10 + $0x4d8] sm:$0xff]
    %v5626 = vld [vmem:[#allocation10 + $0x4e0] sm:$0xff]
    %v5627 = vld [vmem:[#allocation10 + $0x4e8] sm:$0xff]
    %v5628 = vld [vmem:[#allocation10 + $0x4f0] sm:$0xff]
    %v5629 = vld [vmem:[#allocation10 + $0x4f8] sm:$0xff]
    %v5630 = vld [vmem:[#allocation10 + $0x500] sm:$0xff]
    %v5631 = vld [vmem:[#allocation10 + $0x508] sm:$0xff]
    %v5632 = vld [vmem:[#allocation10 + $0x510] sm:$0xff]
    %v5633 = vld [vmem:[#allocation10 + $0x518] sm:$0xff]
    %v5634 = vld [vmem:[#allocation10 + $0x520] sm:$0xff]
    %v5635 = vld [vmem:[#allocation10 + $0x528] sm:$0xff]
    %v5636 = vld [vmem:[#allocation10 + $0x530] sm:$0xff]
    %v5637 = vld [vmem:[#allocation10 + $0x538] sm:$0xff]
    %v5638 = vld [vmem:[#allocation10 + $0x540] sm:$0xff]
    %v5639 = vld [vmem:[#allocation10 + $0x548] sm:$0xff]
    %v5640 = vld [vmem:[#allocation10 + $0x550] sm:$0xff]
    %v5641 = vld [vmem:[#allocation10 + $0x558] sm:$0xff]
    %v5642 = vld [vmem:[#allocation10 + $0x560] sm:$0xff]
    %v5643 = vld [vmem:[#allocation10 + $0x568] sm:$0xff]
    %v5644 = vld [vmem:[#allocation10 + $0x570] sm:$0xff]
    %v5645 = vld [vmem:[#allocation10 + $0x578] sm:$0xff]
    %v5646 = vld [vmem:[#allocation10 + $0x580] sm:$0xff]
    %v5647 = vld [vmem:[#allocation10 + $0x588] sm:$0xff]
    %v5648 = vld [vmem:[#allocation10 + $0x590] sm:$0xff]
    %v5649 = vld [vmem:[#allocation10 + $0x598] sm:$0xff]
    %v5650 = vld [vmem:[#allocation10 + $0x5a0] sm:$0xff]
    %v5651 = vld [vmem:[#allocation10 + $0x5a8] sm:$0xff]
    %v5652 = vld [vmem:[#allocation10 + $0x5b0] sm:$0xff]
    %v5653 = vld [vmem:[#allocation10 + $0x5b8] sm:$0xff]
    %v5654 = vld [vmem:[#allocation10 + $0x5c0] sm:$0xff]
    %v5655 = vld [vmem:[#allocation10 + $0x5c8] sm:$0xff]
    %v5656 = vld [vmem:[#allocation10 + $0x5d0] sm:$0xff]
    %v5657 = vld [vmem:[#allocation10 + $0x5d8] sm:$0xff]
    %v5658 = vld [vmem:[#allocation10 + $0x5e0] sm:$0xff]
    %v5659 = vld [vmem:[#allocation10 + $0x5e8] sm:$0xff]
    %v5660 = vld [vmem:[#allocation10 + $0x5f0] sm:$0xff]
    %v5661 = vld [vmem:[#allocation10 + $0x5f8] sm:$0xff]
    %v5662 = vld [vmem:[#allocation10 + $0x600] sm:$0xff]
    %v5663 = vld [vmem:[#allocation10 + $0x608] sm:$0xff]
    %v5664 = vld [vmem:[#allocation10 + $0x610] sm:$0xff]
    %v5665 = vld [vmem:[#allocation10 + $0x618] sm:$0xff]
    %v5666 = vld [vmem:[#allocation10 + $0x620] sm:$0xff]
    %v5667 = vld [vmem:[#allocation10 + $0x628] sm:$0xff]
    %v5668 = vld [vmem:[#allocation10 + $0x630] sm:$0xff]
    %v5669 = vld [vmem:[#allocation10 + $0x638] sm:$0xff]
    %v5670 = vld [vmem:[#allocation10 + $0x640] sm:$0xff]
    %v5671 = vld [vmem:[#allocation10 + $0x648] sm:$0xff]
    %v5672 = vld [vmem:[#allocation10 + $0x650] sm:$0xff]
    %v5673 = vld [vmem:[#allocation10 + $0x658] sm:$0xff]
    %v5674 = vld [vmem:[#allocation10 + $0x660] sm:$0xff]
    %v5675 = vld [vmem:[#allocation10 + $0x668] sm:$0xff]
    %v5676 = vld [vmem:[#allocation10 + $0x670] sm:$0xff]
    %v5677 = vld [vmem:[#allocation10 + $0x678] sm:$0xff]
    %v5678 = vld [vmem:[#allocation10 + $0x680] sm:$0xff]
    %v5679 = vld [vmem:[#allocation10 + $0x688] sm:$0xff]
    %v5680 = vld [vmem:[#allocation10 + $0x690] sm:$0xff]
    %v5681 = vld [vmem:[#allocation10 + $0x698] sm:$0xff]
    %v5682 = vld [vmem:[#allocation10 + $0x6a0] sm:$0xff]
    %v5683 = vld [vmem:[#allocation10 + $0x6a8] sm:$0xff]
    %v5684 = vld [vmem:[#allocation10 + $0x6b0] sm:$0xff]
    %v5685 = vld [vmem:[#allocation10 + $0x6b8] sm:$0xff]
    %v5686 = vld [vmem:[#allocation10 + $0x6c0] sm:$0xff]
    %v5687 = vld [vmem:[#allocation10 + $0x6c8] sm:$0xff]
    %v5688 = vld [vmem:[#allocation10 + $0x6d0] sm:$0xff]
    %v5689 = vld [vmem:[#allocation10 + $0x6d8] sm:$0xff]
    %v5690 = vld [vmem:[#allocation10 + $0x6e0] sm:$0xff]
    %v5691 = vld [vmem:[#allocation10 + $0x6e8] sm:$0xff]
    %v5692 = vld [vmem:[#allocation10 + $0x6f0] sm:$0xff]
    %v5693 = vld [vmem:[#allocation10 + $0x6f8] sm:$0xff]
    %v5694 = vld [vmem:[#allocation10 + $0x700] sm:$0xff]
    %v5695 = vld [vmem:[#allocation10 + $0x708] sm:$0xff]
    %v5696 = vld [vmem:[#allocation10 + $0x710] sm:$0xff]
    %v5697 = vld [vmem:[#allocation10 + $0x718] sm:$0xff]
    %v5698 = vld [vmem:[#allocation10 + $0x720] sm:$0xff]
    %v5699 = vld [vmem:[#allocation10 + $0x728] sm:$0xff]
    %v5700 = vld [vmem:[#allocation10 + $0x730] sm:$0xff]
    %v5701 = vld [vmem:[#allocation10 + $0x738] sm:$0xff]
    %v5702 = vld [vmem:[#allocation10 + $0x740] sm:$0xff]
    %v5703 = vld [vmem:[#allocation10 + $0x748] sm:$0xff]
    %v5704 = vld [vmem:[#allocation10 + $0x750] sm:$0xff]
    %v5705 = vld [vmem:[#allocation10 + $0x758] sm:$0xff]
    %v5706 = vld [vmem:[#allocation10 + $0x760] sm:$0xff]
    %v5707 = vld [vmem:[#allocation10 + $0x768] sm:$0xff]
    %v5708 = vld [vmem:[#allocation10 + $0x770] sm:$0xff]
    %v5709 = vld [vmem:[#allocation10 + $0x778] sm:$0xff]
    %v5710 = vld [vmem:[#allocation10 + $0x780] sm:$0xff]
    %v5711 = vld [vmem:[#allocation10 + $0x788] sm:$0xff]
    %v5712 = vld [vmem:[#allocation10 + $0x790] sm:$0xff]
    %v5713 = vld [vmem:[#allocation10 + $0x798] sm:$0xff]
    %v5714 = vld [vmem:[#allocation10 + $0x7a0] sm:$0xff]
    %v5715 = vld [vmem:[#allocation10 + $0x7a8] sm:$0xff]
    %v5716 = vld [vmem:[#allocation10 + $0x7b0] sm:$0xff]
    %v5717 = vld [vmem:[#allocation10 + $0x7b8] sm:$0xff]
    %v5718 = vld [vmem:[#allocation10 + $0x7c0] sm:$0xff]
    %v5719 = vld [vmem:[#allocation10 + $0x7c8] sm:$0xff]
    %v5720 = vld [vmem:[#allocation10 + $0x7d0] sm:$0xff]
    %v5721 = vld [vmem:[#allocation10 + $0x7d8] sm:$0xff]
    %v5722 = vld [vmem:[#allocation10 + $0x7e0] sm:$0xff]
    %v5723 = vld [vmem:[#allocation10 + $0x7e8] sm:$0xff]
    %v5724 = vld [vmem:[#allocation10 + $0x7f0] sm:$0xff]
    %v5725 = vld [vmem:[#allocation10 + $0x7f8] sm:$0xff]
    %v5726 = vld [vmem:[#allocation10 + $0x800] sm:$0xff]
    %v5727 = vld [vmem:[#allocation10 + $0x808] sm:$0xff]
    %v5728 = vld [vmem:[#allocation10 + $0x810] sm:$0xff]
    %v5729 = vld [vmem:[#allocation10 + $0x818] sm:$0xff]
    %v5730 = vld [vmem:[#allocation10 + $0x820] sm:$0xff]
    %v5731 = vld [vmem:[#allocation10 + $0x828] sm:$0xff]
    %v5732 = vld [vmem:[#allocation10 + $0x830] sm:$0xff]
    %v5733 = vld [vmem:[#allocation10 + $0x838] sm:$0xff]
    %v5734 = vld [vmem:[#allocation10 + $0x840] sm:$0xff]
    %v5735 = vld [vmem:[#allocation10 + $0x848] sm:$0xff]
    %v5736 = vld [vmem:[#allocation10 + $0x850] sm:$0xff]
    %v5737 = vld [vmem:[#allocation10 + $0x858] sm:$0xff]
    %v5738 = vld [vmem:[#allocation10 + $0x860] sm:$0xff]
    %v5739 = vld [vmem:[#allocation10 + $0x868] sm:$0xff]
    %v5740 = vld [vmem:[#allocation10 + $0x870] sm:$0xff]
    %v5741 = vld [vmem:[#allocation10 + $0x878] sm:$0xff]
    %v5742 = vld [vmem:[#allocation10 + $0x880] sm:$0xff]
    %v5743 = vld [vmem:[#allocation10 + $0x888] sm:$0xff]
    %v5744 = vld [vmem:[#allocation10 + $0x890] sm:$0xff]
    %v5745 = vld [vmem:[#allocation10 + $0x898] sm:$0xff]
    %v5746 = vld [vmem:[#allocation10 + $0x8a0] sm:$0xff]
    %v5747 = vld [vmem:[#allocation10 + $0x8a8] sm:$0xff]
    %v5748 = vld [vmem:[#allocation10 + $0x8b0] sm:$0xff]
    %v5749 = vld [vmem:[#allocation10 + $0x8b8] sm:$0xff]
    %v5750 = vld [vmem:[#allocation10 + $0x8c0] sm:$0xff]
    %v5751 = vld [vmem:[#allocation10 + $0x8c8] sm:$0xff]
    %v5752 = vld [vmem:[#allocation10 + $0x8d0] sm:$0xff]
    %v5753 = vld [vmem:[#allocation10 + $0x8d8] sm:$0xff]
    %v5754 = vld [vmem:[#allocation10 + $0x8e0] sm:$0xff]
    %v5755 = vld [vmem:[#allocation10 + $0x8e8] sm:$0xff]
    %v5756 = vld [vmem:[#allocation10 + $0x8f0] sm:$0xff]
    %v5757 = vld [vmem:[#allocation10 + $0x8f8] sm:$0xff]
    %v5758 = vld [vmem:[#allocation10 + $0x900] sm:$0xff]
    %v5759 = vld [vmem:[#allocation10 + $0x908] sm:$0xff]
    %v5760 = vld [vmem:[#allocation10 + $0x910] sm:$0xff]
    %v5761 = vld [vmem:[#allocation10 + $0x918] sm:$0xff]
    %v5762 = vld [vmem:[#allocation10 + $0x920] sm:$0xff]
    %v5763 = vld [vmem:[#allocation10 + $0x928] sm:$0xff]
    %v5764 = vld [vmem:[#allocation10 + $0x930] sm:$0xff]
    %v5765 = vld [vmem:[#allocation10 + $0x938] sm:$0xff]
    %v5766 = vld [vmem:[#allocation10 + $0x940] sm:$0xff]
    %v5767 = vld [vmem:[#allocation10 + $0x948] sm:$0xff]
    %v5768 = vld [vmem:[#allocation10 + $0x950] sm:$0xff]
    %v5769 = vld [vmem:[#allocation10 + $0x958] sm:$0xff]
    %v5770 = vld [vmem:[#allocation10 + $0x960] sm:$0xff]
    %v5771 = vld [vmem:[#allocation10 + $0x968] sm:$0xff]
    %v5772 = vld [vmem:[#allocation10 + $0x970] sm:$0xff]
    %v5773 = vld [vmem:[#allocation10 + $0x978] sm:$0xff]
    %v5774 = vld [vmem:[#allocation10 + $0x980] sm:$0xff]
    %v5775 = vld [vmem:[#allocation10 + $0x988] sm:$0xff]
    %v5776 = vld [vmem:[#allocation10 + $0x990] sm:$0xff]
    %v5777 = vld [vmem:[#allocation10 + $0x998] sm:$0xff]
    %v5778 = vld [vmem:[#allocation10 + $0x9a0] sm:$0xff]
    %v5779 = vld [vmem:[#allocation10 + $0x9a8] sm:$0xff]
    %v5780 = vld [vmem:[#allocation10 + $0x9b0] sm:$0xff]
    %v5781 = vld [vmem:[#allocation10 + $0x9b8] sm:$0xff]
    %v5782 = vld [vmem:[#allocation10 + $0x9c0] sm:$0xff]
    %v5783 = vld [vmem:[#allocation10 + $0x9c8] sm:$0xff]
    %v5784 = vld [vmem:[#allocation10 + $0x9d0] sm:$0xff]
    %v5785 = vld [vmem:[#allocation10 + $0x9d8] sm:$0xff]
    %v5786 = vld [vmem:[#allocation10 + $0x9e0] sm:$0xff]
    %v5787 = vld [vmem:[#allocation10 + $0x9e8] sm:$0xff]
    %v5788 = vld [vmem:[#allocation10 + $0x9f0] sm:$0xff]
    %v5789 = vld [vmem:[#allocation10 + $0x9f8] sm:$0xff]
    %v5790 = vld [vmem:[#allocation10 + $0xa00] sm:$0xff]
    %v5791 = vld [vmem:[#allocation10 + $0xa08] sm:$0xff]
    %v5792 = vld [vmem:[#allocation10 + $0xa10] sm:$0xff]
    %v5793 = vld [vmem:[#allocation10 + $0xa18] sm:$0xff]
    %v5794 = vld [vmem:[#allocation10 + $0xa20] sm:$0xff]
    %v5795 = vld [vmem:[#allocation10 + $0xa28] sm:$0xff]
    %v5796 = vld [vmem:[#allocation10 + $0xa30] sm:$0xff]
    %v5797 = vld [vmem:[#allocation10 + $0xa38] sm:$0xff]
    %v5798 = vld [vmem:[#allocation10 + $0xa40] sm:$0xff]
    %v5799 = vld [vmem:[#allocation10 + $0xa48] sm:$0xff]
    %v5800 = vld [vmem:[#allocation10 + $0xa50] sm:$0xff]
    %v5801 = vld [vmem:[#allocation10 + $0xa58] sm:$0xff]
    %v5802 = vld [vmem:[#allocation10 + $0xa60] sm:$0xff]
    %v5803 = vld [vmem:[#allocation10 + $0xa68] sm:$0xff]
    %v5804 = vld [vmem:[#allocation10 + $0xa70] sm:$0xff]
    %v5805 = vld [vmem:[#allocation10 + $0xa78] sm:$0xff]
    %v5806 = vld [vmem:[#allocation10 + $0xa80] sm:$0xff]
    %v5807 = vld [vmem:[#allocation10 + $0xa88] sm:$0xff]
    %v5808 = vld [vmem:[#allocation10 + $0xa90] sm:$0xff]
    %v5809 = vld [vmem:[#allocation10 + $0xa98] sm:$0xff]
    %v5810 = vld [vmem:[#allocation10 + $0xaa0] sm:$0xff]
    %v5811 = vld [vmem:[#allocation10 + $0xaa8] sm:$0xff]
    %v5812 = vld [vmem:[#allocation10 + $0xab0] sm:$0xff]
    %v5813 = vld [vmem:[#allocation10 + $0xab8] sm:$0xff]
    %v5814 = vld [vmem:[#allocation10 + $0xac0] sm:$0xff]
    %v5815 = vld [vmem:[#allocation10 + $0xac8] sm:$0xff]
    %v5816 = vld [vmem:[#allocation10 + $0xad0] sm:$0xff]
    %v5817 = vld [vmem:[#allocation10 + $0xad8] sm:$0xff]
    %v5818 = vld [vmem:[#allocation10 + $0xae0] sm:$0xff]
    %v5819 = vld [vmem:[#allocation10 + $0xae8] sm:$0xff]
    %v5820 = vld [vmem:[#allocation10 + $0xaf0] sm:$0xff]
    %v5821 = vld [vmem:[#allocation10 + $0xaf8] sm:$0xff]
    %v5822 = vld [vmem:[#allocation10 + $0xb00] sm:$0xff]
    %v5823 = vld [vmem:[#allocation10 + $0xb08] sm:$0xff]
    %v5824 = vld [vmem:[#allocation10 + $0xb10] sm:$0xff]
    %v5825 = vld [vmem:[#allocation10 + $0xb18] sm:$0xff]
    %v5826 = vld [vmem:[#allocation10 + $0xb20] sm:$0xff]
    %v5827 = vld [vmem:[#allocation10 + $0xb28] sm:$0xff]
    %v5828 = vld [vmem:[#allocation10 + $0xb30] sm:$0xff]
    %v5829 = vld [vmem:[#allocation10 + $0xb38] sm:$0xff]
    %v5830 = vld [vmem:[#allocation10 + $0xb40] sm:$0xff]
    %v5831 = vld [vmem:[#allocation10 + $0xb48] sm:$0xff]
    %v5832 = vld [vmem:[#allocation10 + $0xb50] sm:$0xff]
    %v5833 = vld [vmem:[#allocation10 + $0xb58] sm:$0xff]
    %v5834 = vld [vmem:[#allocation10 + $0xb60] sm:$0xff]
    %v5835 = vld [vmem:[#allocation10 + $0xb68] sm:$0xff]
    %v5836 = vld [vmem:[#allocation10 + $0xb70] sm:$0xff]
    %v5837 = vld [vmem:[#allocation10 + $0xb78] sm:$0xff]
    %v5838 = vld [vmem:[#allocation10 + $0xb80] sm:$0xff]
    %v5839 = vld [vmem:[#allocation10 + $0xb88] sm:$0xff]
    %v5840 = vld [vmem:[#allocation10 + $0xb90] sm:$0xff]
    %v5841 = vld [vmem:[#allocation10 + $0xb98] sm:$0xff]
    %v5842 = vld [vmem:[#allocation10 + $0xba0] sm:$0xff]
    %v5843 = vld [vmem:[#allocation10 + $0xba8] sm:$0xff]
    %v5844 = vld [vmem:[#allocation10 + $0xbb0] sm:$0xff]
    %v5845 = vld [vmem:[#allocation10 + $0xbb8] sm:$0xff]
    %v5846 = vld [vmem:[#allocation10 + $0xbc0] sm:$0xff]
    %v5847 = vld [vmem:[#allocation10 + $0xbc8] sm:$0xff]
    %v5848 = vld [vmem:[#allocation10 + $0xbd0] sm:$0xff]
    %v5849 = vld [vmem:[#allocation10 + $0xbd8] sm:$0xff]
    %v5850 = vld [vmem:[#allocation10 + $0xbe0] sm:$0xff]
    %v5851 = vld [vmem:[#allocation10 + $0xbe8] sm:$0xff]
    %v5852 = vld [vmem:[#allocation10 + $0xbf0] sm:$0xff]
    %v5853 = vld [vmem:[#allocation10 + $0xbf8] sm:$0xff]
    %v5854 = vld [vmem:[#allocation10 + $0xc00] sm:$0xff]
    %v5855 = vld [vmem:[#allocation10 + $0xc08] sm:$0xff]
    %v5856 = vld [vmem:[#allocation10 + $0xc10] sm:$0xff]
    %v5857 = vld [vmem:[#allocation10 + $0xc18] sm:$0xff]
    %v5858 = vld [vmem:[#allocation10 + $0xc20] sm:$0xff]
    %v5859 = vld [vmem:[#allocation10 + $0xc28] sm:$0xff]
    %v5860 = vld [vmem:[#allocation10 + $0xc30] sm:$0xff]
    %v5861 = vld [vmem:[#allocation10 + $0xc38] sm:$0xff]
    %v5862 = vld [vmem:[#allocation10 + $0xc40] sm:$0xff]
    %v5863 = vld [vmem:[#allocation10 + $0xc48] sm:$0xff]
    %v5864 = vld [vmem:[#allocation10 + $0xc50] sm:$0xff]
    %v5865 = vld [vmem:[#allocation10 + $0xc58] sm:$0xff]
    %v5866 = vld [vmem:[#allocation10 + $0xc60] sm:$0xff]
    %v5867 = vld [vmem:[#allocation10 + $0xc68] sm:$0xff]
    %v5868 = vld [vmem:[#allocation10 + $0xc70] sm:$0xff]
    %v5869 = vld [vmem:[#allocation10 + $0xc78] sm:$0xff]
    %v5870 = vld [vmem:[#allocation10 + $0xc80] sm:$0xff]
    %v5871 = vld [vmem:[#allocation10 + $0xc88] sm:$0xff]
    %v5872 = vld [vmem:[#allocation10 + $0xc90] sm:$0xff]
    %v5873 = vld [vmem:[#allocation10 + $0xc98] sm:$0xff]
    %v5874 = vld [vmem:[#allocation10 + $0xca0] sm:$0xff]
    %v5875 = vld [vmem:[#allocation10 + $0xca8] sm:$0xff]
    %v5876 = vld [vmem:[#allocation10 + $0xcb0] sm:$0xff]
    %v5877 = vld [vmem:[#allocation10 + $0xcb8] sm:$0xff]
    %v5878 = vld [vmem:[#allocation10 + $0xcc0] sm:$0xff]
    %v5879 = vld [vmem:[#allocation10 + $0xcc8] sm:$0xff]
    %v5880 = vld [vmem:[#allocation10 + $0xcd0] sm:$0xff]
    %v5881 = vld [vmem:[#allocation10 + $0xcd8] sm:$0xff]
    %v5882 = vld [vmem:[#allocation10 + $0xce0] sm:$0xff]
    %v5883 = vld [vmem:[#allocation10 + $0xce8] sm:$0xff]
    %v5884 = vld [vmem:[#allocation10 + $0xcf0] sm:$0xff]
    %v5885 = vld [vmem:[#allocation10 + $0xcf8] sm:$0xff]
    %v5886 = vld [vmem:[#allocation10 + $0xd00] sm:$0xff]
    %v5887 = vld [vmem:[#allocation10 + $0xd08] sm:$0xff]
    %v5888 = vld [vmem:[#allocation10 + $0xd10] sm:$0xff]
    %v5889 = vld [vmem:[#allocation10 + $0xd18] sm:$0xff]
    %v5890 = vld [vmem:[#allocation10 + $0xd20] sm:$0xff]
    %v5891 = vld [vmem:[#allocation10 + $0xd28] sm:$0xff]
    %v5892 = vld [vmem:[#allocation10 + $0xd30] sm:$0xff]
    %v5893 = vld [vmem:[#allocation10 + $0xd38] sm:$0xff]
    %v5894 = vld [vmem:[#allocation10 + $0xd40] sm:$0xff]
    %v5895 = vld [vmem:[#allocation10 + $0xd48] sm:$0xff]
    %v5896 = vld [vmem:[#allocation10 + $0xd50] sm:$0xff]
    %v5897 = vld [vmem:[#allocation10 + $0xd58] sm:$0xff]
    %v5898 = vld [vmem:[#allocation10 + $0xd60] sm:$0xff]
    %v5899 = vld [vmem:[#allocation10 + $0xd68] sm:$0xff]
    %v5900 = vld [vmem:[#allocation10 + $0xd70] sm:$0xff]
    %v5901 = vld [vmem:[#allocation10 + $0xd78] sm:$0xff]
    %v5902 = vld [vmem:[#allocation10 + $0xd80] sm:$0xff]
    %v5903 = vld [vmem:[#allocation10 + $0xd88] sm:$0xff]
    %v5904 = vld [vmem:[#allocation10 + $0xd90] sm:$0xff]
    %v5905 = vld [vmem:[#allocation10 + $0xd98] sm:$0xff]
    %v5906 = vld [vmem:[#allocation10 + $0xda0] sm:$0xff]
    %v5907 = vld [vmem:[#allocation10 + $0xda8] sm:$0xff]
    %v5908 = vld [vmem:[#allocation10 + $0xdb0] sm:$0xff]
    %v5909 = vld [vmem:[#allocation10 + $0xdb8] sm:$0xff]
    %v5910 = vld [vmem:[#allocation10 + $0xdc0] sm:$0xff]
    %v5911 = vld [vmem:[#allocation10 + $0xdc8] sm:$0xff]
    %v5912 = vld [vmem:[#allocation10 + $0xdd0] sm:$0xff]
    %v5913 = vld [vmem:[#allocation10 + $0xdd8] sm:$0xff]
    %v5914 = vld [vmem:[#allocation10 + $0xde0] sm:$0xff]
    %v5915 = vld [vmem:[#allocation10 + $0xde8] sm:$0xff]
    %v5916 = vld [vmem:[#allocation10 + $0xdf0] sm:$0xff]
    %v5917 = vld [vmem:[#allocation10 + $0xdf8] sm:$0xff]
    %v5918 = vld [vmem:[#allocation10 + $0xe00] sm:$0xff]
    %v5919 = vld [vmem:[#allocation10 + $0xe08] sm:$0xff]
    %v5920 = vld [vmem:[#allocation10 + $0xe10] sm:$0xff]
    %v5921 = vld [vmem:[#allocation10 + $0xe18] sm:$0xff]
    %v5922 = vld [vmem:[#allocation10 + $0xe20] sm:$0xff]
    %v5923 = vld [vmem:[#allocation10 + $0xe28] sm:$0xff]
    %v5924 = vld [vmem:[#allocation10 + $0xe30] sm:$0xff]
    %v5925 = vld [vmem:[#allocation10 + $0xe38] sm:$0xff]
    %v5926 = vld [vmem:[#allocation10 + $0xe40] sm:$0xff]
    %v5927 = vld [vmem:[#allocation10 + $0xe48] sm:$0xff]
    %v5928 = vld [vmem:[#allocation10 + $0xe50] sm:$0xff]
    %v5929 = vld [vmem:[#allocation10 + $0xe58] sm:$0xff]
    %v5930 = vld [vmem:[#allocation10 + $0xe60] sm:$0xff]
    %v5931 = vld [vmem:[#allocation10 + $0xe68] sm:$0xff]
    %v5932 = vld [vmem:[#allocation10 + $0xe70] sm:$0xff]
    %v5933 = vld [vmem:[#allocation10 + $0xe78] sm:$0xff]
    %v5934 = vld [vmem:[#allocation10 + $0xe80] sm:$0xff]
    %v5935 = vld [vmem:[#allocation10 + $0xe88] sm:$0xff]
    %v5936 = vld [vmem:[#allocation10 + $0xe90] sm:$0xff]
    %v5937 = vld [vmem:[#allocation10 + $0xe98] sm:$0xff]
    %v5938 = vld [vmem:[#allocation10 + $0xea0] sm:$0xff]
    %v5939 = vld [vmem:[#allocation10 + $0xea8] sm:$0xff]
    %v5940 = vld [vmem:[#allocation10 + $0xeb0] sm:$0xff]
    %v5941 = vld [vmem:[#allocation10 + $0xeb8] sm:$0xff]
    %v5942 = vld [vmem:[#allocation10 + $0xec0] sm:$0xff]
    %v5943 = vld [vmem:[#allocation10 + $0xec8] sm:$0xff]
    %v5944 = vld [vmem:[#allocation10 + $0xed0] sm:$0xff]
    %v5945 = vld [vmem:[#allocation10 + $0xed8] sm:$0xff]
    %v5946 = vld [vmem:[#allocation10 + $0xee0] sm:$0xff]
    %v5947 = vld [vmem:[#allocation10 + $0xee8] sm:$0xff]
    %v5948 = vld [vmem:[#allocation10 + $0xef0] sm:$0xff]
    %v5949 = vld [vmem:[#allocation10 + $0xef8] sm:$0xff]
    %v5950 = vld [vmem:[#allocation10 + $0xf00] sm:$0xff]
    %v5951 = vld [vmem:[#allocation10 + $0xf08] sm:$0xff]
    %v5952 = vld [vmem:[#allocation10 + $0xf10] sm:$0xff]
    %v5953 = vld [vmem:[#allocation10 + $0xf18] sm:$0xff]
    %v5954 = vld [vmem:[#allocation10 + $0xf20] sm:$0xff]
    %v5955 = vld [vmem:[#allocation10 + $0xf28] sm:$0xff]
    %v5956 = vld [vmem:[#allocation10 + $0xf30] sm:$0xff]
    %v5957 = vld [vmem:[#allocation10 + $0xf38] sm:$0xff]
    %v5958 = vld [vmem:[#allocation10 + $0xf40] sm:$0xff]
    %v5959 = vld [vmem:[#allocation10 + $0xf48] sm:$0xff]
    %v5960 = vld [vmem:[#allocation10 + $0xf50] sm:$0xff]
    %v5961 = vld [vmem:[#allocation10 + $0xf58] sm:$0xff]
    %v5962 = vld [vmem:[#allocation10 + $0xf60] sm:$0xff]
    %v5963 = vld [vmem:[#allocation10 + $0xf68] sm:$0xff]
    %v5964 = vld [vmem:[#allocation10 + $0xf70] sm:$0xff]
    %v5965 = vld [vmem:[#allocation10 + $0xf78] sm:$0xff]
    %v5966 = vld [vmem:[#allocation10 + $0xf80] sm:$0xff]
    %v5967 = vld [vmem:[#allocation10 + $0xf88] sm:$0xff]
    %v5968 = vld [vmem:[#allocation10 + $0xf90] sm:$0xff]
    %v5969 = vld [vmem:[#allocation10 + $0xf98] sm:$0xff]
    %v5970 = vld [vmem:[#allocation10 + $0xfa0] sm:$0xff]
    %v5971 = vld [vmem:[#allocation10 + $0xfa8] sm:$0xff]
    %v5972 = vld [vmem:[#allocation10 + $0xfb0] sm:$0xff]
    %v5973 = vld [vmem:[#allocation10 + $0xfb8] sm:$0xff]
    %v5974 = vld [vmem:[#allocation10 + $0xfc0] sm:$0xff]
    %v5975 = vld [vmem:[#allocation10 + $0xfc8] sm:$0xff]
    %v5976 = vld [vmem:[#allocation10 + $0xfd0] sm:$0xff]
    %v5977 = vld [vmem:[#allocation10 + $0xfd8] sm:$0xff]
    %v5978 = vld [vmem:[#allocation10 + $0xfe0] sm:$0xff]
    %v5979 = vld [vmem:[#allocation10 + $0xfe8] sm:$0xff]
    %v5980 = vld [vmem:[#allocation10 + $0xff0] sm:$0xff]
    %v5981 = vld [vmem:[#allocation10 + $0xff8] sm:$0xff]
    %v5982 = vld [vmem:[#allocation10 + $0x1000] sm:$0xff]
    %v5983 = vld [vmem:[#allocation10 + $0x1008] sm:$0xff]
    %v5984 = vld [vmem:[#allocation10 + $0x1010] sm:$0xff]
    %v5985 = vld [vmem:[#allocation10 + $0x1018] sm:$0xff]
    %v5986 = vld [vmem:[#allocation10 + $0x1020] sm:$0xff]
    %v5987 = vld [vmem:[#allocation10 + $0x1028] sm:$0xff]
    %v5988 = vld [vmem:[#allocation10 + $0x1030] sm:$0xff]
    %v5989 = vld [vmem:[#allocation10 + $0x1038] sm:$0xff]
    %v5990 = vld [vmem:[#allocation10 + $0x1040] sm:$0xff]
    %v5991 = vld [vmem:[#allocation10 + $0x1048] sm:$0xff]
    %v5992 = vld [vmem:[#allocation10 + $0x1050] sm:$0xff]
    %v5993 = vld [vmem:[#allocation10 + $0x1058] sm:$0xff]
    %v5994 = vld [vmem:[#allocation10 + $0x1060] sm:$0xff]
    %v5995 = vld [vmem:[#allocation10 + $0x1068] sm:$0xff]
    %v5996 = vld [vmem:[#allocation10 + $0x1070] sm:$0xff]
    %v5997 = vld [vmem:[#allocation10 + $0x1078] sm:$0xff]
    %v5998 = vld [vmem:[#allocation10 + $0x1080] sm:$0xff]
    %v5999 = vld [vmem:[#allocation10 + $0x1088] sm:$0xff]
    %v6000 = vld [vmem:[#allocation10 + $0x1090] sm:$0xff]
    %v6001 = vld [vmem:[#allocation10 + $0x1098] sm:$0xff]
    %v6002 = vld [vmem:[#allocation10 + $0x10a0] sm:$0xff]
    %v6003 = vld [vmem:[#allocation10 + $0x10a8] sm:$0xff]
    %v6004 = vld [vmem:[#allocation10 + $0x10b0] sm:$0xff]
    %v6005 = vld [vmem:[#allocation10 + $0x10b8] sm:$0xff]
    %v6006 = vld [vmem:[#allocation10 + $0x10c0] sm:$0xff]
    %v6007 = vld [vmem:[#allocation10 + $0x10c8] sm:$0xff]
    %v6008 = vld [vmem:[#allocation10 + $0x10d0] sm:$0xff]
    %v6009 = vld [vmem:[#allocation10 + $0x10d8] sm:$0xff]
    %v6010 = vld [vmem:[#allocation10 + $0x10e0] sm:$0xff]
    %v6011 = vld [vmem:[#allocation10 + $0x10e8] sm:$0xff]
    %v6012 = vld [vmem:[#allocation10 + $0x10f0] sm:$0xff]
    %v6013 = vld [vmem:[#allocation10 + $0x10f8] sm:$0xff]
    %v6014 = vld [vmem:[#allocation10 + $0x1100] sm:$0xff]
    %v6015 = vld [vmem:[#allocation10 + $0x1108] sm:$0xff]
    %v6016 = vld [vmem:[#allocation10 + $0x1110] sm:$0xff]
    %v6017 = vld [vmem:[#allocation10 + $0x1118] sm:$0xff]
    %v6018 = vld [vmem:[#allocation10 + $0x1120] sm:$0xff]
    %v6019 = vld [vmem:[#allocation10 + $0x1128] sm:$0xff]
    %v6020 = vld [vmem:[#allocation10 + $0x1130] sm:$0xff]
    %v6021 = vld [vmem:[#allocation10 + $0x1138] sm:$0xff]
    %v6022 = vld [vmem:[#allocation10 + $0x1140] sm:$0xff]
    %v6023 = vld [vmem:[#allocation10 + $0x1148] sm:$0xff]
    %v6024 = vld [vmem:[#allocation10 + $0x1150] sm:$0xff]
    %v6025 = vld [vmem:[#allocation10 + $0x1158] sm:$0xff]
    %v6026 = vld [vmem:[#allocation10 + $0x1160] sm:$0xff]
    %v6027 = vld [vmem:[#allocation10 + $0x1168] sm:$0xff]
    %v6028 = vld [vmem:[#allocation10 + $0x1170] sm:$0xff]
    %v6029 = vld [vmem:[#allocation10 + $0x1178] sm:$0xff]
    %v6030 = vld [vmem:[#allocation10 + $0x1180] sm:$0xff]
    %v6031 = vld [vmem:[#allocation10 + $0x1188] sm:$0xff]
    %v6032 = vld [vmem:[#allocation10 + $0x1190] sm:$0xff]
    %v6033 = vld [vmem:[#allocation10 + $0x1198] sm:$0xff]
    %v6034 = vld [vmem:[#allocation10 + $0x11a0] sm:$0xff]
    %v6035 = vld [vmem:[#allocation10 + $0x11a8] sm:$0xff]
    %v6036 = vld [vmem:[#allocation10 + $0x11b0] sm:$0xff]
    %v6037 = vld [vmem:[#allocation10 + $0x11b8] sm:$0xff]
    %v6038 = vld [vmem:[#allocation10 + $0x11c0] sm:$0xff]
    %v6039 = vld [vmem:[#allocation10 + $0x11c8] sm:$0xff]
    %v6040 = vld [vmem:[#allocation10 + $0x11d0] sm:$0xff]
    %v6041 = vld [vmem:[#allocation10 + $0x11d8] sm:$0xff]
    %v6042 = vld [vmem:[#allocation10 + $0x11e0] sm:$0xff]
    %v6043 = vld [vmem:[#allocation10 + $0x11e8] sm:$0xff]
    %v6044 = vld [vmem:[#allocation10 + $0x11f0] sm:$0xff]
    %v6045 = vld [vmem:[#allocation10 + $0x11f8] sm:$0xff]
    %v6046 = vld [vmem:[#allocation11] sm:$0xff]
    %v6047 = vld [vmem:[#allocation11 + $0x8] sm:$0xf]
    %v6050 = vlaneseq
    %v6051 = vshrl.u32 %v6050, 7
    %v6052 = vsub.s32 0, %v6051
    %v6053 = vrot.slane %v6046, %v6052
    %v6054 = vlaneseq
    %v6055 = vshrl.u32 %v6054, 7
    %v6056 = vsub.s32 1, %v6055
    %v6057 = vrot.slane %v6046, %v6056
    %v6058 = vlaneseq
    %v6059 = vshrl.u32 %v6058, 7
    %v6060 = vsub.s32 2, %v6059
    %v6061 = vrot.slane %v6046, %v6060
    %v6062 = vlaneseq
    %v6063 = vshrl.u32 %v6062, 7
    %v6064 = vsub.s32 3, %v6063
    %v6065 = vrot.slane %v6046, %v6064
    %v6066 = vlaneseq
    %v6067 = vshrl.u32 %v6066, 7
    %v6068 = vsub.s32 4, %v6067
    %v6069 = vrot.slane %v6046, %v6068
    %v6070 = vlaneseq
    %v6071 = vshrl.u32 %v6070, 7
    %v6072 = vsub.s32 5, %v6071
    %v6073 = vrot.slane %v6046, %v6072
    %v6074 = vlaneseq
    %v6075 = vshrl.u32 %v6074, 7
    %v6076 = vsub.s32 6, %v6075
    %v6077 = vrot.slane %v6046, %v6076
    %v6078 = vlaneseq
    %v6079 = vshrl.u32 %v6078, 7
    %v6080 = vsub.s32 7, %v6079
    %v6081 = vrot.slane %v6046, %v6080
    %v6082 = vlaneseq
    %v6083 = vshrl.u32 %v6082, 7
    %v6084 = vsub.s32 0, %v6083
    %v6085 = vrot.slane %v6047, %v6084
    %v6086 = vlaneseq
    %v6087 = vshrl.u32 %v6086, 7
    %v6088 = vsub.s32 1, %v6087
    %v6089 = vrot.slane %v6047, %v6088
    %v6090 = vlaneseq
    %v6091 = vshrl.u32 %v6090, 7
    %v6092 = vsub.s32 2, %v6091
    %v6093 = vrot.slane %v6047, %v6092
    %v6094 = vlaneseq
    %v6095 = vshrl.u32 %v6094, 7
    %v6096 = vsub.s32 3, %v6095
    %v6097 = vrot.slane %v6047, %v6096
    %6110 = vmatprep.subr.mxu0 %v5471
    %6111 = vmatpush1.msra.mxu0 %v5470
    %6112 = vmatprep.subr.mxu0 %v5483
    %6113 = vmatpush1.msra.mxu0 %v5482
    %6114 = vmatprep.subr.mxu0 %v5495
    %6115 = vmatpush1.msra.mxu0 %v5494
    %6116 = vmatprep.subr.mxu0 %v5507
    %6117 = vmatpush1.msra.mxu0 %v5506
    %6118 = vmatprep.subr.mxu0 %v5519
    %6119 = vmatpush1.msra.mxu0 %v5518
    %6120 = vmatprep.subr.mxu0 %v5531
    %6121 = vmatpush1.msra.mxu0 %v5530
    %6122 = vmatprep.subr.mxu0 %v5543
    %6123 = vmatpush1.msra.mxu0 %v5542
    %6124 = vmatprep.subr.mxu0 %v5555
    %6125 = vmatpush1.msra.mxu0 %v5554
    %6126 = vmatprep.subr.mxu0 %v5567
    %6127 = vmatpush1.msra.mxu0 %v5566
    %6128 = vmatprep.subr.mxu0 %v5579
    %6129 = vmatpush1.msra.mxu0 %v5578
    %6130 = vmatprep.subr.mxu0 %v5591
    %6131 = vmatpush1.msra.mxu0 %v5590
    %6132 = vmatprep.subr.mxu0 %v5603
    %6133 = vmatpush1.msra.mxu0 %v5602
    %6134 = vmatprep.subr.mxu0 %v5615
    %6135 = vmatpush1.msra.mxu0 %v5614
    %6136 = vmatprep.subr.mxu0 %v5627
    %6137 = vmatpush1.msra.mxu0 %v5626
    %6138 = vmatprep.subr.mxu0 %v5639
    %6139 = vmatpush1.msra.mxu0 %v5638
    %6140 = vmatprep.subr.mxu0 %v5651
    %6141 = vmatpush1.msra.mxu0 %v5650
    %6142 = vmatprep.subr.mxu0 %v5663
    %6143 = vmatpush1.msra.mxu0 %v5662
    %6144 = vmatprep.subr.mxu0 %v5675
    %6145 = vmatpush1.msra.mxu0 %v5674
    %6146 = vmatprep.subr.mxu0 %v5687
    %6147 = vmatpush1.msra.mxu0 %v5686
    %6148 = vmatprep.subr.mxu0 %v5699
    %6149 = vmatpush1.msra.mxu0 %v5698
    %6150 = vmatprep.subr.mxu0 %v5711
    %6151 = vmatpush1.msra.mxu0 %v5710
    %6152 = vmatprep.subr.mxu0 %v5723
    %6153 = vmatpush1.msra.mxu0 %v5722
    %6154 = vmatprep.subr.mxu0 %v5735
    %6155 = vmatpush1.msra.mxu0 %v5734
    %6156 = vmatprep.subr.mxu0 %v5747
    %6157 = vmatpush1.msra.mxu0 %v5746
    %6158 = vmatprep.subr.mxu0 %v5759
    %6159 = vmatpush1.msra.mxu0 %v5758
    %6160 = vmatprep.subr.mxu0 %v5771
    %6161 = vmatpush1.msra.mxu0 %v5770
    %6162 = vmatprep.subr.mxu0 %v5783
    %6163 = vmatpush1.msra.mxu0 %v5782
    %6164 = vmatprep.subr.mxu0 %v5795
    %6165 = vmatpush1.msra.mxu0 %v5794
    %6166 = vmatprep.subr.mxu0 %v5807
    %6167 = vmatpush1.msra.mxu0 %v5806
    %6168 = vmatprep.subr.mxu0 %v5819
    %6169 = vmatpush1.msra.mxu0 %v5818
    %6170 = vmatprep.subr.mxu0 %v5831
    %6171 = vmatpush1.msra.mxu0 %v5830
    %6172 = vmatprep.subr.mxu0 %v5843
    %6173 = vmatpush1.msra.mxu0 %v5842
    %6174 = vmatprep.mubr.f32.mxu0 %v5447
    %6175 = vmatmul.mubr.f32.gmra.mrb[0].mxu0 %v5446
    %v6176 = vpop.f32.mrb[0].mxu0
    %v6177 = vadd.f32 %v6053, %v6176
    %v6178 = vpop.f32.mrb[0].mxu0
    %v6179 = vadd.f32 %v6057, %v6178
    %6180 = vmatprep.mubr.f32.mxu0 %v5450
    %6181 = vmatmul.mubr.f32.gmra.mrb[0].mxu0 %v5449
    %v6182 = vpop.f32.mrb[0].mxu0
    %v6183 = vadd.f32 %v6053, %v6182
    %v6184 = vpop.f32.mrb[0].mxu0
    %v6185 = vadd.f32 %v6057, %v6184
    %6186 = vmatprep.mubr.f32.mxu0 %v5453
    %6187 = vmatmul.mubr.f32.gmra.mrb[0].mxu0 %v5452
    %v6188 = vpop.f32.mrb[0].mxu0
    %v6189 = vadd.f32 %v6053, %v6188
    %v6190 = vpop.f32.mrb[0].mxu0
    %v6191 = vadd.f32 %v6057, %v6190
    %6192 = vmatprep.mubr.f32.mxu0 %v5456
    %6193 = vmatmul.mubr.f32.gmra.mrb[0].mxu0 %v5455
    %v6194 = vpop.f32.mrb[0].mxu0
    %v6195 = vadd.f32 %v6053, %v6194
    %v6196 = vpop.f32.mrb[0].mxu0
    %v6197 = vadd.f32 %v6057, %v6196
    %6198 = vmatprep.mubr.f32.mxu0 %v5459
    %6199 = vmatmul.mubr.f32.gmra.mrb[0].mxu0 %v5458
    %v6200 = vpop.f32.mrb[0].mxu0
    %v6201 = vadd.f32 %v6053, %v6200
    %v6202 = vpop.f32.mrb[0].mxu0
    %v6203 = vadd.f32 %v6057, %v6202
    %6204 = vmatprep.mubr.f32.mxu0 %v5462
    %6205 = vmatmul.mubr.f32.gmra.mrb[0].mxu0 %v5461
    %v6206 = vpop.f32.mrb[0].mxu0
    %v6207 = vadd.f32 %v6053, %v6206
    %v6208 = vpop.f32.mrb[0].mxu0
    %v6209 = vadd.f32 %v6057, %v6208
    %6210 = vmatprep.mubr.f32.mxu0 %v5465
    %6211 = vmatmul.mubr.f32.gmra.mrb[0].mxu0 %v5464
    %v6212 = vpop.f32.mrb[0].mxu0
    %v6213 = vadd.f32 %v6053, %v6212
    %v6214 = vpop.f32.mrb[0].mxu0
    %v6215 = vadd.f32 %v6057, %v6214
    %6216 = vmatprep.mubr.f32.mxu0 %v5468
    %6217 = vmatmul.mubr.f32.gmra.mrb[0].mxu0 %v5467
    %v6218 = vpop.f32.mrb[0].mxu0
    %v6219 = vadd.f32 %v6053, %v6218
    %v6220 = vpop.f32.mrb[0].mxu0
    %v6221 = vadd.f32 %v6057, %v6220
    %6222 = vdwg.mxu0
    %6223 = vmatprep.subr.mxu0 %v5855
    %6224 = vmatpush1.msra.mxu0 %v5854
    %6225 = vmatprep.subr.mxu0 %v5867
    %6226 = vmatpush1.msra.mxu0 %v5866
    %6227 = vmatprep.subr.mxu0 %v5879
    %6228 = vmatpush1.msra.mxu0 %v5878
    %6229 = vmatprep.subr.mxu0 %v5891
    %6230 = vmatpush1.msra.mxu0 %v5890
    %6231 = vmatprep.subr.mxu0 %v5903
    %6232 = vmatpush1.msra.mxu0 %v5902
    %6233 = vmatprep.subr.mxu0 %v5915
    %6234 = vmatpush1.msra.mxu0 %v5914
    %6235 = vmatprep.subr.mxu0 %v5927
    %6236 = vmatpush1.msra.mxu0 %v5926
    %6237 = vmatprep.subr.mxu0 %v5939
    %6238 = vmatpush1.msra.mxu0 %v5938
    %6239 = vmatprep.subr.mxu0 %v5951
    %6240 = vmatpush1.msra.mxu0 %v5950
    %6241 = vmatprep.subr.mxu0 %v5963
    %6242 = vmatpush1.msra.mxu0 %v5962
    %6243 = vmatprep.subr.mxu0 %v5975
    %6244 = vmatpush1.msra.mxu0 %v5974
    %6245 = vmatprep.subr.mxu0 %v5987
    %6246 = vmatpush1.msra.mxu0 %v5986
    %6247 = vmatprep.subr.mxu0 %v5999
    %6248 = vmatpush1.msra.mxu0 %v5998
    %6249 = vmatprep.subr.mxu0 %v6011
    %6250 = vmatpush1.msra.mxu0 %v6010
    %6251 = vmatprep.subr.mxu0 %v6023
    %6252 = vmatpush1.msra.mxu0 %v6022
    %6253 = vmatprep.subr.mxu0 %v6035
    %6254 = vmatpush1.msra.mxu0 %v6034
    %6255 = vmatprep.subr.mxu0 0.0
    %6256 = vmatpush1.msra.mxu0 0.0
    %6257 = vmatprep.subr.mxu0 0.0
    %6258 = vmatpush1.msra.mxu0 0.0
    %6259 = vmatprep.subr.mxu0 0.0
    %6260 = vmatpush1.msra.mxu0 0.0
    %6261 = vmatprep.subr.mxu0 0.0
    %6262 = vmatpush1.msra.mxu0 0.0
    %6263 = vmatprep.subr.mxu0 0.0
    %6264 = vmatpush1.msra.mxu0 0.0
    %6265 = vmatprep.subr.mxu0 0.0
    %6266 = vmatpush1.msra.mxu0 0.0
    %6267 = vmatprep.subr.mxu0 0.0
    %6268 = vmatpush1.msra.mxu0 0.0
    %6269 = vmatprep.subr.mxu0 0.0
    %6270 = vmatpush1.msra.mxu0 0.0
    %6271 = vmatprep.subr.mxu0 0.0
    %6272 = vmatpush1.msra.mxu0 0.0
    %6273 = vmatprep.subr.mxu0 0.0
    %6274 = vmatpush1.msra.mxu0 0.0
    %6275 = vmatprep.subr.mxu0 0.0
    %6276 = vmatpush1.msra.mxu0 0.0
    %6277 = vmatprep.subr.mxu0 0.0
    %6278 = vmatpush1.msra.mxu0 0.0
    %6279 = vmatprep.subr.mxu0 0.0
    %6280 = vmatpush1.msra.mxu0 0.0
    %6281 = vmatprep.subr.mxu0 0.0
    %6282 = vmatpush1.msra.mxu0 0.0
    %6283 = vmatprep.subr.mxu0 0.0
    %6284 = vmatpush1.msra.mxu0 0.0
    %6285 = vmatprep.subr.mxu0 0.0
    %6286 = vmatpush1.msra.mxu0 0.0
    %6287 = vmatprep.mubr.f32.mxu0 0.0
    %6288 = vmatmul.mubr.f32.gmra.mrb[0].mxu0 %v5448
    %v6289 = vpop.f32.mrb[0].mxu0
    %v6290 = vadd.f32 %v6177, %v6289
    %v6291 = vpop.f32.mrb[0].mxu0
    %v6292 = vadd.f32 %v6179, %v6291
    %6293 = vmatprep.mubr.f32.mxu0 0.0
    %6294 = vmatmul.mubr.f32.gmra.mrb[0].mxu0 %v5451
    %v6295 = vpop.f32.mrb[0].mxu0
    %v6296 = vadd.f32 %v6183, %v6295
    %v6297 = vpop.f32.mrb[0].mxu0
    %v6298 = vadd.f32 %v6185, %v6297
    %6299 = vmatprep.mubr.f32.mxu0 0.0
    %6300 = vmatmul.mubr.f32.gmra.mrb[0].mxu0 %v5454
    %v6301 = vpop.f32.mrb[0].mxu0
    %v6302 = vadd.f32 %v6189, %v6301
    %v6303 = vpop.f32.mrb[0].mxu0
    %v6304 = vadd.f32 %v6191, %v6303
    %6305 = vmatprep.mubr.f32.mxu0 0.0
    %6306 = vmatmul.mubr.f32.gmra.mrb[0].mxu0 %v5457
    %v6307 = vpop.f32.mrb[0].mxu0
    %v6308 = vadd.f32 %v6195, %v6307
    %v6309 = vpop.f32.mrb[0].mxu0
    %v6310 = vadd.f32 %v6197, %v6309
    %6311 = vmatprep.mubr.f32.mxu0 0.0
    %6312 = vmatmul.mubr.f32.gmra.mrb[0].mxu0 %v5460
    %v6313 = vpop.f32.mrb[0].mxu0
    %v6314 = vadd.f32 %v6201, %v6313
    %v6315 = vpop.f32.mrb[0].mxu0
    %v6316 = vadd.f32 %v6203, %v6315
    %6317 = vmatprep.mubr.f32.mxu0 0.0
    %6318 = vmatmul.mubr.f32.gmra.mrb[0].mxu0 %v5463
    %v6319 = vpop.f32.mrb[0].mxu0
    %v6320 = vadd.f32 %v6207, %v6319
    %v6321 = vpop.f32.mrb[0].mxu0
    %v6322 = vadd.f32 %v6209, %v6321
    %6323 = vmatprep.mubr.f32.mxu0 0.0
    %6324 = vmatmul.mubr.f32.gmra.mrb[0].mxu0 %v5466
    %v6325 = vpop.f32.mrb[0].mxu0
    %v6326 = vadd.f32 %v6213, %v6325
    %v6327 = vpop.f32.mrb[0].mxu0
    %v6328 = vadd.f32 %v6215, %v6327
    %6329 = vmatprep.mubr.f32.mxu0 0.0
    %6330 = vmatmul.mubr.f32.gmra.mrb[0].mxu0 %v5469
    %v6331 = vpop.f32.mrb[0].mxu0
    %v6332 = vadd.f32 %v6219, %v6331
    %v6333 = vpop.f32.mrb[0].mxu0
    %v6334 = vadd.f32 %v6221, %v6333
    %6335 = vdwg.mxu0
    %6336 = vmatprep.subr.mxu0 %v5473
    %6337 = vmatpush1.msra.mxu0 %v5472
    %6338 = vmatprep.subr.mxu0 %v5485
    %6339 = vmatpush1.msra.mxu0 %v5484
    %6340 = vmatprep.subr.mxu0 %v5497
    %6341 = vmatpush1.msra.mxu0 %v5496
    %6342 = vmatprep.subr.mxu0 %v5509
    %6343 = vmatpush1.msra.mxu0 %v5508
    %6344 = vmatprep.subr.mxu0 %v5521
    %6345 = vmatpush1.msra.mxu0 %v5520
    %6346 = vmatprep.subr.mxu0 %v5533
    %6347 = vmatpush1.msra.mxu0 %v5532
    %6348 = vmatprep.subr.mxu0 %v5545
    %6349 = vmatpush1.msra.mxu0 %v5544
    %6350 = vmatprep.subr.mxu0 %v5557
    %6351 = vmatpush1.msra.mxu0 %v5556
    %6352 = vmatprep.subr.mxu0 %v5569
    %6353 = vmatpush1.msra.mxu0 %v5568
    %6354 = vmatprep.subr.mxu0 %v5581
    %6355 = vmatpush1.msra.mxu0 %v5580
    %6356 = vmatprep.subr.mxu0 %v5593
    %6357 = vmatpush1.msra.mxu0 %v5592
    %6358 = vmatprep.subr.mxu0 %v5605
    %6359 = vmatpush1.msra.mxu0 %v5604
    %6360 = vmatprep.subr.mxu0 %v5617
    %6361 = vmatpush1.msra.mxu0 %v5616
    %6362 = vmatprep.subr.mxu0 %v5629
    %6363 = vmatpush1.msra.mxu0 %v5628
    %6364 = vmatprep.subr.mxu0 %v5641
    %6365 = vmatpush1.msra.mxu0 %v5640
    %6366 = vmatprep.subr.mxu0 %v5653
    %6367 = vmatpush1.msra.mxu0 %v5652
    %6368 = vmatprep.subr.mxu0 %v5665
    %6369 = vmatpush1.msra.mxu0 %v5664
    %6370 = vmatprep.subr.mxu0 %v5677
    %6371 = vmatpush1.msra.mxu0 %v5676
    %6372 = vmatprep.subr.mxu0 %v5689
    %6373 = vmatpush1.msra.mxu0 %v5688
    %6374 = vmatprep.subr.mxu0 %v5701
    %6375 = vmatpush1.msra.mxu0 %v5700
    %6376 = vmatprep.subr.mxu0 %v5713
    %6377 = vmatpush1.msra.mxu0 %v5712
    %6378 = vmatprep.subr.mxu0 %v5725
    %6379 = vmatpush1.msra.mxu0 %v5724
    %6380 = vmatprep.subr.mxu0 %v5737
    %6381 = vmatpush1.msra.mxu0 %v5736
    %6382 = vmatprep.subr.mxu0 %v5749
    %6383 = vmatpush1.msra.mxu0 %v5748
    %6384 = vmatprep.subr.mxu0 %v5761
    %6385 = vmatpush1.msra.mxu0 %v5760
    %6386 = vmatprep.subr.mxu0 %v5773
    %6387 = vmatpush1.msra.mxu0 %v5772
    %6388 = vmatprep.subr.mxu0 %v5785
    %6389 = vmatpush1.msra.mxu0 %v5784
    %6390 = vmatprep.subr.mxu0 %v5797
    %6391 = vmatpush1.msra.mxu0 %v5796
    %6392 = vmatprep.subr.mxu0 %v5809
    %6393 = vmatpush1.msra.mxu0 %v5808
    %6394 = vmatprep.subr.mxu0 %v5821
    %6395 = vmatpush1.msra.mxu0 %v5820
    %6396 = vmatprep.subr.mxu0 %v5833
    %6397 = vmatpush1.msra.mxu0 %v5832
    %6398 = vmatprep.subr.mxu0 %v5845
    %6399 = vmatpush1.msra.mxu0 %v5844
    %6400 = vmatprep.mubr.f32.mxu0 %v5447
    %6401 = vmatmul.mubr.f32.gmra.mrb[0].mxu0 %v5446
    %v6402 = vpop.f32.mrb[0].mxu0
    %v6403 = vadd.f32 %v6061, %v6402
    %v6404 = vpop.f32.mrb[0].mxu0
    %v6405 = vadd.f32 %v6065, %v6404
    %6406 = vmatprep.mubr.f32.mxu0 %v5450
    %6407 = vmatmul.mubr.f32.gmra.mrb[0].mxu0 %v5449
    %v6408 = vpop.f32.mrb[0].mxu0
    %v6409 = vadd.f32 %v6061, %v6408
    %v6410 = vpop.f32.mrb[0].mxu0
    %v6411 = vadd.f32 %v6065, %v6410
    %6412 = vmatprep.mubr.f32.mxu0 %v5453
    %6413 = vmatmul.mubr.f32.gmra.mrb[0].mxu0 %v5452
    %v6414 = vpop.f32.mrb[0].mxu0
    %v6415 = vadd.f32 %v6061, %v6414
    %v6416 = vpop.f32.mrb[0].mxu0
    %v6417 = vadd.f32 %v6065, %v6416
    %6418 = vmatprep.mubr.f32.mxu0 %v5456
    %6419 = vmatmul.mubr.f32.gmra.mrb[0].mxu0 %v5455
    %v6420 = vpop.f32.mrb[0].mxu0
    %v6421 = vadd.f32 %v6061, %v6420
    %v6422 = vpop.f32.mrb[0].mxu0
    %v6423 = vadd.f32 %v6065, %v6422
    %6424 = vmatprep.mubr.f32.mxu0 %v5459
    %6425 = vmatmul.mubr.f32.gmra.mrb[0].mxu0 %v5458
    %v6426 = vpop.f32.mrb[0].mxu0
    %v6427 = vadd.f32 %v6061, %v6426
    %v6428 = vpop.f32.mrb[0].mxu0
    %v6429 = vadd.f32 %v6065, %v6428
    %6430 = vmatprep.mubr.f32.mxu0 %v5462
    %6431 = vmatmul.mubr.f32.gmra.mrb[0].mxu0 %v5461
    %v6432 = vpop.f32.mrb[0].mxu0
    %v6433 = vadd.f32 %v6061, %v6432
    %v6434 = vpop.f32.mrb[0].mxu0
    %v6435 = vadd.f32 %v6065, %v6434
    %6436 = vmatprep.mubr.f32.mxu0 %v5465
    %6437 = vmatmul.mubr.f32.gmra.mrb[0].mxu0 %v5464
    %v6438 = vpop.f32.mrb[0].mxu0
    %v6439 = vadd.f32 %v6061, %v6438
    %v6440 = vpop.f32.mrb[0].mxu0
    %v6441 = vadd.f32 %v6065, %v6440
    %6442 = vmatprep.mubr.f32.mxu0 %v5468
    %6443 = vmatmul.mubr.f32.gmra.mrb[0].mxu0 %v5467
    %v6444 = vpop.f32.mrb[0].mxu0
    %v6445 = vadd.f32 %v6061, %v6444
    %v6446 = vpop.f32.mrb[0].mxu0
    %v6447 = vadd.f32 %v6065, %v6446
    %6448 = vdwg.mxu0
    %6449 = vmatprep.subr.mxu0 %v5857
    %6450 = vmatpush1.msra.mxu0 %v5856
    %6451 = vmatprep.subr.mxu0 %v5869
    %6452 = vmatpush1.msra.mxu0 %v5868
    %6453 = vmatprep.subr.mxu0 %v5881
    %6454 = vmatpush1.msra.mxu0 %v5880
    %6455 = vmatprep.subr.mxu0 %v5893
    %6456 = vmatpush1.msra.mxu0 %v5892
    %6457 = vmatprep.subr.mxu0 %v5905
    %6458 = vmatpush1.msra.mxu0 %v5904
    %6459 = vmatprep.subr.mxu0 %v5917
    %6460 = vmatpush1.msra.mxu0 %v5916
    %6461 = vmatprep.subr.mxu0 %v5929
    %6462 = vmatpush1.msra.mxu0 %v5928
    %6463 = vmatprep.subr.mxu0 %v5941
    %6464 = vmatpush1.msra.mxu0 %v5940
    %6465 = vmatprep.subr.mxu0 %v5953
    %6466 = vmatpush1.msra.mxu0 %v5952
    %6467 = vmatprep.subr.mxu0 %v5965
    %6468 = vmatpush1.msra.mxu0 %v5964
    %6469 = vmatprep.subr.mxu0 %v5977
    %6470 = vmatpush1.msra.mxu0 %v5976
    %6471 = vmatprep.subr.mxu0 %v5989
    %6472 = vmatpush1.msra.mxu0 %v5988
    %6473 = vmatprep.subr.mxu0 %v6001
    %6474 = vmatpush1.msra.mxu0 %v6000
    %6475 = vmatprep.subr.mxu0 %v6013
    %6476 = vmatpush1.msra.mxu0 %v6012
    %6477 = vmatprep.subr.mxu0 %v6025
    %6478 = vmatpush1.msra.mxu0 %v6024
    %6479 = vmatprep.subr.mxu0 %v6037
    %6480 = vmatpush1.msra.mxu0 %v6036
    %6481 = vmatprep.subr.mxu0 0.0
    %6482 = vmatpush1.msra.mxu0 0.0
    %6483 = vmatprep.subr.mxu0 0.0
    %6484 = vmatpush1.msra.mxu0 0.0
    %6485 = vmatprep.subr.mxu0 0.0
    %6486 = vmatpush1.msra.mxu0 0.0
    %6487 = vmatprep.subr.mxu0 0.0
    %6488 = vmatpush1.msra.mxu0 0.0
    %6489 = vmatprep.subr.mxu0 0.0
    %6490 = vmatpush1.msra.mxu0 0.0
    %6491 = vmatprep.subr.mxu0 0.0
    %6492 = vmatpush1.msra.mxu0 0.0
    %6493 = vmatprep.subr.mxu0 0.0
    %6494 = vmatpush1.msra.mxu0 0.0
    %6495 = vmatprep.subr.mxu0 0.0
    %6496 = vmatpush1.msra.mxu0 0.0
    %6497 = vmatprep.subr.mxu0 0.0
    %6498 = vmatpush1.msra.mxu0 0.0
    %6499 = vmatprep.subr.mxu0 0.0
    %6500 = vmatpush1.msra.mxu0 0.0
    %6501 = vmatprep.subr.mxu0 0.0
    %6502 = vmatpush1.msra.mxu0 0.0
    %6503 = vmatprep.subr.mxu0 0.0
    %6504 = vmatpush1.msra.mxu0 0.0
    %6505 = vmatprep.subr.mxu0 0.0
    %6506 = vmatpush1.msra.mxu0 0.0
    %6507 = vmatprep.subr.mxu0 0.0
    %6508 = vmatpush1.msra.mxu0 0.0
    %6509 = vmatprep.subr.mxu0 0.0
    %6510 = vmatpush1.msra.mxu0 0.0
    %6511 = vmatprep.subr.mxu0 0.0
    %6512 = vmatpush1.msra.mxu0 0.0
    %6513 = vmatprep.mubr.f32.mxu0 0.0
    %6514 = vmatmul.mubr.f32.gmra.mrb[0].mxu0 %v5448
    %v6515 = vpop.f32.mrb[0].mxu0
    %v6516 = vadd.f32 %v6403, %v6515
    %v6517 = vpop.f32.mrb[0].mxu0
    %v6518 = vadd.f32 %v6405, %v6517
    %6519 = vmatprep.mubr.f32.mxu0 0.0
    %6520 = vmatmul.mubr.f32.gmra.mrb[0].mxu0 %v5451
    %v6521 = vpop.f32.mrb[0].mxu0
    %v6522 = vadd.f32 %v6409, %v6521
    %v6523 = vpop.f32.mrb[0].mxu0
    %v6524 = vadd.f32 %v6411, %v6523
    %6525 = vmatprep.mubr.f32.mxu0 0.0
    %6526 = vmatmul.mubr.f32.gmra.mrb[0].mxu0 %v5454
    %v6527 = vpop.f32.mrb[0].mxu0
    %v6528 = vadd.f32 %v6415, %v6527
    %v6529 = vpop.f32.mrb[0].mxu0
    %v6530 = vadd.f32 %v6417, %v6529
    %6531 = vmatprep.mubr.f32.mxu0 0.0
    %6532 = vmatmul.mubr.f32.gmra.mrb[0].mxu0 %v5457
    %v6533 = vpop.f32.mrb[0].mxu0
    %v6534 = vadd.f32 %v6421, %v6533
    %v6535 = vpop.f32.mrb[0].mxu0
    %v6536 = vadd.f32 %v6423, %v6535
    %6537 = vmatprep.mubr.f32.mxu0 0.0
    %6538 = vmatmul.mubr.f32.gmra.mrb[0].mxu0 %v5460
    %v6539 = vpop.f32.mrb[0].mxu0
    %v6540 = vadd.f32 %v6427, %v6539
    %v6541 = vpop.f32.mrb[0].mxu0
    %v6542 = vadd.f32 %v6429, %v6541
    %6543 = vmatprep.mubr.f32.mxu0 0.0
    %6544 = vmatmul.mubr.f32.gmra.mrb[0].mxu0 %v5463
    %v6545 = vpop.f32.mrb[0].mxu0
    %v6546 = vadd.f32 %v6433, %v6545
    %v6547 = vpop.f32.mrb[0].mxu0
    %v6548 = vadd.f32 %v6435, %v6547
    %6549 = vmatprep.mubr.f32.mxu0 0.0
    %6550 = vmatmul.mubr.f32.gmra.mrb[0].mxu0 %v5466
    %v6551 = vpop.f32.mrb[0].mxu0
    %v6552 = vadd.f32 %v6439, %v6551
    %v6553 = vpop.f32.mrb[0].mxu0
    %v6554 = vadd.f32 %v6441, %v6553
    %6555 = vmatprep.mubr.f32.mxu0 0.0
    %6556 = vmatmul.mubr.f32.gmra.mrb[0].mxu0 %v5469
    %v6557 = vpop.f32.mrb[0].mxu0
    %v6558 = vadd.f32 %v6445, %v6557
    %v6559 = vpop.f32.mrb[0].mxu0
    %v6560 = vadd.f32 %v6447, %v6559
    %6561 = vdwg.mxu0
    %6562 = vmatprep.subr.mxu0 %v5475
    %6563 = vmatpush1.msra.mxu0 %v5474
    %6564 = vmatprep.subr.mxu0 %v5487
    %6565 = vmatpush1.msra.mxu0 %v5486
    %6566 = vmatprep.subr.mxu0 %v5499
    %6567 = vmatpush1.msra.mxu0 %v5498
    %6568 = vmatprep.subr.mxu0 %v5511
    %6569 = vmatpush1.msra.mxu0 %v5510
    %6570 = vmatprep.subr.mxu0 %v5523
    %6571 = vmatpush1.msra.mxu0 %v5522
    %6572 = vmatprep.subr.mxu0 %v5535
    %6573 = vmatpush1.msra.mxu0 %v5534
    %6574 = vmatprep.subr.mxu0 %v5547
    %6575 = vmatpush1.msra.mxu0 %v5546
    %6576 = vmatprep.subr.mxu0 %v5559
    %6577 = vmatpush1.msra.mxu0 %v5558
    %6578 = vmatprep.subr.mxu0 %v5571
    %6579 = vmatpush1.msra.mxu0 %v5570
    %6580 = vmatprep.subr.mxu0 %v5583
    %6581 = vmatpush1.msra.mxu0 %v5582
    %6582 = vmatprep.subr.mxu0 %v5595
    %6583 = vmatpush1.msra.mxu0 %v5594
    %6584 = vmatprep.subr.mxu0 %v5607
    %6585 = vmatpush1.msra.mxu0 %v5606
    %6586 = vmatprep.subr.mxu0 %v5619
    %6587 = vmatpush1.msra.mxu0 %v5618
    %6588 = vmatprep.subr.mxu0 %v5631
    %6589 = vmatpush1.msra.mxu0 %v5630
    %6590 = vmatprep.subr.mxu0 %v5643
    %6591 = vmatpush1.msra.mxu0 %v5642
    %6592 = vmatprep.subr.mxu0 %v5655
    %6593 = vmatpush1.msra.mxu0 %v5654
    %6594 = vmatprep.subr.mxu0 %v5667
    %6595 = vmatpush1.msra.mxu0 %v5666
    %6596 = vmatprep.subr.mxu0 %v5679
    %6597 = vmatpush1.msra.mxu0 %v5678
    %6598 = vmatprep.subr.mxu0 %v5691
    %6599 = vmatpush1.msra.mxu0 %v5690
    %6600 = vmatprep.subr.mxu0 %v5703
    %6601 = vmatpush1.msra.mxu0 %v5702
    %6602 = vmatprep.subr.mxu0 %v5715
    %6603 = vmatpush1.msra.mxu0 %v5714
    %6604 = vmatprep.subr.mxu0 %v5727
    %6605 = vmatpush1.msra.mxu0 %v5726
    %6606 = vmatprep.subr.mxu0 %v5739
    %6607 = vmatpush1.msra.mxu0 %v5738
    %6608 = vmatprep.subr.mxu0 %v5751
    %6609 = vmatpush1.msra.mxu0 %v5750
    %6610 = vmatprep.subr.mxu0 %v5763
    %6611 = vmatpush1.msra.mxu0 %v5762
    %6612 = vmatprep.subr.mxu0 %v5775
    %6613 = vmatpush1.msra.mxu0 %v5774
    %6614 = vmatprep.subr.mxu0 %v5787
    %6615 = vmatpush1.msra.mxu0 %v5786
    %6616 = vmatprep.subr.mxu0 %v5799
    %6617 = vmatpush1.msra.mxu0 %v5798
    %6618 = vmatprep.subr.mxu0 %v5811
    %6619 = vmatpush1.msra.mxu0 %v5810
    %6620 = vmatprep.subr.mxu0 %v5823
    %6621 = vmatpush1.msra.mxu0 %v5822
    %6622 = vmatprep.subr.mxu0 %v5835
    %6623 = vmatpush1.msra.mxu0 %v5834
    %6624 = vmatprep.subr.mxu0 %v5847
    %6625 = vmatpush1.msra.mxu0 %v5846
    %6626 = vmatprep.mubr.f32.mxu0 %v5447
    %6627 = vmatmul.mubr.f32.gmra.mrb[0].mxu0 %v5446
    %v6628 = vpop.f32.mrb[0].mxu0
    %v6629 = vadd.f32 %v6069, %v6628
    %v6630 = vpop.f32.mrb[0].mxu0
    %v6631 = vadd.f32 %v6073, %v6630
    %6632 = vmatprep.mubr.f32.mxu0 %v5450
    %6633 = vmatmul.mubr.f32.gmra.mrb[0].mxu0 %v5449
    %v6634 = vpop.f32.mrb[0].mxu0
    %v6635 = vadd.f32 %v6069, %v6634
    %v6636 = vpop.f32.mrb[0].mxu0
    %v6637 = vadd.f32 %v6073, %v6636
    %6638 = vmatprep.mubr.f32.mxu0 %v5453
    %6639 = vmatmul.mubr.f32.gmra.mrb[0].mxu0 %v5452
    %v6640 = vpop.f32.mrb[0].mxu0
    %v6641 = vadd.f32 %v6069, %v6640
    %v6642 = vpop.f32.mrb[0].mxu0
    %v6643 = vadd.f32 %v6073, %v6642
    %6644 = vmatprep.mubr.f32.mxu0 %v5456
    %6645 = vmatmul.mubr.f32.gmra.mrb[0].mxu0 %v5455
    %v6646 = vpop.f32.mrb[0].mxu0
    %v6647 = vadd.f32 %v6069, %v6646
    %v6648 = vpop.f32.mrb[0].mxu0
    %v6649 = vadd.f32 %v6073, %v6648
    %6650 = vmatprep.mubr.f32.mxu0 %v5459
    %6651 = vmatmul.mubr.f32.gmra.mrb[0].mxu0 %v5458
    %v6652 = vpop.f32.mrb[0].mxu0
    %v6653 = vadd.f32 %v6069, %v6652
    %v6654 = vpop.f32.mrb[0].mxu0
    %v6655 = vadd.f32 %v6073, %v6654
    %6656 = vmatprep.mubr.f32.mxu0 %v5462
    %6657 = vmatmul.mubr.f32.gmra.mrb[0].mxu0 %v5461
    %v6658 = vpop.f32.mrb[0].mxu0
    %v6659 = vadd.f32 %v6069, %v6658
    %v6660 = vpop.f32.mrb[0].mxu0
    %v6661 = vadd.f32 %v6073, %v6660
    %6662 = vmatprep.mubr.f32.mxu0 %v5465
    %6663 = vmatmul.mubr.f32.gmra.mrb[0].mxu0 %v5464
    %v6664 = vpop.f32.mrb[0].mxu0
    %v6665 = vadd.f32 %v6069, %v6664
    %v6666 = vpop.f32.mrb[0].mxu0
    %v6667 = vadd.f32 %v6073, %v6666
    %6668 = vmatprep.mubr.f32.mxu0 %v5468
    %6669 = vmatmul.mubr.f32.gmra.mrb[0].mxu0 %v5467
    %v6670 = vpop.f32.mrb[0].mxu0
    %v6671 = vadd.f32 %v6069, %v6670
    %v6672 = vpop.f32.mrb[0].mxu0
    %v6673 = vadd.f32 %v6073, %v6672
    %6674 = vdwg.mxu0
    %6675 = vmatprep.subr.mxu0 %v5859
    %6676 = vmatpush1.msra.mxu0 %v5858
    %6677 = vmatprep.subr.mxu0 %v5871
    %6678 = vmatpush1.msra.mxu0 %v5870
    %6679 = vmatprep.subr.mxu0 %v5883
    %6680 = vmatpush1.msra.mxu0 %v5882
    %6681 = vmatprep.subr.mxu0 %v5895
    %6682 = vmatpush1.msra.mxu0 %v5894
    %6683 = vmatprep.subr.mxu0 %v5907
    %6684 = vmatpush1.msra.mxu0 %v5906
    %6685 = vmatprep.subr.mxu0 %v5919
    %6686 = vmatpush1.msra.mxu0 %v5918
    %6687 = vmatprep.subr.mxu0 %v5931
    %6688 = vmatpush1.msra.mxu0 %v5930
    %6689 = vmatprep.subr.mxu0 %v5943
    %6690 = vmatpush1.msra.mxu0 %v5942
    %6691 = vmatprep.subr.mxu0 %v5955
    %6692 = vmatpush1.msra.mxu0 %v5954
    %6693 = vmatprep.subr.mxu0 %v5967
    %6694 = vmatpush1.msra.mxu0 %v5966
    %6695 = vmatprep.subr.mxu0 %v5979
    %6696 = vmatpush1.msra.mxu0 %v5978
    %6697 = vmatprep.subr.mxu0 %v5991
    %6698 = vmatpush1.msra.mxu0 %v5990
    %6699 = vmatprep.subr.mxu0 %v6003
    %6700 = vmatpush1.msra.mxu0 %v6002
    %6701 = vmatprep.subr.mxu0 %v6015
    %6702 = vmatpush1.msra.mxu0 %v6014
    %6703 = vmatprep.subr.mxu0 %v6027
    %6704 = vmatpush1.msra.mxu0 %v6026
    %6705 = vmatprep.subr.mxu0 %v6039
    %6706 = vmatpush1.msra.mxu0 %v6038
    %6707 = vmatprep.subr.mxu0 0.0
    %6708 = vmatpush1.msra.mxu0 0.0
    %6709 = vmatprep.subr.mxu0 0.0
    %6710 = vmatpush1.msra.mxu0 0.0
    %6711 = vmatprep.subr.mxu0 0.0
    %6712 = vmatpush1.msra.mxu0 0.0
    %6713 = vmatprep.subr.mxu0 0.0
    %6714 = vmatpush1.msra.mxu0 0.0
    %6715 = vmatprep.subr.mxu0 0.0
    %6716 = vmatpush1.msra.mxu0 0.0
    %6717 = vmatprep.subr.mxu0 0.0
    %6718 = vmatpush1.msra.mxu0 0.0
    %6719 = vmatprep.subr.mxu0 0.0
    %6720 = vmatpush1.msra.mxu0 0.0
    %6721 = vmatprep.subr.mxu0 0.0
    %6722 = vmatpush1.msra.mxu0 0.0
    %6723 = vmatprep.subr.mxu0 0.0
    %6724 = vmatpush1.msra.mxu0 0.0
    %6725 = vmatprep.subr.mxu0 0.0
    %6726 = vmatpush1.msra.mxu0 0.0
    %6727 = vmatprep.subr.mxu0 0.0
    %6728 = vmatpush1.msra.mxu0 0.0
    %6729 = vmatprep.subr.mxu0 0.0
    %6730 = vmatpush1.msra.mxu0 0.0
    %6731 = vmatprep.subr.mxu0 0.0
    %6732 = vmatpush1.msra.mxu0 0.0
    %6733 = vmatprep.subr.mxu0 0.0
    %6734 = vmatpush1.msra.mxu0 0.0
    %6735 = vmatprep.subr.mxu0 0.0
    %6736 = vmatpush1.msra.mxu0 0.0
    %6737 = vmatprep.subr.mxu0 0.0
    %6738 = vmatpush1.msra.mxu0 0.0
    %6739 = vmatprep.mubr.f32.mxu0 0.0
    %6740 = vmatmul.mubr.f32.gmra.mrb[0].mxu0 %v5448
    %v6741 = vpop.f32.mrb[0].mxu0
    %v6742 = vadd.f32 %v6629, %v6741
    %v6743 = vpop.f32.mrb[0].mxu0
    %v6744 = vadd.f32 %v6631, %v6743
    %6745 = vmatprep.mubr.f32.mxu0 0.0
    %6746 = vmatmul.mubr.f32.gmra.mrb[0].mxu0 %v5451
    %v6747 = vpop.f32.mrb[0].mxu0
    %v6748 = vadd.f32 %v6635, %v6747
    %v6749 = vpop.f32.mrb[0].mxu0
    %v6750 = vadd.f32 %v6637, %v6749
    %6751 = vmatprep.mubr.f32.mxu0 0.0
    %6752 = vmatmul.mubr.f32.gmra.mrb[0].mxu0 %v5454
    %v6753 = vpop.f32.mrb[0].mxu0
    %v6754 = vadd.f32 %v6641, %v6753
    %v6755 = vpop.f32.mrb[0].mxu0
    %v6756 = vadd.f32 %v6643, %v6755
    %6757 = vmatprep.mubr.f32.mxu0 0.0
    %6758 = vmatmul.mubr.f32.gmra.mrb[0].mxu0 %v5457
    %v6759 = vpop.f32.mrb[0].mxu0
    %v6760 = vadd.f32 %v6647, %v6759
    %v6761 = vpop.f32.mrb[0].mxu0
    %v6762 = vadd.f32 %v6649, %v6761
    %6763 = vmatprep.mubr.f32.mxu0 0.0
    %6764 = vmatmul.mubr.f32.gmra.mrb[0].mxu0 %v5460
    %v6765 = vpop.f32.mrb[0].mxu0
    %v6766 = vadd.f32 %v6653, %v6765
    %v6767 = vpop.f32.mrb[0].mxu0
    %v6768 = vadd.f32 %v6655, %v6767
    %6769 = vmatprep.mubr.f32.mxu0 0.0
    %6770 = vmatmul.mubr.f32.gmra.mrb[0].mxu0 %v5463
    %v6771 = vpop.f32.mrb[0].mxu0
    %v6772 = vadd.f32 %v6659, %v6771
    %v6773 = vpop.f32.mrb[0].mxu0
    %v6774 = vadd.f32 %v6661, %v6773
    %6775 = vmatprep.mubr.f32.mxu0 0.0
    %6776 = vmatmul.mubr.f32.gmra.mrb[0].mxu0 %v5466
    %v6777 = vpop.f32.mrb[0].mxu0
    %v6778 = vadd.f32 %v6665, %v6777
    %v6779 = vpop.f32.mrb[0].mxu0
    %v6780 = vadd.f32 %v6667, %v6779
    %6781 = vmatprep.mubr.f32.mxu0 0.0
    %6782 = vmatmul.mubr.f32.gmra.mrb[0].mxu0 %v5469
    %v6783 = vpop.f32.mrb[0].mxu0
    %v6784 = vadd.f32 %v6671, %v6783
    %v6785 = vpop.f32.mrb[0].mxu0
    %v6786 = vadd.f32 %v6673, %v6785
    %6787 = vdwg.mxu0
    %6788 = vmatprep.subr.mxu0 %v5477
    %6789 = vmatpush1.msra.mxu0 %v5476
    %6790 = vmatprep.subr.mxu0 %v5489
    %6791 = vmatpush1.msra.mxu0 %v5488
    %6792 = vmatprep.subr.mxu0 %v5501
    %6793 = vmatpush1.msra.mxu0 %v5500
    %6794 = vmatprep.subr.mxu0 %v5513
    %6795 = vmatpush1.msra.mxu0 %v5512
    %6796 = vmatprep.subr.mxu0 %v5525
    %6797 = vmatpush1.msra.mxu0 %v5524
    %6798 = vmatprep.subr.mxu0 %v5537
    %6799 = vmatpush1.msra.mxu0 %v5536
    %6800 = vmatprep.subr.mxu0 %v5549
    %6801 = vmatpush1.msra.mxu0 %v5548
    %6802 = vmatprep.subr.mxu0 %v5561
    %6803 = vmatpush1.msra.mxu0 %v5560
    %6804 = vmatprep.subr.mxu0 %v5573
    %6805 = vmatpush1.msra.mxu0 %v5572
    %6806 = vmatprep.subr.mxu0 %v5585
    %6807 = vmatpush1.msra.mxu0 %v5584
    %6808 = vmatprep.subr.mxu0 %v5597
    %6809 = vmatpush1.msra.mxu0 %v5596
    %6810 = vmatprep.subr.mxu0 %v5609
    %6811 = vmatpush1.msra.mxu0 %v5608
    %6812 = vmatprep.subr.mxu0 %v5621
    %6813 = vmatpush1.msra.mxu0 %v5620
    %6814 = vmatprep.subr.mxu0 %v5633
    %6815 = vmatpush1.msra.mxu0 %v5632
    %6816 = vmatprep.subr.mxu0 %v5645
    %6817 = vmatpush1.msra.mxu0 %v5644
    %6818 = vmatprep.subr.mxu0 %v5657
    %6819 = vmatpush1.msra.mxu0 %v5656
    %6820 = vmatprep.subr.mxu0 %v5669
    %6821 = vmatpush1.msra.mxu0 %v5668
    %6822 = vmatprep.subr.mxu0 %v5681
    %6823 = vmatpush1.msra.mxu0 %v5680
    %6824 = vmatprep.subr.mxu0 %v5693
    %6825 = vmatpush1.msra.mxu0 %v5692
    %6826 = vmatprep.subr.mxu0 %v5705
    %6827 = vmatpush1.msra.mxu0 %v5704
    %6828 = vmatprep.subr.mxu0 %v5717
    %6829 = vmatpush1.msra.mxu0 %v5716
    %6830 = vmatprep.subr.mxu0 %v5729
    %6831 = vmatpush1.msra.mxu0 %v5728
    %6832 = vmatprep.subr.mxu0 %v5741
    %6833 = vmatpush1.msra.mxu0 %v5740
    %6834 = vmatprep.subr.mxu0 %v5753
    %6835 = vmatpush1.msra.mxu0 %v5752
    %6836 = vmatprep.subr.mxu0 %v5765
    %6837 = vmatpush1.msra.mxu0 %v5764
    %6838 = vmatprep.subr.mxu0 %v5777
    %6839 = vmatpush1.msra.mxu0 %v5776
    %6840 = vmatprep.subr.mxu0 %v5789
    %6841 = vmatpush1.msra.mxu0 %v5788
    %6842 = vmatprep.subr.mxu0 %v5801
    %6843 = vmatpush1.msra.mxu0 %v5800
    %6844 = vmatprep.subr.mxu0 %v5813
    %6845 = vmatpush1.msra.mxu0 %v5812
    %6846 = vmatprep.subr.mxu0 %v5825
    %6847 = vmatpush1.msra.mxu0 %v5824
    %6848 = vmatprep.subr.mxu0 %v5837
    %6849 = vmatpush1.msra.mxu0 %v5836
    %6850 = vmatprep.subr.mxu0 %v5849
    %6851 = vmatpush1.msra.mxu0 %v5848
    %6852 = vmatprep.mubr.f32.mxu0 %v5447
    %6853 = vmatmul.mubr.f32.gmra.mrb[0].mxu0 %v5446
    %v6854 = vpop.f32.mrb[0].mxu0
    %v6855 = vadd.f32 %v6077, %v6854
    %v6856 = vpop.f32.mrb[0].mxu0
    %v6857 = vadd.f32 %v6081, %v6856
    %6858 = vmatprep.mubr.f32.mxu0 %v5450
    %6859 = vmatmul.mubr.f32.gmra.mrb[0].mxu0 %v5449
    %v6860 = vpop.f32.mrb[0].mxu0
    %v6861 = vadd.f32 %v6077, %v6860
    %v6862 = vpop.f32.mrb[0].mxu0
    %v6863 = vadd.f32 %v6081, %v6862
    %6864 = vmatprep.mubr.f32.mxu0 %v5453
    %6865 = vmatmul.mubr.f32.gmra.mrb[0].mxu0 %v5452
    %v6866 = vpop.f32.mrb[0].mxu0
    %v6867 = vadd.f32 %v6077, %v6866
    %v6868 = vpop.f32.mrb[0].mxu0
    %v6869 = vadd.f32 %v6081, %v6868
    %6870 = vmatprep.mubr.f32.mxu0 %v5456
    %6871 = vmatmul.mubr.f32.gmra.mrb[0].mxu0 %v5455
    %v6872 = vpop.f32.mrb[0].mxu0
    %v6873 = vadd.f32 %v6077, %v6872
    %v6874 = vpop.f32.mrb[0].mxu0
    %v6875 = vadd.f32 %v6081, %v6874
    %6876 = vmatprep.mubr.f32.mxu0 %v5459
    %6877 = vmatmul.mubr.f32.gmra.mrb[0].mxu0 %v5458
    %v6878 = vpop.f32.mrb[0].mxu0
    %v6879 = vadd.f32 %v6077, %v6878
    %v6880 = vpop.f32.mrb[0].mxu0
    %v6881 = vadd.f32 %v6081, %v6880
    %6882 = vmatprep.mubr.f32.mxu0 %v5462
    %6883 = vmatmul.mubr.f32.gmra.mrb[0].mxu0 %v5461
    %v6884 = vpop.f32.mrb[0].mxu0
    %v6885 = vadd.f32 %v6077, %v6884
    %v6886 = vpop.f32.mrb[0].mxu0
    %v6887 = vadd.f32 %v6081, %v6886
    %6888 = vmatprep.mubr.f32.mxu0 %v5465
    %6889 = vmatmul.mubr.f32.gmra.mrb[0].mxu0 %v5464
    %v6890 = vpop.f32.mrb[0].mxu0
    %v6891 = vadd.f32 %v6077, %v6890
    %v6892 = vpop.f32.mrb[0].mxu0
    %v6893 = vadd.f32 %v6081, %v6892
    %6894 = vmatprep.mubr.f32.mxu0 %v5468
    %6895 = vmatmul.mubr.f32.gmra.mrb[0].mxu0 %v5467
    %v6896 = vpop.f32.mrb[0].mxu0
    %v6897 = vadd.f32 %v6077, %v6896
    %v6898 = vpop.f32.mrb[0].mxu0
    %v6899 = vadd.f32 %v6081, %v6898
    %6900 = vdwg.mxu0
    %6901 = vmatprep.subr.mxu0 %v5861
    %6902 = vmatpush1.msra.mxu0 %v5860
    %6903 = vmatprep.subr.mxu0 %v5873
    %6904 = vmatpush1.msra.mxu0 %v5872
    %6905 = vmatprep.subr.mxu0 %v5885
    %6906 = vmatpush1.msra.mxu0 %v5884
    %6907 = vmatprep.subr.mxu0 %v5897
    %6908 = vmatpush1.msra.mxu0 %v5896
    %6909 = vmatprep.subr.mxu0 %v5909
    %6910 = vmatpush1.msra.mxu0 %v5908
    %6911 = vmatprep.subr.mxu0 %v5921
    %6912 = vmatpush1.msra.mxu0 %v5920
    %6913 = vmatprep.subr.mxu0 %v5933
    %6914 = vmatpush1.msra.mxu0 %v5932
    %6915 = vmatprep.subr.mxu0 %v5945
    %6916 = vmatpush1.msra.mxu0 %v5944
    %6917 = vmatprep.subr.mxu0 %v5957
    %6918 = vmatpush1.msra.mxu0 %v5956
    %6919 = vmatprep.subr.mxu0 %v5969
    %6920 = vmatpush1.msra.mxu0 %v5968
    %6921 = vmatprep.subr.mxu0 %v5981
    %6922 = vmatpush1.msra.mxu0 %v5980
    %6923 = vmatprep.subr.mxu0 %v5993
    %6924 = vmatpush1.msra.mxu0 %v5992
    %6925 = vmatprep.subr.mxu0 %v6005
    %6926 = vmatpush1.msra.mxu0 %v6004
    %6927 = vmatprep.subr.mxu0 %v6017
    %6928 = vmatpush1.msra.mxu0 %v6016
    %6929 = vmatprep.subr.mxu0 %v6029
    %6930 = vmatpush1.msra.mxu0 %v6028
    %6931 = vmatprep.subr.mxu0 %v6041
    %6932 = vmatpush1.msra.mxu0 %v6040
    %6933 = vmatprep.subr.mxu0 0.0
    %6934 = vmatpush1.msra.mxu0 0.0
    %6935 = vmatprep.subr.mxu0 0.0
    %6936 = vmatpush1.msra.mxu0 0.0
    %6937 = vmatprep.subr.mxu0 0.0
    %6938 = vmatpush1.msra.mxu0 0.0
    %6939 = vmatprep.subr.mxu0 0.0
    %6940 = vmatpush1.msra.mxu0 0.0
    %6941 = vmatprep.subr.mxu0 0.0
    %6942 = vmatpush1.msra.mxu0 0.0
    %6943 = vmatprep.subr.mxu0 0.0
    %6944 = vmatpush1.msra.mxu0 0.0
    %6945 = vmatprep.subr.mxu0 0.0
    %6946 = vmatpush1.msra.mxu0 0.0
    %6947 = vmatprep.subr.mxu0 0.0
    %6948 = vmatpush1.msra.mxu0 0.0
    %6949 = vmatprep.subr.mxu0 0.0
    %6950 = vmatpush1.msra.mxu0 0.0
    %6951 = vmatprep.subr.mxu0 0.0
    %6952 = vmatpush1.msra.mxu0 0.0
    %6953 = vmatprep.subr.mxu0 0.0
    %6954 = vmatpush1.msra.mxu0 0.0
    %6955 = vmatprep.subr.mxu0 0.0
    %6956 = vmatpush1.msra.mxu0 0.0
    %6957 = vmatprep.subr.mxu0 0.0
    %6958 = vmatpush1.msra.mxu0 0.0
    %6959 = vmatprep.subr.mxu0 0.0
    %6960 = vmatpush1.msra.mxu0 0.0
    %6961 = vmatprep.subr.mxu0 0.0
    %6962 = vmatpush1.msra.mxu0 0.0
    %6963 = vmatprep.subr.mxu0 0.0
    %6964 = vmatpush1.msra.mxu0 0.0
    %6965 = vmatprep.mubr.f32.mxu0 0.0
    %6966 = vmatmul.mubr.f32.gmra.mrb[0].mxu0 %v5448
    %v6967 = vpop.f32.mrb[0].mxu0
    %v6968 = vadd.f32 %v6855, %v6967
    %v6969 = vpop.f32.mrb[0].mxu0
    %v6970 = vadd.f32 %v6857, %v6969
    %6971 = vmatprep.mubr.f32.mxu0 0.0
    %6972 = vmatmul.mubr.f32.gmra.mrb[0].mxu0 %v5451
    %v6973 = vpop.f32.mrb[0].mxu0
    %v6974 = vadd.f32 %v6861, %v6973
    %v6975 = vpop.f32.mrb[0].mxu0
    %v6976 = vadd.f32 %v6863, %v6975
    %6977 = vmatprep.mubr.f32.mxu0 0.0
    %6978 = vmatmul.mubr.f32.gmra.mrb[0].mxu0 %v5454
    %v6979 = vpop.f32.mrb[0].mxu0
    %v6980 = vadd.f32 %v6867, %v6979
    %v6981 = vpop.f32.mrb[0].mxu0
    %v6982 = vadd.f32 %v6869, %v6981
    %6983 = vmatprep.mubr.f32.mxu0 0.0
    %6984 = vmatmul.mubr.f32.gmra.mrb[0].mxu0 %v5457
    %v6985 = vpop.f32.mrb[0].mxu0
    %v6986 = vadd.f32 %v6873, %v6985
    %v6987 = vpop.f32.mrb[0].mxu0
    %v6988 = vadd.f32 %v6875, %v6987
    %6989 = vmatprep.mubr.f32.mxu0 0.0
    %6990 = vmatmul.mubr.f32.gmra.mrb[0].mxu0 %v5460
    %v6991 = vpop.f32.mrb[0].mxu0
    %v6992 = vadd.f32 %v6879, %v6991
    %v6993 = vpop.f32.mrb[0].mxu0
    %v6994 = vadd.f32 %v6881, %v6993
    %6995 = vmatprep.mubr.f32.mxu0 0.0
    %6996 = vmatmul.mubr.f32.gmra.mrb[0].mxu0 %v5463
    %v6997 = vpop.f32.mrb[0].mxu0
    %v6998 = vadd.f32 %v6885, %v6997
    %v6999 = vpop.f32.mrb[0].mxu0
    %v7000 = vadd.f32 %v6887, %v6999
    %7001 = vmatprep.mubr.f32.mxu0 0.0
    %7002 = vmatmul.mubr.f32.gmra.mrb[0].mxu0 %v5466
    %v7003 = vpop.f32.mrb[0].mxu0
    %v7004 = vadd.f32 %v6891, %v7003
    %v7005 = vpop.f32.mrb[0].mxu0
    %v7006 = vadd.f32 %v6893, %v7005
    %7007 = vmatprep.mubr.f32.mxu0 0.0
    %7008 = vmatmul.mubr.f32.gmra.mrb[0].mxu0 %v5469
    %v7009 = vpop.f32.mrb[0].mxu0
    %v7010 = vadd.f32 %v6897, %v7009
    %v7011 = vpop.f32.mrb[0].mxu0
    %v7012 = vadd.f32 %v6899, %v7011
    %7013 = vdwg.mxu0
    %7014 = vmatprep.subr.mxu0 %v5479
    %7015 = vmatpush1.msra.mxu0 %v5478
    %7016 = vmatprep.subr.mxu0 %v5491
    %7017 = vmatpush1.msra.mxu0 %v5490
    %7018 = vmatprep.subr.mxu0 %v5503
    %7019 = vmatpush1.msra.mxu0 %v5502
    %7020 = vmatprep.subr.mxu0 %v5515
    %7021 = vmatpush1.msra.mxu0 %v5514
    %7022 = vmatprep.subr.mxu0 %v5527
    %7023 = vmatpush1.msra.mxu0 %v5526
    %7024 = vmatprep.subr.mxu0 %v5539
    %7025 = vmatpush1.msra.mxu0 %v5538
    %7026 = vmatprep.subr.mxu0 %v5551
    %7027 = vmatpush1.msra.mxu0 %v5550
    %7028 = vmatprep.subr.mxu0 %v5563
    %7029 = vmatpush1.msra.mxu0 %v5562
    %7030 = vmatprep.subr.mxu0 %v5575
    %7031 = vmatpush1.msra.mxu0 %v5574
    %7032 = vmatprep.subr.mxu0 %v5587
    %7033 = vmatpush1.msra.mxu0 %v5586
    %7034 = vmatprep.subr.mxu0 %v5599
    %7035 = vmatpush1.msra.mxu0 %v5598
    %7036 = vmatprep.subr.mxu0 %v5611
    %7037 = vmatpush1.msra.mxu0 %v5610
    %7038 = vmatprep.subr.mxu0 %v5623
    %7039 = vmatpush1.msra.mxu0 %v5622
    %7040 = vmatprep.subr.mxu0 %v5635
    %7041 = vmatpush1.msra.mxu0 %v5634
    %7042 = vmatprep.subr.mxu0 %v5647
    %7043 = vmatpush1.msra.mxu0 %v5646
    %7044 = vmatprep.subr.mxu0 %v5659
    %7045 = vmatpush1.msra.mxu0 %v5658
    %7046 = vmatprep.subr.mxu0 %v5671
    %7047 = vmatpush1.msra.mxu0 %v5670
    %7048 = vmatprep.subr.mxu0 %v5683
    %7049 = vmatpush1.msra.mxu0 %v5682
    %7050 = vmatprep.subr.mxu0 %v5695
    %7051 = vmatpush1.msra.mxu0 %v5694
    %7052 = vmatprep.subr.mxu0 %v5707
    %7053 = vmatpush1.msra.mxu0 %v5706
    %7054 = vmatprep.subr.mxu0 %v5719
    %7055 = vmatpush1.msra.mxu0 %v5718
    %7056 = vmatprep.subr.mxu0 %v5731
    %7057 = vmatpush1.msra.mxu0 %v5730
    %7058 = vmatprep.subr.mxu0 %v5743
    %7059 = vmatpush1.msra.mxu0 %v5742
    %7060 = vmatprep.subr.mxu0 %v5755
    %7061 = vmatpush1.msra.mxu0 %v5754
    %7062 = vmatprep.subr.mxu0 %v5767
    %7063 = vmatpush1.msra.mxu0 %v5766
    %7064 = vmatprep.subr.mxu0 %v5779
    %7065 = vmatpush1.msra.mxu0 %v5778
    %7066 = vmatprep.subr.mxu0 %v5791
    %7067 = vmatpush1.msra.mxu0 %v5790
    %7068 = vmatprep.subr.mxu0 %v5803
    %7069 = vmatpush1.msra.mxu0 %v5802
    %7070 = vmatprep.subr.mxu0 %v5815
    %7071 = vmatpush1.msra.mxu0 %v5814
    %7072 = vmatprep.subr.mxu0 %v5827
    %7073 = vmatpush1.msra.mxu0 %v5826
    %7074 = vmatprep.subr.mxu0 %v5839
    %7075 = vmatpush1.msra.mxu0 %v5838
    %7076 = vmatprep.subr.mxu0 %v5851
    %7077 = vmatpush1.msra.mxu0 %v5850
    %7078 = vmatprep.mubr.f32.mxu0 %v5447
    %7079 = vmatmul.mubr.f32.gmra.mrb[0].mxu0 %v5446
    %v7080 = vpop.f32.mrb[0].mxu0
    %v7081 = vadd.f32 %v6085, %v7080
    %v7082 = vpop.f32.mrb[0].mxu0
    %v7083 = vadd.f32 %v6089, %v7082
    %7084 = vmatprep.mubr.f32.mxu0 %v5450
    %7085 = vmatmul.mubr.f32.gmra.mrb[0].mxu0 %v5449
    %v7086 = vpop.f32.mrb[0].mxu0
    %v7087 = vadd.f32 %v6085, %v7086
    %v7088 = vpop.f32.mrb[0].mxu0
    %v7089 = vadd.f32 %v6089, %v7088
    %7090 = vmatprep.mubr.f32.mxu0 %v5453
    %7091 = vmatmul.mubr.f32.gmra.mrb[0].mxu0 %v5452
    %v7092 = vpop.f32.mrb[0].mxu0
    %v7093 = vadd.f32 %v6085, %v7092
    %v7094 = vpop.f32.mrb[0].mxu0
    %v7095 = vadd.f32 %v6089, %v7094
    %7096 = vmatprep.mubr.f32.mxu0 %v5456
    %7097 = vmatmul.mubr.f32.gmra.mrb[0].mxu0 %v5455
    %v7098 = vpop.f32.mrb[0].mxu0
    %v7099 = vadd.f32 %v6085, %v7098
    %v7100 = vpop.f32.mrb[0].mxu0
    %v7101 = vadd.f32 %v6089, %v7100
    %7102 = vmatprep.mubr.f32.mxu0 %v5459
    %7103 = vmatmul.mubr.f32.gmra.mrb[0].mxu0 %v5458
    %v7104 = vpop.f32.mrb[0].mxu0
    %v7105 = vadd.f32 %v6085, %v7104
    %v7106 = vpop.f32.mrb[0].mxu0
    %v7107 = vadd.f32 %v6089, %v7106
    %7108 = vmatprep.mubr.f32.mxu0 %v5462
    %7109 = vmatmul.mubr.f32.gmra.mrb[0].mxu0 %v5461
    %v7110 = vpop.f32.mrb[0].mxu0
    %v7111 = vadd.f32 %v6085, %v7110
    %v7112 = vpop.f32.mrb[0].mxu0
    %v7113 = vadd.f32 %v6089, %v7112
    %7114 = vmatprep.mubr.f32.mxu0 %v5465
    %7115 = vmatmul.mubr.f32.gmra.mrb[0].mxu0 %v5464
    %v7116 = vpop.f32.mrb[0].mxu0
    %v7117 = vadd.f32 %v6085, %v7116
    %v7118 = vpop.f32.mrb[0].mxu0
    %v7119 = vadd.f32 %v6089, %v7118
    %7120 = vmatprep.mubr.f32.mxu0 %v5468
    %7121 = vmatmul.mubr.f32.gmra.mrb[0].mxu0 %v5467
    %v7122 = vpop.f32.mrb[0].mxu0
    %v7123 = vadd.f32 %v6085, %v7122
    %v7124 = vpop.f32.mrb[0].mxu0
    %v7125 = vadd.f32 %v6089, %v7124
    %7126 = vdwg.mxu0
    %7127 = vmatprep.subr.mxu0 %v5863
    %7128 = vmatpush1.msra.mxu0 %v5862
    %7129 = vmatprep.subr.mxu0 %v5875
    %7130 = vmatpush1.msra.mxu0 %v5874
    %7131 = vmatprep.subr.mxu0 %v5887
    %7132 = vmatpush1.msra.mxu0 %v5886
    %7133 = vmatprep.subr.mxu0 %v5899
    %7134 = vmatpush1.msra.mxu0 %v5898
    %7135 = vmatprep.subr.mxu0 %v5911
    %7136 = vmatpush1.msra.mxu0 %v5910
    %7137 = vmatprep.subr.mxu0 %v5923
    %7138 = vmatpush1.msra.mxu0 %v5922
    %7139 = vmatprep.subr.mxu0 %v5935
    %7140 = vmatpush1.msra.mxu0 %v5934
    %7141 = vmatprep.subr.mxu0 %v5947
    %7142 = vmatpush1.msra.mxu0 %v5946
    %7143 = vmatprep.subr.mxu0 %v5959
    %7144 = vmatpush1.msra.mxu0 %v5958
    %7145 = vmatprep.subr.mxu0 %v5971
    %7146 = vmatpush1.msra.mxu0 %v5970
    %7147 = vmatprep.subr.mxu0 %v5983
    %7148 = vmatpush1.msra.mxu0 %v5982
    %7149 = vmatprep.subr.mxu0 %v5995
    %7150 = vmatpush1.msra.mxu0 %v5994
    %7151 = vmatprep.subr.mxu0 %v6007
    %7152 = vmatpush1.msra.mxu0 %v6006
    %7153 = vmatprep.subr.mxu0 %v6019
    %7154 = vmatpush1.msra.mxu0 %v6018
    %7155 = vmatprep.subr.mxu0 %v6031
    %7156 = vmatpush1.msra.mxu0 %v6030
    %7157 = vmatprep.subr.mxu0 %v6043
    %7158 = vmatpush1.msra.mxu0 %v6042
    %7159 = vmatprep.subr.mxu0 0.0
    %7160 = vmatpush1.msra.mxu0 0.0
    %7161 = vmatprep.subr.mxu0 0.0
    %7162 = vmatpush1.msra.mxu0 0.0
    %7163 = vmatprep.subr.mxu0 0.0
    %7164 = vmatpush1.msra.mxu0 0.0
    %7165 = vmatprep.subr.mxu0 0.0
    %7166 = vmatpush1.msra.mxu0 0.0
    %7167 = vmatprep.subr.mxu0 0.0
    %7168 = vmatpush1.msra.mxu0 0.0
    %7169 = vmatprep.subr.mxu0 0.0
    %7170 = vmatpush1.msra.mxu0 0.0
    %7171 = vmatprep.subr.mxu0 0.0
    %7172 = vmatpush1.msra.mxu0 0.0
    %7173 = vmatprep.subr.mxu0 0.0
    %7174 = vmatpush1.msra.mxu0 0.0
    %7175 = vmatprep.subr.mxu0 0.0
    %7176 = vmatpush1.msra.mxu0 0.0
    %7177 = vmatprep.subr.mxu0 0.0
    %7178 = vmatpush1.msra.mxu0 0.0
    %7179 = vmatprep.subr.mxu0 0.0
    %7180 = vmatpush1.msra.mxu0 0.0
    %7181 = vmatprep.subr.mxu0 0.0
    %7182 = vmatpush1.msra.mxu0 0.0
    %7183 = vmatprep.subr.mxu0 0.0
    %7184 = vmatpush1.msra.mxu0 0.0
    %7185 = vmatprep.subr.mxu0 0.0
    %7186 = vmatpush1.msra.mxu0 0.0
    %7187 = vmatprep.subr.mxu0 0.0
    %7188 = vmatpush1.msra.mxu0 0.0
    %7189 = vmatprep.subr.mxu0 0.0
    %7190 = vmatpush1.msra.mxu0 0.0
    %7191 = vmatprep.mubr.f32.mxu0 0.0
    %7192 = vmatmul.mubr.f32.gmra.mrb[0].mxu0 %v5448
    %v7193 = vpop.f32.mrb[0].mxu0
    %v7194 = vadd.f32 %v7081, %v7193
    %v7195 = vpop.f32.mrb[0].mxu0
    %v7196 = vadd.f32 %v7083, %v7195
    %7197 = vmatprep.mubr.f32.mxu0 0.0
    %7198 = vmatmul.mubr.f32.gmra.mrb[0].mxu0 %v5451
    %v7199 = vpop.f32.mrb[0].mxu0
    %v7200 = vadd.f32 %v7087, %v7199
    %v7201 = vpop.f32.mrb[0].mxu0
    %v7202 = vadd.f32 %v7089, %v7201
    %7203 = vmatprep.mubr.f32.mxu0 0.0
    %7204 = vmatmul.mubr.f32.gmra.mrb[0].mxu0 %v5454
    %v7205 = vpop.f32.mrb[0].mxu0
    %v7206 = vadd.f32 %v7093, %v7205
    %v7207 = vpop.f32.mrb[0].mxu0
    %v7208 = vadd.f32 %v7095, %v7207
    %7209 = vmatprep.mubr.f32.mxu0 0.0
    %7210 = vmatmul.mubr.f32.gmra.mrb[0].mxu0 %v5457
    %v7211 = vpop.f32.mrb[0].mxu0
    %v7212 = vadd.f32 %v7099, %v7211
    %v7213 = vpop.f32.mrb[0].mxu0
    %v7214 = vadd.f32 %v7101, %v7213
    %7215 = vmatprep.mubr.f32.mxu0 0.0
    %7216 = vmatmul.mubr.f32.gmra.mrb[0].mxu0 %v5460
    %v7217 = vpop.f32.mrb[0].mxu0
    %v7218 = vadd.f32 %v7105, %v7217
    %v7219 = vpop.f32.mrb[0].mxu0
    %v7220 = vadd.f32 %v7107, %v7219
    %7221 = vmatprep.mubr.f32.mxu0 0.0
    %7222 = vmatmul.mubr.f32.gmra.mrb[0].mxu0 %v5463
    %v7223 = vpop.f32.mrb[0].mxu0
    %v7224 = vadd.f32 %v7111, %v7223
    %v7225 = vpop.f32.mrb[0].mxu0
    %v7226 = vadd.f32 %v7113, %v7225
    %7227 = vmatprep.mubr.f32.mxu0 0.0
    %7228 = vmatmul.mubr.f32.gmra.mrb[0].mxu0 %v5466
    %v7229 = vpop.f32.mrb[0].mxu0
    %v7230 = vadd.f32 %v7117, %v7229
    %v7231 = vpop.f32.mrb[0].mxu0
    %v7232 = vadd.f32 %v7119, %v7231
    %7233 = vmatprep.mubr.f32.mxu0 0.0
    %7234 = vmatmul.mubr.f32.gmra.mrb[0].mxu0 %v5469
    %v7235 = vpop.f32.mrb[0].mxu0
    %v7236 = vadd.f32 %v7123, %v7235
    %v7237 = vpop.f32.mrb[0].mxu0
    %v7238 = vadd.f32 %v7125, %v7237
    %7239 = vdwg.mxu0
    %7240 = vmatprep.subr.mxu0 %v5481
    %7241 = vmatpush1.msra.mxu0 %v5480
    %7242 = vmatprep.subr.mxu0 %v5493
    %7243 = vmatpush1.msra.mxu0 %v5492
    %7244 = vmatprep.subr.mxu0 %v5505
    %7245 = vmatpush1.msra.mxu0 %v5504
    %7246 = vmatprep.subr.mxu0 %v5517
    %7247 = vmatpush1.msra.mxu0 %v5516
    %7248 = vmatprep.subr.mxu0 %v5529
    %7249 = vmatpush1.msra.mxu0 %v5528
    %7250 = vmatprep.subr.mxu0 %v5541
    %7251 = vmatpush1.msra.mxu0 %v5540
    %7252 = vmatprep.subr.mxu0 %v5553
    %7253 = vmatpush1.msra.mxu0 %v5552
    %7254 = vmatprep.subr.mxu0 %v5565
    %7255 = vmatpush1.msra.mxu0 %v5564
    %7256 = vmatprep.subr.mxu0 %v5577
    %7257 = vmatpush1.msra.mxu0 %v5576
    %7258 = vmatprep.subr.mxu0 %v5589
    %7259 = vmatpush1.msra.mxu0 %v5588
    %7260 = vmatprep.subr.mxu0 %v5601
    %7261 = vmatpush1.msra.mxu0 %v5600
    %7262 = vmatprep.subr.mxu0 %v5613
    %7263 = vmatpush1.msra.mxu0 %v5612
    %7264 = vmatprep.subr.mxu0 %v5625
    %7265 = vmatpush1.msra.mxu0 %v5624
    %7266 = vmatprep.subr.mxu0 %v5637
    %7267 = vmatpush1.msra.mxu0 %v5636
    %7268 = vmatprep.subr.mxu0 %v5649
    %7269 = vmatpush1.msra.mxu0 %v5648
    %7270 = vmatprep.subr.mxu0 %v5661
    %7271 = vmatpush1.msra.mxu0 %v5660
    %7272 = vmatprep.subr.mxu0 %v5673
    %7273 = vmatpush1.msra.mxu0 %v5672
    %7274 = vmatprep.subr.mxu0 %v5685
    %7275 = vmatpush1.msra.mxu0 %v5684
    %7276 = vmatprep.subr.mxu0 %v5697
    %7277 = vmatpush1.msra.mxu0 %v5696
    %7278 = vmatprep.subr.mxu0 %v5709
    %7279 = vmatpush1.msra.mxu0 %v5708
    %7280 = vmatprep.subr.mxu0 %v5721
    %7281 = vmatpush1.msra.mxu0 %v5720
    %7282 = vmatprep.subr.mxu0 %v5733
    %7283 = vmatpush1.msra.mxu0 %v5732
    %7284 = vmatprep.subr.mxu0 %v5745
    %7285 = vmatpush1.msra.mxu0 %v5744
    %7286 = vmatprep.subr.mxu0 %v5757
    %7287 = vmatpush1.msra.mxu0 %v5756
    %7288 = vmatprep.subr.mxu0 %v5769
    %7289 = vmatpush1.msra.mxu0 %v5768
    %7290 = vmatprep.subr.mxu0 %v5781
    %7291 = vmatpush1.msra.mxu0 %v5780
    %7292 = vmatprep.subr.mxu0 %v5793
    %7293 = vmatpush1.msra.mxu0 %v5792
    %7294 = vmatprep.subr.mxu0 %v5805
    %7295 = vmatpush1.msra.mxu0 %v5804
    %7296 = vmatprep.subr.mxu0 %v5817
    %7297 = vmatpush1.msra.mxu0 %v5816
    %7298 = vmatprep.subr.mxu0 %v5829
    %7299 = vmatpush1.msra.mxu0 %v5828
    %7300 = vmatprep.subr.mxu0 %v5841
    %7301 = vmatpush1.msra.mxu0 %v5840
    %7302 = vmatprep.subr.mxu0 %v5853
    %7303 = vmatpush1.msra.mxu0 %v5852
    %7304 = vmatprep.mubr.f32.mxu0 %v5447
    %7305 = vmatmul.mubr.f32.gmra.mrb[0].mxu0 %v5446
    %v7306 = vpop.f32.mrb[0].mxu0
    %v7307 = vadd.f32 %v6093, %v7306
    %v7308 = vpop.f32.mrb[0].mxu0
    %v7309 = vadd.f32 %v6097, %v7308
    %7310 = vmatprep.mubr.f32.mxu0 %v5450
    %7311 = vmatmul.mubr.f32.gmra.mrb[0].mxu0 %v5449
    %v7312 = vpop.f32.mrb[0].mxu0
    %v7313 = vadd.f32 %v6093, %v7312
    %v7314 = vpop.f32.mrb[0].mxu0
    %v7315 = vadd.f32 %v6097, %v7314
    %7316 = vmatprep.mubr.f32.mxu0 %v5453
    %7317 = vmatmul.mubr.f32.gmra.mrb[0].mxu0 %v5452
    %v7318 = vpop.f32.mrb[0].mxu0
    %v7319 = vadd.f32 %v6093, %v7318
    %v7320 = vpop.f32.mrb[0].mxu0
    %v7321 = vadd.f32 %v6097, %v7320
    %7322 = vmatprep.mubr.f32.mxu0 %v5456
    %7323 = vmatmul.mubr.f32.gmra.mrb[0].mxu0 %v5455
    %v7324 = vpop.f32.mrb[0].mxu0
    %v7325 = vadd.f32 %v6093, %v7324
    %v7326 = vpop.f32.mrb[0].mxu0
    %v7327 = vadd.f32 %v6097, %v7326
    %7328 = vmatprep.mubr.f32.mxu0 %v5459
    %7329 = vmatmul.mubr.f32.gmra.mrb[0].mxu0 %v5458
    %v7330 = vpop.f32.mrb[0].mxu0
    %v7331 = vadd.f32 %v6093, %v7330
    %v7332 = vpop.f32.mrb[0].mxu0
    %v7333 = vadd.f32 %v6097, %v7332
    %7334 = vmatprep.mubr.f32.mxu0 %v5462
    %7335 = vmatmul.mubr.f32.gmra.mrb[0].mxu0 %v5461
    %v7336 = vpop.f32.mrb[0].mxu0
    %v7337 = vadd.f32 %v6093, %v7336
    %v7338 = vpop.f32.mrb[0].mxu0
    %v7339 = vadd.f32 %v6097, %v7338
    %7340 = vmatprep.mubr.f32.mxu0 %v5465
    %7341 = vmatmul.mubr.f32.gmra.mrb[0].mxu0 %v5464
    %v7342 = vpop.f32.mrb[0].mxu0
    %v7343 = vadd.f32 %v6093, %v7342
    %v7344 = vpop.f32.mrb[0].mxu0
    %v7345 = vadd.f32 %v6097, %v7344
    %7346 = vmatprep.mubr.f32.mxu0 %v5468
    %7347 = vmatmul.mubr.f32.gmra.mrb[0].mxu0 %v5467
    %v7348 = vpop.f32.mrb[0].mxu0
    %v7349 = vadd.f32 %v6093, %v7348
    %v7350 = vpop.f32.mrb[0].mxu0
    %v7351 = vadd.f32 %v6097, %v7350
    %7352 = vdwg.mxu0
    %7353 = vmatprep.subr.mxu0 %v5865
    %7354 = vmatpush1.msra.mxu0 %v5864
    %7355 = vmatprep.subr.mxu0 %v5877
    %7356 = vmatpush1.msra.mxu0 %v5876
    %7357 = vmatprep.subr.mxu0 %v5889
    %7358 = vmatpush1.msra.mxu0 %v5888
    %7359 = vmatprep.subr.mxu0 %v5901
    %7360 = vmatpush1.msra.mxu0 %v5900
    %7361 = vmatprep.subr.mxu0 %v5913
    %7362 = vmatpush1.msra.mxu0 %v5912
    %7363 = vmatprep.subr.mxu0 %v5925
    %7364 = vmatpush1.msra.mxu0 %v5924
    %7365 = vmatprep.subr.mxu0 %v5937
    %7366 = vmatpush1.msra.mxu0 %v5936
    %7367 = vmatprep.subr.mxu0 %v5949
    %7368 = vmatpush1.msra.mxu0 %v5948
    %7369 = vmatprep.subr.mxu0 %v5961
    %7370 = vmatpush1.msra.mxu0 %v5960
    %7371 = vmatprep.subr.mxu0 %v5973
    %7372 = vmatpush1.msra.mxu0 %v5972
    %7373 = vmatprep.subr.mxu0 %v5985
    %7374 = vmatpush1.msra.mxu0 %v5984
    %7375 = vmatprep.subr.mxu0 %v5997
    %7376 = vmatpush1.msra.mxu0 %v5996
    %7377 = vmatprep.subr.mxu0 %v6009
    %7378 = vmatpush1.msra.mxu0 %v6008
    %7379 = vmatprep.subr.mxu0 %v6021
    %7380 = vmatpush1.msra.mxu0 %v6020
    %7381 = vmatprep.subr.mxu0 %v6033
    %7382 = vmatpush1.msra.mxu0 %v6032
    %7383 = vmatprep.subr.mxu0 %v6045
    %7384 = vmatpush1.msra.mxu0 %v6044
    %7385 = vmatprep.subr.mxu0 0.0
    %7386 = vmatpush1.msra.mxu0 0.0
    %7387 = vmatprep.subr.mxu0 0.0
    %7388 = vmatpush1.msra.mxu0 0.0
    %7389 = vmatprep.subr.mxu0 0.0
    %7390 = vmatpush1.msra.mxu0 0.0
    %7391 = vmatprep.subr.mxu0 0.0
    %7392 = vmatpush1.msra.mxu0 0.0
    %7393 = vmatprep.subr.mxu0 0.0
    %7394 = vmatpush1.msra.mxu0 0.0
    %7395 = vmatprep.subr.mxu0 0.0
    %7396 = vmatpush1.msra.mxu0 0.0
    %7397 = vmatprep.subr.mxu0 0.0
    %7398 = vmatpush1.msra.mxu0 0.0
    %7399 = vmatprep.subr.mxu0 0.0
    %7400 = vmatpush1.msra.mxu0 0.0
    %7401 = vmatprep.subr.mxu0 0.0
    %7402 = vmatpush1.msra.mxu0 0.0
    %7403 = vmatprep.subr.mxu0 0.0
    %7404 = vmatpush1.msra.mxu0 0.0
    %7405 = vmatprep.subr.mxu0 0.0
    %7406 = vmatpush1.msra.mxu0 0.0
    %7407 = vmatprep.subr.mxu0 0.0
    %7408 = vmatpush1.msra.mxu0 0.0
    %7409 = vmatprep.subr.mxu0 0.0
    %7410 = vmatpush1.msra.mxu0 0.0
    %7411 = vmatprep.subr.mxu0 0.0
    %7412 = vmatpush1.msra.mxu0 0.0
    %7413 = vmatprep.subr.mxu0 0.0
    %7414 = vmatpush1.msra.mxu0 0.0
    %7415 = vmatprep.subr.mxu0 0.0
    %7416 = vmatpush1.msra.mxu0 0.0
    %7417 = vmatprep.mubr.f32.mxu0 0.0
    %7418 = vmatmul.mubr.f32.gmra.mrb[0].mxu0 %v5448
    %v7419 = vpop.f32.mrb[0].mxu0
    %v7420 = vadd.f32 %v7307, %v7419
    %v7421 = vpop.f32.mrb[0].mxu0
    %v7422 = vadd.f32 %v7309, %v7421
    %7423 = vmatprep.mubr.f32.mxu0 0.0
    %7424 = vmatmul.mubr.f32.gmra.mrb[0].mxu0 %v5451
    %v7425 = vpop.f32.mrb[0].mxu0
    %v7426 = vadd.f32 %v7313, %v7425
    %v7427 = vpop.f32.mrb[0].mxu0
    %v7428 = vadd.f32 %v7315, %v7427
    %7429 = vmatprep.mubr.f32.mxu0 0.0
    %7430 = vmatmul.mubr.f32.gmra.mrb[0].mxu0 %v5454
    %v7431 = vpop.f32.mrb[0].mxu0
    %v7432 = vadd.f32 %v7319, %v7431
    %v7433 = vpop.f32.mrb[0].mxu0
    %v7434 = vadd.f32 %v7321, %v7433
    %7435 = vmatprep.mubr.f32.mxu0 0.0
    %7436 = vmatmul.mubr.f32.gmra.mrb[0].mxu0 %v5457
    %v7437 = vpop.f32.mrb[0].mxu0
    %v7438 = vadd.f32 %v7325, %v7437
    %v7439 = vpop.f32.mrb[0].mxu0
    %v7440 = vadd.f32 %v7327, %v7439
    %7441 = vmatprep.mubr.f32.mxu0 0.0
    %7442 = vmatmul.mubr.f32.gmra.mrb[0].mxu0 %v5460
    %v7443 = vpop.f32.mrb[0].mxu0
    %v7444 = vadd.f32 %v7331, %v7443
    %v7445 = vpop.f32.mrb[0].mxu0
    %v7446 = vadd.f32 %v7333, %v7445
    %7447 = vmatprep.mubr.f32.mxu0 0.0
    %7448 = vmatmul.mubr.f32.gmra.mrb[0].mxu0 %v5463
    %v7449 = vpop.f32.mrb[0].mxu0
    %v7450 = vadd.f32 %v7337, %v7449
    %v7451 = vpop.f32.mrb[0].mxu0
    %v7452 = vadd.f32 %v7339, %v7451
    %7453 = vmatprep.mubr.f32.mxu0 0.0
    %7454 = vmatmul.mubr.f32.gmra.mrb[0].mxu0 %v5466
    %v7455 = vpop.f32.mrb[0].mxu0
    %v7456 = vadd.f32 %v7343, %v7455
    %v7457 = vpop.f32.mrb[0].mxu0
    %v7458 = vadd.f32 %v7345, %v7457
    %7459 = vmatprep.mubr.f32.mxu0 0.0
    %7460 = vmatmul.mubr.f32.gmra.mrb[0].mxu0 %v5469
    %v7461 = vpop.f32.mrb[0].mxu0
    %v7462 = vadd.f32 %v7349, %v7461
    %v7463 = vpop.f32.mrb[0].mxu0
    %v7464 = vadd.f32 %v7351, %v7463
    %7465 = vdwg.mxu0
    %v7466 = vmax.f32 %v6290, 0.0
    %v7467 = vmax.f32 %v6292, 0.0
    %v7468 = vmax.f32 %v6516, 0.0
    %v7469 = vmax.f32 %v6518, 0.0
    %v7470 = vmax.f32 %v6742, 0.0
    %v7471 = vmax.f32 %v6744, 0.0
    %v7472 = vmax.f32 %v6968, 0.0
    %v7473 = vmax.f32 %v6970, 0.0
    %v7474 = vmax.f32 %v7194, 0.0
    %v7475 = vmax.f32 %v7196, 0.0
    %v7476 = vmax.f32 %v7420, 0.0
    %v7477 = vmax.f32 %v7422, 0.0
    %v7478 = vmax.f32 %v6296, 0.0
    %v7479 = vmax.f32 %v6298, 0.0
    %v7480 = vmax.f32 %v6522, 0.0
    %v7481 = vmax.f32 %v6524, 0.0
    %v7482 = vmax.f32 %v6748, 0.0
    %v7483 = vmax.f32 %v6750, 0.0
    %v7484 = vmax.f32 %v6974, 0.0
    %v7485 = vmax.f32 %v6976, 0.0
    %v7486 = vmax.f32 %v7200, 0.0
    %v7487 = vmax.f32 %v7202, 0.0
    %v7488 = vmax.f32 %v7426, 0.0
    %v7489 = vmax.f32 %v7428, 0.0
    %v7490 = vmax.f32 %v6302, 0.0
    %v7491 = vmax.f32 %v6304, 0.0
    %v7492 = vmax.f32 %v6528, 0.0
    %v7493 = vmax.f32 %v6530, 0.0
    %v7494 = vmax.f32 %v6754, 0.0
    %v7495 = vmax.f32 %v6756, 0.0
    %v7496 = vmax.f32 %v6980, 0.0
    %v7497 = vmax.f32 %v6982, 0.0
    %v7498 = vmax.f32 %v7206, 0.0
    %v7499 = vmax.f32 %v7208, 0.0
    %v7500 = vmax.f32 %v7432, 0.0
    %v7501 = vmax.f32 %v7434, 0.0
    %v7502 = vmax.f32 %v6308, 0.0
    %v7503 = vmax.f32 %v6310, 0.0
    %v7504 = vmax.f32 %v6534, 0.0
    %v7505 = vmax.f32 %v6536, 0.0
    %v7506 = vmax.f32 %v6760, 0.0
    %v7507 = vmax.f32 %v6762, 0.0
    %v7508 = vmax.f32 %v6986, 0.0
    %v7509 = vmax.f32 %v6988, 0.0
    %v7510 = vmax.f32 %v7212, 0.0
    %v7511 = vmax.f32 %v7214, 0.0
    %v7512 = vmax.f32 %v7438, 0.0
    %v7513 = vmax.f32 %v7440, 0.0
    %v7514 = vmax.f32 %v6314, 0.0
    %v7515 = vmax.f32 %v6316, 0.0
    %v7516 = vmax.f32 %v6540, 0.0
    %v7517 = vmax.f32 %v6542, 0.0
    %v7518 = vmax.f32 %v6766, 0.0
    %v7519 = vmax.f32 %v6768, 0.0
    %v7520 = vmax.f32 %v6992, 0.0
    %v7521 = vmax.f32 %v6994, 0.0
    %v7522 = vmax.f32 %v7218, 0.0
    %v7523 = vmax.f32 %v7220, 0.0
    %v7524 = vmax.f32 %v7444, 0.0
    %v7525 = vmax.f32 %v7446, 0.0
    %v7526 = vmax.f32 %v6320, 0.0
    %v7527 = vmax.f32 %v6322, 0.0
    %v7528 = vmax.f32 %v6546, 0.0
    %v7529 = vmax.f32 %v6548, 0.0
    %v7530 = vmax.f32 %v6772, 0.0
    %v7531 = vmax.f32 %v6774, 0.0
    %v7532 = vmax.f32 %v6998, 0.0
    %v7533 = vmax.f32 %v7000, 0.0
    %v7534 = vmax.f32 %v7224, 0.0
    %v7535 = vmax.f32 %v7226, 0.0
    %v7536 = vmax.f32 %v7450, 0.0
    %v7537 = vmax.f32 %v7452, 0.0
    %v7538 = vmax.f32 %v6326, 0.0
    %v7539 = vmax.f32 %v6328, 0.0
    %v7540 = vmax.f32 %v6552, 0.0
    %v7541 = vmax.f32 %v6554, 0.0
    %v7542 = vmax.f32 %v6778, 0.0
    %v7543 = vmax.f32 %v6780, 0.0
    %v7544 = vmax.f32 %v7004, 0.0
    %v7545 = vmax.f32 %v7006, 0.0
    %v7546 = vmax.f32 %v7230, 0.0
    %v7547 = vmax.f32 %v7232, 0.0
    %v7548 = vmax.f32 %v7456, 0.0
    %v7549 = vmax.f32 %v7458, 0.0
    %v7550 = vmax.f32 %v6332, 0.0
    %v7551 = vmax.f32 %v6334, 0.0
    %v7552 = vmax.f32 %v6558, 0.0
    %v7553 = vmax.f32 %v6560, 0.0
    %v7554 = vmax.f32 %v6784, 0.0
    %v7555 = vmax.f32 %v6786, 0.0
    %v7556 = vmax.f32 %v7010, 0.0
    %v7557 = vmax.f32 %v7012, 0.0
    %v7558 = vmax.f32 %v7236, 0.0
    %v7559 = vmax.f32 %v7238, 0.0
    %v7560 = vmax.f32 %v7462, 0.0
    %v7561 = vmax.f32 %v7464, 0.0
    %v7562 = vld [vmem:[#allocation13] sm:$0xff]
    %v7563 = vld [vmem:[#allocation13 + $0x8] sm:$0xff]
    %v7564 = vld [vmem:[#allocation13 + $0x10] sm:$0xff]
    %v7565 = vld [vmem:[#allocation13 + $0x18] sm:$0xff]
    %v7566 = vld [vmem:[#allocation13 + $0x20] sm:$0xff]
    %v7567 = vld [vmem:[#allocation13 + $0x28] sm:$0xff]
    %v7568 = vld [vmem:[#allocation13 + $0x30] sm:$0xff]
    %v7569 = vld [vmem:[#allocation13 + $0x38] sm:$0xff]
    %v7570 = vld [vmem:[#allocation13 + $0x40] sm:$0xff]
    %v7571 = vld [vmem:[#allocation13 + $0x48] sm:$0xff]
    %v7572 = vld [vmem:[#allocation13 + $0x50] sm:$0xff]
    %v7573 = vld [vmem:[#allocation13 + $0x58] sm:$0xff]
    %v7574 = vld [vmem:[#allocation13 + $0x60] sm:$0xff]
    %v7575 = vld [vmem:[#allocation13 + $0x68] sm:$0xff]
    %v7576 = vld [vmem:[#allocation13 + $0x70] sm:$0xff]
    %v7577 = vld [vmem:[#allocation13 + $0x78] sm:$0xff]
    %v7578 = vld [vmem:[#allocation13 + $0x80] sm:$0xff]
    %v7579 = vld [vmem:[#allocation13 + $0x88] sm:$0xff]
    %v7580 = vld [vmem:[#allocation13 + $0x90] sm:$0xff]
    %v7581 = vld [vmem:[#allocation13 + $0x98] sm:$0xff]
    %v7582 = vld [vmem:[#allocation13 + $0xa0] sm:$0xff]
    %v7583 = vld [vmem:[#allocation13 + $0xa8] sm:$0xff]
    %v7584 = vld [vmem:[#allocation13 + $0xb0] sm:$0xff]
    %v7585 = vld [vmem:[#allocation13 + $0xb8] sm:$0xff]
    %v7586 = vld [vmem:[#allocation13 + $0xc0] sm:$0xff]
    %v7587 = vld [vmem:[#allocation13 + $0xc8] sm:$0xff]
    %v7588 = vld [vmem:[#allocation13 + $0xd0] sm:$0xff]
    %v7589 = vld [vmem:[#allocation13 + $0xd8] sm:$0xff]
    %v7590 = vld [vmem:[#allocation13 + $0xe0] sm:$0xff]
    %v7591 = vld [vmem:[#allocation13 + $0xe8] sm:$0xff]
    %v7592 = vld [vmem:[#allocation13 + $0xf0] sm:$0xff]
    %v7593 = vld [vmem:[#allocation13 + $0xf8] sm:$0xff]
    %v7594 = vld [vmem:[#allocation13 + $0x100] sm:$0xff]
    %v7595 = vld [vmem:[#allocation13 + $0x108] sm:$0xff]
    %v7596 = vld [vmem:[#allocation13 + $0x110] sm:$0xff]
    %v7597 = vld [vmem:[#allocation13 + $0x118] sm:$0xff]
    %v7598 = vld [vmem:[#allocation13 + $0x120] sm:$0xff]
    %v7599 = vld [vmem:[#allocation13 + $0x128] sm:$0xff]
    %v7600 = vld [vmem:[#allocation13 + $0x130] sm:$0xff]
    %v7601 = vld [vmem:[#allocation13 + $0x138] sm:$0xff]
    %v7602 = vld [vmem:[#allocation13 + $0x140] sm:$0xff]
    %v7603 = vld [vmem:[#allocation13 + $0x148] sm:$0xff]
    %v7604 = vld [vmem:[#allocation13 + $0x150] sm:$0xff]
    %v7605 = vld [vmem:[#allocation13 + $0x158] sm:$0xff]
    %v7606 = vld [vmem:[#allocation13 + $0x160] sm:$0xff]
    %v7607 = vld [vmem:[#allocation13 + $0x168] sm:$0xff]
    %v7608 = vld [vmem:[#allocation13 + $0x170] sm:$0xff]
    %v7609 = vld [vmem:[#allocation13 + $0x178] sm:$0xff]
    %v7610 = vld [vmem:[#allocation13 + $0x180] sm:$0xff]
    %v7611 = vld [vmem:[#allocation13 + $0x188] sm:$0xff]
    %v7612 = vld [vmem:[#allocation13 + $0x190] sm:$0xff]
    %v7613 = vld [vmem:[#allocation13 + $0x198] sm:$0xff]
    %v7614 = vld [vmem:[#allocation13 + $0x1a0] sm:$0xff]
    %v7615 = vld [vmem:[#allocation13 + $0x1a8] sm:$0xff]
    %v7616 = vld [vmem:[#allocation13 + $0x1b0] sm:$0xff]
    %v7617 = vld [vmem:[#allocation13 + $0x1b8] sm:$0xff]
    %v7618 = vld [vmem:[#allocation13 + $0x1c0] sm:$0xff]
    %v7619 = vld [vmem:[#allocation13 + $0x1c8] sm:$0xff]
    %v7620 = vld [vmem:[#allocation13 + $0x1d0] sm:$0xff]
    %v7621 = vld [vmem:[#allocation13 + $0x1d8] sm:$0xff]
    %v7622 = vld [vmem:[#allocation13 + $0x1e0] sm:$0xff]
    %v7623 = vld [vmem:[#allocation13 + $0x1e8] sm:$0xff]
    %v7624 = vld [vmem:[#allocation13 + $0x1f0] sm:$0xff]
    %v7625 = vld [vmem:[#allocation13 + $0x1f8] sm:$0xff]
    %v7626 = vld [vmem:[#allocation13 + $0x200] sm:$0xff]
    %v7627 = vld [vmem:[#allocation13 + $0x208] sm:$0xff]
    %v7628 = vld [vmem:[#allocation13 + $0x210] sm:$0xff]
    %v7629 = vld [vmem:[#allocation13 + $0x218] sm:$0xff]
    %v7630 = vld [vmem:[#allocation13 + $0x220] sm:$0xff]
    %v7631 = vld [vmem:[#allocation13 + $0x228] sm:$0xff]
    %v7632 = vld [vmem:[#allocation13 + $0x230] sm:$0xff]
    %v7633 = vld [vmem:[#allocation13 + $0x238] sm:$0xff]
    %v7634 = vld [vmem:[#allocation13 + $0x240] sm:$0xff]
    %v7635 = vld [vmem:[#allocation13 + $0x248] sm:$0xff]
    %v7636 = vld [vmem:[#allocation13 + $0x250] sm:$0xff]
    %v7637 = vld [vmem:[#allocation13 + $0x258] sm:$0xff]
    %v7638 = vld [vmem:[#allocation13 + $0x260] sm:$0xff]
    %v7639 = vld [vmem:[#allocation13 + $0x268] sm:$0xff]
    %v7640 = vld [vmem:[#allocation13 + $0x270] sm:$0xff]
    %v7641 = vld [vmem:[#allocation13 + $0x278] sm:$0xff]
    %v7642 = vld [vmem:[#allocation13 + $0x280] sm:$0xff]
    %v7643 = vld [vmem:[#allocation13 + $0x288] sm:$0xff]
    %v7644 = vld [vmem:[#allocation13 + $0x290] sm:$0xff]
    %v7645 = vld [vmem:[#allocation13 + $0x298] sm:$0xff]
    %v7646 = vld [vmem:[#allocation13 + $0x2a0] sm:$0xff]
    %v7647 = vld [vmem:[#allocation13 + $0x2a8] sm:$0xff]
    %v7648 = vld [vmem:[#allocation13 + $0x2b0] sm:$0xff]
    %v7649 = vld [vmem:[#allocation13 + $0x2b8] sm:$0xff]
    %v7650 = vld [vmem:[#allocation13 + $0x2c0] sm:$0xff]
    %v7651 = vld [vmem:[#allocation13 + $0x2c8] sm:$0xff]
    %v7652 = vld [vmem:[#allocation13 + $0x2d0] sm:$0xff]
    %v7653 = vld [vmem:[#allocation13 + $0x2d8] sm:$0xff]
    %v7654 = vld [vmem:[#allocation13 + $0x2e0] sm:$0xff]
    %v7655 = vld [vmem:[#allocation13 + $0x2e8] sm:$0xff]
    %v7656 = vld [vmem:[#allocation13 + $0x2f0] sm:$0xff]
    %v7657 = vld [vmem:[#allocation13 + $0x2f8] sm:$0xff]
    %v7658 = vld [vmem:[#allocation13 + $0x300] sm:$0xff]
    %v7659 = vld [vmem:[#allocation13 + $0x308] sm:$0xff]
    %v7660 = vld [vmem:[#allocation13 + $0x310] sm:$0xff]
    %v7661 = vld [vmem:[#allocation13 + $0x318] sm:$0xff]
    %v7662 = vld [vmem:[#allocation13 + $0x320] sm:$0xff]
    %v7663 = vld [vmem:[#allocation13 + $0x328] sm:$0xff]
    %v7664 = vld [vmem:[#allocation13 + $0x330] sm:$0xff]
    %v7665 = vld [vmem:[#allocation13 + $0x338] sm:$0xff]
    %v7666 = vld [vmem:[#allocation13 + $0x340] sm:$0xff]
    %v7667 = vld [vmem:[#allocation13 + $0x348] sm:$0xff]
    %v7668 = vld [vmem:[#allocation13 + $0x350] sm:$0xff]
    %v7669 = vld [vmem:[#allocation13 + $0x358] sm:$0xff]
    %v7670 = vld [vmem:[#allocation13 + $0x360] sm:$0xff]
    %v7671 = vld [vmem:[#allocation13 + $0x368] sm:$0xff]
    %v7672 = vld [vmem:[#allocation13 + $0x370] sm:$0xff]
    %v7673 = vld [vmem:[#allocation13 + $0x378] sm:$0xff]
    %v7674 = vld [vmem:[#allocation13 + $0x380] sm:$0xff]
    %v7675 = vld [vmem:[#allocation13 + $0x388] sm:$0xff]
    %v7676 = vld [vmem:[#allocation13 + $0x390] sm:$0xff]
    %v7677 = vld [vmem:[#allocation13 + $0x398] sm:$0xff]
    %v7678 = vld [vmem:[#allocation13 + $0x3a0] sm:$0xff]
    %v7679 = vld [vmem:[#allocation13 + $0x3a8] sm:$0xff]
    %v7680 = vld [vmem:[#allocation13 + $0x3b0] sm:$0xff]
    %v7681 = vld [vmem:[#allocation13 + $0x3b8] sm:$0xff]
    %v7682 = vld [vmem:[#allocation13 + $0x3c0] sm:$0xff]
    %v7683 = vld [vmem:[#allocation13 + $0x3c8] sm:$0xff]
    %v7684 = vld [vmem:[#allocation13 + $0x3d0] sm:$0xff]
    %v7685 = vld [vmem:[#allocation13 + $0x3d8] sm:$0xff]
    %v7686 = vld [vmem:[#allocation13 + $0x3e0] sm:$0xff]
    %v7687 = vld [vmem:[#allocation13 + $0x3e8] sm:$0xff]
    %v7688 = vld [vmem:[#allocation13 + $0x3f0] sm:$0xff]
    %v7689 = vld [vmem:[#allocation13 + $0x3f8] sm:$0xff]
    %v7690 = vld [vmem:[#allocation13 + $0x400] sm:$0xff]
    %v7691 = vld [vmem:[#allocation13 + $0x408] sm:$0xff]
    %v7692 = vld [vmem:[#allocation13 + $0x410] sm:$0xff]
    %v7693 = vld [vmem:[#allocation13 + $0x418] sm:$0xff]
    %v7694 = vld [vmem:[#allocation13 + $0x420] sm:$0xff]
    %v7695 = vld [vmem:[#allocation13 + $0x428] sm:$0xff]
    %v7696 = vld [vmem:[#allocation13 + $0x430] sm:$0xff]
    %v7697 = vld [vmem:[#allocation13 + $0x438] sm:$0xff]
    %v7698 = vld [vmem:[#allocation13 + $0x440] sm:$0xff]
    %v7699 = vld [vmem:[#allocation13 + $0x448] sm:$0xff]
    %v7700 = vld [vmem:[#allocation13 + $0x450] sm:$0xff]
    %v7701 = vld [vmem:[#allocation13 + $0x458] sm:$0xff]
    %v7702 = vld [vmem:[#allocation13 + $0x460] sm:$0xff]
    %v7703 = vld [vmem:[#allocation13 + $0x468] sm:$0xff]
    %v7704 = vld [vmem:[#allocation13 + $0x470] sm:$0xff]
    %v7705 = vld [vmem:[#allocation13 + $0x478] sm:$0xff]
    %v7706 = vld [vmem:[#allocation13 + $0x480] sm:$0xff]
    %v7707 = vld [vmem:[#allocation13 + $0x488] sm:$0xff]
    %v7708 = vld [vmem:[#allocation13 + $0x490] sm:$0xff]
    %v7709 = vld [vmem:[#allocation13 + $0x498] sm:$0xff]
    %v7710 = vld [vmem:[#allocation13 + $0x4a0] sm:$0xff]
    %v7711 = vld [vmem:[#allocation13 + $0x4a8] sm:$0xff]
    %v7712 = vld [vmem:[#allocation13 + $0x4b0] sm:$0xff]
    %v7713 = vld [vmem:[#allocation13 + $0x4b8] sm:$0xff]
    %v7714 = vld [vmem:[#allocation13 + $0x4c0] sm:$0xff]
    %v7715 = vld [vmem:[#allocation13 + $0x4c8] sm:$0xff]
    %v7716 = vld [vmem:[#allocation13 + $0x4d0] sm:$0xff]
    %v7717 = vld [vmem:[#allocation13 + $0x4d8] sm:$0xff]
    %v7718 = vld [vmem:[#allocation13 + $0x4e0] sm:$0xff]
    %v7719 = vld [vmem:[#allocation13 + $0x4e8] sm:$0xff]
    %v7720 = vld [vmem:[#allocation13 + $0x4f0] sm:$0xff]
    %v7721 = vld [vmem:[#allocation13 + $0x4f8] sm:$0xff]
    %v7722 = vld [vmem:[#allocation13 + $0x500] sm:$0xff]
    %v7723 = vld [vmem:[#allocation13 + $0x508] sm:$0xff]
    %v7724 = vld [vmem:[#allocation13 + $0x510] sm:$0xff]
    %v7725 = vld [vmem:[#allocation13 + $0x518] sm:$0xff]
    %v7726 = vld [vmem:[#allocation13 + $0x520] sm:$0xff]
    %v7727 = vld [vmem:[#allocation13 + $0x528] sm:$0xff]
    %v7728 = vld [vmem:[#allocation13 + $0x530] sm:$0xff]
    %v7729 = vld [vmem:[#allocation13 + $0x538] sm:$0xff]
    %v7730 = vld [vmem:[#allocation13 + $0x540] sm:$0xff]
    %v7731 = vld [vmem:[#allocation13 + $0x548] sm:$0xff]
    %v7732 = vld [vmem:[#allocation13 + $0x550] sm:$0xff]
    %v7733 = vld [vmem:[#allocation13 + $0x558] sm:$0xff]
    %v7734 = vld [vmem:[#allocation13 + $0x560] sm:$0xff]
    %v7735 = vld [vmem:[#allocation13 + $0x568] sm:$0xff]
    %v7736 = vld [vmem:[#allocation13 + $0x570] sm:$0xff]
    %v7737 = vld [vmem:[#allocation13 + $0x578] sm:$0xff]
    %v7738 = vld [vmem:[#allocation13 + $0x580] sm:$0xff]
    %v7739 = vld [vmem:[#allocation13 + $0x588] sm:$0xff]
    %v7740 = vld [vmem:[#allocation13 + $0x590] sm:$0xff]
    %v7741 = vld [vmem:[#allocation13 + $0x598] sm:$0xff]
    %v7742 = vld [vmem:[#allocation13 + $0x5a0] sm:$0xff]
    %v7743 = vld [vmem:[#allocation13 + $0x5a8] sm:$0xff]
    %v7744 = vld [vmem:[#allocation13 + $0x5b0] sm:$0xff]
    %v7745 = vld [vmem:[#allocation13 + $0x5b8] sm:$0xff]
    %v7746 = vld [vmem:[#allocation13 + $0x5c0] sm:$0xff]
    %v7747 = vld [vmem:[#allocation13 + $0x5c8] sm:$0xff]
    %v7748 = vld [vmem:[#allocation13 + $0x5d0] sm:$0xff]
    %v7749 = vld [vmem:[#allocation13 + $0x5d8] sm:$0xff]
    %v7750 = vld [vmem:[#allocation13 + $0x5e0] sm:$0xff]
    %v7751 = vld [vmem:[#allocation13 + $0x5e8] sm:$0xff]
    %v7752 = vld [vmem:[#allocation13 + $0x5f0] sm:$0xff]
    %v7753 = vld [vmem:[#allocation13 + $0x5f8] sm:$0xff]
    %v7754 = vld [vmem:[#allocation13 + $0x600] sm:$0xff]
    %v7755 = vld [vmem:[#allocation13 + $0x608] sm:$0xff]
    %v7756 = vld [vmem:[#allocation13 + $0x610] sm:$0xff]
    %v7757 = vld [vmem:[#allocation13 + $0x618] sm:$0xff]
    %v7758 = vld [vmem:[#allocation13 + $0x620] sm:$0xff]
    %v7759 = vld [vmem:[#allocation13 + $0x628] sm:$0xff]
    %v7760 = vld [vmem:[#allocation13 + $0x630] sm:$0xff]
    %v7761 = vld [vmem:[#allocation13 + $0x638] sm:$0xff]
    %v7762 = vld [vmem:[#allocation13 + $0x640] sm:$0xff]
    %v7763 = vld [vmem:[#allocation13 + $0x648] sm:$0xff]
    %v7764 = vld [vmem:[#allocation13 + $0x650] sm:$0xff]
    %v7765 = vld [vmem:[#allocation13 + $0x658] sm:$0xff]
    %v7766 = vld [vmem:[#allocation13 + $0x660] sm:$0xff]
    %v7767 = vld [vmem:[#allocation13 + $0x668] sm:$0xff]
    %v7768 = vld [vmem:[#allocation13 + $0x670] sm:$0xff]
    %v7769 = vld [vmem:[#allocation13 + $0x678] sm:$0xff]
    %v7770 = vld [vmem:[#allocation13 + $0x680] sm:$0xff]
    %v7771 = vld [vmem:[#allocation13 + $0x688] sm:$0xff]
    %v7772 = vld [vmem:[#allocation13 + $0x690] sm:$0xff]
    %v7773 = vld [vmem:[#allocation13 + $0x698] sm:$0xff]
    %v7774 = vld [vmem:[#allocation13 + $0x6a0] sm:$0xff]
    %v7775 = vld [vmem:[#allocation13 + $0x6a8] sm:$0xff]
    %v7776 = vld [vmem:[#allocation13 + $0x6b0] sm:$0xff]
    %v7777 = vld [vmem:[#allocation13 + $0x6b8] sm:$0xff]
    %v7778 = vld [vmem:[#allocation13 + $0x6c0] sm:$0xff]
    %v7779 = vld [vmem:[#allocation13 + $0x6c8] sm:$0xff]
    %v7780 = vld [vmem:[#allocation13 + $0x6d0] sm:$0xff]
    %v7781 = vld [vmem:[#allocation13 + $0x6d8] sm:$0xff]
    %v7782 = vld [vmem:[#allocation13 + $0x6e0] sm:$0xff]
    %v7783 = vld [vmem:[#allocation13 + $0x6e8] sm:$0xff]
    %v7784 = vld [vmem:[#allocation13 + $0x6f0] sm:$0xff]
    %v7785 = vld [vmem:[#allocation13 + $0x6f8] sm:$0xff]
    %v7786 = vld [vmem:[#allocation13 + $0x700] sm:$0xff]
    %v7787 = vld [vmem:[#allocation13 + $0x708] sm:$0xff]
    %v7788 = vld [vmem:[#allocation13 + $0x710] sm:$0xff]
    %v7789 = vld [vmem:[#allocation13 + $0x718] sm:$0xff]
    %v7790 = vld [vmem:[#allocation13 + $0x720] sm:$0xff]
    %v7791 = vld [vmem:[#allocation13 + $0x728] sm:$0xff]
    %v7792 = vld [vmem:[#allocation13 + $0x730] sm:$0xff]
    %v7793 = vld [vmem:[#allocation13 + $0x738] sm:$0xff]
    %v7794 = vld [vmem:[#allocation13 + $0x740] sm:$0xff]
    %v7795 = vld [vmem:[#allocation13 + $0x748] sm:$0xff]
    %v7796 = vld [vmem:[#allocation13 + $0x750] sm:$0xff]
    %v7797 = vld [vmem:[#allocation13 + $0x758] sm:$0xff]
    %v7798 = vld [vmem:[#allocation13 + $0x760] sm:$0xff]
    %v7799 = vld [vmem:[#allocation13 + $0x768] sm:$0xff]
    %v7800 = vld [vmem:[#allocation13 + $0x770] sm:$0xff]
    %v7801 = vld [vmem:[#allocation13 + $0x778] sm:$0xff]
    %v7802 = vld [vmem:[#allocation13 + $0x780] sm:$0xff]
    %v7803 = vld [vmem:[#allocation13 + $0x788] sm:$0xff]
    %v7804 = vld [vmem:[#allocation13 + $0x790] sm:$0xff]
    %v7805 = vld [vmem:[#allocation13 + $0x798] sm:$0xff]
    %v7806 = vld [vmem:[#allocation13 + $0x7a0] sm:$0xff]
    %v7807 = vld [vmem:[#allocation13 + $0x7a8] sm:$0xff]
    %v7808 = vld [vmem:[#allocation13 + $0x7b0] sm:$0xff]
    %v7809 = vld [vmem:[#allocation13 + $0x7b8] sm:$0xff]
    %v7810 = vld [vmem:[#allocation13 + $0x7c0] sm:$0xff]
    %v7811 = vld [vmem:[#allocation13 + $0x7c8] sm:$0xff]
    %v7812 = vld [vmem:[#allocation13 + $0x7d0] sm:$0xff]
    %v7813 = vld [vmem:[#allocation13 + $0x7d8] sm:$0xff]
    %v7814 = vld [vmem:[#allocation13 + $0x7e0] sm:$0xff]
    %v7815 = vld [vmem:[#allocation13 + $0x7e8] sm:$0xff]
    %v7816 = vld [vmem:[#allocation13 + $0x7f0] sm:$0xff]
    %v7817 = vld [vmem:[#allocation13 + $0x7f8] sm:$0xff]
    %v7818 = vld [vmem:[#allocation13 + $0x800] sm:$0xff]
    %v7819 = vld [vmem:[#allocation13 + $0x808] sm:$0xff]
    %v7820 = vld [vmem:[#allocation13 + $0x810] sm:$0xff]
    %v7821 = vld [vmem:[#allocation13 + $0x818] sm:$0xff]
    %v7822 = vld [vmem:[#allocation13 + $0x820] sm:$0xff]
    %v7823 = vld [vmem:[#allocation13 + $0x828] sm:$0xff]
    %v7824 = vld [vmem:[#allocation13 + $0x830] sm:$0xff]
    %v7825 = vld [vmem:[#allocation13 + $0x838] sm:$0xff]
    %v7826 = vld [vmem:[#allocation13 + $0x840] sm:$0xff]
    %v7827 = vld [vmem:[#allocation13 + $0x848] sm:$0xff]
    %v7828 = vld [vmem:[#allocation13 + $0x850] sm:$0xff]
    %v7829 = vld [vmem:[#allocation13 + $0x858] sm:$0xff]
    %v7830 = vld [vmem:[#allocation13 + $0x860] sm:$0xff]
    %v7831 = vld [vmem:[#allocation13 + $0x868] sm:$0xff]
    %v7832 = vld [vmem:[#allocation13 + $0x870] sm:$0xff]
    %v7833 = vld [vmem:[#allocation13 + $0x878] sm:$0xff]
    %v7834 = vld [vmem:[#allocation13 + $0x880] sm:$0xff]
    %v7835 = vld [vmem:[#allocation13 + $0x888] sm:$0xff]
    %v7836 = vld [vmem:[#allocation13 + $0x890] sm:$0xff]
    %v7837 = vld [vmem:[#allocation13 + $0x898] sm:$0xff]
    %v7838 = vld [vmem:[#allocation13 + $0x8a0] sm:$0xff]
    %v7839 = vld [vmem:[#allocation13 + $0x8a8] sm:$0xff]
    %v7840 = vld [vmem:[#allocation13 + $0x8b0] sm:$0xff]
    %v7841 = vld [vmem:[#allocation13 + $0x8b8] sm:$0xff]
    %v7842 = vld [vmem:[#allocation13 + $0x8c0] sm:$0xff]
    %v7843 = vld [vmem:[#allocation13 + $0x8c8] sm:$0xff]
    %v7844 = vld [vmem:[#allocation13 + $0x8d0] sm:$0xff]
    %v7845 = vld [vmem:[#allocation13 + $0x8d8] sm:$0xff]
    %v7846 = vld [vmem:[#allocation13 + $0x8e0] sm:$0xff]
    %v7847 = vld [vmem:[#allocation13 + $0x8e8] sm:$0xff]
    %v7848 = vld [vmem:[#allocation13 + $0x8f0] sm:$0xff]
    %v7849 = vld [vmem:[#allocation13 + $0x8f8] sm:$0xff]
    %v7850 = vld [vmem:[#allocation13 + $0x900] sm:$0xff]
    %v7851 = vld [vmem:[#allocation13 + $0x908] sm:$0xff]
    %v7852 = vld [vmem:[#allocation13 + $0x910] sm:$0xff]
    %v7853 = vld [vmem:[#allocation13 + $0x918] sm:$0xff]
    %v7854 = vld [vmem:[#allocation13 + $0x920] sm:$0xff]
    %v7855 = vld [vmem:[#allocation13 + $0x928] sm:$0xff]
    %v7856 = vld [vmem:[#allocation13 + $0x930] sm:$0xff]
    %v7857 = vld [vmem:[#allocation13 + $0x938] sm:$0xff]
    %v7858 = vld [vmem:[#allocation13 + $0x940] sm:$0xff]
    %v7859 = vld [vmem:[#allocation13 + $0x948] sm:$0xff]
    %v7860 = vld [vmem:[#allocation13 + $0x950] sm:$0xff]
    %v7861 = vld [vmem:[#allocation13 + $0x958] sm:$0xff]
    %v7862 = vld [vmem:[#allocation13 + $0x960] sm:$0xff]
    %v7863 = vld [vmem:[#allocation13 + $0x968] sm:$0xff]
    %v7864 = vld [vmem:[#allocation13 + $0x970] sm:$0xff]
    %v7865 = vld [vmem:[#allocation13 + $0x978] sm:$0xff]
    %v7866 = vld [vmem:[#allocation13 + $0x980] sm:$0xff]
    %v7867 = vld [vmem:[#allocation13 + $0x988] sm:$0xff]
    %v7868 = vld [vmem:[#allocation13 + $0x990] sm:$0xff]
    %v7869 = vld [vmem:[#allocation13 + $0x998] sm:$0xff]
    %v7870 = vld [vmem:[#allocation13 + $0x9a0] sm:$0xff]
    %v7871 = vld [vmem:[#allocation13 + $0x9a8] sm:$0xff]
    %v7872 = vld [vmem:[#allocation13 + $0x9b0] sm:$0xff]
    %v7873 = vld [vmem:[#allocation13 + $0x9b8] sm:$0xff]
    %v7874 = vld [vmem:[#allocation13 + $0x9c0] sm:$0xff]
    %v7875 = vld [vmem:[#allocation13 + $0x9c8] sm:$0xff]
    %v7876 = vld [vmem:[#allocation13 + $0x9d0] sm:$0xff]
    %v7877 = vld [vmem:[#allocation13 + $0x9d8] sm:$0xff]
    %v7878 = vld [vmem:[#allocation13 + $0x9e0] sm:$0xff]
    %v7879 = vld [vmem:[#allocation13 + $0x9e8] sm:$0xff]
    %v7880 = vld [vmem:[#allocation13 + $0x9f0] sm:$0xff]
    %v7881 = vld [vmem:[#allocation13 + $0x9f8] sm:$0xff]
    %v7882 = vld [vmem:[#allocation13 + $0xa00] sm:$0xff]
    %v7883 = vld [vmem:[#allocation13 + $0xa08] sm:$0xff]
    %v7884 = vld [vmem:[#allocation13 + $0xa10] sm:$0xff]
    %v7885 = vld [vmem:[#allocation13 + $0xa18] sm:$0xff]
    %v7886 = vld [vmem:[#allocation13 + $0xa20] sm:$0xff]
    %v7887 = vld [vmem:[#allocation13 + $0xa28] sm:$0xff]
    %v7888 = vld [vmem:[#allocation13 + $0xa30] sm:$0xff]
    %v7889 = vld [vmem:[#allocation13 + $0xa38] sm:$0xff]
    %v7890 = vld [vmem:[#allocation13 + $0xa40] sm:$0xff]
    %v7891 = vld [vmem:[#allocation13 + $0xa48] sm:$0xff]
    %v7892 = vld [vmem:[#allocation13 + $0xa50] sm:$0xff]
    %v7893 = vld [vmem:[#allocation13 + $0xa58] sm:$0xff]
    %v7894 = vld [vmem:[#allocation13 + $0xa60] sm:$0xff]
    %v7895 = vld [vmem:[#allocation13 + $0xa68] sm:$0xff]
    %v7896 = vld [vmem:[#allocation13 + $0xa70] sm:$0xff]
    %v7897 = vld [vmem:[#allocation13 + $0xa78] sm:$0xff]
    %v7898 = vld [vmem:[#allocation13 + $0xa80] sm:$0xff]
    %v7899 = vld [vmem:[#allocation13 + $0xa88] sm:$0xff]
    %v7900 = vld [vmem:[#allocation13 + $0xa90] sm:$0xff]
    %v7901 = vld [vmem:[#allocation13 + $0xa98] sm:$0xff]
    %v7902 = vld [vmem:[#allocation13 + $0xaa0] sm:$0xff]
    %v7903 = vld [vmem:[#allocation13 + $0xaa8] sm:$0xff]
    %v7904 = vld [vmem:[#allocation13 + $0xab0] sm:$0xff]
    %v7905 = vld [vmem:[#allocation13 + $0xab8] sm:$0xff]
    %v7906 = vld [vmem:[#allocation13 + $0xac0] sm:$0xff]
    %v7907 = vld [vmem:[#allocation13 + $0xac8] sm:$0xff]
    %v7908 = vld [vmem:[#allocation13 + $0xad0] sm:$0xff]
    %v7909 = vld [vmem:[#allocation13 + $0xad8] sm:$0xff]
    %v7910 = vld [vmem:[#allocation13 + $0xae0] sm:$0xff]
    %v7911 = vld [vmem:[#allocation13 + $0xae8] sm:$0xff]
    %v7912 = vld [vmem:[#allocation13 + $0xaf0] sm:$0xff]
    %v7913 = vld [vmem:[#allocation13 + $0xaf8] sm:$0xff]
    %v7914 = vld [vmem:[#allocation13 + $0xb00] sm:$0xff]
    %v7915 = vld [vmem:[#allocation13 + $0xb08] sm:$0xff]
    %v7916 = vld [vmem:[#allocation13 + $0xb10] sm:$0xff]
    %v7917 = vld [vmem:[#allocation13 + $0xb18] sm:$0xff]
    %v7918 = vld [vmem:[#allocation13 + $0xb20] sm:$0xff]
    %v7919 = vld [vmem:[#allocation13 + $0xb28] sm:$0xff]
    %v7920 = vld [vmem:[#allocation13 + $0xb30] sm:$0xff]
    %v7921 = vld [vmem:[#allocation13 + $0xb38] sm:$0xff]
    %v7922 = vld [vmem:[#allocation13 + $0xb40] sm:$0xff]
    %v7923 = vld [vmem:[#allocation13 + $0xb48] sm:$0xff]
    %v7924 = vld [vmem:[#allocation13 + $0xb50] sm:$0xff]
    %v7925 = vld [vmem:[#allocation13 + $0xb58] sm:$0xff]
    %v7926 = vld [vmem:[#allocation13 + $0xb60] sm:$0xff]
    %v7927 = vld [vmem:[#allocation13 + $0xb68] sm:$0xff]
    %v7928 = vld [vmem:[#allocation13 + $0xb70] sm:$0xff]
    %v7929 = vld [vmem:[#allocation13 + $0xb78] sm:$0xff]
    %v7930 = vld [vmem:[#allocation13 + $0xb80] sm:$0xff]
    %v7931 = vld [vmem:[#allocation13 + $0xb88] sm:$0xff]
    %v7932 = vld [vmem:[#allocation13 + $0xb90] sm:$0xff]
    %v7933 = vld [vmem:[#allocation13 + $0xb98] sm:$0xff]
    %v7934 = vld [vmem:[#allocation13 + $0xba0] sm:$0xff]
    %v7935 = vld [vmem:[#allocation13 + $0xba8] sm:$0xff]
    %v7936 = vld [vmem:[#allocation13 + $0xbb0] sm:$0xff]
    %v7937 = vld [vmem:[#allocation13 + $0xbb8] sm:$0xff]
    %v7938 = vld [vmem:[#allocation13 + $0xbc0] sm:$0xff]
    %v7939 = vld [vmem:[#allocation13 + $0xbc8] sm:$0xff]
    %v7940 = vld [vmem:[#allocation13 + $0xbd0] sm:$0xff]
    %v7941 = vld [vmem:[#allocation13 + $0xbd8] sm:$0xff]
    %v7942 = vld [vmem:[#allocation13 + $0xbe0] sm:$0xff]
    %v7943 = vld [vmem:[#allocation13 + $0xbe8] sm:$0xff]
    %v7944 = vld [vmem:[#allocation13 + $0xbf0] sm:$0xff]
    %v7945 = vld [vmem:[#allocation13 + $0xbf8] sm:$0xff]
    %v7946 = vld [vmem:[#allocation13 + $0xc00] sm:$0xff]
    %v7947 = vld [vmem:[#allocation13 + $0xc08] sm:$0xff]
    %v7948 = vld [vmem:[#allocation13 + $0xc10] sm:$0xff]
    %v7949 = vld [vmem:[#allocation13 + $0xc18] sm:$0xff]
    %v7950 = vld [vmem:[#allocation13 + $0xc20] sm:$0xff]
    %v7951 = vld [vmem:[#allocation13 + $0xc28] sm:$0xff]
    %v7952 = vld [vmem:[#allocation13 + $0xc30] sm:$0xff]
    %v7953 = vld [vmem:[#allocation13 + $0xc38] sm:$0xff]
    %v7954 = vld [vmem:[#allocation13 + $0xc40] sm:$0xff]
    %v7955 = vld [vmem:[#allocation13 + $0xc48] sm:$0xff]
    %v7956 = vld [vmem:[#allocation13 + $0xc50] sm:$0xff]
    %v7957 = vld [vmem:[#allocation13 + $0xc58] sm:$0xff]
    %v7958 = vld [vmem:[#allocation13 + $0xc60] sm:$0xff]
    %v7959 = vld [vmem:[#allocation13 + $0xc68] sm:$0xff]
    %v7960 = vld [vmem:[#allocation13 + $0xc70] sm:$0xff]
    %v7961 = vld [vmem:[#allocation13 + $0xc78] sm:$0xff]
    %v7962 = vld [vmem:[#allocation13 + $0xc80] sm:$0xff]
    %v7963 = vld [vmem:[#allocation13 + $0xc88] sm:$0xff]
    %v7964 = vld [vmem:[#allocation13 + $0xc90] sm:$0xff]
    %v7965 = vld [vmem:[#allocation13 + $0xc98] sm:$0xff]
    %v7966 = vld [vmem:[#allocation13 + $0xca0] sm:$0xff]
    %v7967 = vld [vmem:[#allocation13 + $0xca8] sm:$0xff]
    %v7968 = vld [vmem:[#allocation13 + $0xcb0] sm:$0xff]
    %v7969 = vld [vmem:[#allocation13 + $0xcb8] sm:$0xff]
    %v7970 = vld [vmem:[#allocation13 + $0xcc0] sm:$0xff]
    %v7971 = vld [vmem:[#allocation13 + $0xcc8] sm:$0xff]
    %v7972 = vld [vmem:[#allocation13 + $0xcd0] sm:$0xff]
    %v7973 = vld [vmem:[#allocation13 + $0xcd8] sm:$0xff]
    %v7974 = vld [vmem:[#allocation13 + $0xce0] sm:$0xff]
    %v7975 = vld [vmem:[#allocation13 + $0xce8] sm:$0xff]
    %v7976 = vld [vmem:[#allocation13 + $0xcf0] sm:$0xff]
    %v7977 = vld [vmem:[#allocation13 + $0xcf8] sm:$0xff]
    %v7978 = vld [vmem:[#allocation13 + $0xd00] sm:$0xff]
    %v7979 = vld [vmem:[#allocation13 + $0xd08] sm:$0xff]
    %v7980 = vld [vmem:[#allocation13 + $0xd10] sm:$0xff]
    %v7981 = vld [vmem:[#allocation13 + $0xd18] sm:$0xff]
    %v7982 = vld [vmem:[#allocation13 + $0xd20] sm:$0xff]
    %v7983 = vld [vmem:[#allocation13 + $0xd28] sm:$0xff]
    %v7984 = vld [vmem:[#allocation13 + $0xd30] sm:$0xff]
    %v7985 = vld [vmem:[#allocation13 + $0xd38] sm:$0xff]
    %v7986 = vld [vmem:[#allocation13 + $0xd40] sm:$0xff]
    %v7987 = vld [vmem:[#allocation13 + $0xd48] sm:$0xff]
    %v7988 = vld [vmem:[#allocation13 + $0xd50] sm:$0xff]
    %v7989 = vld [vmem:[#allocation13 + $0xd58] sm:$0xff]
    %v7990 = vld [vmem:[#allocation13 + $0xd60] sm:$0xff]
    %v7991 = vld [vmem:[#allocation13 + $0xd68] sm:$0xff]
    %v7992 = vld [vmem:[#allocation13 + $0xd70] sm:$0xff]
    %v7993 = vld [vmem:[#allocation13 + $0xd78] sm:$0xff]
    %v7994 = vld [vmem:[#allocation13 + $0xd80] sm:$0xff]
    %v7995 = vld [vmem:[#allocation13 + $0xd88] sm:$0xff]
    %v7996 = vld [vmem:[#allocation13 + $0xd90] sm:$0xff]
    %v7997 = vld [vmem:[#allocation13 + $0xd98] sm:$0xff]
    %v7998 = vld [vmem:[#allocation13 + $0xda0] sm:$0xff]
    %v7999 = vld [vmem:[#allocation13 + $0xda8] sm:$0xff]
    %v8000 = vld [vmem:[#allocation13 + $0xdb0] sm:$0xff]
    %v8001 = vld [vmem:[#allocation13 + $0xdb8] sm:$0xff]
    %v8002 = vld [vmem:[#allocation13 + $0xdc0] sm:$0xff]
    %v8003 = vld [vmem:[#allocation13 + $0xdc8] sm:$0xff]
    %v8004 = vld [vmem:[#allocation13 + $0xdd0] sm:$0xff]
    %v8005 = vld [vmem:[#allocation13 + $0xdd8] sm:$0xff]
    %v8006 = vld [vmem:[#allocation13 + $0xde0] sm:$0xff]
    %v8007 = vld [vmem:[#allocation13 + $0xde8] sm:$0xff]
    %v8008 = vld [vmem:[#allocation13 + $0xdf0] sm:$0xff]
    %v8009 = vld [vmem:[#allocation13 + $0xdf8] sm:$0xff]
    %v8010 = vld [vmem:[#allocation13 + $0xe00] sm:$0xff]
    %v8011 = vld [vmem:[#allocation13 + $0xe08] sm:$0xff]
    %v8012 = vld [vmem:[#allocation13 + $0xe10] sm:$0xff]
    %v8013 = vld [vmem:[#allocation13 + $0xe18] sm:$0xff]
    %v8014 = vld [vmem:[#allocation13 + $0xe20] sm:$0xff]
    %v8015 = vld [vmem:[#allocation13 + $0xe28] sm:$0xff]
    %v8016 = vld [vmem:[#allocation13 + $0xe30] sm:$0xff]
    %v8017 = vld [vmem:[#allocation13 + $0xe38] sm:$0xff]
    %v8018 = vld [vmem:[#allocation13 + $0xe40] sm:$0xff]
    %v8019 = vld [vmem:[#allocation13 + $0xe48] sm:$0xff]
    %v8020 = vld [vmem:[#allocation13 + $0xe50] sm:$0xff]
    %v8021 = vld [vmem:[#allocation13 + $0xe58] sm:$0xff]
    %v8022 = vld [vmem:[#allocation13 + $0xe60] sm:$0xff]
    %v8023 = vld [vmem:[#allocation13 + $0xe68] sm:$0xff]
    %v8024 = vld [vmem:[#allocation13 + $0xe70] sm:$0xff]
    %v8025 = vld [vmem:[#allocation13 + $0xe78] sm:$0xff]
    %v8026 = vld [vmem:[#allocation13 + $0xe80] sm:$0xff]
    %v8027 = vld [vmem:[#allocation13 + $0xe88] sm:$0xff]
    %v8028 = vld [vmem:[#allocation13 + $0xe90] sm:$0xff]
    %v8029 = vld [vmem:[#allocation13 + $0xe98] sm:$0xff]
    %v8030 = vld [vmem:[#allocation13 + $0xea0] sm:$0xff]
    %v8031 = vld [vmem:[#allocation13 + $0xea8] sm:$0xff]
    %v8032 = vld [vmem:[#allocation13 + $0xeb0] sm:$0xff]
    %v8033 = vld [vmem:[#allocation13 + $0xeb8] sm:$0xff]
    %v8034 = vld [vmem:[#allocation13 + $0xec0] sm:$0xff]
    %v8035 = vld [vmem:[#allocation13 + $0xec8] sm:$0xff]
    %v8036 = vld [vmem:[#allocation13 + $0xed0] sm:$0xff]
    %v8037 = vld [vmem:[#allocation13 + $0xed8] sm:$0xff]
    %v8038 = vld [vmem:[#allocation13 + $0xee0] sm:$0xff]
    %v8039 = vld [vmem:[#allocation13 + $0xee8] sm:$0xff]
    %v8040 = vld [vmem:[#allocation13 + $0xef0] sm:$0xff]
    %v8041 = vld [vmem:[#allocation13 + $0xef8] sm:$0xff]
    %v8042 = vld [vmem:[#allocation13 + $0xf00] sm:$0xff]
    %v8043 = vld [vmem:[#allocation13 + $0xf08] sm:$0xff]
    %v8044 = vld [vmem:[#allocation13 + $0xf10] sm:$0xff]
    %v8045 = vld [vmem:[#allocation13 + $0xf18] sm:$0xff]
    %v8046 = vld [vmem:[#allocation13 + $0xf20] sm:$0xff]
    %v8047 = vld [vmem:[#allocation13 + $0xf28] sm:$0xff]
    %v8048 = vld [vmem:[#allocation13 + $0xf30] sm:$0xff]
    %v8049 = vld [vmem:[#allocation13 + $0xf38] sm:$0xff]
    %v8050 = vld [vmem:[#allocation13 + $0xf40] sm:$0xff]
    %v8051 = vld [vmem:[#allocation13 + $0xf48] sm:$0xff]
    %v8052 = vld [vmem:[#allocation13 + $0xf50] sm:$0xff]
    %v8053 = vld [vmem:[#allocation13 + $0xf58] sm:$0xff]
    %v8054 = vld [vmem:[#allocation13 + $0xf60] sm:$0xff]
    %v8055 = vld [vmem:[#allocation13 + $0xf68] sm:$0xff]
    %v8056 = vld [vmem:[#allocation13 + $0xf70] sm:$0xff]
    %v8057 = vld [vmem:[#allocation13 + $0xf78] sm:$0xff]
    %v8058 = vld [vmem:[#allocation13 + $0xf80] sm:$0xff]
    %v8059 = vld [vmem:[#allocation13 + $0xf88] sm:$0xff]
    %v8060 = vld [vmem:[#allocation13 + $0xf90] sm:$0xff]
    %v8061 = vld [vmem:[#allocation13 + $0xf98] sm:$0xff]
    %v8062 = vld [vmem:[#allocation13 + $0xfa0] sm:$0xff]
    %v8063 = vld [vmem:[#allocation13 + $0xfa8] sm:$0xff]
    %v8064 = vld [vmem:[#allocation13 + $0xfb0] sm:$0xff]
    %v8065 = vld [vmem:[#allocation13 + $0xfb8] sm:$0xff]
    %v8066 = vld [vmem:[#allocation13 + $0xfc0] sm:$0xff]
    %v8067 = vld [vmem:[#allocation13 + $0xfc8] sm:$0xff]
    %v8068 = vld [vmem:[#allocation13 + $0xfd0] sm:$0xff]
    %v8069 = vld [vmem:[#allocation13 + $0xfd8] sm:$0xff]
    %v8070 = vld [vmem:[#allocation13 + $0xfe0] sm:$0xff]
    %v8071 = vld [vmem:[#allocation13 + $0xfe8] sm:$0xff]
    %v8072 = vld [vmem:[#allocation13 + $0xff0] sm:$0xff]
    %v8073 = vld [vmem:[#allocation13 + $0xff8] sm:$0xff]
    %v8074 = vld [vmem:[#allocation13 + $0x1000] sm:$0xff]
    %v8075 = vld [vmem:[#allocation13 + $0x1008] sm:$0xff]
    %v8076 = vld [vmem:[#allocation13 + $0x1010] sm:$0xff]
    %v8077 = vld [vmem:[#allocation13 + $0x1018] sm:$0xff]
    %v8078 = vld [vmem:[#allocation13 + $0x1020] sm:$0xff]
    %v8079 = vld [vmem:[#allocation13 + $0x1028] sm:$0xff]
    %v8080 = vld [vmem:[#allocation13 + $0x1030] sm:$0xff]
    %v8081 = vld [vmem:[#allocation13 + $0x1038] sm:$0xff]
    %v8082 = vld [vmem:[#allocation13 + $0x1040] sm:$0xff]
    %v8083 = vld [vmem:[#allocation13 + $0x1048] sm:$0xff]
    %v8084 = vld [vmem:[#allocation13 + $0x1050] sm:$0xff]
    %v8085 = vld [vmem:[#allocation13 + $0x1058] sm:$0xff]
    %v8086 = vld [vmem:[#allocation13 + $0x1060] sm:$0xff]
    %v8087 = vld [vmem:[#allocation13 + $0x1068] sm:$0xff]
    %v8088 = vld [vmem:[#allocation13 + $0x1070] sm:$0xff]
    %v8089 = vld [vmem:[#allocation13 + $0x1078] sm:$0xff]
    %v8090 = vld [vmem:[#allocation13 + $0x1080] sm:$0xff]
    %v8091 = vld [vmem:[#allocation13 + $0x1088] sm:$0xff]
    %v8092 = vld [vmem:[#allocation13 + $0x1090] sm:$0xff]
    %v8093 = vld [vmem:[#allocation13 + $0x1098] sm:$0xff]
    %v8094 = vld [vmem:[#allocation13 + $0x10a0] sm:$0xff]
    %v8095 = vld [vmem:[#allocation13 + $0x10a8] sm:$0xff]
    %v8096 = vld [vmem:[#allocation13 + $0x10b0] sm:$0xff]
    %v8097 = vld [vmem:[#allocation13 + $0x10b8] sm:$0xff]
    %v8098 = vld [vmem:[#allocation13 + $0x10c0] sm:$0xff]
    %v8099 = vld [vmem:[#allocation13 + $0x10c8] sm:$0xff]
    %v8100 = vld [vmem:[#allocation13 + $0x10d0] sm:$0xff]
    %v8101 = vld [vmem:[#allocation13 + $0x10d8] sm:$0xff]
    %v8102 = vld [vmem:[#allocation13 + $0x10e0] sm:$0xff]
    %v8103 = vld [vmem:[#allocation13 + $0x10e8] sm:$0xff]
    %v8104 = vld [vmem:[#allocation13 + $0x10f0] sm:$0xff]
    %v8105 = vld [vmem:[#allocation13 + $0x10f8] sm:$0xff]
    %v8106 = vld [vmem:[#allocation13 + $0x1100] sm:$0xff]
    %v8107 = vld [vmem:[#allocation13 + $0x1108] sm:$0xff]
    %v8108 = vld [vmem:[#allocation13 + $0x1110] sm:$0xff]
    %v8109 = vld [vmem:[#allocation13 + $0x1118] sm:$0xff]
    %v8110 = vld [vmem:[#allocation13 + $0x1120] sm:$0xff]
    %v8111 = vld [vmem:[#allocation13 + $0x1128] sm:$0xff]
    %v8112 = vld [vmem:[#allocation13 + $0x1130] sm:$0xff]
    %v8113 = vld [vmem:[#allocation13 + $0x1138] sm:$0xff]
    %v8114 = vld [vmem:[#allocation13 + $0x1140] sm:$0xff]
    %v8115 = vld [vmem:[#allocation13 + $0x1148] sm:$0xff]
    %v8116 = vld [vmem:[#allocation13 + $0x1150] sm:$0xff]
    %v8117 = vld [vmem:[#allocation13 + $0x1158] sm:$0xff]
    %v8118 = vld [vmem:[#allocation13 + $0x1160] sm:$0xff]
    %v8119 = vld [vmem:[#allocation13 + $0x1168] sm:$0xff]
    %v8120 = vld [vmem:[#allocation13 + $0x1170] sm:$0xff]
    %v8121 = vld [vmem:[#allocation13 + $0x1178] sm:$0xff]
    %v8122 = vld [vmem:[#allocation13 + $0x1180] sm:$0xff]
    %v8123 = vld [vmem:[#allocation13 + $0x1188] sm:$0xff]
    %v8124 = vld [vmem:[#allocation13 + $0x1190] sm:$0xff]
    %v8125 = vld [vmem:[#allocation13 + $0x1198] sm:$0xff]
    %v8126 = vld [vmem:[#allocation13 + $0x11a0] sm:$0xff]
    %v8127 = vld [vmem:[#allocation13 + $0x11a8] sm:$0xff]
    %v8128 = vld [vmem:[#allocation13 + $0x11b0] sm:$0xff]
    %v8129 = vld [vmem:[#allocation13 + $0x11b8] sm:$0xff]
    %v8130 = vld [vmem:[#allocation13 + $0x11c0] sm:$0xff]
    %v8131 = vld [vmem:[#allocation13 + $0x11c8] sm:$0xff]
    %v8132 = vld [vmem:[#allocation13 + $0x11d0] sm:$0xff]
    %v8133 = vld [vmem:[#allocation13 + $0x11d8] sm:$0xff]
    %v8134 = vld [vmem:[#allocation13 + $0x11e0] sm:$0xff]
    %v8135 = vld [vmem:[#allocation13 + $0x11e8] sm:$0xff]
    %v8136 = vld [vmem:[#allocation13 + $0x11f0] sm:$0xff]
    %v8137 = vld [vmem:[#allocation13 + $0x11f8] sm:$0xff]
    %v8138 = vld [vmem:[#allocation14] sm:$0x7]
    %v8140 = vlaneseq
    %v8141 = vshrl.u32 %v8140, 7
    %v8142 = vsub.s32 0, %v8141
    %v8143 = vrot.slane %v8138, %v8142
    %v8144 = vlaneseq
    %v8145 = vshrl.u32 %v8144, 7
    %v8146 = vsub.s32 1, %v8145
    %v8147 = vrot.slane %v8138, %v8146
    %v8148 = vlaneseq
    %v8149 = vshrl.u32 %v8148, 7
    %v8150 = vsub.s32 2, %v8149
    %v8151 = vrot.slane %v8138, %v8150
    %8155 = vmatprep.subr.mxu0 %v7563
    %8156 = vmatpush1.msra.mxu0 %v7562
    %8157 = vmatprep.subr.mxu0 %v7566
    %8158 = vmatpush1.msra.mxu0 %v7565
    %8159 = vmatprep.subr.mxu0 %v7569
    %8160 = vmatpush1.msra.mxu0 %v7568
    %8161 = vmatprep.subr.mxu0 %v7572
    %8162 = vmatpush1.msra.mxu0 %v7571
    %8163 = vmatprep.subr.mxu0 %v7575
    %8164 = vmatpush1.msra.mxu0 %v7574
    %8165 = vmatprep.subr.mxu0 %v7578
    %8166 = vmatpush1.msra.mxu0 %v7577
    %8167 = vmatprep.subr.mxu0 %v7581
    %8168 = vmatpush1.msra.mxu0 %v7580
    %8169 = vmatprep.subr.mxu0 %v7584
    %8170 = vmatpush1.msra.mxu0 %v7583
    %8171 = vmatprep.subr.mxu0 %v7587
    %8172 = vmatpush1.msra.mxu0 %v7586
    %8173 = vmatprep.subr.mxu0 %v7590
    %8174 = vmatpush1.msra.mxu0 %v7589
    %8175 = vmatprep.subr.mxu0 %v7593
    %8176 = vmatpush1.msra.mxu0 %v7592
    %8177 = vmatprep.subr.mxu0 %v7596
    %8178 = vmatpush1.msra.mxu0 %v7595
    %8179 = vmatprep.subr.mxu0 %v7599
    %8180 = vmatpush1.msra.mxu0 %v7598
    %8181 = vmatprep.subr.mxu0 %v7602
    %8182 = vmatpush1.msra.mxu0 %v7601
    %8183 = vmatprep.subr.mxu0 %v7605
    %8184 = vmatpush1.msra.mxu0 %v7604
    %8185 = vmatprep.subr.mxu0 %v7608
    %8186 = vmatpush1.msra.mxu0 %v7607
    %8187 = vmatprep.subr.mxu0 %v7611
    %8188 = vmatpush1.msra.mxu0 %v7610
    %8189 = vmatprep.subr.mxu0 %v7614
    %8190 = vmatpush1.msra.mxu0 %v7613
    %8191 = vmatprep.subr.mxu0 %v7617
    %8192 = vmatpush1.msra.mxu0 %v7616
    %8193 = vmatprep.subr.mxu0 %v7620
    %8194 = vmatpush1.msra.mxu0 %v7619
    %8195 = vmatprep.subr.mxu0 %v7623
    %8196 = vmatpush1.msra.mxu0 %v7622
    %8197 = vmatprep.subr.mxu0 %v7626
    %8198 = vmatpush1.msra.mxu0 %v7625
    %8199 = vmatprep.subr.mxu0 %v7629
    %8200 = vmatpush1.msra.mxu0 %v7628
    %8201 = vmatprep.subr.mxu0 %v7632
    %8202 = vmatpush1.msra.mxu0 %v7631
    %8203 = vmatprep.subr.mxu0 %v7635
    %8204 = vmatpush1.msra.mxu0 %v7634
    %8205 = vmatprep.subr.mxu0 %v7638
    %8206 = vmatpush1.msra.mxu0 %v7637
    %8207 = vmatprep.subr.mxu0 %v7641
    %8208 = vmatpush1.msra.mxu0 %v7640
    %8209 = vmatprep.subr.mxu0 %v7644
    %8210 = vmatpush1.msra.mxu0 %v7643
    %8211 = vmatprep.subr.mxu0 %v7647
    %8212 = vmatpush1.msra.mxu0 %v7646
    %8213 = vmatprep.subr.mxu0 %v7650
    %8214 = vmatpush1.msra.mxu0 %v7649
    %8215 = vmatprep.subr.mxu0 %v7653
    %8216 = vmatpush1.msra.mxu0 %v7652
    %8217 = vmatprep.subr.mxu0 %v7656
    %8218 = vmatpush1.msra.mxu0 %v7655
    %8219 = vmatprep.mubr.f32.mxu0 %v7467
    %8220 = vmatmul.mubr.f32.gmra.mrb[0].mxu0 %v7466
    %v8221 = vpop.f32.mrb[0].mxu0
    %v8222 = vadd.f32 %v8143, %v8221
    %v8223 = vpop.f32.mrb[0].mxu0
    %v8224 = vadd.f32 %v8147, %v8223
    %8225 = vmatprep.mubr.f32.mxu0 %v7479
    %8226 = vmatmul.mubr.f32.gmra.mrb[0].mxu0 %v7478
    %v8227 = vpop.f32.mrb[0].mxu0
    %v8228 = vadd.f32 %v8143, %v8227
    %v8229 = vpop.f32.mrb[0].mxu0
    %v8230 = vadd.f32 %v8147, %v8229
    %8231 = vmatprep.mubr.f32.mxu0 %v7491
    %8232 = vmatmul.mubr.f32.gmra.mrb[0].mxu0 %v7490
    %v8233 = vpop.f32.mrb[0].mxu0
    %v8234 = vadd.f32 %v8143, %v8233
    %v8235 = vpop.f32.mrb[0].mxu0
    %v8236 = vadd.f32 %v8147, %v8235
    %8237 = vmatprep.mubr.f32.mxu0 %v7503
    %8238 = vmatmul.mubr.f32.gmra.mrb[0].mxu0 %v7502
    %v8239 = vpop.f32.mrb[0].mxu0
    %v8240 = vadd.f32 %v8143, %v8239
    %v8241 = vpop.f32.mrb[0].mxu0
    %v8242 = vadd.f32 %v8147, %v8241
    %8243 = vmatprep.mubr.f32.mxu0 %v7515
    %8244 = vmatmul.mubr.f32.gmra.mrb[0].mxu0 %v7514
    %v8245 = vpop.f32.mrb[0].mxu0
    %v8246 = vadd.f32 %v8143, %v8245
    %v8247 = vpop.f32.mrb[0].mxu0
    %v8248 = vadd.f32 %v8147, %v8247
    %8249 = vmatprep.mubr.f32.mxu0 %v7527
    %8250 = vmatmul.mubr.f32.gmra.mrb[0].mxu0 %v7526
    %v8251 = vpop.f32.mrb[0].mxu0
    %v8252 = vadd.f32 %v8143, %v8251
    %v8253 = vpop.f32.mrb[0].mxu0
    %v8254 = vadd.f32 %v8147, %v8253
    %8255 = vmatprep.mubr.f32.mxu0 %v7539
    %8256 = vmatmul.mubr.f32.gmra.mrb[0].mxu0 %v7538
    %v8257 = vpop.f32.mrb[0].mxu0
    %v8258 = vadd.f32 %v8143, %v8257
    %v8259 = vpop.f32.mrb[0].mxu0
    %v8260 = vadd.f32 %v8147, %v8259
    %8261 = vmatprep.mubr.f32.mxu0 %v7551
    %8262 = vmatmul.mubr.f32.gmra.mrb[0].mxu0 %v7550
    %v8263 = vpop.f32.mrb[0].mxu0
    %v8264 = vadd.f32 %v8143, %v8263
    %v8265 = vpop.f32.mrb[0].mxu0
    %v8266 = vadd.f32 %v8147, %v8265
    %8267 = vdwg.mxu0
    %8268 = vmatprep.subr.mxu0 %v7659
    %8269 = vmatpush1.msra.mxu0 %v7658
    %8270 = vmatprep.subr.mxu0 %v7662
    %8271 = vmatpush1.msra.mxu0 %v7661
    %8272 = vmatprep.subr.mxu0 %v7665
    %8273 = vmatpush1.msra.mxu0 %v7664
    %8274 = vmatprep.subr.mxu0 %v7668
    %8275 = vmatpush1.msra.mxu0 %v7667
    %8276 = vmatprep.subr.mxu0 %v7671
    %8277 = vmatpush1.msra.mxu0 %v7670
    %8278 = vmatprep.subr.mxu0 %v7674
    %8279 = vmatpush1.msra.mxu0 %v7673
    %8280 = vmatprep.subr.mxu0 %v7677
    %8281 = vmatpush1.msra.mxu0 %v7676
    %8282 = vmatprep.subr.mxu0 %v7680
    %8283 = vmatpush1.msra.mxu0 %v7679
    %8284 = vmatprep.subr.mxu0 %v7683
    %8285 = vmatpush1.msra.mxu0 %v7682
    %8286 = vmatprep.subr.mxu0 %v7686
    %8287 = vmatpush1.msra.mxu0 %v7685
    %8288 = vmatprep.subr.mxu0 %v7689
    %8289 = vmatpush1.msra.mxu0 %v7688
    %8290 = vmatprep.subr.mxu0 %v7692
    %8291 = vmatpush1.msra.mxu0 %v7691
    %8292 = vmatprep.subr.mxu0 %v7695
    %8293 = vmatpush1.msra.mxu0 %v7694
    %8294 = vmatprep.subr.mxu0 %v7698
    %8295 = vmatpush1.msra.mxu0 %v7697
    %8296 = vmatprep.subr.mxu0 %v7701
    %8297 = vmatpush1.msra.mxu0 %v7700
    %8298 = vmatprep.subr.mxu0 %v7704
    %8299 = vmatpush1.msra.mxu0 %v7703
    %8300 = vmatprep.subr.mxu0 %v7707
    %8301 = vmatpush1.msra.mxu0 %v7706
    %8302 = vmatprep.subr.mxu0 %v7710
    %8303 = vmatpush1.msra.mxu0 %v7709
    %8304 = vmatprep.subr.mxu0 %v7713
    %8305 = vmatpush1.msra.mxu0 %v7712
    %8306 = vmatprep.subr.mxu0 %v7716
    %8307 = vmatpush1.msra.mxu0 %v7715
    %8308 = vmatprep.subr.mxu0 %v7719
    %8309 = vmatpush1.msra.mxu0 %v7718
    %8310 = vmatprep.subr.mxu0 %v7722
    %8311 = vmatpush1.msra.mxu0 %v7721
    %8312 = vmatprep.subr.mxu0 %v7725
    %8313 = vmatpush1.msra.mxu0 %v7724
    %8314 = vmatprep.subr.mxu0 %v7728
    %8315 = vmatpush1.msra.mxu0 %v7727
    %8316 = vmatprep.subr.mxu0 %v7731
    %8317 = vmatpush1.msra.mxu0 %v7730
    %8318 = vmatprep.subr.mxu0 %v7734
    %8319 = vmatpush1.msra.mxu0 %v7733
    %8320 = vmatprep.subr.mxu0 %v7737
    %8321 = vmatpush1.msra.mxu0 %v7736
    %8322 = vmatprep.subr.mxu0 %v7740
    %8323 = vmatpush1.msra.mxu0 %v7739
    %8324 = vmatprep.subr.mxu0 %v7743
    %8325 = vmatpush1.msra.mxu0 %v7742
    %8326 = vmatprep.subr.mxu0 %v7746
    %8327 = vmatpush1.msra.mxu0 %v7745
    %8328 = vmatprep.subr.mxu0 %v7749
    %8329 = vmatpush1.msra.mxu0 %v7748
    %8330 = vmatprep.subr.mxu0 %v7752
    %8331 = vmatpush1.msra.mxu0 %v7751
    %8332 = vmatprep.mubr.f32.mxu0 %v7469
    %8333 = vmatmul.mubr.f32.gmra.mrb[0].mxu0 %v7468
    %v8334 = vpop.f32.mrb[0].mxu0
    %v8335 = vadd.f32 %v8222, %v8334
    %v8336 = vpop.f32.mrb[0].mxu0
    %v8337 = vadd.f32 %v8224, %v8336
    %8338 = vmatprep.mubr.f32.mxu0 %v7481
    %8339 = vmatmul.mubr.f32.gmra.mrb[0].mxu0 %v7480
    %v8340 = vpop.f32.mrb[0].mxu0
    %v8341 = vadd.f32 %v8228, %v8340
    %v8342 = vpop.f32.mrb[0].mxu0
    %v8343 = vadd.f32 %v8230, %v8342
    %8344 = vmatprep.mubr.f32.mxu0 %v7493
    %8345 = vmatmul.mubr.f32.gmra.mrb[0].mxu0 %v7492
    %v8346 = vpop.f32.mrb[0].mxu0
    %v8347 = vadd.f32 %v8234, %v8346
    %v8348 = vpop.f32.mrb[0].mxu0
    %v8349 = vadd.f32 %v8236, %v8348
    %8350 = vmatprep.mubr.f32.mxu0 %v7505
    %8351 = vmatmul.mubr.f32.gmra.mrb[0].mxu0 %v7504
    %v8352 = vpop.f32.mrb[0].mxu0
    %v8353 = vadd.f32 %v8240, %v8352
    %v8354 = vpop.f32.mrb[0].mxu0
    %v8355 = vadd.f32 %v8242, %v8354
    %8356 = vmatprep.mubr.f32.mxu0 %v7517
    %8357 = vmatmul.mubr.f32.gmra.mrb[0].mxu0 %v7516
    %v8358 = vpop.f32.mrb[0].mxu0
    %v8359 = vadd.f32 %v8246, %v8358
    %v8360 = vpop.f32.mrb[0].mxu0
    %v8361 = vadd.f32 %v8248, %v8360
    %8362 = vmatprep.mubr.f32.mxu0 %v7529
    %8363 = vmatmul.mubr.f32.gmra.mrb[0].mxu0 %v7528
    %v8364 = vpop.f32.mrb[0].mxu0
    %v8365 = vadd.f32 %v8252, %v8364
    %v8366 = vpop.f32.mrb[0].mxu0
    %v8367 = vadd.f32 %v8254, %v8366
    %8368 = vmatprep.mubr.f32.mxu0 %v7541
    %8369 = vmatmul.mubr.f32.gmra.mrb[0].mxu0 %v7540
    %v8370 = vpop.f32.mrb[0].mxu0
    %v8371 = vadd.f32 %v8258, %v8370
    %v8372 = vpop.f32.mrb[0].mxu0
    %v8373 = vadd.f32 %v8260, %v8372
    %8374 = vmatprep.mubr.f32.mxu0 %v7553
    %8375 = vmatmul.mubr.f32.gmra.mrb[0].mxu0 %v7552
    %v8376 = vpop.f32.mrb[0].mxu0
    %v8377 = vadd.f32 %v8264, %v8376
    %v8378 = vpop.f32.mrb[0].mxu0
    %v8379 = vadd.f32 %v8266, %v8378
    %8380 = vdwg.mxu0
    %8381 = vmatprep.subr.mxu0 %v7755
    %8382 = vmatpush1.msra.mxu0 %v7754
    %8383 = vmatprep.subr.mxu0 %v7758
    %8384 = vmatpush1.msra.mxu0 %v7757
    %8385 = vmatprep.subr.mxu0 %v7761
    %8386 = vmatpush1.msra.mxu0 %v7760
    %8387 = vmatprep.subr.mxu0 %v7764
    %8388 = vmatpush1.msra.mxu0 %v7763
    %8389 = vmatprep.subr.mxu0 %v7767
    %8390 = vmatpush1.msra.mxu0 %v7766
    %8391 = vmatprep.subr.mxu0 %v7770
    %8392 = vmatpush1.msra.mxu0 %v7769
    %8393 = vmatprep.subr.mxu0 %v7773
    %8394 = vmatpush1.msra.mxu0 %v7772
    %8395 = vmatprep.subr.mxu0 %v7776
    %8396 = vmatpush1.msra.mxu0 %v7775
    %8397 = vmatprep.subr.mxu0 %v7779
    %8398 = vmatpush1.msra.mxu0 %v7778
    %8399 = vmatprep.subr.mxu0 %v7782
    %8400 = vmatpush1.msra.mxu0 %v7781
    %8401 = vmatprep.subr.mxu0 %v7785
    %8402 = vmatpush1.msra.mxu0 %v7784
    %8403 = vmatprep.subr.mxu0 %v7788
    %8404 = vmatpush1.msra.mxu0 %v7787
    %8405 = vmatprep.subr.mxu0 %v7791
    %8406 = vmatpush1.msra.mxu0 %v7790
    %8407 = vmatprep.subr.mxu0 %v7794
    %8408 = vmatpush1.msra.mxu0 %v7793
    %8409 = vmatprep.subr.mxu0 %v7797
    %8410 = vmatpush1.msra.mxu0 %v7796
    %8411 = vmatprep.subr.mxu0 %v7800
    %8412 = vmatpush1.msra.mxu0 %v7799
    %8413 = vmatprep.subr.mxu0 %v7803
    %8414 = vmatpush1.msra.mxu0 %v7802
    %8415 = vmatprep.subr.mxu0 %v7806
    %8416 = vmatpush1.msra.mxu0 %v7805
    %8417 = vmatprep.subr.mxu0 %v7809
    %8418 = vmatpush1.msra.mxu0 %v7808
    %8419 = vmatprep.subr.mxu0 %v7812
    %8420 = vmatpush1.msra.mxu0 %v7811
    %8421 = vmatprep.subr.mxu0 %v7815
    %8422 = vmatpush1.msra.mxu0 %v7814
    %8423 = vmatprep.subr.mxu0 %v7818
    %8424 = vmatpush1.msra.mxu0 %v7817
    %8425 = vmatprep.subr.mxu0 %v7821
    %8426 = vmatpush1.msra.mxu0 %v7820
    %8427 = vmatprep.subr.mxu0 %v7824
    %8428 = vmatpush1.msra.mxu0 %v7823
    %8429 = vmatprep.subr.mxu0 %v7827
    %8430 = vmatpush1.msra.mxu0 %v7826
    %8431 = vmatprep.subr.mxu0 %v7830
    %8432 = vmatpush1.msra.mxu0 %v7829
    %8433 = vmatprep.subr.mxu0 %v7833
    %8434 = vmatpush1.msra.mxu0 %v7832
    %8435 = vmatprep.subr.mxu0 %v7836
    %8436 = vmatpush1.msra.mxu0 %v7835
    %8437 = vmatprep.subr.mxu0 %v7839
    %8438 = vmatpush1.msra.mxu0 %v7838
    %8439 = vmatprep.subr.mxu0 %v7842
    %8440 = vmatpush1.msra.mxu0 %v7841
    %8441 = vmatprep.subr.mxu0 %v7845
    %8442 = vmatpush1.msra.mxu0 %v7844
    %8443 = vmatprep.subr.mxu0 %v7848
    %8444 = vmatpush1.msra.mxu0 %v7847
    %8445 = vmatprep.mubr.f32.mxu0 %v7471
    %8446 = vmatmul.mubr.f32.gmra.mrb[0].mxu0 %v7470
    %v8447 = vpop.f32.mrb[0].mxu0
    %v8448 = vadd.f32 %v8335, %v8447
    %v8449 = vpop.f32.mrb[0].mxu0
    %v8450 = vadd.f32 %v8337, %v8449
    %8451 = vmatprep.mubr.f32.mxu0 %v7483
    %8452 = vmatmul.mubr.f32.gmra.mrb[0].mxu0 %v7482
    %v8453 = vpop.f32.mrb[0].mxu0
    %v8454 = vadd.f32 %v8341, %v8453
    %v8455 = vpop.f32.mrb[0].mxu0
    %v8456 = vadd.f32 %v8343, %v8455
    %8457 = vmatprep.mubr.f32.mxu0 %v7495
    %8458 = vmatmul.mubr.f32.gmra.mrb[0].mxu0 %v7494
    %v8459 = vpop.f32.mrb[0].mxu0
    %v8460 = vadd.f32 %v8347, %v8459
    %v8461 = vpop.f32.mrb[0].mxu0
    %v8462 = vadd.f32 %v8349, %v8461
    %8463 = vmatprep.mubr.f32.mxu0 %v7507
    %8464 = vmatmul.mubr.f32.gmra.mrb[0].mxu0 %v7506
    %v8465 = vpop.f32.mrb[0].mxu0
    %v8466 = vadd.f32 %v8353, %v8465
    %v8467 = vpop.f32.mrb[0].mxu0
    %v8468 = vadd.f32 %v8355, %v8467
    %8469 = vmatprep.mubr.f32.mxu0 %v7519
    %8470 = vmatmul.mubr.f32.gmra.mrb[0].mxu0 %v7518
    %v8471 = vpop.f32.mrb[0].mxu0
    %v8472 = vadd.f32 %v8359, %v8471
    %v8473 = vpop.f32.mrb[0].mxu0
    %v8474 = vadd.f32 %v8361, %v8473
    %8475 = vmatprep.mubr.f32.mxu0 %v7531
    %8476 = vmatmul.mubr.f32.gmra.mrb[0].mxu0 %v7530
    %v8477 = vpop.f32.mrb[0].mxu0
    %v8478 = vadd.f32 %v8365, %v8477
    %v8479 = vpop.f32.mrb[0].mxu0
    %v8480 = vadd.f32 %v8367, %v8479
    %8481 = vmatprep.mubr.f32.mxu0 %v7543
    %8482 = vmatmul.mubr.f32.gmra.mrb[0].mxu0 %v7542
    %v8483 = vpop.f32.mrb[0].mxu0
    %v8484 = vadd.f32 %v8371, %v8483
    %v8485 = vpop.f32.mrb[0].mxu0
    %v8486 = vadd.f32 %v8373, %v8485
    %8487 = vmatprep.mubr.f32.mxu0 %v7555
    %8488 = vmatmul.mubr.f32.gmra.mrb[0].mxu0 %v7554
    %v8489 = vpop.f32.mrb[0].mxu0
    %v8490 = vadd.f32 %v8377, %v8489
    %v8491 = vpop.f32.mrb[0].mxu0
    %v8492 = vadd.f32 %v8379, %v8491
    %8493 = vdwg.mxu0
    %8494 = vmatprep.subr.mxu0 %v7851
    %8495 = vmatpush1.msra.mxu0 %v7850
    %8496 = vmatprep.subr.mxu0 %v7854
    %8497 = vmatpush1.msra.mxu0 %v7853
    %8498 = vmatprep.subr.mxu0 %v7857
    %8499 = vmatpush1.msra.mxu0 %v7856
    %8500 = vmatprep.subr.mxu0 %v7860
    %8501 = vmatpush1.msra.mxu0 %v7859
    %8502 = vmatprep.subr.mxu0 %v7863
    %8503 = vmatpush1.msra.mxu0 %v7862
    %8504 = vmatprep.subr.mxu0 %v7866
    %8505 = vmatpush1.msra.mxu0 %v7865
    %8506 = vmatprep.subr.mxu0 %v7869
    %8507 = vmatpush1.msra.mxu0 %v7868
    %8508 = vmatprep.subr.mxu0 %v7872
    %8509 = vmatpush1.msra.mxu0 %v7871
    %8510 = vmatprep.subr.mxu0 %v7875
    %8511 = vmatpush1.msra.mxu0 %v7874
    %8512 = vmatprep.subr.mxu0 %v7878
    %8513 = vmatpush1.msra.mxu0 %v7877
    %8514 = vmatprep.subr.mxu0 %v7881
    %8515 = vmatpush1.msra.mxu0 %v7880
    %8516 = vmatprep.subr.mxu0 %v7884
    %8517 = vmatpush1.msra.mxu0 %v7883
    %8518 = vmatprep.subr.mxu0 %v7887
    %8519 = vmatpush1.msra.mxu0 %v7886
    %8520 = vmatprep.subr.mxu0 %v7890
    %8521 = vmatpush1.msra.mxu0 %v7889
    %8522 = vmatprep.subr.mxu0 %v7893
    %8523 = vmatpush1.msra.mxu0 %v7892
    %8524 = vmatprep.subr.mxu0 %v7896
    %8525 = vmatpush1.msra.mxu0 %v7895
    %8526 = vmatprep.subr.mxu0 %v7899
    %8527 = vmatpush1.msra.mxu0 %v7898
    %8528 = vmatprep.subr.mxu0 %v7902
    %8529 = vmatpush1.msra.mxu0 %v7901
    %8530 = vmatprep.subr.mxu0 %v7905
    %8531 = vmatpush1.msra.mxu0 %v7904
    %8532 = vmatprep.subr.mxu0 %v7908
    %8533 = vmatpush1.msra.mxu0 %v7907
    %8534 = vmatprep.subr.mxu0 %v7911
    %8535 = vmatpush1.msra.mxu0 %v7910
    %8536 = vmatprep.subr.mxu0 %v7914
    %8537 = vmatpush1.msra.mxu0 %v7913
    %8538 = vmatprep.subr.mxu0 %v7917
    %8539 = vmatpush1.msra.mxu0 %v7916
    %8540 = vmatprep.subr.mxu0 %v7920
    %8541 = vmatpush1.msra.mxu0 %v7919
    %8542 = vmatprep.subr.mxu0 %v7923
    %8543 = vmatpush1.msra.mxu0 %v7922
    %8544 = vmatprep.subr.mxu0 %v7926
    %8545 = vmatpush1.msra.mxu0 %v7925
    %8546 = vmatprep.subr.mxu0 %v7929
    %8547 = vmatpush1.msra.mxu0 %v7928
    %8548 = vmatprep.subr.mxu0 %v7932
    %8549 = vmatpush1.msra.mxu0 %v7931
    %8550 = vmatprep.subr.mxu0 %v7935
    %8551 = vmatpush1.msra.mxu0 %v7934
    %8552 = vmatprep.subr.mxu0 %v7938
    %8553 = vmatpush1.msra.mxu0 %v7937
    %8554 = vmatprep.subr.mxu0 %v7941
    %8555 = vmatpush1.msra.mxu0 %v7940
    %8556 = vmatprep.subr.mxu0 %v7944
    %8557 = vmatpush1.msra.mxu0 %v7943
    %8558 = vmatprep.mubr.f32.mxu0 %v7473
    %8559 = vmatmul.mubr.f32.gmra.mrb[0].mxu0 %v7472
    %v8560 = vpop.f32.mrb[0].mxu0
    %v8561 = vadd.f32 %v8448, %v8560
    %v8562 = vpop.f32.mrb[0].mxu0
    %v8563 = vadd.f32 %v8450, %v8562
    %8564 = vmatprep.mubr.f32.mxu0 %v7485
    %8565 = vmatmul.mubr.f32.gmra.mrb[0].mxu0 %v7484
    %v8566 = vpop.f32.mrb[0].mxu0
    %v8567 = vadd.f32 %v8454, %v8566
    %v8568 = vpop.f32.mrb[0].mxu0
    %v8569 = vadd.f32 %v8456, %v8568
    %8570 = vmatprep.mubr.f32.mxu0 %v7497
    %8571 = vmatmul.mubr.f32.gmra.mrb[0].mxu0 %v7496
    %v8572 = vpop.f32.mrb[0].mxu0
    %v8573 = vadd.f32 %v8460, %v8572
    %v8574 = vpop.f32.mrb[0].mxu0
    %v8575 = vadd.f32 %v8462, %v8574
    %8576 = vmatprep.mubr.f32.mxu0 %v7509
    %8577 = vmatmul.mubr.f32.gmra.mrb[0].mxu0 %v7508
    %v8578 = vpop.f32.mrb[0].mxu0
    %v8579 = vadd.f32 %v8466, %v8578
    %v8580 = vpop.f32.mrb[0].mxu0
    %v8581 = vadd.f32 %v8468, %v8580
    %8582 = vmatprep.mubr.f32.mxu0 %v7521
    %8583 = vmatmul.mubr.f32.gmra.mrb[0].mxu0 %v7520
    %v8584 = vpop.f32.mrb[0].mxu0
    %v8585 = vadd.f32 %v8472, %v8584
    %v8586 = vpop.f32.mrb[0].mxu0
    %v8587 = vadd.f32 %v8474, %v8586
    %8588 = vmatprep.mubr.f32.mxu0 %v7533
    %8589 = vmatmul.mubr.f32.gmra.mrb[0].mxu0 %v7532
    %v8590 = vpop.f32.mrb[0].mxu0
    %v8591 = vadd.f32 %v8478, %v8590
    %v8592 = vpop.f32.mrb[0].mxu0
    %v8593 = vadd.f32 %v8480, %v8592
    %8594 = vmatprep.mubr.f32.mxu0 %v7545
    %8595 = vmatmul.mubr.f32.gmra.mrb[0].mxu0 %v7544
    %v8596 = vpop.f32.mrb[0].mxu0
    %v8597 = vadd.f32 %v8484, %v8596
    %v8598 = vpop.f32.mrb[0].mxu0
    %v8599 = vadd.f32 %v8486, %v8598
    %8600 = vmatprep.mubr.f32.mxu0 %v7557
    %8601 = vmatmul.mubr.f32.gmra.mrb[0].mxu0 %v7556
    %v8602 = vpop.f32.mrb[0].mxu0
    %v8603 = vadd.f32 %v8490, %v8602
    %v8604 = vpop.f32.mrb[0].mxu0
    %v8605 = vadd.f32 %v8492, %v8604
    %8606 = vdwg.mxu0
    %8607 = vmatprep.subr.mxu0 %v7947
    %8608 = vmatpush1.msra.mxu0 %v7946
    %8609 = vmatprep.subr.mxu0 %v7950
    %8610 = vmatpush1.msra.mxu0 %v7949
    %8611 = vmatprep.subr.mxu0 %v7953
    %8612 = vmatpush1.msra.mxu0 %v7952
    %8613 = vmatprep.subr.mxu0 %v7956
    %8614 = vmatpush1.msra.mxu0 %v7955
    %8615 = vmatprep.subr.mxu0 %v7959
    %8616 = vmatpush1.msra.mxu0 %v7958
    %8617 = vmatprep.subr.mxu0 %v7962
    %8618 = vmatpush1.msra.mxu0 %v7961
    %8619 = vmatprep.subr.mxu0 %v7965
    %8620 = vmatpush1.msra.mxu0 %v7964
    %8621 = vmatprep.subr.mxu0 %v7968
    %8622 = vmatpush1.msra.mxu0 %v7967
    %8623 = vmatprep.subr.mxu0 %v7971
    %8624 = vmatpush1.msra.mxu0 %v7970
    %8625 = vmatprep.subr.mxu0 %v7974
    %8626 = vmatpush1.msra.mxu0 %v7973
    %8627 = vmatprep.subr.mxu0 %v7977
    %8628 = vmatpush1.msra.mxu0 %v7976
    %8629 = vmatprep.subr.mxu0 %v7980
    %8630 = vmatpush1.msra.mxu0 %v7979
    %8631 = vmatprep.subr.mxu0 %v7983
    %8632 = vmatpush1.msra.mxu0 %v7982
    %8633 = vmatprep.subr.mxu0 %v7986
    %8634 = vmatpush1.msra.mxu0 %v7985
    %8635 = vmatprep.subr.mxu0 %v7989
    %8636 = vmatpush1.msra.mxu0 %v7988
    %8637 = vmatprep.subr.mxu0 %v7992
    %8638 = vmatpush1.msra.mxu0 %v7991
    %8639 = vmatprep.subr.mxu0 %v7995
    %8640 = vmatpush1.msra.mxu0 %v7994
    %8641 = vmatprep.subr.mxu0 %v7998
    %8642 = vmatpush1.msra.mxu0 %v7997
    %8643 = vmatprep.subr.mxu0 %v8001
    %8644 = vmatpush1.msra.mxu0 %v8000
    %8645 = vmatprep.subr.mxu0 %v8004
    %8646 = vmatpush1.msra.mxu0 %v8003
    %8647 = vmatprep.subr.mxu0 %v8007
    %8648 = vmatpush1.msra.mxu0 %v8006
    %8649 = vmatprep.subr.mxu0 %v8010
    %8650 = vmatpush1.msra.mxu0 %v8009
    %8651 = vmatprep.subr.mxu0 %v8013
    %8652 = vmatpush1.msra.mxu0 %v8012
    %8653 = vmatprep.subr.mxu0 %v8016
    %8654 = vmatpush1.msra.mxu0 %v8015
    %8655 = vmatprep.subr.mxu0 %v8019
    %8656 = vmatpush1.msra.mxu0 %v8018
    %8657 = vmatprep.subr.mxu0 %v8022
    %8658 = vmatpush1.msra.mxu0 %v8021
    %8659 = vmatprep.subr.mxu0 %v8025
    %8660 = vmatpush1.msra.mxu0 %v8024
    %8661 = vmatprep.subr.mxu0 %v8028
    %8662 = vmatpush1.msra.mxu0 %v8027
    %8663 = vmatprep.subr.mxu0 %v8031
    %8664 = vmatpush1.msra.mxu0 %v8030
    %8665 = vmatprep.subr.mxu0 %v8034
    %8666 = vmatpush1.msra.mxu0 %v8033
    %8667 = vmatprep.subr.mxu0 %v8037
    %8668 = vmatpush1.msra.mxu0 %v8036
    %8669 = vmatprep.subr.mxu0 %v8040
    %8670 = vmatpush1.msra.mxu0 %v8039
    %8671 = vmatprep.mubr.f32.mxu0 %v7475
    %8672 = vmatmul.mubr.f32.gmra.mrb[0].mxu0 %v7474
    %v8673 = vpop.f32.mrb[0].mxu0
    %v8674 = vadd.f32 %v8561, %v8673
    %v8675 = vpop.f32.mrb[0].mxu0
    %v8676 = vadd.f32 %v8563, %v8675
    %8677 = vmatprep.mubr.f32.mxu0 %v7487
    %8678 = vmatmul.mubr.f32.gmra.mrb[0].mxu0 %v7486
    %v8679 = vpop.f32.mrb[0].mxu0
    %v8680 = vadd.f32 %v8567, %v8679
    %v8681 = vpop.f32.mrb[0].mxu0
    %v8682 = vadd.f32 %v8569, %v8681
    %8683 = vmatprep.mubr.f32.mxu0 %v7499
    %8684 = vmatmul.mubr.f32.gmra.mrb[0].mxu0 %v7498
    %v8685 = vpop.f32.mrb[0].mxu0
    %v8686 = vadd.f32 %v8573, %v8685
    %v8687 = vpop.f32.mrb[0].mxu0
    %v8688 = vadd.f32 %v8575, %v8687
    %8689 = vmatprep.mubr.f32.mxu0 %v7511
    %8690 = vmatmul.mubr.f32.gmra.mrb[0].mxu0 %v7510
    %v8691 = vpop.f32.mrb[0].mxu0
    %v8692 = vadd.f32 %v8579, %v8691
    %v8693 = vpop.f32.mrb[0].mxu0
    %v8694 = vadd.f32 %v8581, %v8693
    %8695 = vmatprep.mubr.f32.mxu0 %v7523
    %8696 = vmatmul.mubr.f32.gmra.mrb[0].mxu0 %v7522
    %v8697 = vpop.f32.mrb[0].mxu0
    %v8698 = vadd.f32 %v8585, %v8697
    %v8699 = vpop.f32.mrb[0].mxu0
    %v8700 = vadd.f32 %v8587, %v8699
    %8701 = vmatprep.mubr.f32.mxu0 %v7535
    %8702 = vmatmul.mubr.f32.gmra.mrb[0].mxu0 %v7534
    %v8703 = vpop.f32.mrb[0].mxu0
    %v8704 = vadd.f32 %v8591, %v8703
    %v8705 = vpop.f32.mrb[0].mxu0
    %v8706 = vadd.f32 %v8593, %v8705
    %8707 = vmatprep.mubr.f32.mxu0 %v7547
    %8708 = vmatmul.mubr.f32.gmra.mrb[0].mxu0 %v7546
    %v8709 = vpop.f32.mrb[0].mxu0
    %v8710 = vadd.f32 %v8597, %v8709
    %v8711 = vpop.f32.mrb[0].mxu0
    %v8712 = vadd.f32 %v8599, %v8711
    %8713 = vmatprep.mubr.f32.mxu0 %v7559
    %8714 = vmatmul.mubr.f32.gmra.mrb[0].mxu0 %v7558
    %v8715 = vpop.f32.mrb[0].mxu0
    %v8716 = vadd.f32 %v8603, %v8715
    %v8717 = vpop.f32.mrb[0].mxu0
    %v8718 = vadd.f32 %v8605, %v8717
    %8719 = vdwg.mxu0
    %8720 = vmatprep.subr.mxu0 %v8043
    %8721 = vmatpush1.msra.mxu0 %v8042
    %8722 = vmatprep.subr.mxu0 %v8046
    %8723 = vmatpush1.msra.mxu0 %v8045
    %8724 = vmatprep.subr.mxu0 %v8049
    %8725 = vmatpush1.msra.mxu0 %v8048
    %8726 = vmatprep.subr.mxu0 %v8052
    %8727 = vmatpush1.msra.mxu0 %v8051
    %8728 = vmatprep.subr.mxu0 %v8055
    %8729 = vmatpush1.msra.mxu0 %v8054
    %8730 = vmatprep.subr.mxu0 %v8058
    %8731 = vmatpush1.msra.mxu0 %v8057
    %8732 = vmatprep.subr.mxu0 %v8061
    %8733 = vmatpush1.msra.mxu0 %v8060
    %8734 = vmatprep.subr.mxu0 %v8064
    %8735 = vmatpush1.msra.mxu0 %v8063
    %8736 = vmatprep.subr.mxu0 %v8067
    %8737 = vmatpush1.msra.mxu0 %v8066
    %8738 = vmatprep.subr.mxu0 %v8070
    %8739 = vmatpush1.msra.mxu0 %v8069
    %8740 = vmatprep.subr.mxu0 %v8073
    %8741 = vmatpush1.msra.mxu0 %v8072
    %8742 = vmatprep.subr.mxu0 %v8076
    %8743 = vmatpush1.msra.mxu0 %v8075
    %8744 = vmatprep.subr.mxu0 %v8079
    %8745 = vmatpush1.msra.mxu0 %v8078
    %8746 = vmatprep.subr.mxu0 %v8082
    %8747 = vmatpush1.msra.mxu0 %v8081
    %8748 = vmatprep.subr.mxu0 %v8085
    %8749 = vmatpush1.msra.mxu0 %v8084
    %8750 = vmatprep.subr.mxu0 %v8088
    %8751 = vmatpush1.msra.mxu0 %v8087
    %8752 = vmatprep.subr.mxu0 %v8091
    %8753 = vmatpush1.msra.mxu0 %v8090
    %8754 = vmatprep.subr.mxu0 %v8094
    %8755 = vmatpush1.msra.mxu0 %v8093
    %8756 = vmatprep.subr.mxu0 %v8097
    %8757 = vmatpush1.msra.mxu0 %v8096
    %8758 = vmatprep.subr.mxu0 %v8100
    %8759 = vmatpush1.msra.mxu0 %v8099
    %8760 = vmatprep.subr.mxu0 %v8103
    %8761 = vmatpush1.msra.mxu0 %v8102
    %8762 = vmatprep.subr.mxu0 %v8106
    %8763 = vmatpush1.msra.mxu0 %v8105
    %8764 = vmatprep.subr.mxu0 %v8109
    %8765 = vmatpush1.msra.mxu0 %v8108
    %8766 = vmatprep.subr.mxu0 %v8112
    %8767 = vmatpush1.msra.mxu0 %v8111
    %8768 = vmatprep.subr.mxu0 %v8115
    %8769 = vmatpush1.msra.mxu0 %v8114
    %8770 = vmatprep.subr.mxu0 %v8118
    %8771 = vmatpush1.msra.mxu0 %v8117
    %8772 = vmatprep.subr.mxu0 %v8121
    %8773 = vmatpush1.msra.mxu0 %v8120
    %8774 = vmatprep.subr.mxu0 %v8124
    %8775 = vmatpush1.msra.mxu0 %v8123
    %8776 = vmatprep.subr.mxu0 %v8127
    %8777 = vmatpush1.msra.mxu0 %v8126
    %8778 = vmatprep.subr.mxu0 %v8130
    %8779 = vmatpush1.msra.mxu0 %v8129
    %8780 = vmatprep.subr.mxu0 %v8133
    %8781 = vmatpush1.msra.mxu0 %v8132
    %8782 = vmatprep.subr.mxu0 %v8136
    %8783 = vmatpush1.msra.mxu0 %v8135
    %8784 = vmatprep.mubr.f32.mxu0 %v7477
    %8785 = vmatmul.mubr.f32.gmra.mrb[0].mxu0 %v7476
    %v8786 = vpop.f32.mrb[0].mxu0
    %v8787 = vadd.f32 %v8674, %v8786
    %v8788 = vpop.f32.mrb[0].mxu0
    %v8789 = vadd.f32 %v8676, %v8788
    %8790 = vmatprep.mubr.f32.mxu0 %v7489
    %8791 = vmatmul.mubr.f32.gmra.mrb[0].mxu0 %v7488
    %v8792 = vpop.f32.mrb[0].mxu0
    %v8793 = vadd.f32 %v8680, %v8792
    %v8794 = vpop.f32.mrb[0].mxu0
    %v8795 = vadd.f32 %v8682, %v8794
    %8796 = vmatprep.mubr.f32.mxu0 %v7501
    %8797 = vmatmul.mubr.f32.gmra.mrb[0].mxu0 %v7500
    %v8798 = vpop.f32.mrb[0].mxu0
    %v8799 = vadd.f32 %v8686, %v8798
    %v8800 = vpop.f32.mrb[0].mxu0
    %v8801 = vadd.f32 %v8688, %v8800
    %8802 = vmatprep.mubr.f32.mxu0 %v7513
    %8803 = vmatmul.mubr.f32.gmra.mrb[0].mxu0 %v7512
    %v8804 = vpop.f32.mrb[0].mxu0
    %v8805 = vadd.f32 %v8692, %v8804
    %v8806 = vpop.f32.mrb[0].mxu0
    %v8807 = vadd.f32 %v8694, %v8806
    %8808 = vmatprep.mubr.f32.mxu0 %v7525
    %8809 = vmatmul.mubr.f32.gmra.mrb[0].mxu0 %v7524
    %v8810 = vpop.f32.mrb[0].mxu0
    %v8811 = vadd.f32 %v8698, %v8810
    %v8812 = vpop.f32.mrb[0].mxu0
    %v8813 = vadd.f32 %v8700, %v8812
    %8814 = vmatprep.mubr.f32.mxu0 %v7537
    %8815 = vmatmul.mubr.f32.gmra.mrb[0].mxu0 %v7536
    %v8816 = vpop.f32.mrb[0].mxu0
    %v8817 = vadd.f32 %v8704, %v8816
    %v8818 = vpop.f32.mrb[0].mxu0
    %v8819 = vadd.f32 %v8706, %v8818
    %8820 = vmatprep.mubr.f32.mxu0 %v7549
    %8821 = vmatmul.mubr.f32.gmra.mrb[0].mxu0 %v7548
    %v8822 = vpop.f32.mrb[0].mxu0
    %v8823 = vadd.f32 %v8710, %v8822
    %v8824 = vpop.f32.mrb[0].mxu0
    %v8825 = vadd.f32 %v8712, %v8824
    %8826 = vmatprep.mubr.f32.mxu0 %v7561
    %8827 = vmatmul.mubr.f32.gmra.mrb[0].mxu0 %v7560
    %v8828 = vpop.f32.mrb[0].mxu0
    %v8829 = vadd.f32 %v8716, %v8828
    %v8830 = vpop.f32.mrb[0].mxu0
    %v8831 = vadd.f32 %v8718, %v8830
    %8832 = vdwg.mxu0
    %8833 = vmatprep.subr.mxu0 0.0
    %8834 = vmatpush1.msra.mxu0 %v7564
    %8835 = vmatprep.subr.mxu0 0.0
    %8836 = vmatpush1.msra.mxu0 %v7567
    %8837 = vmatprep.subr.mxu0 0.0
    %8838 = vmatpush1.msra.mxu0 %v7570
    %8839 = vmatprep.subr.mxu0 0.0
    %8840 = vmatpush1.msra.mxu0 %v7573
    %8841 = vmatprep.subr.mxu0 0.0
    %8842 = vmatpush1.msra.mxu0 %v7576
    %8843 = vmatprep.subr.mxu0 0.0
    %8844 = vmatpush1.msra.mxu0 %v7579
    %8845 = vmatprep.subr.mxu0 0.0
    %8846 = vmatpush1.msra.mxu0 %v7582
    %8847 = vmatprep.subr.mxu0 0.0
    %8848 = vmatpush1.msra.mxu0 %v7585
    %8849 = vmatprep.subr.mxu0 0.0
    %8850 = vmatpush1.msra.mxu0 %v7588
    %8851 = vmatprep.subr.mxu0 0.0
    %8852 = vmatpush1.msra.mxu0 %v7591
    %8853 = vmatprep.subr.mxu0 0.0
    %8854 = vmatpush1.msra.mxu0 %v7594
    %8855 = vmatprep.subr.mxu0 0.0
    %8856 = vmatpush1.msra.mxu0 %v7597
    %8857 = vmatprep.subr.mxu0 0.0
    %8858 = vmatpush1.msra.mxu0 %v7600
    %8859 = vmatprep.subr.mxu0 0.0
    %8860 = vmatpush1.msra.mxu0 %v7603
    %8861 = vmatprep.subr.mxu0 0.0
    %8862 = vmatpush1.msra.mxu0 %v7606
    %8863 = vmatprep.subr.mxu0 0.0
    %8864 = vmatpush1.msra.mxu0 %v7609
    %8865 = vmatprep.subr.mxu0 0.0
    %8866 = vmatpush1.msra.mxu0 %v7612
    %8867 = vmatprep.subr.mxu0 0.0
    %8868 = vmatpush1.msra.mxu0 %v7615
    %8869 = vmatprep.subr.mxu0 0.0
    %8870 = vmatpush1.msra.mxu0 %v7618
    %8871 = vmatprep.subr.mxu0 0.0
    %8872 = vmatpush1.msra.mxu0 %v7621
    %8873 = vmatprep.subr.mxu0 0.0
    %8874 = vmatpush1.msra.mxu0 %v7624
    %8875 = vmatprep.subr.mxu0 0.0
    %8876 = vmatpush1.msra.mxu0 %v7627
    %8877 = vmatprep.subr.mxu0 0.0
    %8878 = vmatpush1.msra.mxu0 %v7630
    %8879 = vmatprep.subr.mxu0 0.0
    %8880 = vmatpush1.msra.mxu0 %v7633
    %8881 = vmatprep.subr.mxu0 0.0
    %8882 = vmatpush1.msra.mxu0 %v7636
    %8883 = vmatprep.subr.mxu0 0.0
    %8884 = vmatpush1.msra.mxu0 %v7639
    %8885 = vmatprep.subr.mxu0 0.0
    %8886 = vmatpush1.msra.mxu0 %v7642
    %8887 = vmatprep.subr.mxu0 0.0
    %8888 = vmatpush1.msra.mxu0 %v7645
    %8889 = vmatprep.subr.mxu0 0.0
    %8890 = vmatpush1.msra.mxu0 %v7648
    %8891 = vmatprep.subr.mxu0 0.0
    %8892 = vmatpush1.msra.mxu0 %v7651
    %8893 = vmatprep.subr.mxu0 0.0
    %8894 = vmatpush1.msra.mxu0 %v7654
    %8895 = vmatprep.subr.mxu0 0.0
    %8896 = vmatpush1.msra.mxu0 %v7657
    %8897 = vmatprep.mubr.f32.mxu0 %v7467
    %8898 = vmatmul.mubr.f32.gmra.mrb[0].mxu0 %v7466
    %v8899 = vpop.f32.mrb[0].mxu0
    %v8900 = vadd.f32 %v8151, %v8899
    %v8901 = vpop.f32.mrb[0].mxu0
    %8902 = vmatprep.mubr.f32.mxu0 %v7479
    %8903 = vmatmul.mubr.f32.gmra.mrb[0].mxu0 %v7478
    %v8904 = vpop.f32.mrb[0].mxu0
    %v8905 = vadd.f32 %v8151, %v8904
    %v8906 = vpop.f32.mrb[0].mxu0
    %8907 = vmatprep.mubr.f32.mxu0 %v7491
    %8908 = vmatmul.mubr.f32.gmra.mrb[0].mxu0 %v7490
    %v8909 = vpop.f32.mrb[0].mxu0
    %v8910 = vadd.f32 %v8151, %v8909
    %v8911 = vpop.f32.mrb[0].mxu0
    %8912 = vmatprep.mubr.f32.mxu0 %v7503
    %8913 = vmatmul.mubr.f32.gmra.mrb[0].mxu0 %v7502
    %v8914 = vpop.f32.mrb[0].mxu0
    %v8915 = vadd.f32 %v8151, %v8914
    %v8916 = vpop.f32.mrb[0].mxu0
    %8917 = vmatprep.mubr.f32.mxu0 %v7515
    %8918 = vmatmul.mubr.f32.gmra.mrb[0].mxu0 %v7514
    %v8919 = vpop.f32.mrb[0].mxu0
    %v8920 = vadd.f32 %v8151, %v8919
    %v8921 = vpop.f32.mrb[0].mxu0
    %8922 = vmatprep.mubr.f32.mxu0 %v7527
    %8923 = vmatmul.mubr.f32.gmra.mrb[0].mxu0 %v7526
    %v8924 = vpop.f32.mrb[0].mxu0
    %v8925 = vadd.f32 %v8151, %v8924
    %v8926 = vpop.f32.mrb[0].mxu0
    %8927 = vmatprep.mubr.f32.mxu0 %v7539
    %8928 = vmatmul.mubr.f32.gmra.mrb[0].mxu0 %v7538
    %v8929 = vpop.f32.mrb[0].mxu0
    %v8930 = vadd.f32 %v8151, %v8929
    %v8931 = vpop.f32.mrb[0].mxu0
    %8932 = vmatprep.mubr.f32.mxu0 %v7551
    %8933 = vmatmul.mubr.f32.gmra.mrb[0].mxu0 %v7550
    %v8934 = vpop.f32.mrb[0].mxu0
    %v8935 = vadd.f32 %v8151, %v8934
    %v8936 = vpop.f32.mrb[0].mxu0
    %8937 = vdwg.mxu0
    %8938 = vmatprep.subr.mxu0 0.0
    %8939 = vmatpush1.msra.mxu0 %v7660
    %8940 = vmatprep.subr.mxu0 0.0
    %8941 = vmatpush1.msra.mxu0 %v7663
    %8942 = vmatprep.subr.mxu0 0.0
    %8943 = vmatpush1.msra.mxu0 %v7666
    %8944 = vmatprep.subr.mxu0 0.0
    %8945 = vmatpush1.msra.mxu0 %v7669
    %8946 = vmatprep.subr.mxu0 0.0
    %8947 = vmatpush1.msra.mxu0 %v7672
    %8948 = vmatprep.subr.mxu0 0.0
    %8949 = vmatpush1.msra.mxu0 %v7675
    %8950 = vmatprep.subr.mxu0 0.0
    %8951 = vmatpush1.msra.mxu0 %v7678
    %8952 = vmatprep.subr.mxu0 0.0
    %8953 = vmatpush1.msra.mxu0 %v7681
    %8954 = vmatprep.subr.mxu0 0.0
    %8955 = vmatpush1.msra.mxu0 %v7684
    %8956 = vmatprep.subr.mxu0 0.0
    %8957 = vmatpush1.msra.mxu0 %v7687
    %8958 = vmatprep.subr.mxu0 0.0
    %8959 = vmatpush1.msra.mxu0 %v7690
    %8960 = vmatprep.subr.mxu0 0.0
    %8961 = vmatpush1.msra.mxu0 %v7693
    %8962 = vmatprep.subr.mxu0 0.0
    %8963 = vmatpush1.msra.mxu0 %v7696
    %8964 = vmatprep.subr.mxu0 0.0
    %8965 = vmatpush1.msra.mxu0 %v7699
    %8966 = vmatprep.subr.mxu0 0.0
    %8967 = vmatpush1.msra.mxu0 %v7702
    %8968 = vmatprep.subr.mxu0 0.0
    %8969 = vmatpush1.msra.mxu0 %v7705
    %8970 = vmatprep.subr.mxu0 0.0
    %8971 = vmatpush1.msra.mxu0 %v7708
    %8972 = vmatprep.subr.mxu0 0.0
    %8973 = vmatpush1.msra.mxu0 %v7711
    %8974 = vmatprep.subr.mxu0 0.0
    %8975 = vmatpush1.msra.mxu0 %v7714
    %8976 = vmatprep.subr.mxu0 0.0
    %8977 = vmatpush1.msra.mxu0 %v7717
    %8978 = vmatprep.subr.mxu0 0.0
    %8979 = vmatpush1.msra.mxu0 %v7720
    %8980 = vmatprep.subr.mxu0 0.0
    %8981 = vmatpush1.msra.mxu0 %v7723
    %8982 = vmatprep.subr.mxu0 0.0
    %8983 = vmatpush1.msra.mxu0 %v7726
    %8984 = vmatprep.subr.mxu0 0.0
    %8985 = vmatpush1.msra.mxu0 %v7729
    %8986 = vmatprep.subr.mxu0 0.0
    %8987 = vmatpush1.msra.mxu0 %v7732
    %8988 = vmatprep.subr.mxu0 0.0
    %8989 = vmatpush1.msra.mxu0 %v7735
    %8990 = vmatprep.subr.mxu0 0.0
    %8991 = vmatpush1.msra.mxu0 %v7738
    %8992 = vmatprep.subr.mxu0 0.0
    %8993 = vmatpush1.msra.mxu0 %v7741
    %8994 = vmatprep.subr.mxu0 0.0
    %8995 = vmatpush1.msra.mxu0 %v7744
    %8996 = vmatprep.subr.mxu0 0.0
    %8997 = vmatpush1.msra.mxu0 %v7747
    %8998 = vmatprep.subr.mxu0 0.0
    %8999 = vmatpush1.msra.mxu0 %v7750
    %9000 = vmatprep.subr.mxu0 0.0
    %9001 = vmatpush1.msra.mxu0 %v7753
    %9002 = vmatprep.mubr.f32.mxu0 %v7469
    %9003 = vmatmul.mubr.f32.gmra.mrb[0].mxu0 %v7468
    %v9004 = vpop.f32.mrb[0].mxu0
    %v9005 = vadd.f32 %v8900, %v9004
    %v9006 = vpop.f32.mrb[0].mxu0
    %9007 = vmatprep.mubr.f32.mxu0 %v7481
    %9008 = vmatmul.mubr.f32.gmra.mrb[0].mxu0 %v7480
    %v9009 = vpop.f32.mrb[0].mxu0
    %v9010 = vadd.f32 %v8905, %v9009
    %v9011 = vpop.f32.mrb[0].mxu0
    %9012 = vmatprep.mubr.f32.mxu0 %v7493
    %9013 = vmatmul.mubr.f32.gmra.mrb[0].mxu0 %v7492
    %v9014 = vpop.f32.mrb[0].mxu0
    %v9015 = vadd.f32 %v8910, %v9014
    %v9016 = vpop.f32.mrb[0].mxu0
    %9017 = vmatprep.mubr.f32.mxu0 %v7505
    %9018 = vmatmul.mubr.f32.gmra.mrb[0].mxu0 %v7504
    %v9019 = vpop.f32.mrb[0].mxu0
    %v9020 = vadd.f32 %v8915, %v9019
    %v9021 = vpop.f32.mrb[0].mxu0
    %9022 = vmatprep.mubr.f32.mxu0 %v7517
    %9023 = vmatmul.mubr.f32.gmra.mrb[0].mxu0 %v7516
    %v9024 = vpop.f32.mrb[0].mxu0
    %v9025 = vadd.f32 %v8920, %v9024
    %v9026 = vpop.f32.mrb[0].mxu0
    %9027 = vmatprep.mubr.f32.mxu0 %v7529
    %9028 = vmatmul.mubr.f32.gmra.mrb[0].mxu0 %v7528
    %v9029 = vpop.f32.mrb[0].mxu0
    %v9030 = vadd.f32 %v8925, %v9029
    %v9031 = vpop.f32.mrb[0].mxu0
    %9032 = vmatprep.mubr.f32.mxu0 %v7541
    %9033 = vmatmul.mubr.f32.gmra.mrb[0].mxu0 %v7540
    %v9034 = vpop.f32.mrb[0].mxu0
    %v9035 = vadd.f32 %v8930, %v9034
    %v9036 = vpop.f32.mrb[0].mxu0
    %9037 = vmatprep.mubr.f32.mxu0 %v7553
    %9038 = vmatmul.mubr.f32.gmra.mrb[0].mxu0 %v7552
    %v9039 = vpop.f32.mrb[0].mxu0
    %v9040 = vadd.f32 %v8935, %v9039
    %v9041 = vpop.f32.mrb[0].mxu0
    %9042 = vdwg.mxu0
    %9043 = vmatprep.subr.mxu0 0.0
    %9044 = vmatpush1.msra.mxu0 %v7756
    %9045 = vmatprep.subr.mxu0 0.0
    %9046 = vmatpush1.msra.mxu0 %v7759
    %9047 = vmatprep.subr.mxu0 0.0
    %9048 = vmatpush1.msra.mxu0 %v7762
    %9049 = vmatprep.subr.mxu0 0.0
    %9050 = vmatpush1.msra.mxu0 %v7765
    %9051 = vmatprep.subr.mxu0 0.0
    %9052 = vmatpush1.msra.mxu0 %v7768
    %9053 = vmatprep.subr.mxu0 0.0
    %9054 = vmatpush1.msra.mxu0 %v7771
    %9055 = vmatprep.subr.mxu0 0.0
    %9056 = vmatpush1.msra.mxu0 %v7774
    %9057 = vmatprep.subr.mxu0 0.0
    %9058 = vmatpush1.msra.mxu0 %v7777
    %9059 = vmatprep.subr.mxu0 0.0
    %9060 = vmatpush1.msra.mxu0 %v7780
    %9061 = vmatprep.subr.mxu0 0.0
    %9062 = vmatpush1.msra.mxu0 %v7783
    %9063 = vmatprep.subr.mxu0 0.0
    %9064 = vmatpush1.msra.mxu0 %v7786
    %9065 = vmatprep.subr.mxu0 0.0
    %9066 = vmatpush1.msra.mxu0 %v7789
    %9067 = vmatprep.subr.mxu0 0.0
    %9068 = vmatpush1.msra.mxu0 %v7792
    %9069 = vmatprep.subr.mxu0 0.0
    %9070 = vmatpush1.msra.mxu0 %v7795
    %9071 = vmatprep.subr.mxu0 0.0
    %9072 = vmatpush1.msra.mxu0 %v7798
    %9073 = vmatprep.subr.mxu0 0.0
    %9074 = vmatpush1.msra.mxu0 %v7801
    %9075 = vmatprep.subr.mxu0 0.0
    %9076 = vmatpush1.msra.mxu0 %v7804
    %9077 = vmatprep.subr.mxu0 0.0
    %9078 = vmatpush1.msra.mxu0 %v7807
    %9079 = vmatprep.subr.mxu0 0.0
    %9080 = vmatpush1.msra.mxu0 %v7810
    %9081 = vmatprep.subr.mxu0 0.0
    %9082 = vmatpush1.msra.mxu0 %v7813
    %9083 = vmatprep.subr.mxu0 0.0
    %9084 = vmatpush1.msra.mxu0 %v7816
    %9085 = vmatprep.subr.mxu0 0.0
    %9086 = vmatpush1.msra.mxu0 %v7819
    %9087 = vmatprep.subr.mxu0 0.0
    %9088 = vmatpush1.msra.mxu0 %v7822
    %9089 = vmatprep.subr.mxu0 0.0
    %9090 = vmatpush1.msra.mxu0 %v7825
    %9091 = vmatprep.subr.mxu0 0.0
    %9092 = vmatpush1.msra.mxu0 %v7828
    %9093 = vmatprep.subr.mxu0 0.0
    %9094 = vmatpush1.msra.mxu0 %v7831
    %9095 = vmatprep.subr.mxu0 0.0
    %9096 = vmatpush1.msra.mxu0 %v7834
    %9097 = vmatprep.subr.mxu0 0.0
    %9098 = vmatpush1.msra.mxu0 %v7837
    %9099 = vmatprep.subr.mxu0 0.0
    %9100 = vmatpush1.msra.mxu0 %v7840
    %9101 = vmatprep.subr.mxu0 0.0
    %9102 = vmatpush1.msra.mxu0 %v7843
    %9103 = vmatprep.subr.mxu0 0.0
    %9104 = vmatpush1.msra.mxu0 %v7846
    %9105 = vmatprep.subr.mxu0 0.0
    %9106 = vmatpush1.msra.mxu0 %v7849
    %9107 = vmatprep.mubr.f32.mxu0 %v7471
    %9108 = vmatmul.mubr.f32.gmra.mrb[0].mxu0 %v7470
    %v9109 = vpop.f32.mrb[0].mxu0
    %v9110 = vadd.f32 %v9005, %v9109
    %v9111 = vpop.f32.mrb[0].mxu0
    %9112 = vmatprep.mubr.f32.mxu0 %v7483
    %9113 = vmatmul.mubr.f32.gmra.mrb[0].mxu0 %v7482
    %v9114 = vpop.f32.mrb[0].mxu0
    %v9115 = vadd.f32 %v9010, %v9114
    %v9116 = vpop.f32.mrb[0].mxu0
    %9117 = vmatprep.mubr.f32.mxu0 %v7495
    %9118 = vmatmul.mubr.f32.gmra.mrb[0].mxu0 %v7494
    %v9119 = vpop.f32.mrb[0].mxu0
    %v9120 = vadd.f32 %v9015, %v9119
    %v9121 = vpop.f32.mrb[0].mxu0
    %9122 = vmatprep.mubr.f32.mxu0 %v7507
    %9123 = vmatmul.mubr.f32.gmra.mrb[0].mxu0 %v7506
    %v9124 = vpop.f32.mrb[0].mxu0
    %v9125 = vadd.f32 %v9020, %v9124
    %v9126 = vpop.f32.mrb[0].mxu0
    %9127 = vmatprep.mubr.f32.mxu0 %v7519
    %9128 = vmatmul.mubr.f32.gmra.mrb[0].mxu0 %v7518
    %v9129 = vpop.f32.mrb[0].mxu0
    %v9130 = vadd.f32 %v9025, %v9129
    %v9131 = vpop.f32.mrb[0].mxu0
    %9132 = vmatprep.mubr.f32.mxu0 %v7531
    %9133 = vmatmul.mubr.f32.gmra.mrb[0].mxu0 %v7530
    %v9134 = vpop.f32.mrb[0].mxu0
    %v9135 = vadd.f32 %v9030, %v9134
    %v9136 = vpop.f32.mrb[0].mxu0
    %9137 = vmatprep.mubr.f32.mxu0 %v7543
    %9138 = vmatmul.mubr.f32.gmra.mrb[0].mxu0 %v7542
    %v9139 = vpop.f32.mrb[0].mxu0
    %v9140 = vadd.f32 %v9035, %v9139
    %v9141 = vpop.f32.mrb[0].mxu0
    %9142 = vmatprep.mubr.f32.mxu0 %v7555
    %9143 = vmatmul.mubr.f32.gmra.mrb[0].mxu0 %v7554
    %v9144 = vpop.f32.mrb[0].mxu0
    %v9145 = vadd.f32 %v9040, %v9144
    %v9146 = vpop.f32.mrb[0].mxu0
    %9147 = vdwg.mxu0
    %9148 = vmatprep.subr.mxu0 0.0
    %9149 = vmatpush1.msra.mxu0 %v7852
    %9150 = vmatprep.subr.mxu0 0.0
    %9151 = vmatpush1.msra.mxu0 %v7855
    %9152 = vmatprep.subr.mxu0 0.0
    %9153 = vmatpush1.msra.mxu0 %v7858
    %9154 = vmatprep.subr.mxu0 0.0
    %9155 = vmatpush1.msra.mxu0 %v7861
    %9156 = vmatprep.subr.mxu0 0.0
    %9157 = vmatpush1.msra.mxu0 %v7864
    %9158 = vmatprep.subr.mxu0 0.0
    %9159 = vmatpush1.msra.mxu0 %v7867
    %9160 = vmatprep.subr.mxu0 0.0
    %9161 = vmatpush1.msra.mxu0 %v7870
    %9162 = vmatprep.subr.mxu0 0.0
    %9163 = vmatpush1.msra.mxu0 %v7873
    %9164 = vmatprep.subr.mxu0 0.0
    %9165 = vmatpush1.msra.mxu0 %v7876
    %9166 = vmatprep.subr.mxu0 0.0
    %9167 = vmatpush1.msra.mxu0 %v7879
    %9168 = vmatprep.subr.mxu0 0.0
    %9169 = vmatpush1.msra.mxu0 %v7882
    %9170 = vmatprep.subr.mxu0 0.0
    %9171 = vmatpush1.msra.mxu0 %v7885
    %9172 = vmatprep.subr.mxu0 0.0
    %9173 = vmatpush1.msra.mxu0 %v7888
    %9174 = vmatprep.subr.mxu0 0.0
    %9175 = vmatpush1.msra.mxu0 %v7891
    %9176 = vmatprep.subr.mxu0 0.0
    %9177 = vmatpush1.msra.mxu0 %v7894
    %9178 = vmatprep.subr.mxu0 0.0
    %9179 = vmatpush1.msra.mxu0 %v7897
    %9180 = vmatprep.subr.mxu0 0.0
    %9181 = vmatpush1.msra.mxu0 %v7900
    %9182 = vmatprep.subr.mxu0 0.0
    %9183 = vmatpush1.msra.mxu0 %v7903
    %9184 = vmatprep.subr.mxu0 0.0
    %9185 = vmatpush1.msra.mxu0 %v7906
    %9186 = vmatprep.subr.mxu0 0.0
    %9187 = vmatpush1.msra.mxu0 %v7909
    %9188 = vmatprep.subr.mxu0 0.0
    %9189 = vmatpush1.msra.mxu0 %v7912
    %9190 = vmatprep.subr.mxu0 0.0
    %9191 = vmatpush1.msra.mxu0 %v7915
    %9192 = vmatprep.subr.mxu0 0.0
    %9193 = vmatpush1.msra.mxu0 %v7918
    %9194 = vmatprep.subr.mxu0 0.0
    %9195 = vmatpush1.msra.mxu0 %v7921
    %9196 = vmatprep.subr.mxu0 0.0
    %9197 = vmatpush1.msra.mxu0 %v7924
    %9198 = vmatprep.subr.mxu0 0.0
    %9199 = vmatpush1.msra.mxu0 %v7927
    %9200 = vmatprep.subr.mxu0 0.0
    %9201 = vmatpush1.msra.mxu0 %v7930
    %9202 = vmatprep.subr.mxu0 0.0
    %9203 = vmatpush1.msra.mxu0 %v7933
    %9204 = vmatprep.subr.mxu0 0.0
    %9205 = vmatpush1.msra.mxu0 %v7936
    %9206 = vmatprep.subr.mxu0 0.0
    %9207 = vmatpush1.msra.mxu0 %v7939
    %9208 = vmatprep.subr.mxu0 0.0
    %9209 = vmatpush1.msra.mxu0 %v7942
    %9210 = vmatprep.subr.mxu0 0.0
    %9211 = vmatpush1.msra.mxu0 %v7945
    %9212 = vmatprep.mubr.f32.mxu0 %v7473
    %9213 = vmatmul.mubr.f32.gmra.mrb[0].mxu0 %v7472
    %v9214 = vpop.f32.mrb[0].mxu0
    %v9215 = vadd.f32 %v9110, %v9214
    %v9216 = vpop.f32.mrb[0].mxu0
    %9217 = vmatprep.mubr.f32.mxu0 %v7485
    %9218 = vmatmul.mubr.f32.gmra.mrb[0].mxu0 %v7484
    %v9219 = vpop.f32.mrb[0].mxu0
    %v9220 = vadd.f32 %v9115, %v9219
    %v9221 = vpop.f32.mrb[0].mxu0
    %9222 = vmatprep.mubr.f32.mxu0 %v7497
    %9223 = vmatmul.mubr.f32.gmra.mrb[0].mxu0 %v7496
    %v9224 = vpop.f32.mrb[0].mxu0
    %v9225 = vadd.f32 %v9120, %v9224
    %v9226 = vpop.f32.mrb[0].mxu0
    %9227 = vmatprep.mubr.f32.mxu0 %v7509
    %9228 = vmatmul.mubr.f32.gmra.mrb[0].mxu0 %v7508
    %v9229 = vpop.f32.mrb[0].mxu0
    %v9230 = vadd.f32 %v9125, %v9229
    %v9231 = vpop.f32.mrb[0].mxu0
    %9232 = vmatprep.mubr.f32.mxu0 %v7521
    %9233 = vmatmul.mubr.f32.gmra.mrb[0].mxu0 %v7520
    %v9234 = vpop.f32.mrb[0].mxu0
    %v9235 = vadd.f32 %v9130, %v9234
    %v9236 = vpop.f32.mrb[0].mxu0
    %9237 = vmatprep.mubr.f32.mxu0 %v7533
    %9238 = vmatmul.mubr.f32.gmra.mrb[0].mxu0 %v7532
    %v9239 = vpop.f32.mrb[0].mxu0
    %v9240 = vadd.f32 %v9135, %v9239
    %v9241 = vpop.f32.mrb[0].mxu0
    %9242 = vmatprep.mubr.f32.mxu0 %v7545
    %9243 = vmatmul.mubr.f32.gmra.mrb[0].mxu0 %v7544
    %v9244 = vpop.f32.mrb[0].mxu0
    %v9245 = vadd.f32 %v9140, %v9244
    %v9246 = vpop.f32.mrb[0].mxu0
    %9247 = vmatprep.mubr.f32.mxu0 %v7557
    %9248 = vmatmul.mubr.f32.gmra.mrb[0].mxu0 %v7556
    %v9249 = vpop.f32.mrb[0].mxu0
    %v9250 = vadd.f32 %v9145, %v9249
    %v9251 = vpop.f32.mrb[0].mxu0
    %9252 = vdwg.mxu0
    %9253 = vmatprep.subr.mxu0 0.0
    %9254 = vmatpush1.msra.mxu0 %v7948
    %9255 = vmatprep.subr.mxu0 0.0
    %9256 = vmatpush1.msra.mxu0 %v7951
    %9257 = vmatprep.subr.mxu0 0.0
    %9258 = vmatpush1.msra.mxu0 %v7954
    %9259 = vmatprep.subr.mxu0 0.0
    %9260 = vmatpush1.msra.mxu0 %v7957
    %9261 = vmatprep.subr.mxu0 0.0
    %9262 = vmatpush1.msra.mxu0 %v7960
    %9263 = vmatprep.subr.mxu0 0.0
    %9264 = vmatpush1.msra.mxu0 %v7963
    %9265 = vmatprep.subr.mxu0 0.0
    %9266 = vmatpush1.msra.mxu0 %v7966
    %9267 = vmatprep.subr.mxu0 0.0
    %9268 = vmatpush1.msra.mxu0 %v7969
    %9269 = vmatprep.subr.mxu0 0.0
    %9270 = vmatpush1.msra.mxu0 %v7972
    %9271 = vmatprep.subr.mxu0 0.0
    %9272 = vmatpush1.msra.mxu0 %v7975
    %9273 = vmatprep.subr.mxu0 0.0
    %9274 = vmatpush1.msra.mxu0 %v7978
    %9275 = vmatprep.subr.mxu0 0.0
    %9276 = vmatpush1.msra.mxu0 %v7981
    %9277 = vmatprep.subr.mxu0 0.0
    %9278 = vmatpush1.msra.mxu0 %v7984
    %9279 = vmatprep.subr.mxu0 0.0
    %9280 = vmatpush1.msra.mxu0 %v7987
    %9281 = vmatprep.subr.mxu0 0.0
    %9282 = vmatpush1.msra.mxu0 %v7990
    %9283 = vmatprep.subr.mxu0 0.0
    %9284 = vmatpush1.msra.mxu0 %v7993
    %9285 = vmatprep.subr.mxu0 0.0
    %9286 = vmatpush1.msra.mxu0 %v7996
    %9287 = vmatprep.subr.mxu0 0.0
    %9288 = vmatpush1.msra.mxu0 %v7999
    %9289 = vmatprep.subr.mxu0 0.0
    %9290 = vmatpush1.msra.mxu0 %v8002
    %9291 = vmatprep.subr.mxu0 0.0
    %9292 = vmatpush1.msra.mxu0 %v8005
    %9293 = vmatprep.subr.mxu0 0.0
    %9294 = vmatpush1.msra.mxu0 %v8008
    %9295 = vmatprep.subr.mxu0 0.0
    %9296 = vmatpush1.msra.mxu0 %v8011
    %9297 = vmatprep.subr.mxu0 0.0
    %9298 = vmatpush1.msra.mxu0 %v8014
    %9299 = vmatprep.subr.mxu0 0.0
    %9300 = vmatpush1.msra.mxu0 %v8017
    %9301 = vmatprep.subr.mxu0 0.0
    %9302 = vmatpush1.msra.mxu0 %v8020
    %9303 = vmatprep.subr.mxu0 0.0
    %9304 = vmatpush1.msra.mxu0 %v8023
    %9305 = vmatprep.subr.mxu0 0.0
    %9306 = vmatpush1.msra.mxu0 %v8026
    %9307 = vmatprep.subr.mxu0 0.0
    %9308 = vmatpush1.msra.mxu0 %v8029
    %9309 = vmatprep.subr.mxu0 0.0
    %9310 = vmatpush1.msra.mxu0 %v8032
    %9311 = vmatprep.subr.mxu0 0.0
    %9312 = vmatpush1.msra.mxu0 %v8035
    %9313 = vmatprep.subr.mxu0 0.0
    %9314 = vmatpush1.msra.mxu0 %v8038
    %9315 = vmatprep.subr.mxu0 0.0
    %9316 = vmatpush1.msra.mxu0 %v8041
    %9317 = vmatprep.mubr.f32.mxu0 %v7475
    %9318 = vmatmul.mubr.f32.gmra.mrb[0].mxu0 %v7474
    %v9319 = vpop.f32.mrb[0].mxu0
    %v9320 = vadd.f32 %v9215, %v9319
    %v9321 = vpop.f32.mrb[0].mxu0
    %9322 = vmatprep.mubr.f32.mxu0 %v7487
    %9323 = vmatmul.mubr.f32.gmra.mrb[0].mxu0 %v7486
    %v9324 = vpop.f32.mrb[0].mxu0
    %v9325 = vadd.f32 %v9220, %v9324
    %v9326 = vpop.f32.mrb[0].mxu0
    %9327 = vmatprep.mubr.f32.mxu0 %v7499
    %9328 = vmatmul.mubr.f32.gmra.mrb[0].mxu0 %v7498
    %v9329 = vpop.f32.mrb[0].mxu0
    %v9330 = vadd.f32 %v9225, %v9329
    %v9331 = vpop.f32.mrb[0].mxu0
    %9332 = vmatprep.mubr.f32.mxu0 %v7511
    %9333 = vmatmul.mubr.f32.gmra.mrb[0].mxu0 %v7510
    %v9334 = vpop.f32.mrb[0].mxu0
    %v9335 = vadd.f32 %v9230, %v9334
    %v9336 = vpop.f32.mrb[0].mxu0
    %9337 = vmatprep.mubr.f32.mxu0 %v7523
    %9338 = vmatmul.mubr.f32.gmra.mrb[0].mxu0 %v7522
    %v9339 = vpop.f32.mrb[0].mxu0
    %v9340 = vadd.f32 %v9235, %v9339
    %v9341 = vpop.f32.mrb[0].mxu0
    %9342 = vmatprep.mubr.f32.mxu0 %v7535
    %9343 = vmatmul.mubr.f32.gmra.mrb[0].mxu0 %v7534
    %v9344 = vpop.f32.mrb[0].mxu0
    %v9345 = vadd.f32 %v9240, %v9344
    %v9346 = vpop.f32.mrb[0].mxu0
    %9347 = vmatprep.mubr.f32.mxu0 %v7547
    %9348 = vmatmul.mubr.f32.gmra.mrb[0].mxu0 %v7546
    %v9349 = vpop.f32.mrb[0].mxu0
    %v9350 = vadd.f32 %v9245, %v9349
    %v9351 = vpop.f32.mrb[0].mxu0
    %9352 = vmatprep.mubr.f32.mxu0 %v7559
    %9353 = vmatmul.mubr.f32.gmra.mrb[0].mxu0 %v7558
    %v9354 = vpop.f32.mrb[0].mxu0
    %v9355 = vadd.f32 %v9250, %v9354
    %v9356 = vpop.f32.mrb[0].mxu0
    %9357 = vdwg.mxu0
    %9358 = vmatprep.subr.mxu0 0.0
    %9359 = vmatpush1.msra.mxu0 %v8044
    %9360 = vmatprep.subr.mxu0 0.0
    %9361 = vmatpush1.msra.mxu0 %v8047
    %9362 = vmatprep.subr.mxu0 0.0
    %9363 = vmatpush1.msra.mxu0 %v8050
    %9364 = vmatprep.subr.mxu0 0.0
    %9365 = vmatpush1.msra.mxu0 %v8053
    %9366 = vmatprep.subr.mxu0 0.0
    %9367 = vmatpush1.msra.mxu0 %v8056
    %9368 = vmatprep.subr.mxu0 0.0
    %9369 = vmatpush1.msra.mxu0 %v8059
    %9370 = vmatprep.subr.mxu0 0.0
    %9371 = vmatpush1.msra.mxu0 %v8062
    %9372 = vmatprep.subr.mxu0 0.0
    %9373 = vmatpush1.msra.mxu0 %v8065
    %9374 = vmatprep.subr.mxu0 0.0
    %9375 = vmatpush1.msra.mxu0 %v8068
    %9376 = vmatprep.subr.mxu0 0.0
    %9377 = vmatpush1.msra.mxu0 %v8071
    %9378 = vmatprep.subr.mxu0 0.0
    %9379 = vmatpush1.msra.mxu0 %v8074
    %9380 = vmatprep.subr.mxu0 0.0
    %9381 = vmatpush1.msra.mxu0 %v8077
    %9382 = vmatprep.subr.mxu0 0.0
    %9383 = vmatpush1.msra.mxu0 %v8080
    %9384 = vmatprep.subr.mxu0 0.0
    %9385 = vmatpush1.msra.mxu0 %v8083
    %9386 = vmatprep.subr.mxu0 0.0
    %9387 = vmatpush1.msra.mxu0 %v8086
    %9388 = vmatprep.subr.mxu0 0.0
    %9389 = vmatpush1.msra.mxu0 %v8089
    %9390 = vmatprep.subr.mxu0 0.0
    %9391 = vmatpush1.msra.mxu0 %v8092
    %9392 = vmatprep.subr.mxu0 0.0
    %9393 = vmatpush1.msra.mxu0 %v8095
    %9394 = vmatprep.subr.mxu0 0.0
    %9395 = vmatpush1.msra.mxu0 %v8098
    %9396 = vmatprep.subr.mxu0 0.0
    %9397 = vmatpush1.msra.mxu0 %v8101
    %9398 = vmatprep.subr.mxu0 0.0
    %9399 = vmatpush1.msra.mxu0 %v8104
    %9400 = vmatprep.subr.mxu0 0.0
    %9401 = vmatpush1.msra.mxu0 %v8107
    %9402 = vmatprep.subr.mxu0 0.0
    %9403 = vmatpush1.msra.mxu0 %v8110
    %9404 = vmatprep.subr.mxu0 0.0
    %9405 = vmatpush1.msra.mxu0 %v8113
    %9406 = vmatprep.subr.mxu0 0.0
    %9407 = vmatpush1.msra.mxu0 %v8116
    %9408 = vmatprep.subr.mxu0 0.0
    %9409 = vmatpush1.msra.mxu0 %v8119
    %9410 = vmatprep.subr.mxu0 0.0
    %9411 = vmatpush1.msra.mxu0 %v8122
    %9412 = vmatprep.subr.mxu0 0.0
    %9413 = vmatpush1.msra.mxu0 %v8125
    %9414 = vmatprep.subr.mxu0 0.0
    %9415 = vmatpush1.msra.mxu0 %v8128
    %9416 = vmatprep.subr.mxu0 0.0
    %9417 = vmatpush1.msra.mxu0 %v8131
    %9418 = vmatprep.subr.mxu0 0.0
    %9419 = vmatpush1.msra.mxu0 %v8134
    %9420 = vmatprep.subr.mxu0 0.0
    %9421 = vmatpush1.msra.mxu0 %v8137
    %9422 = vmatprep.mubr.f32.mxu0 %v7477
    %9423 = vmatmul.mubr.f32.gmra.mrb[0].mxu0 %v7476
    %v9424 = vpop.f32.mrb[0].mxu0
    %v9425 = vadd.f32 %v9320, %v9424
    %v9426 = vpop.f32.mrb[0].mxu0
    %9427 = vmatprep.mubr.f32.mxu0 %v7489
    %9428 = vmatmul.mubr.f32.gmra.mrb[0].mxu0 %v7488
    %v9429 = vpop.f32.mrb[0].mxu0
    %v9430 = vadd.f32 %v9325, %v9429
    %v9431 = vpop.f32.mrb[0].mxu0
    %9432 = vmatprep.mubr.f32.mxu0 %v7501
    %9433 = vmatmul.mubr.f32.gmra.mrb[0].mxu0 %v7500
    %v9434 = vpop.f32.mrb[0].mxu0
    %v9435 = vadd.f32 %v9330, %v9434
    %v9436 = vpop.f32.mrb[0].mxu0
    %9437 = vmatprep.mubr.f32.mxu0 %v7513
    %9438 = vmatmul.mubr.f32.gmra.mrb[0].mxu0 %v7512
    %v9439 = vpop.f32.mrb[0].mxu0
    %v9440 = vadd.f32 %v9335, %v9439
    %v9441 = vpop.f32.mrb[0].mxu0
    %9442 = vmatprep.mubr.f32.mxu0 %v7525
    %9443 = vmatmul.mubr.f32.gmra.mrb[0].mxu0 %v7524
    %v9444 = vpop.f32.mrb[0].mxu0
    %v9445 = vadd.f32 %v9340, %v9444
    %v9446 = vpop.f32.mrb[0].mxu0
    %9447 = vmatprep.mubr.f32.mxu0 %v7537
    %9448 = vmatmul.mubr.f32.gmra.mrb[0].mxu0 %v7536
    %v9449 = vpop.f32.mrb[0].mxu0
    %v9450 = vadd.f32 %v9345, %v9449
    %v9451 = vpop.f32.mrb[0].mxu0
    %9452 = vmatprep.mubr.f32.mxu0 %v7549
    %9453 = vmatmul.mubr.f32.gmra.mrb[0].mxu0 %v7548
    %v9454 = vpop.f32.mrb[0].mxu0
    %v9455 = vadd.f32 %v9350, %v9454
    %v9456 = vpop.f32.mrb[0].mxu0
    %9457 = vmatprep.mubr.f32.mxu0 %v7561
    %9458 = vmatmul.mubr.f32.gmra.mrb[0].mxu0 %v7560
    %v9459 = vpop.f32.mrb[0].mxu0
    %v9460 = vadd.f32 %v9355, %v9459
    %v9461 = vpop.f32.mrb[0].mxu0
    %9462 = vdwg.mxu0
    %v9463 = vadd.f32 %v5446, %v8787
    %v9464 = vadd.f32 %v5447, %v8789
    %v9465 = vadd.f32 %v5448, %v9425
    %v9466 = vadd.f32 %v5449, %v8793
    %v9467 = vadd.f32 %v5450, %v8795
    %v9468 = vadd.f32 %v5451, %v9430
    %v9469 = vadd.f32 %v5452, %v8799
    %v9470 = vadd.f32 %v5453, %v8801
    %v9471 = vadd.f32 %v5454, %v9435
    %v9472 = vadd.f32 %v5455, %v8805
    %v9473 = vadd.f32 %v5456, %v8807
    %v9474 = vadd.f32 %v5457, %v9440
    %v9475 = vadd.f32 %v5458, %v8811
    %v9476 = vadd.f32 %v5459, %v8813
    %v9477 = vadd.f32 %v5460, %v9445
    %v9478 = vadd.f32 %v5461, %v8817
    %v9479 = vadd.f32 %v5462, %v8819
    %v9480 = vadd.f32 %v5463, %v9450
    %v9481 = vadd.f32 %v5464, %v8823
    %v9482 = vadd.f32 %v5465, %v8825
    %v9483 = vadd.f32 %v5466, %v9455
    %v9484 = vadd.f32 %v5467, %v8829
    %v9485 = vadd.f32 %v5468, %v8831
    %v9486 = vadd.f32 %v5469, %v9460
    %v9487 = vld [vmem:[#allocation19] sm:$0x7]
    %v9488 = vld [vmem:[#allocation20] sm:$0x7]
    %v9489 = vadd.f32 %v9463, %v9464
    %v9490 = vadd.f32 %v9489, %v9465
    %9491 = vadd.xlane.f32.xlu0 %v9490
    %v9492 = vpop.xlane.xlu0 %9491
    %v9493 = vadd.f32 %v9466, %v9467
    %v9494 = vadd.f32 %v9493, %v9468
    %9495 = vadd.xlane.f32.xlu0 %v9494
    %v9496 = vpop.xlane.xlu0 %9495
    %v9497 = vadd.f32 %v9469, %v9470
    %v9498 = vadd.f32 %v9497, %v9471
    %9499 = vadd.xlane.f32.xlu0 %v9498
    %v9500 = vpop.xlane.xlu0 %9499
    %v9501 = vadd.f32 %v9472, %v9473
    %v9502 = vadd.f32 %v9501, %v9474
    %9503 = vadd.xlane.f32.xlu0 %v9502
    %v9504 = vpop.xlane.xlu0 %9503
    %v9505 = vadd.f32 %v9475, %v9476
    %v9506 = vadd.f32 %v9505, %v9477
    %9507 = vadd.xlane.f32.xlu0 %v9506
    %v9508 = vpop.xlane.xlu0 %9507
    %v9509 = vadd.f32 %v9478, %v9479
    %v9510 = vadd.f32 %v9509, %v9480
    %9511 = vadd.xlane.f32.xlu0 %v9510
    %v9512 = vpop.xlane.xlu0 %9511
    %v9513 = vadd.f32 %v9481, %v9482
    %v9514 = vadd.f32 %v9513, %v9483
    %9515 = vadd.xlane.f32.xlu0 %v9514
    %v9516 = vpop.xlane.xlu0 %9515
    %v9517 = vadd.f32 %v9484, %v9485
    %v9518 = vadd.f32 %v9517, %v9486
    %9519 = vadd.xlane.f32.xlu0 %v9518
    %v9520 = vpop.xlane.xlu0 %9519
    %v9521 = vmul.f32 %v9492, %v5253
    %v9522 = vmul.f32 %v9496, %v5253
    %v9523 = vmul.f32 %v9500, %v5253
    %v9524 = vmul.f32 %v9504, %v5253
    %v9525 = vmul.f32 %v9508, %v5253
    %v9526 = vmul.f32 %v9512, %v5253
    %v9527 = vmul.f32 %v9516, %v5253
    %v9528 = vmul.f32 %v9520, %v5253
    %v9529 = vsub.f32 %v9463, %v9521
    %v9530 = vsub.f32 %v9464, %v9521
    %v9531 = vsub.f32 %v9465, %v9521
    %v9532 = vsub.f32 %v9466, %v9522
    %v9533 = vsub.f32 %v9467, %v9522
    %v9534 = vsub.f32 %v9468, %v9522
    %v9535 = vsub.f32 %v9469, %v9523
    %v9536 = vsub.f32 %v9470, %v9523
    %v9537 = vsub.f32 %v9471, %v9523
    %v9538 = vsub.f32 %v9472, %v9524
    %v9539 = vsub.f32 %v9473, %v9524
    %v9540 = vsub.f32 %v9474, %v9524
    %v9541 = vsub.f32 %v9475, %v9525
    %v9542 = vsub.f32 %v9476, %v9525
    %v9543 = vsub.f32 %v9477, %v9525
    %v9544 = vsub.f32 %v9478, %v9526
    %v9545 = vsub.f32 %v9479, %v9526
    %v9546 = vsub.f32 %v9480, %v9526
    %v9547 = vsub.f32 %v9481, %v9527
    %v9548 = vsub.f32 %v9482, %v9527
    %v9549 = vsub.f32 %v9483, %v9527
    %v9550 = vsub.f32 %v9484, %v9528
    %v9551 = vsub.f32 %v9485, %v9528
    %v9552 = vsub.f32 %v9486, %v9528
    %v9553 = vmul.f32 %v9529, %v9529
    %v9554 = vmul.f32 %v9530, %v9530
    %v9555 = vmul.f32 %v9531, %v9531
    %v9556 = vmul.f32 %v9532, %v9532
    %v9557 = vmul.f32 %v9533, %v9533
    %v9558 = vmul.f32 %v9534, %v9534
    %v9559 = vmul.f32 %v9535, %v9535
    %v9560 = vmul.f32 %v9536, %v9536
    %v9561 = vmul.f32 %v9537, %v9537
    %v9562 = vmul.f32 %v9538, %v9538
    %v9563 = vmul.f32 %v9539, %v9539
    %v9564 = vmul.f32 %v9540, %v9540
    %v9565 = vmul.f32 %v9541, %v9541
    %v9566 = vmul.f32 %v9542, %v9542
    %v9567 = vmul.f32 %v9543, %v9543
    %v9568 = vmul.f32 %v9544, %v9544
    %v9569 = vmul.f32 %v9545, %v9545
    %v9570 = vmul.f32 %v9546, %v9546
    %v9571 = vmul.f32 %v9547, %v9547
    %v9572 = vmul.f32 %v9548, %v9548
    %v9573 = vmul.f32 %v9549, %v9549
    %v9574 = vmul.f32 %v9550, %v9550
    %v9575 = vmul.f32 %v9551, %v9551
    %v9576 = vmul.f32 %v9552, %v9552
    %v9577 = vadd.f32 %v9553, %v9554
    %v9578 = vadd.f32 %v9577, %v9555
    %9579 = vadd.xlane.f32.xlu0 %v9578
    %v9580 = vpop.xlane.xlu0 %9579
    %v9581 = vadd.f32 %v9556, %v9557
    %v9582 = vadd.f32 %v9581, %v9558
    %9583 = vadd.xlane.f32.xlu0 %v9582
    %v9584 = vpop.xlane.xlu0 %9583
    %v9585 = vadd.f32 %v9559, %v9560
    %v9586 = vadd.f32 %v9585, %v9561
    %9587 = vadd.xlane.f32.xlu0 %v9586
    %v9588 = vpop.xlane.xlu0 %9587
    %v9589 = vadd.f32 %v9562, %v9563
    %v9590 = vadd.f32 %v9589, %v9564
    %9591 = vadd.xlane.f32.xlu0 %v9590
    %v9592 = vpop.xlane.xlu0 %9591
    %v9593 = vadd.f32 %v9565, %v9566
    %v9594 = vadd.f32 %v9593, %v9567
    %9595 = vadd.xlane.f32.xlu0 %v9594
    %v9596 = vpop.xlane.xlu0 %9595
    %v9597 = vadd.f32 %v9568, %v9569
    %v9598 = vadd.f32 %v9597, %v9570
    %9599 = vadd.xlane.f32.xlu0 %v9598
    %v9600 = vpop.xlane.xlu0 %9599
    %v9601 = vadd.f32 %v9571, %v9572
    %v9602 = vadd.f32 %v9601, %v9573
    %9603 = vadd.xlane.f32.xlu0 %v9602
    %v9604 = vpop.xlane.xlu0 %9603
    %v9605 = vadd.f32 %v9574, %v9575
    %v9606 = vadd.f32 %v9605, %v9576
    %9607 = vadd.xlane.f32.xlu0 %v9606
    %v9608 = vpop.xlane.xlu0 %9607
    %v9609 = vmul.f32 %v9580, %v5253
    %v9610 = vmul.f32 %v9584, %v5253
    %v9611 = vmul.f32 %v9588, %v5253
    %v9612 = vmul.f32 %v9592, %v5253
    %v9613 = vmul.f32 %v9596, %v5253
    %v9614 = vmul.f32 %v9600, %v5253
    %v9615 = vmul.f32 %v9604, %v5253
    %v9616 = vmul.f32 %v9608, %v5253
    %v9617 = vadd.f32 %v9609, 1e-05
    %v9618 = vadd.f32 %v9610, 1e-05
    %v9619 = vadd.f32 %v9611, 1e-05
    %v9620 = vadd.f32 %v9612, 1e-05
    %v9621 = vadd.f32 %v9613, 1e-05
    %v9622 = vadd.f32 %v9614, 1e-05
    %v9623 = vadd.f32 %v9615, 1e-05
    %v9624 = vadd.f32 %v9616, 1e-05
    %v9625 = vrsqrt.pop %v9617
    %v9626 = vrsqrt.pop %v9618
    %v9627 = vrsqrt.pop %v9619
    %v9628 = vrsqrt.pop %v9620
    %v9629 = vrsqrt.pop %v9621
    %v9630 = vrsqrt.pop %v9622
    %v9631 = vrsqrt.pop %v9623
    %v9632 = vrsqrt.pop %v9624
    %v9633 = vmul.f32 %v9529, %v9625
    %v9634 = vmul.f32 %v9530, %v9625
    %v9635 = vmul.f32 %v9531, %v9625
    %v9636 = vmul.f32 %v9532, %v9626
    %v9637 = vmul.f32 %v9533, %v9626
    %v9638 = vmul.f32 %v9534, %v9626
    %v9639 = vmul.f32 %v9535, %v9627
    %v9640 = vmul.f32 %v9536, %v9627
    %v9641 = vmul.f32 %v9537, %v9627
    %v9642 = vmul.f32 %v9538, %v9628
    %v9643 = vmul.f32 %v9539, %v9628
    %v9644 = vmul.f32 %v9540, %v9628
    %v9645 = vmul.f32 %v9541, %v9629
    %v9646 = vmul.f32 %v9542, %v9629
    %v9647 = vmul.f32 %v9543, %v9629
    %v9648 = vmul.f32 %v9544, %v9630
    %v9649 = vmul.f32 %v9545, %v9630
    %v9650 = vmul.f32 %v9546, %v9630
    %v9651 = vmul.f32 %v9547, %v9631
    %v9652 = vmul.f32 %v9548, %v9631
    %v9653 = vmul.f32 %v9549, %v9631
    %v9654 = vmul.f32 %v9550, %v9632
    %v9655 = vmul.f32 %v9551, %v9632
    %v9656 = vmul.f32 %v9552, %v9632
    %v9658 = vlaneseq
    %v9659 = vshrl.u32 %v9658, 7
    %v9660 = vsub.s32 0, %v9659
    %v9661 = vrot.slane %v9487, %v9660
    %v9662 = vlaneseq
    %v9663 = vshrl.u32 %v9662, 7
    %v9664 = vsub.s32 1, %v9663
    %v9665 = vrot.slane %v9487, %v9664
    %v9666 = vlaneseq
    %v9667 = vshrl.u32 %v9666, 7
    %v9668 = vsub.s32 2, %v9667
    %v9669 = vrot.slane %v9487, %v9668
    %v9673 = vmul.f32 %v9633, %v9661
    %v9674 = vmul.f32 %v9634, %v9665
    %v9675 = vmul.f32 %v9635, %v9669
    %v9676 = vmul.f32 %v9636, %v9661
    %v9677 = vmul.f32 %v9637, %v9665
    %v9678 = vmul.f32 %v9638, %v9669
    %v9679 = vmul.f32 %v9639, %v9661
    %v9680 = vmul.f32 %v9640, %v9665
    %v9681 = vmul.f32 %v9641, %v9669
    %v9682 = vmul.f32 %v9642, %v9661
    %v9683 = vmul.f32 %v9643, %v9665
    %v9684 = vmul.f32 %v9644, %v9669
    %v9685 = vmul.f32 %v9645, %v9661
    %v9686 = vmul.f32 %v9646, %v9665
    %v9687 = vmul.f32 %v9647, %v9669
    %v9688 = vmul.f32 %v9648, %v9661
    %v9689 = vmul.f32 %v9649, %v9665
    %v9690 = vmul.f32 %v9650, %v9669
    %v9691 = vmul.f32 %v9651, %v9661
    %v9692 = vmul.f32 %v9652, %v9665
    %v9693 = vmul.f32 %v9653, %v9669
    %v9694 = vmul.f32 %v9654, %v9661
    %v9695 = vmul.f32 %v9655, %v9665
    %v9696 = vmul.f32 %v9656, %v9669
    %v9698 = vlaneseq
    %v9699 = vshrl.u32 %v9698, 7
    %v9700 = vsub.s32 0, %v9699
    %v9701 = vrot.slane %v9488, %v9700
    %v9702 = vlaneseq
    %v9703 = vshrl.u32 %v9702, 7
    %v9704 = vsub.s32 1, %v9703
    %v9705 = vrot.slane %v9488, %v9704
    %v9706 = vlaneseq
    %v9707 = vshrl.u32 %v9706, 7
    %v9708 = vsub.s32 2, %v9707
    %v9709 = vrot.slane %v9488, %v9708
    %v9713 = vadd.f32 %v9673, %v9701
    %v9714 = vadd.f32 %v9674, %v9705
    %v9715 = vadd.f32 %v9675, %v9709
    %v9716 = vadd.f32 %v9676, %v9701
    %v9717 = vadd.f32 %v9677, %v9705
    %v9718 = vadd.f32 %v9678, %v9709
    %v9719 = vadd.f32 %v9679, %v9701
    %v9720 = vadd.f32 %v9680, %v9705
    %v9721 = vadd.f32 %v9681, %v9709
    %v9722 = vadd.f32 %v9682, %v9701
    %v9723 = vadd.f32 %v9683, %v9705
    %v9724 = vadd.f32 %v9684, %v9709
    %v9725 = vadd.f32 %v9685, %v9701
    %v9726 = vadd.f32 %v9686, %v9705
    %v9727 = vadd.f32 %v9687, %v9709
    %v9728 = vadd.f32 %v9688, %v9701
    %v9729 = vadd.f32 %v9689, %v9705
    %v9730 = vadd.f32 %v9690, %v9709
    %v9731 = vadd.f32 %v9691, %v9701
    %v9732 = vadd.f32 %v9692, %v9705
    %v9733 = vadd.f32 %v9693, %v9709
    %v9734 = vadd.f32 %v9694, %v9701
    %v9735 = vadd.f32 %v9695, %v9705
    %v9736 = vadd.f32 %v9696, %v9709
    %9737 = vst [vmem:[#allocation22] sm:$0xff] %v9713
    %9738 = vst [vmem:[#allocation22 + $0x8] sm:$0xff] %v9714
    %9739 = vst [vmem:[#allocation22 + $0x10] sm:$0xff] %v9715
    %9740 = vst [vmem:[#allocation22 + $0x18] sm:$0xff] %v9716
    %9741 = vst [vmem:[#allocation22 + $0x20] sm:$0xff] %v9717
    %9742 = vst [vmem:[#allocation22 + $0x28] sm:$0xff] %v9718
    %9743 = vst [vmem:[#allocation22 + $0x30] sm:$0xff] %v9719
    %9744 = vst [vmem:[#allocation22 + $0x38] sm:$0xff] %v9720
    %9745 = vst [vmem:[#allocation22 + $0x40] sm:$0xff] %v9721
    %9746 = vst [vmem:[#allocation22 + $0x48] sm:$0xff] %v9722
    %9747 = vst [vmem:[#allocation22 + $0x50] sm:$0xff] %v9723
    %9748 = vst [vmem:[#allocation22 + $0x58] sm:$0xff] %v9724
    %9749 = vst [vmem:[#allocation22 + $0x60] sm:$0xff] %v9725
    %9750 = vst [vmem:[#allocation22 + $0x68] sm:$0xff] %v9726
    %9751 = vst [vmem:[#allocation22 + $0x70] sm:$0xff] %v9727
    %9752 = vst [vmem:[#allocation22 + $0x78] sm:$0xff] %v9728
    %9753 = vst [vmem:[#allocation22 + $0x80] sm:$0xff] %v9729
    %9754 = vst [vmem:[#allocation22 + $0x88] sm:$0xff] %v9730
    %9755 = vst [vmem:[#allocation22 + $0x90] sm:$0xff] %v9731
    %9756 = vst [vmem:[#allocation22 + $0x98] sm:$0xff] %v9732
    %9757 = vst [vmem:[#allocation22 + $0xa0] sm:$0xff] %v9733
    %9758 = vst [vmem:[#allocation22 + $0xa8] sm:$0xff] %v9734
    %9759 = vst [vmem:[#allocation22 + $0xb0] sm:$0xff] %v9735
    %9760 = vst [vmem:[#allocation22 + $0xb8] sm:$0xff] %v9736
    // Predicated region
    $region98: #{tpu_custom_call.1} parent=1 // pred_check
      _
    $region99: #{tpu_custom_call.1} parent=1 // pred_check_branch
      %9762 = sbr.rel (0) target = $region101
    $region100: #{tpu_custom_call.1} parent=1 // pred_region
      %s9764 = ssub.s32 3072, 3072
      %9765 = vsyncadd [#allocation4], %s9764
      %s9766 = sshll.u32 [#allocation22], 4
      %s9767 = int_to_ptr.vmem [resolvable:$true] %s9766
      %9772 = dma.vmem_to_hbm [thread:$0]  %s9767, 3072, %s12, [#allocation4], 384, 384, 24
    $region101: #{tpu_custom_call.1} parent=1 // pred_fallthru
      _
    // Predicated region
    $region102: #{tpu_custom_call.1} parent=1 // pred_check
      _
    $region103: #{tpu_custom_call.1} parent=1 // pred_check_branch
      %9774 = sbr.rel (0) target = $region105
    $region104: #{tpu_custom_call.1} parent=1 // pred_region
      %9775 = dma.done [#allocation4], 3072
    $region105: #{tpu_custom_call.1} parent=1 // pred_fallthru
      _
    %9776 = vsyncpa [#allocation3], 1
    %9777 = vsyncpa [#allocation6], 1
    %9778 = vsyncpa [#allocation9], 1
    %9779 = vsyncpa [#allocation12], 1
    %9780 = vsyncpa [#allocation15], 1
    %9781 = vsyncpa [#allocation18], 1
    %9782 = vsyncpa [#allocation21], 1
    %9783 = vsyncpa [#allocation4], 1

</llo_original>
